<compile_context>
chip_gen: v7x
topology: tpu7x:2x2x1
jax: 0.10.0
libtpu: 0.0.40
codegen_flags: <defaults>
</compile_context>

<pallas_src>
import functools

import numpy as np
import jax
import jax.numpy as jnp
from jax.experimental import pallas as pl
from jax.experimental.pallas import tpu as pltpu


# ----------------------------- helpers -----------------------------

def _cparams(n_grid_axes):
    # "parallel" lets v7x shard the batch grid across its 2 TensorCores;
    # harmless on v5e/v6e.  32 MiB scoped VMEM is safe on all generations.
    return pltpu.CompilerParams(
        dimension_semantics=("parallel",) * n_grid_axes,
        vmem_limit_bytes=32 * 1024 * 1024)


def _const_spec(arr):
    """Full-array BlockSpec with a constant index map (resident across grid)."""
    shape = tuple(arr.shape)
    nd = len(shape)
    return pl.BlockSpec(shape, lambda *_: (0,) * nd)


def _tap_select(H, W, stride):
    """0/1 selection matrices for a 3x3 / pad-1 window: shape (9, Ho*Wo, H*W).

    S[k, o, p] == 1 iff input position p is read by tap k of output o.
    Out-of-bounds (padded) taps have all-zero rows, i.e. they contribute 0.
    """
    Ho = (H + 2 - 3) // stride + 1
    Wo = (W + 2 - 3) // stride + 1
    S = np.zeros((9, Ho * Wo, H * W), np.float32)
    k = 0
    for kh in range(3):
        for kw in range(3):
            for i in range(Ho):
                for j in range(Wo):
                    r = i * stride + kh - 1
                    c = j * stride + kw - 1
                    if 0 <= r < H and 0 <= c < W:
                        S[k, i * Wo + j, r * W + c] = 1.0
            k += 1
    return S


# ----------------------------- Pallas kernels -----------------------------

def _stem_kernel(cols_ref, wc_ref, bc_ref, sp_ref, o_ref):
    # conv1 (im2col matmul, BN scale folded into wc) + bias + ReLU,
    # then 3x3/s2/pad1 max-pool as 9 exact 0/1 gather-matmuls + elementwise max
    # (0-padding is correct because h >= 0 after ReLU).
    h = jnp.dot(cols_ref[0], wc_ref[...], preferred_element_type=jnp.float32)
    h = jnp.maximum(h + bc_ref[...], 0.0).astype(jnp.bfloat16)      # (Hc*Wc, C)
    m = None
    for k in range(9):
        g = jnp.dot(sp_ref[k], h, preferred_element_type=jnp.float32)
        m = g if m is None else jnp.maximum(m, g)
    o_ref[0] = m.astype(o_ref.dtype)


def _unit_s1_kernel(x_ref, w1_ref, b1_ref, s_ref, wd_ref, bd_ref,
                    w2_ref, b2_ref, o_ref):
    # Fused stride-1 ShuffleNet unit for one batch element.
    x = x_ref[0]                                                    # (M, C) bf16
    y = jnp.dot(x, w1_ref[...], preferred_element_type=jnp.float32)
    y = jnp.maximum(y + b1_ref[...], 0.0).astype(jnp.bfloat16)      # (M, mid)
    # depthwise 3x3 / s1: exact spatial gathers (MXU) + per-channel tap weights
    acc = None
    for k in range(9):
        g = jnp.dot(s_ref[k], y, preferred_element_type=jnp.float32)
        t = g * wd_ref[k]
        acc = t if acc is None else acc + t
    d = (acc + bd_ref[...]).astype(jnp.bfloat16)                    # (M, mid)
    z = jnp.dot(d, w2_ref[...], preferred_element_type=jnp.float32) + b2_ref[...]
    o_ref[0] = jnp.maximum(z + x.astype(jnp.float32), 0.0).astype(o_ref.dtype)


def _unit_s2_kernel(x_ref, w1_ref, b1_ref, s_ref, wd_ref, bd_ref,
                    w2_ref, b2_ref, p_ref, e1_ref, o_ref):
    # Fused stride-2 ShuffleNet unit for one batch element.
    x = x_ref[0]                                                    # (Min, Cin) bf16
    y = jnp.dot(x, w1_ref[...], preferred_element_type=jnp.float32)
    y = jnp.maximum(y + b1_ref[...], 0.0).astype(jnp.bfloat16)      # (Min, mid)
    # depthwise 3x3 / s2 via stride-2 selection matrices
    acc = None
    for k in range(9):
        g = jnp.dot(s_ref[k], y, preferred_element_type=jnp.float32)  # (Mout, mid)
        t = g * wd_ref[k]
        acc = t if acc is None else acc + t
    d = (acc + bd_ref[...]).astype(jnp.bfloat16)                    # (Mout, mid)
    # w2/b2 are zero-padded on the left Cin columns -> the branch already sits
    # in the right columns and the shortcut columns are exactly zero.
    z = jnp.dot(d, w2_ref[...], preferred_element_type=jnp.float32) + b2_ref[...]
    # 3x3/s2/pad1 avg-pool shortcut (count_include_pad=True -> /9), placed into
    # the left columns via an exact 0/1 embedding matmul -> one lane-dense
    # full-width store, no concatenate / partial stores.
    sc = (jnp.dot(p_ref[...], x, preferred_element_type=jnp.float32)
          * (1.0 / 9.0)).astype(jnp.bfloat16)                       # (Mout, Cin)
    z = z + jnp.dot(sc, e1_ref[...], preferred_element_type=jnp.float32)
    # unit inputs are post-ReLU >= 0, so ReLU on the shortcut columns is identity
    o_ref[0] = jnp.maximum(z, 0.0).astype(o_ref.dtype)


def _heads_kernel(f_ref, wl_ref, wc_ref, lab_ref, clo_ref):
    # Both FC heads fused: one read of the feature slab, two matmuls.
    f = f_ref[...]                                                  # (B, C) bf16
    lab_ref[...] = jnp.dot(f, wl_ref[...], preferred_element_type=jnp.float32)
    clo_ref[...] = jnp.maximum(
        jnp.dot(f, wc_ref[...], preferred_element_type=jnp.float32), 0.0)


# --------------------------- pallas_call wrappers --------------------------

def stem_call(cols, wc, bc, sp):
    B, M, K = cols.shape
    Mo = sp.shape[1]
    N = wc.shape[1]
    return pl.pallas_call(
        _stem_kernel,
        grid=(B,),
        out_shape=jax.ShapeDtypeStruct((B, Mo, N), jnp.bfloat16),
        in_specs=[pl.BlockSpec((1, M, K), lambda b: (b, 0, 0)),
                  _const_spec(wc), _const_spec(bc), _const_spec(sp)],
        out_specs=pl.BlockSpec((1, Mo, N), lambda b: (b, 0, 0)),
        compiler_params=_cparams(1),
    )(cols, wc, bc, sp)


def unit_s1_call(x, p):
    B, M, C = x.shape
    return pl.pallas_call(
        _unit_s1_kernel,
        grid=(B,),
        out_shape=jax.ShapeDtypeStruct((B, M, C), jnp.bfloat16),
        in_specs=[pl.BlockSpec((1, M, C), lambda b: (b, 0, 0)),
                  _const_spec(p["w1"]), _const_spec(p["b1"]),
                  _const_spec(p["S"]), _const_spec(p["wd"]),
                  _const_spec(p["bd"]), _const_spec(p["w2"]),
                  _const_spec(p["b2"])],
        out_specs=pl.BlockSpec((1, M, C), lambda b: (b, 0, 0)),
        compiler_params=_cparams(1),
    )(x, p["w1"], p["b1"], p["S"], p["wd"], p["bd"], p["w2"], p["b2"])


def unit_s2_call(x, p):
    B, M, C = x.shape
    Mo = p["S"].shape[1]
    Ct = p["w2"].shape[1]
    return pl.pallas_call(
        _unit_s2_kernel,
        grid=(B,),
        out_shape=jax.ShapeDtypeStruct((B, Mo, Ct), jnp.bfloat16),
        in_specs=[pl.BlockSpec((1, M, C), lambda b: (b, 0, 0)),
                  _const_spec(p["w1"]), _const_spec(p["b1"]),
                  _const_spec(p["S"]), _const_spec(p["wd"]),
                  _const_spec(p["bd"]), _const_spec(p["w2"]),
                  _const_spec(p["b2"]), _const_spec(p["P"]),
                  _const_spec(p["E1"])],
        out_specs=pl.BlockSpec((1, Mo, Ct), lambda b: (b, 0, 0)),
        compiler_params=_cparams(1),
    )(x, p["w1"], p["b1"], p["S"], p["wd"], p["bd"], p["w2"], p["b2"],
      p["P"], p["E1"])


def heads_call(feat, fc_w, closs_w):
    B, _ = feat.shape
    ncls = fc_w.shape[1]
    ncl = closs_w.shape[1]
    return pl.pallas_call(
        _heads_kernel,
        grid=(1,),
        out_shape=(jax.ShapeDtypeStruct((B, ncls), jnp.float32),
                   jax.ShapeDtypeStruct((B, ncl), jnp.float32)),
        in_specs=[_const_spec(feat), _const_spec(fc_w), _const_spec(closs_w)],
        out_specs=(pl.BlockSpec((B, ncls), lambda i: (0, 0)),
                   pl.BlockSpec((B, ncl), lambda i: (0, 0))),
        compiler_params=_cparams(1),
    )(feat, fc_w, closs_w)


# ------------------------------ forward ---------------------------------

def shufflenet_forward(x_nchw, params, config):
    # TODO(synk): nn.Dropout2d(p=0.5) is identity at inference.
    x = jnp.transpose(x_nchw, (0, 2, 3, 1)).astype(jnp.float32)     # NCHW -> NHWC
    B, H, W, Cin = x.shape
    Ho, Wo = H // 2, W // 2
    # conv1 im2col stays in JAX (one tiny fused XLA pass, runs once); the
    # tap-major column order matches the tap-major conv1 weight layout.
    xp = jnp.pad(x, ((0, 0), (1, 1), (1, 1), (0, 0)))
    taps = [xp[:, kh:kh + 2 * Ho - 1:2, kw:kw + 2 * Wo - 1:2, :]
            for kh in range(3) for kw in range(3)]
    cols = jnp.concatenate(taps, axis=-1).reshape(
        B, Ho * Wo, 9 * Cin).astype(jnp.bfloat16)

    out = stem_call(cols, params["conv1_w"], params["conv1_b"], params["pool_S"])

    for stage in ("stage2", "stage3", "stage4"):
        for p, stride in zip(params[stage], config[stage]):
            out = unit_s2_call(out, p) if stride == 2 else unit_s1_call(out, p)

    B2, M, C = out.shape
    # reference flattens NCHW; identical here because the final feature map is 1x1
    assert M == 1, "expected 1x1 final feature map"
    feat = out.reshape(B2, C)
    label_output, closs_output = heads_call(feat, params["fc_w"], params["closs_w"])
    return closs_output, label_output


# ------------------------------ init ---------------------------------

def _bn_init(key, c):
    k1, k2 = jax.random.split(key)
    scale = 1.0 + 0.05 * jax.random.normal(k1, (c,), jnp.float32)
    bias = 0.05 * jax.random.normal(k2, (c,), jnp.float32)
    return scale, bias


def _block_diag(wg):
    """(G, cin_g, cout_g) grouped 1x1 weights -> dense block-diagonal matrix."""
    G, ci, co = wg.shape
    rows = []
    for g in range(G):
        row = [jnp.zeros((ci, co), jnp.float32) for _ in range(G)]
        row[g] = wg[g]
        rows.append(jnp.concatenate(row, axis=1))
    return jnp.concatenate(rows, axis=0)


def init_unit(key, in_ch, out_ch, stride, groups, use_groups, H, W):
    bottleneck = out_ch // 4
    g1 = groups if use_groups else 1
    out2 = out_ch - in_ch if stride == 2 else out_ch
    ks = jax.random.split(key, 6)

    w1g = 0.2 * jax.random.normal(ks[0], (g1, in_ch // g1, bottleneck // g1),
                                  jnp.float32)
    s1, b1 = _bn_init(ks[1], bottleneck)
    wd = 0.2 * jax.random.normal(ks[2], (9, bottleneck), jnp.float32)
    sd, bd = _bn_init(ks[3], bottleneck)
    w2g = 0.2 * jax.random.normal(ks[4], (groups, bottleneck // groups,
                                          out2 // groups), jnp.float32)
    s2, b2 = _bn_init(ks[5], out2)

    # densify grouped 1x1 weights, fold BN scale into the weight columns, and
    # fold the channel shuffle into the first conv's output channels (static
    # permutation -> no runtime shuffle pass).
    w1 = _block_diag(w1g) * s1[None, :]
    perm = jnp.transpose(
        jnp.arange(bottleneck).reshape(groups, bottleneck // groups)).reshape(-1)
    w1 = jnp.take(w1, perm, axis=1)
    b1p = jnp.take(b1, perm)
    wdf = (wd * sd[None, :]).reshape(9, 1, bottleneck)   # BN scale folded dw taps
    w2 = _block_diag(w2g) * s2[None, :]

    p = {"w1": w1.astype(jnp.bfloat16),
         "b1": b1p.reshape(1, bottleneck),
         "S": jnp.asarray(_tap_select(H, W, stride), jnp.bfloat16),
         "wd": wdf,
         "bd": bd.reshape(1, bottleneck)}
    if stride == 1:
        p["w2"] = w2.astype(jnp.bfloat16)
        p["b2"] = b2.reshape(1, out2)
    else:
        ctot = in_ch + out2
        # zero-pad w2/b2 on the left Cin columns so the fused kernel emits the
        # [avgpool-shortcut, branch] concat as one lane-dense store.
        w2p = jnp.concatenate(
            [jnp.zeros((bottleneck, in_ch), jnp.float32), w2], axis=1)
        b2p = jnp.concatenate(
            [jnp.zeros((in_ch,), jnp.float32), b2]).reshape(1, ctot)
        p["w2"] = w2p.astype(jnp.bfloat16)
        p["b2"] = b2p
        # avg-pool shortcut: 0/1 tap-sum matrix (divide by 9 in-kernel, exact gathers)
        p["P"] = jnp.asarray(_tap_select(H, W, 2).sum(axis=0), jnp.bfloat16)
        # 0/1 column-embedding matrix placing Cin shortcut channels on the left
        e1 = np.zeros((in_ch, ctot), np.float32)
        e1[:, :in_ch] = np.eye(in_ch, dtype=np.float32)
        p["E1"] = jnp.asarray(e1, jnp.bfloat16)
    return p


def init_params(key, in_channels, out_channels, groups, repeats, num_class, in_hw):
    keys = jax.random.split(key, 8)
    params, config = {}, {}
    H = W = in_hw

    c1 = 0.2 * jax.random.normal(keys[0], (9 * in_channels, out_channels[1]),
                                 jnp.float32)
    s, b = _bn_init(keys[1], out_channels[1])
    params["conv1_w"] = (c1 * s[None, :]).astype(jnp.bfloat16)   # BN scale folded
    params["conv1_b"] = b.reshape(1, out_channels[1])
    H, W = H // 2, W // 2                       # conv1, stride 2
    params["pool_S"] = jnp.asarray(_tap_select(H, W, 2), jnp.bfloat16)
    H, W = H // 2, W // 2                       # maxpool, stride 2

    stage_keys = {2: keys[2], 3: keys[3], 4: keys[4]}
    for si in (2, 3, 4):
        stage = "stage%d" % si
        in_ch, out_ch = out_channels[si - 1], out_channels[si]
        units = [init_unit(jax.random.fold_in(stage_keys[si], 0),
                           in_ch, out_ch, 2, groups, False, H, W)]
        strides = [2]
        H, W = H // 2, W // 2
        for r in range(repeats[si]):
            units.append(init_unit(jax.random.fold_in(stage_keys[si], r + 1),
                                   out_ch, out_ch, 1, groups, True, H, W))
            strides.append(1)
        params[stage] = units
        config[stage] = strides

    params["fc_w"] = (0.2 * jax.random.normal(
        keys[5], (out_channels[4], num_class), jnp.float32)).astype(jnp.bfloat16)
    params["closs_w"] = (0.2 * jax.random.normal(
        keys[6], (out_channels[4], 1000), jnp.float32)).astype(jnp.bfloat16)
    return params, config


# ------------------------------ main ---------------------------------

if __name__ == "__main__":
    key = jax.random.PRNGKey(0)
    k_in, k_par = jax.random.split(key)

    # Small, architecture-consistent config: 5 stride-2 stages => 32x32 -> 1x1.
    in_channels = 3
    out_channels = [3, 8, 16, 32, 64]
    groups = 2
    repeats = [0, 0, 1, 1, 1]
    num_class = 10

    params, config = init_params(k_par, in_channels, out_channels, groups,
                                 repeats, num_class, in_hw=32)
    x = jax.random.normal(k_in, (2, in_channels, 32, 32), jnp.float32)  # NCHW

    fwd = jax.jit(functools.partial(shufflenet_forward, config=config))
    closs_output, label_output = fwd(x, params)
    jax.block_until_ready((closs_output, label_output))

    assert closs_output.shape == (2, 1000), closs_output.shape
    assert label_output.shape == (2, num_class), label_output.shape
    assert bool(jnp.all(closs_output >= 0.0))  # ReLU'd branch
    print("KERNEL_OK")
</pallas_src>

<mosaic_0001>
module attributes {stable_mosaic.version = 11 : i64} {
  func.func @_stem_kernel(%arg0: i32, %arg1: memref<1x256x27xbf16, #tpu.memory_space<vmem>>, %arg2: memref<27x8xbf16, #tpu.memory_space<vmem>>, %arg3: memref<1x8xf32, #tpu.memory_space<vmem>>, %arg4: memref<9x64x256xbf16, #tpu.memory_space<vmem>>, %arg5: memref<1x64x8xbf16, #tpu.memory_space<vmem>>) attributes {dimension_semantics = [#tpu.dimension_semantics<parallel>], iteration_bounds = array<i64: 2>, scalar_prefetch = 0 : i64, scratch_operands = 0 : i64, tpu.core_type = #tpu.core_type<tc>, window_params = [{transform_indices = @transform_0, window_bounds = array<i64: 1, 256, 27>}, {pipeline_mode = #tpu.pipeline_mode<synchronous>, transform_indices = @transform_1, window_bounds = array<i64: 27, 8>}, {pipeline_mode = #tpu.pipeline_mode<synchronous>, transform_indices = @transform_2, window_bounds = array<i64: 1, 8>}, {pipeline_mode = #tpu.pipeline_mode<synchronous>, transform_indices = @transform_3, window_bounds = array<i64: 9, 64, 256>}, {transform_indices = @transform_4, window_bounds = array<i64: 1, 64, 8>}]} {
    %c0 = arith.constant 0 : index
    %c0_0 = arith.constant 0 : index
    %c0_1 = arith.constant 0 : index
    %0 = vector.load %arg1[%c0, %c0_0, %c0_1] : memref<1x256x27xbf16, #tpu.memory_space<vmem>>, vector<1x256x27xbf16>
    %1 = vector.shape_cast %0 : vector<1x256x27xbf16> to vector<256x27xbf16>
    %c0_2 = arith.constant 0 : index
    %c0_3 = arith.constant 0 : index
    %2 = vector.load %arg2[%c0_2, %c0_3] : memref<27x8xbf16, #tpu.memory_space<vmem>>, vector<27x8xbf16>
    %cst = arith.constant dense<0.000000e+00> : vector<256x8xf32>
    %3 = tpu.matmul %1, %2, %cst {dimension_numbers = #tpu.dot_dimension_numbers<[1], [0], [0], [1], [0, 0, 1, 1], [], []>} : vector<256x27xbf16>, vector<27x8xbf16>, vector<256x8xf32> -> vector<256x8xf32>
    %c0_4 = arith.constant 0 : index
    %c0_5 = arith.constant 0 : index
    %4 = vector.load %arg3[%c0_4, %c0_5] : memref<1x8xf32, #tpu.memory_space<vmem>>, vector<1x8xf32>
    %5 = vector.broadcast %4 : vector<1x8xf32> to vector<256x8xf32>
    %6 = arith.addf %3, %5 : vector<256x8xf32>
    %cst_6 = arith.constant 0.000000e+00 : f32
    %7 = vector.broadcast %cst_6 : f32 to vector<256x8xf32>
    %8 = arith.maximumf %6, %7 : vector<256x8xf32>
    %9 = arith.truncf %8 : vector<256x8xf32> to vector<256x8xbf16>
    %c0_7 = arith.constant 0 : index
    %c0_8 = arith.constant 0 : index
    %c0_9 = arith.constant 0 : index
    %10 = vector.load %arg4[%c0_7, %c0_8, %c0_9] : memref<9x64x256xbf16, #tpu.memory_space<vmem>>, vector<1x64x256xbf16>
    %11 = vector.shape_cast %10 : vector<1x64x256xbf16> to vector<64x256xbf16>
    %cst_10 = arith.constant dense<0.000000e+00> : vector<64x8xf32>
    %12 = tpu.matmul %11, %9, %cst_10 {dimension_numbers = #tpu.dot_dimension_numbers<[1], [0], [0], [1], [0, 0, 1, 1], [], []>} : vector<64x256xbf16>, vector<256x8xbf16>, vector<64x8xf32> -> vector<64x8xf32>
    %c1 = arith.constant 1 : index
    %c0_11 = arith.constant 0 : index
    %c0_12 = arith.constant 0 : index
    %13 = vector.load %arg4[%c1, %c0_11, %c0_12] : memref<9x64x256xbf16, #tpu.memory_space<vmem>>, vector<1x64x256xbf16>
    %14 = vector.shape_cast %13 : vector<1x64x256xbf16> to vector<64x256xbf16>
    %cst_13 = arith.constant dense<0.000000e+00> : vector<64x8xf32>
    %15 = tpu.matmul %14, %9, %cst_13 {dimension_numbers = #tpu.dot_dimension_numbers<[1], [0], [0], [1], [0, 0, 1, 1], [], []>} : vector<64x256xbf16>, vector<256x8xbf16>, vector<64x8xf32> -> vector<64x8xf32>
    %16 = arith.maximumf %12, %15 : vector<64x8xf32>
    %c2 = arith.constant 2 : index
    %c0_14 = arith.constant 0 : index
    %c0_15 = arith.constant 0 : index
    %17 = vector.load %arg4[%c2, %c0_14, %c0_15] : memref<9x64x256xbf16, #tpu.memory_space<vmem>>, vector<1x64x256xbf16>
    %18 = vector.shape_cast %17 : vector<1x64x256xbf16> to vector<64x256xbf16>
    %cst_16 = arith.constant dense<0.000000e+00> : vector<64x8xf32>
    %19 = tpu.matmul %18, %9, %cst_16 {dimension_numbers = #tpu.dot_dimension_numbers<[1], [0], [0], [1], [0, 0, 1, 1], [], []>} : vector<64x256xbf16>, vector<256x8xbf16>, vector<64x8xf32> -> vector<64x8xf32>
    %20 = arith.maximumf %16, %19 : vector<64x8xf32>
    %c3 = arith.constant 3 : index
    %c0_17 = arith.constant 0 : index
    %c0_18 = arith.constant 0 : index
    %21 = vector.load %arg4[%c3, %c0_17, %c0_18] : memref<9x64x256xbf16, #tpu.memory_space<vmem>>, vector<1x64x256xbf16>
    %22 = vector.shape_cast %21 : vector<1x64x256xbf16> to vector<64x256xbf16>
    %cst_19 = arith.constant dense<0.000000e+00> : vector<64x8xf32>
    %23 = tpu.matmul %22, %9, %cst_19 {dimension_numbers = #tpu.dot_dimension_numbers<[1], [0], [0], [1], [0, 0, 1, 1], [], []>} : vector<64x256xbf16>, vector<256x8xbf16>, vector<64x8xf32> -> vector<64x8xf32>
    %24 = arith.maximumf %20, %23 : vector<64x8xf32>
    %c4 = arith.constant 4 : index
    %c0_20 = arith.constant 0 : index
    %c0_21 = arith.constant 0 : index
    %25 = vector.load %arg4[%c4, %c0_20, %c0_21] : memref<9x64x256xbf16, #tpu.memory_space<vmem>>, vector<1x64x256xbf16>
    %26 = vector.shape_cast %25 : vector<1x64x256xbf16> to vector<64x256xbf16>
    %cst_22 = arith.constant dense<0.000000e+00> : vector<64x8xf32>
    %27 = tpu.matmul %26, %9, %cst_22 {dimension_numbers = #tpu.dot_dimension_numbers<[1], [0], [0], [1], [0, 0, 1, 1], [], []>} : vector<64x256xbf16>, vector<256x8xbf16>, vector<64x8xf32> -> vector<64x8xf32>
    %28 = arith.maximumf %24, %27 : vector<64x8xf32>
    %c5 = arith.constant 5 : index
    %c0_23 = arith.constant 0 : index
    %c0_24 = arith.constant 0 : index
    %29 = vector.load %arg4[%c5, %c0_23, %c0_24] : memref<9x64x256xbf16, #tpu.memory_space<vmem>>, vector<1x64x256xbf16>
    %30 = vector.shape_cast %29 : vector<1x64x256xbf16> to vector<64x256xbf16>
    %cst_25 = arith.constant dense<0.000000e+00> : vector<64x8xf32>
    %31 = tpu.matmul %30, %9, %cst_25 {dimension_numbers = #tpu.dot_dimension_numbers<[1], [0], [0], [1], [0, 0, 1, 1], [], []>} : vector<64x256xbf16>, vector<256x8xbf16>, vector<64x8xf32> -> vector<64x8xf32>
    %32 = arith.maximumf %28, %31 : vector<64x8xf32>
    %c6 = arith.constant 6 : index
    %c0_26 = arith.constant 0 : index
    %c0_27 = arith.constant 0 : index
    %33 = vector.load %arg4[%c6, %c0_26, %c0_27] : memref<9x64x256xbf16, #tpu.memory_space<vmem>>, vector<1x64x256xbf16>
    %34 = vector.shape_cast %33 : vector<1x64x256xbf16> to vector<64x256xbf16>
    %cst_28 = arith.constant dense<0.000000e+00> : vector<64x8xf32>
    %35 = tpu.matmul %34, %9, %cst_28 {dimension_numbers = #tpu.dot_dimension_numbers<[1], [0], [0], [1], [0, 0, 1, 1], [], []>} : vector<64x256xbf16>, vector<256x8xbf16>, vector<64x8xf32> -> vector<64x8xf32>
    %36 = arith.maximumf %32, %35 : vector<64x8xf32>
    %c7 = arith.constant 7 : index
    %c0_29 = arith.constant 0 : index
    %c0_30 = arith.constant 0 : index
    %37 = vector.load %arg4[%c7, %c0_29, %c0_30] : memref<9x64x256xbf16, #tpu.memory_space<vmem>>, vector<1x64x256xbf16>
    %38 = vector.shape_cast %37 : vector<1x64x256xbf16> to vector<64x256xbf16>
    %cst_31 = arith.constant dense<0.000000e+00> : vector<64x8xf32>
    %39 = tpu.matmul %38, %9, %cst_31 {dimension_numbers = #tpu.dot_dimension_numbers<[1], [0], [0], [1], [0, 0, 1, 1], [], []>} : vector<64x256xbf16>, vector<256x8xbf16>, vector<64x8xf32> -> vector<64x8xf32>
    %40 = arith.maximumf %36, %39 : vector<64x8xf32>
    %c8 = arith.constant 8 : index
    %c0_32 = arith.constant 0 : index
    %c0_33 = arith.constant 0 : index
    %41 = vector.load %arg4[%c8, %c0_32, %c0_33] : memref<9x64x256xbf16, #tpu.memory_space<vmem>>, vector<1x64x256xbf16>
    %42 = vector.shape_cast %41 : vector<1x64x256xbf16> to vector<64x256xbf16>
    %cst_34 = arith.constant dense<0.000000e+00> : vector<64x8xf32>
    %43 = tpu.matmul %42, %9, %cst_34 {dimension_numbers = #tpu.dot_dimension_numbers<[1], [0], [0], [1], [0, 0, 1, 1], [], []>} : vector<64x256xbf16>, vector<256x8xbf16>, vector<64x8xf32> -> vector<64x8xf32>
    %44 = arith.maximumf %40, %43 : vector<64x8xf32>
    %45 = arith.truncf %44 : vector<64x8xf32> to vector<64x8xbf16>
    %c0_35 = arith.constant 0 : index
    %c0_36 = arith.constant 0 : index
    %c0_37 = arith.constant 0 : index
    %46 = vector.load %arg5[%c0_35, %c0_36, %c0_37] : memref<1x64x8xbf16, #tpu.memory_space<vmem>>, vector<1x64x8xbf16>
    %47 = vector.shape_cast %46 : vector<1x64x8xbf16> to vector<64x8xbf16>
    %48 = vector.shape_cast %45 : vector<64x8xbf16> to vector<1x64x8xbf16>
    tpu.vector_store %arg5[%c0_35, %c0_36, %c0_37], %48 {strides = array<i32>} : memref<1x64x8xbf16, #tpu.memory_space<vmem>>, vector<1x64x8xbf16>,
    return
  }
  func.func @transform_0(%arg0: i32) -> (i32, i32, i32) {
    %c0_i32 = arith.constant 0 : i32
    %c0_i32_0 = arith.constant 0 : i32
    %c0_i32_1 = arith.constant 0 : i32
    return %arg0, %c0_i32, %c0_i32_0 : i32, i32, i32
  }
  func.func @transform_1(%arg0: i32) -> (i32, i32) {
    %c0_i32 = arith.constant 0 : i32
    %c0_i32_0 = arith.constant 0 : i32
    %c0_i32_1 = arith.constant 0 : i32
    return %c0_i32, %c0_i32_0 : i32, i32
  }
  func.func @transform_2(%arg0: i32) -> (i32, i32) {
    %c0_i32 = arith.constant 0 : i32
    %c0_i32_0 = arith.constant 0 : i32
    %c0_i32_1 = arith.constant 0 : i32
    return %c0_i32, %c0_i32_0 : i32, i32
  }
  func.func @transform_3(%arg0: i32) -> (i32, i32, i32) {
    %c0_i32 = arith.constant 0 : i32
    %c0_i32_0 = arith.constant 0 : i32
    %c0_i32_1 = arith.constant 0 : i32
    %c0_i32_2 = arith.constant 0 : i32
    return %c0_i32, %c0_i32_0, %c0_i32_1 : i32, i32, i32
  }
  func.func @transform_4(%arg0: i32) -> (i32, i32, i32) {
    %c0_i32 = arith.constant 0 : i32
    %c0_i32_0 = arith.constant 0 : i32
    %c0_i32_1 = arith.constant 0 : i32
    return %arg0, %c0_i32, %c0_i32_0 : i32, i32, i32
  }
}

module attributes {stable_mosaic.version = 11 : i64} {
  func.func @_unit_s2_kernel(%arg0: i32, %arg1: memref<1x64x8xbf16, #tpu.memory_space<vmem>>, %arg2: memref<8x4xbf16, #tpu.memory_space<vmem>>, %arg3: memref<1x4xf32, #tpu.memory_space<vmem>>, %arg4: memref<9x16x64xbf16, #tpu.memory_space<vmem>>, %arg5: memref<9x1x4xf32, #tpu.memory_space<vmem>>, %arg6: memref<1x4xf32, #tpu.memory_space<vmem>>, %arg7: memref<4x16xbf16, #tpu.memory_space<vmem>>, %arg8: memref<1x16xf32, #tpu.memory_space<vmem>>, %arg9: memref<16x64xbf16, #tpu.memory_space<vmem>>, %arg10: memref<8x16xbf16, #tpu.memory_space<vmem>>, %arg11: memref<1x16x16xbf16, #tpu.memory_space<vmem>>) attributes {dimension_semantics = [#tpu.dimension_semantics<parallel>], iteration_bounds = array<i64: 2>, scalar_prefetch = 0 : i64, scratch_operands = 0 : i64, tpu.core_type = #tpu.core_type<tc>, window_params = [{transform_indices = @transform_0, window_bounds = array<i64: 1, 64, 8>}, {pipeline_mode = #tpu.pipeline_mode<synchronous>, transform_indices = @transform_1, window_bounds = array<i64: 8, 4>}, {pipeline_mode = #tpu.pipeline_mode<synchronous>, transform_indices = @transform_2, window_bounds = array<i64: 1, 4>}, {pipeline_mode = #tpu.pipeline_mode<synchronous>, transform_indices = @transform_3, window_bounds = array<i64: 9, 16, 64>}, {pipeline_mode = #tpu.pipeline_mode<synchronous>, transform_indices = @transform_4, window_bounds = array<i64: 9, 1, 4>}, {pipeline_mode = #tpu.pipeline_mode<synchronous>, transform_indices = @transform_5, window_bounds = array<i64: 1, 4>}, {pipeline_mode = #tpu.pipeline_mode<synchronous>, transform_indices = @transform_6, window_bounds = array<i64: 4, 16>}, {pipeline_mode = #tpu.pipeline_mode<synchronous>, transform_indices = @transform_7, window_bounds = array<i64: 1, 16>}, {pipeline_mode = #tpu.pipeline_mode<synchronous>, transform_indices = @transform_8, window_bounds = array<i64: 16, 64>}, {pipeline_mode = #tpu.pipeline_mode<synchronous>, transform_indices = @transform_9, window_bounds = array<i64: 8, 16>}, {transform_indices = @transform_10, window_bounds = array<i64: 1, 16, 16>}]} {
    %c0 = arith.constant 0 : index
    %c0_0 = arith.constant 0 : index
    %c0_1 = arith.constant 0 : index
    %0 = vector.load %arg1[%c0, %c0_0, %c0_1] : memref<1x64x8xbf16, #tpu.memory_space<vmem>>, vector<1x64x8xbf16>
    %1 = vector.shape_cast %0 : vector<1x64x8xbf16> to vector<64x8xbf16>
    %c0_2 = arith.constant 0 : index
    %c0_3 = arith.constant 0 : index
    %2 = vector.load %arg2[%c0_2, %c0_3] : memref<8x4xbf16, #tpu.memory_space<vmem>>, vector<8x4xbf16>
    %cst = arith.constant dense<0.000000e+00> : vector<64x4xf32>
    %3 = tpu.matmul %1, %2, %cst {dimension_numbers = #tpu.dot_dimension_numbers<[1], [0], [0], [1], [0, 0, 1, 1], [], []>} : vector<64x8xbf16>, vector<8x4xbf16>, vector<64x4xf32> -> vector<64x4xf32>
    %c0_4 = arith.constant 0 : index
    %c0_5 = arith.constant 0 : index
    %4 = vector.load %arg3[%c0_4, %c0_5] : memref<1x4xf32, #tpu.memory_space<vmem>>, vector<1x4xf32>
    %5 = vector.broadcast %4 : vector<1x4xf32> to vector<64x4xf32>
    %6 = arith.addf %3, %5 : vector<64x4xf32>
    %cst_6 = arith.constant 0.000000e+00 : f32
    %7 = vector.broadcast %cst_6 : f32 to vector<64x4xf32>
    %8 = arith.maximumf %6, %7 : vector<64x4xf32>
    %9 = arith.truncf %8 : vector<64x4xf32> to vector<64x4xbf16>
    %c0_7 = arith.constant 0 : index
    %c0_8 = arith.constant 0 : index
    %c0_9 = arith.constant 0 : index
    %10 = vector.load %arg4[%c0_7, %c0_8, %c0_9] : memref<9x16x64xbf16, #tpu.memory_space<vmem>>, vector<1x16x64xbf16>
    %11 = vector.shape_cast %10 : vector<1x16x64xbf16> to vector<16x64xbf16>
    %cst_10 = arith.constant dense<0.000000e+00> : vector<16x4xf32>
    %12 = tpu.matmul %11, %9, %cst_10 {dimension_numbers = #tpu.dot_dimension_numbers<[1], [0], [0], [1], [0, 0, 1, 1], [], []>} : vector<16x64xbf16>, vector<64x4xbf16>, vector<16x4xf32> -> vector<16x4xf32>
    %c0_11 = arith.constant 0 : index
    %c0_12 = arith.constant 0 : index
    %c0_13 = arith.constant 0 : index
    %13 = vector.load %arg5[%c0_11, %c0_12, %c0_13] : memref<9x1x4xf32, #tpu.memory_space<vmem>>, vector<1x1x4xf32>
    %14 = vector.shape_cast %13 : vector<1x1x4xf32> to vector<1x4xf32>
    %15 = vector.broadcast %14 : vector<1x4xf32> to vector<16x4xf32>
    %16 = arith.mulf %12, %15 : vector<16x4xf32>
    %c1 = arith.constant 1 : index
    %c0_14 = arith.constant 0 : index
    %c0_15 = arith.constant 0 : index
    %17 = vector.load %arg4[%c1, %c0_14, %c0_15] : memref<9x16x64xbf16, #tpu.memory_space<vmem>>, vector<1x16x64xbf16>
    %18 = vector.shape_cast %17 : vector<1x16x64xbf16> to vector<16x64xbf16>
    %cst_16 = arith.constant dense<0.000000e+00> : vector<16x4xf32>
    %19 = tpu.matmul %18, %9, %cst_16 {dimension_numbers = #tpu.dot_dimension_numbers<[1], [0], [0], [1], [0, 0, 1, 1], [], []>} : vector<16x64xbf16>, vector<64x4xbf16>, vector<16x4xf32> -> vector<16x4xf32>
    %c1_17 = arith.constant 1 : index
    %c0_18 = arith.constant 0 : index
    %c0_19 = arith.constant 0 : index
    %20 = vector.load %arg5[%c1_17, %c0_18, %c0_19] : memref<9x1x4xf32, #tpu.memory_space<vmem>>, vector<1x1x4xf32>
    %21 = vector.shape_cast %20 : vector<1x1x4xf32> to vector<1x4xf32>
    %22 = vector.broadcast %21 : vector<1x4xf32> to vector<16x4xf32>
    %23 = arith.mulf %19, %22 : vector<16x4xf32>
    %24 = arith.addf %16, %23 : vector<16x4xf32>
    %c2 = arith.constant 2 : index
    %c0_20 = arith.constant 0 : index
    %c0_21 = arith.constant 0 : index
    %25 = vector.load %arg4[%c2, %c0_20, %c0_21] : memref<9x16x64xbf16, #tpu.memory_space<vmem>>, vector<1x16x64xbf16>
    %26 = vector.shape_cast %25 : vector<1x16x64xbf16> to vector<16x64xbf16>
    %cst_22 = arith.constant dense<0.000000e+00> : vector<16x4xf32>
    %27 = tpu.matmul %26, %9, %cst_22 {dimension_numbers = #tpu.dot_dimension_numbers<[1], [0], [0], [1], [0, 0, 1, 1], [], []>} : vector<16x64xbf16>, vector<64x4xbf16>, vector<16x4xf32> -> vector<16x4xf32>
    %c2_23 = arith.constant 2 : index
    %c0_24 = arith.constant 0 : index
    %c0_25 = arith.constant 0 : index
    %28 = vector.load %arg5[%c2_23, %c0_24, %c0_25] : memref<9x1x4xf32, #tpu.memory_space<vmem>>, vector<1x1x4xf32>
    %29 = vector.shape_cast %28 : vector<1x1x4xf32> to vector<1x4xf32>
    %30 = vector.broadcast %29 : vector<1x4xf32> to vector<16x4xf32>
    %31 = arith.mulf %27, %30 : vector<16x4xf32>
    %32 = arith.addf %24, %31 : vector<16x4xf32>
    %c3 = arith.constant 3 : index
    %c0_26 = arith.constant 0 : index
    %c0_27 = arith.constant 0 : index
    %33 = vector.load %arg4[%c3, %c0_26, %c0_27] : memref<9x16x64xbf16, #tpu.memory_space<vmem>>, vector<1x16x64xbf16>
    %34 = vector.shape_cast %33 : vector<1x16x64xbf16> to vector<16x64xbf16>
    %cst_28 = arith.constant dense<0.000000e+00> : vector<16x4xf32>
    %35 = tpu.matmul %34, %9, %cst_28 {dimension_numbers = #tpu.dot_dimension_numbers<[1], [0], [0], [1], [0, 0, 1, 1], [], []>} : vector<16x64xbf16>, vector<64x4xbf16>, vector<16x4xf32> -> vector<16x4xf32>
    %c3_29 = arith.constant 3 : index
    %c0_30 = arith.constant 0 : index
    %c0_31 = arith.constant 0 : index
    %36 = vector.load %arg5[%c3_29, %c0_30, %c0_31] : memref<9x1x4xf32, #tpu.memory_space<vmem>>, vector<1x1x4xf32>
    %37 = vector.shape_cast %36 : vector<1x1x4xf32> to vector<1x4xf32>
    %38 = vector.broadcast %37 : vector<1x4xf32> to vector<16x4xf32>
    %39 = arith.mulf %35, %38 : vector<16x4xf32>
    %40 = arith.addf %32, %39 : vector<16x4xf32>
    %c4 = arith.constant 4 : index
    %c0_32 = arith.constant 0 : index
    %c0_33 = arith.constant 0 : index
    %41 = vector.load %arg4[%c4, %c0_32, %c0_33] : memref<9x16x64xbf16, #tpu.memory_space<vmem>>, vector<1x16x64xbf16>
    %42 = vector.shape_cast %41 : vector<1x16x64xbf16> to vector<16x64xbf16>
    %cst_34 = arith.constant dense<0.000000e+00> : vector<16x4xf32>
    %43 = tpu.matmul %42, %9, %cst_34 {dimension_numbers = #tpu.dot_dimension_numbers<[1], [0], [0], [1], [0, 0, 1, 1], [], []>} : vector<16x64xbf16>, vector<64x4xbf16>, vector<16x4xf32> -> vector<16x4xf32>
    %c4_35 = arith.constant 4 : index
    %c0_36 = arith.constant 0 : index
    %c0_37 = arith.constant 0 : index
    %44 = vector.load %arg5[%c4_35, %c0_36, %c0_37] : memref<9x1x4xf32, #tpu.memory_space<vmem>>, vector<1x1x4xf32>
    %45 = vector.shape_cast %44 : vector<1x1x4xf32> to vector<1x4xf32>
    %46 = vector.broadcast %45 : vector<1x4xf32> to vector<16x4xf32>
    %47 = arith.mulf %43, %46 : vector<16x4xf32>
    %48 = arith.addf %40, %47 : vector<16x4xf32>
    %c5 = arith.constant 5 : index
    %c0_38 = arith.constant 0 : index
    %c0_39 = arith.constant 0 : index
    %49 = vector.load %arg4[%c5, %c0_38, %c0_39] : memref<9x16x64xbf16, #tpu.memory_space<vmem>>, vector<1x16x64xbf16>
    %50 = vector.shape_cast %49 : vector<1x16x64xbf16> to vector<16x64xbf16>
    %cst_40 = arith.constant dense<0.000000e+00> : vector<16x4xf32>
    %51 = tpu.matmul %50, %9, %cst_40 {dimension_numbers = #tpu.dot_dimension_numbers<[1], [0], [0], [1], [0, 0, 1, 1], [], []>} : vector<16x64xbf16>, vector<64x4xbf16>, vector<16x4xf32> -> vector<16x4xf32>
    %c5_41 = arith.constant 5 : index
    %c0_42 = arith.constant 0 : index
    %c0_43 = arith.constant 0 : index
    %52 = vector.load %arg5[%c5_41, %c0_42, %c0_43] : memref<9x1x4xf32, #tpu.memory_space<vmem>>, vector<1x1x4xf32>
    %53 = vector.shape_cast %52 : vector<1x1x4xf32> to vector<1x4xf32>
    %54 = vector.broadcast %53 : vector<1x4xf32> to vector<16x4xf32>
    %55 = arith.mulf %51, %54 : vector<16x4xf32>
    %56 = arith.addf %48, %55 : vector<16x4xf32>
    %c6 = arith.constant 6 : index
    %c0_44 = arith.constant 0 : index
    %c0_45 = arith.constant 0 : index
    %57 = vector.load %arg4[%c6, %c0_44, %c0_45] : memref<9x16x64xbf16, #tpu.memory_space<vmem>>, vector<1x16x64xbf16>
    %58 = vector.shape_cast %57 : vector<1x16x64xbf16> to vector<16x64xbf16>
    %cst_46 = arith.constant dense<0.000000e+00> : vector<16x4xf32>
    %59 = tpu.matmul %58, %9, %cst_46 {dimension_numbers = #tpu.dot_dimension_numbers<[1], [0], [0], [1], [0, 0, 1, 1], [], []>} : vector<16x64xbf16>, vector<64x4xbf16>, vector<16x4xf32> -> vector<16x4xf32>
    %c6_47 = arith.constant 6 : index
    %c0_48 = arith.constant 0 : index
    %c0_49 = arith.constant 0 : index
    %60 = vector.load %arg5[%c6_47, %c0_48, %c0_49] : memref<9x1x4xf32, #tpu.memory_space<vmem>>, vector<1x1x4xf32>
    %61 = vector.shape_cast %60 : vector<1x1x4xf32> to vector<1x4xf32>
    %62 = vector.broadcast %61 : vector<1x4xf32> to vector<16x4xf32>
    %63 = arith.mulf %59, %62 : vector<16x4xf32>
    %64 = arith.addf %56, %63 : vector<16x4xf32>
    %c7 = arith.constant 7 : index
    %c0_50 = arith.constant 0 : index
    %c0_51 = arith.constant 0 : index
    %65 = vector.load %arg4[%c7, %c0_50, %c0_51] : memref<9x16x64xbf16, #tpu.memory_space<vmem>>, vector<1x16x64xbf16>
    %66 = vector.shape_cast %65 : vector<1x16x64xbf16> to vector<16x64xbf16>
    %cst_52 = arith.constant dense<0.000000e+00> : vector<16x4xf32>
    %67 = tpu.matmul %66, %9, %cst_52 {dimension_numbers = #tpu.dot_dimension_numbers<[1], [0], [0], [1], [0, 0, 1, 1], [], []>} : vector<16x64xbf16>, vector<64x4xbf16>, vector<16x4xf32> -> vector<16x4xf32>
    %c7_53 = arith.constant 7 : index
    %c0_54 = arith.constant 0 : index
    %c0_55 = arith.constant 0 : index
    %68 = vector.load %arg5[%c7_53, %c0_54, %c0_55] : memref<9x1x4xf32, #tpu.memory_space<vmem>>, vector<1x1x4xf32>
    %69 = vector.shape_cast %68 : vector<1x1x4xf32> to vector<1x4xf32>
    %70 = vector.broadcast %69 : vector<1x4xf32> to vector<16x4xf32>
    %71 = arith.mulf %67, %70 : vector<16x4xf32>
    %72 = arith.addf %64, %71 : vector<16x4xf32>
    %c8 = arith.constant 8 : index
    %c0_56 = arith.constant 0 : index
    %c0_57 = arith.constant 0 : index
    %73 = vector.load %arg4[%c8, %c0_56, %c0_57] : memref<9x16x64xbf16, #tpu.memory_space<vmem>>, vector<1x16x64xbf16>
    %74 = vector.shape_cast %73 : vector<1x16x64xbf16> to vector<16x64xbf16>
    %cst_58 = arith.constant dense<0.000000e+00> : vector<16x4xf32>
    %75 = tpu.matmul %74, %9, %cst_58 {dimension_numbers = #tpu.dot_dimension_numbers<[1], [0], [0], [1], [0, 0, 1, 1], [], []>} : vector<16x64xbf16>, vector<64x4xbf16>, vector<16x4xf32> -> vector<16x4xf32>
    %c8_59 = arith.constant 8 : index
    %c0_60 = arith.constant 0 : index
    %c0_61 = arith.constant 0 : index
    %76 = vector.load %arg5[%c8_59, %c0_60, %c0_61] : memref<9x1x4xf32, #tpu.memory_space<vmem>>, vector<1x1x4xf32>
    %77 = vector.shape_cast %76 : vector<1x1x4xf32> to vector<1x4xf32>
    %78 = vector.broadcast %77 : vector<1x4xf32> to vector<16x4xf32>
    %79 = arith.mulf %75, %78 : vector<16x4xf32>
    %80 = arith.addf %72, %79 : vector<16x4xf32>
    %c0_62 = arith.constant 0 : index
    %c0_63 = arith.constant 0 : index
    %81 = vector.load %arg6[%c0_62, %c0_63] : memref<1x4xf32, #tpu.memory_space<vmem>>, vector<1x4xf32>
    %82 = vector.broadcast %81 : vector<1x4xf32> to vector<16x4xf32>
    %83 = arith.addf %80, %82 : vector<16x4xf32>
    %84 = arith.truncf %83 : vector<16x4xf32> to vector<16x4xbf16>
    %c0_64 = arith.constant 0 : index
    %c0_65 = arith.constant 0 : index
    %85 = vector.load %arg7[%c0_64, %c0_65] : memref<4x16xbf16, #tpu.memory_space<vmem>>, vector<4x16xbf16>
    %cst_66 = arith.constant dense<0.000000e+00> : vector<16x16xf32>
    %86 = tpu.matmul %84, %85, %cst_66 {dimension_numbers = #tpu.dot_dimension_numbers<[1], [0], [0], [1], [0, 0, 1, 1], [], []>} : vector<16x4xbf16>, vector<4x16xbf16>, vector<16x16xf32> -> vector<16x16xf32>
    %c0_67 = arith.constant 0 : index
    %c0_68 = arith.constant 0 : index
    %87 = vector.load %arg8[%c0_67, %c0_68] : memref<1x16xf32, #tpu.memory_space<vmem>>, vector<1x16xf32>
    %88 = vector.broadcast %87 : vector<1x16xf32> to vector<16x16xf32>
    %89 = arith.addf %86, %88 : vector<16x16xf32>
    %c0_69 = arith.constant 0 : index
    %c0_70 = arith.constant 0 : index
    %90 = vector.load %arg9[%c0_69, %c0_70] : memref<16x64xbf16, #tpu.memory_space<vmem>>, vector<16x64xbf16>
    %cst_71 = arith.constant dense<0.000000e+00> : vector<16x8xf32>
    %91 = tpu.matmul %90, %1, %cst_71 {dimension_numbers = #tpu.dot_dimension_numbers<[1], [0], [0], [1], [0, 0, 1, 1], [], []>} : vector<16x64xbf16>, vector<64x8xbf16>, vector<16x8xf32> -> vector<16x8xf32>
    %cst_72 = arith.constant 0.111111112 : f32
    %92 = vector.broadcast %cst_72 : f32 to vector<16x8xf32>
    %93 = arith.mulf %91, %92 : vector<16x8xf32>
    %94 = arith.truncf %93 : vector<16x8xf32> to vector<16x8xbf16>
    %c0_73 = arith.constant 0 : index
    %c0_74 = arith.constant 0 : index
    %95 = vector.load %arg10[%c0_73, %c0_74] : memref<8x16xbf16, #tpu.memory_space<vmem>>, vector<8x16xbf16>
    %cst_75 = arith.constant dense<0.000000e+00> : vector<16x16xf32>
    %96 = tpu.matmul %94, %95, %cst_75 {dimension_numbers = #tpu.dot_dimension_numbers<[1], [0], [0], [1], [0, 0, 1, 1], [], []>} : vector<16x8xbf16>, vector<8x16xbf16>, vector<16x16xf32> -> vector<16x16xf32>
    %97 = arith.addf %89, %96 : vector<16x16xf32>
    %cst_76 = arith.constant 0.000000e+00 : f32
    %98 = vector.broadcast %cst_76 : f32 to vector<16x16xf32>
    %99 = arith.maximumf %97, %98 : vector<16x16xf32>
    %100 = arith.truncf %99 : vector<16x16xf32> to vector<16x16xbf16>
    %c0_77 = arith.constant 0 : index
    %c0_78 = arith.constant 0 : index
    %c0_79 = arith.constant 0 : index
    %101 = vector.load %arg11[%c0_77, %c0_78, %c0_79] : memref<1x16x16xbf16, #tpu.memory_space<vmem>>, vector<1x16x16xbf16>
    %102 = vector.shape_cast %101 : vector<1x16x16xbf16> to vector<16x16xbf16>
    %103 = vector.shape_cast %100 : vector<16x16xbf16> to vector<1x16x16xbf16>
    tpu.vector_store %arg11[%c0_77, %c0_78, %c0_79], %103 {strides = array<i32>} : memref<1x16x16xbf16, #tpu.memory_space<vmem>>, vector<1x16x16xbf16>,
    return
  }
  func.func @transform_0(%arg0: i32) -> (i32, i32, i32) {
    %c0_i32 = arith.constant 0 : i32
    %c0_i32_0 = arith.constant 0 : i32
    %c0_i32_1 = arith.constant 0 : i32
    return %arg0, %c0_i32, %c0_i32_0 : i32, i32, i32
  }
  func.func @transform_1(%arg0: i32) -> (i32, i32) {
    %c0_i32 = arith.constant 0 : i32
    %c0_i32_0 = arith.constant 0 : i32
    %c0_i32_1 = arith.constant 0 : i32
    return %c0_i32, %c0_i32_0 : i32, i32
  }
  func.func @transform_2(%arg0: i32) -> (i32, i32) {
    %c0_i32 = arith.constant 0 : i32
    %c0_i32_0 = arith.constant 0 : i32
    %c0_i32_1 = arith.constant 0 : i32
    return %c0_i32, %c0_i32_0 : i32, i32
  }
  func.func @transform_3(%arg0: i32) -> (i32, i32, i32) {
    %c0_i32 = arith.constant 0 : i32
    %c0_i32_0 = arith.constant 0 : i32
    %c0_i32_1 = arith.constant 0 : i32
    %c0_i32_2 = arith.constant 0 : i32
    return %c0_i32, %c0_i32_0, %c0_i32_1 : i32, i32, i32
  }
  func.func @transform_4(%arg0: i32) -> (i32, i32, i32) {
    %c0_i32 = arith.constant 0 : i32
    %c0_i32_0 = arith.constant 0 : i32
    %c0_i32_1 = arith.constant 0 : i32
    %c0_i32_2 = arith.constant 0 : i32
    return %c0_i32, %c0_i32_0, %c0_i32_1 : i32, i32, i32
  }
  func.func @transform_5(%arg0: i32) -> (i32, i32) {
    %c0_i32 = arith.constant 0 : i32
    %c0_i32_0 = arith.constant 0 : i32
    %c0_i32_1 = arith.constant 0 : i32
    return %c0_i32, %c0_i32_0 : i32, i32
  }
  func.func @transform_6(%arg0: i32) -> (i32, i32) {
    %c0_i32 = arith.constant 0 : i32
    %c0_i32_0 = arith.constant 0 : i32
    %c0_i32_1 = arith.constant 0 : i32
    return %c0_i32, %c0_i32_0 : i32, i32
  }
  func.func @transform_7(%arg0: i32) -> (i32, i32) {
    %c0_i32 = arith.constant 0 : i32
    %c0_i32_0 = arith.constant 0 : i32
    %c0_i32_1 = arith.constant 0 : i32
    return %c0_i32, %c0_i32_0 : i32, i32
  }
  func.func @transform_8(%arg0: i32) -> (i32, i32) {
    %c0_i32 = arith.constant 0 : i32
    %c0_i32_0 = arith.constant 0 : i32
    %c0_i32_1 = arith.constant 0 : i32
    return %c0_i32, %c0_i32_0 : i32, i32
  }
  func.func @transform_9(%arg0: i32) -> (i32, i32) {
    %c0_i32 = arith.constant 0 : i32
    %c0_i32_0 = arith.constant 0 : i32
    %c0_i32_1 = arith.constant 0 : i32
    return %c0_i32, %c0_i32_0 : i32, i32
  }
  func.func @transform_10(%arg0: i32) -> (i32, i32, i32) {
    %c0_i32 = arith.constant 0 : i32
    %c0_i32_0 = arith.constant 0 : i32
    %c0_i32_1 = arith.constant 0 : i32
    return %arg0, %c0_i32, %c0_i32_0 : i32, i32, i32
  }
}

module attributes {stable_mosaic.version = 11 : i64} {
  func.func @_unit_s1_kernel(%arg0: i32, %arg1: memref<1x16x16xbf16, #tpu.memory_space<vmem>>, %arg2: memref<16x4xbf16, #tpu.memory_space<vmem>>, %arg3: memref<1x4xf32, #tpu.memory_space<vmem>>, %arg4: memref<9x16x16xbf16, #tpu.memory_space<vmem>>, %arg5: memref<9x1x4xf32, #tpu.memory_space<vmem>>, %arg6: memref<1x4xf32, #tpu.memory_space<vmem>>, %arg7: memref<4x16xbf16, #tpu.memory_space<vmem>>, %arg8: memref<1x16xf32, #tpu.memory_space<vmem>>, %arg9: memref<1x16x16xbf16, #tpu.memory_space<vmem>>) attributes {dimension_semantics = [#tpu.dimension_semantics<parallel>], iteration_bounds = array<i64: 2>, scalar_prefetch = 0 : i64, scratch_operands = 0 : i64, tpu.core_type = #tpu.core_type<tc>, window_params = [{transform_indices = @transform_0, window_bounds = array<i64: 1, 16, 16>}, {pipeline_mode = #tpu.pipeline_mode<synchronous>, transform_indices = @transform_1, window_bounds = array<i64: 16, 4>}, {pipeline_mode = #tpu.pipeline_mode<synchronous>, transform_indices = @transform_2, window_bounds = array<i64: 1, 4>}, {pipeline_mode = #tpu.pipeline_mode<synchronous>, transform_indices = @transform_3, window_bounds = array<i64: 9, 16, 16>}, {pipeline_mode = #tpu.pipeline_mode<synchronous>, transform_indices = @transform_4, window_bounds = array<i64: 9, 1, 4>}, {pipeline_mode = #tpu.pipeline_mode<synchronous>, transform_indices = @transform_5, window_bounds = array<i64: 1, 4>}, {pipeline_mode = #tpu.pipeline_mode<synchronous>, transform_indices = @transform_6, window_bounds = array<i64: 4, 16>}, {pipeline_mode = #tpu.pipeline_mode<synchronous>, transform_indices = @transform_7, window_bounds = array<i64: 1, 16>}, {transform_indices = @transform_8, window_bounds = array<i64: 1, 16, 16>}]} {
    %c0 = arith.constant 0 : index
    %c0_0 = arith.constant 0 : index
    %c0_1 = arith.constant 0 : index
    %0 = vector.load %arg1[%c0, %c0_0, %c0_1] : memref<1x16x16xbf16, #tpu.memory_space<vmem>>, vector<1x16x16xbf16>
    %1 = vector.shape_cast %0 : vector<1x16x16xbf16> to vector<16x16xbf16>
    %c0_2 = arith.constant 0 : index
    %c0_3 = arith.constant 0 : index
    %2 = vector.load %arg2[%c0_2, %c0_3] : memref<16x4xbf16, #tpu.memory_space<vmem>>, vector<16x4xbf16>
    %cst = arith.constant dense<0.000000e+00> : vector<16x4xf32>
    %3 = tpu.matmul %1, %2, %cst {dimension_numbers = #tpu.dot_dimension_numbers<[1], [0], [0], [1], [0, 0, 1, 1], [], []>} : vector<16x16xbf16>, vector<16x4xbf16>, vector<16x4xf32> -> vector<16x4xf32>
    %c0_4 = arith.constant 0 : index
    %c0_5 = arith.constant 0 : index
    %4 = vector.load %arg3[%c0_4, %c0_5] : memref<1x4xf32, #tpu.memory_space<vmem>>, vector<1x4xf32>
    %5 = vector.broadcast %4 : vector<1x4xf32> to vector<16x4xf32>
    %6 = arith.addf %3, %5 : vector<16x4xf32>
    %cst_6 = arith.constant 0.000000e+00 : f32
    %7 = vector.broadcast %cst_6 : f32 to vector<16x4xf32>
    %8 = arith.maximumf %6, %7 : vector<16x4xf32>
    %9 = arith.truncf %8 : vector<16x4xf32> to vector<16x4xbf16>
    %c0_7 = arith.constant 0 : index
    %c0_8 = arith.constant 0 : index
    %c0_9 = arith.constant 0 : index
    %10 = vector.load %arg4[%c0_7, %c0_8, %c0_9] : memref<9x16x16xbf16, #tpu.memory_space<vmem>>, vector<1x16x16xbf16>
    %11 = vector.shape_cast %10 : vector<1x16x16xbf16> to vector<16x16xbf16>
    %cst_10 = arith.constant dense<0.000000e+00> : vector<16x4xf32>
    %12 = tpu.matmul %11, %9, %cst_10 {dimension_numbers = #tpu.dot_dimension_numbers<[1], [0], [0], [1], [0, 0, 1, 1], [], []>} : vector<16x16xbf16>, vector<16x4xbf16>, vector<16x4xf32> -> vector<16x4xf32>
    %c0_11 = arith.constant 0 : index
    %c0_12 = arith.constant 0 : index
    %c0_13 = arith.constant 0 : index
    %13 = vector.load %arg5[%c0_11, %c0_12, %c0_13] : memref<9x1x4xf32, #tpu.memory_space<vmem>>, vector<1x1x4xf32>
    %14 = vector.shape_cast %13 : vector<1x1x4xf32> to vector<1x4xf32>
    %15 = vector.broadcast %14 : vector<1x4xf32> to vector<16x4xf32>
    %16 = arith.mulf %12, %15 : vector<16x4xf32>
    %c1 = arith.constant 1 : index
    %c0_14 = arith.constant 0 : index
    %c0_15 = arith.constant 0 : index
    %17 = vector.load %arg4[%c1, %c0_14, %c0_15] : memref<9x16x16xbf16, #tpu.memory_space<vmem>>, vector<1x16x16xbf16>
    %18 = vector.shape_cast %17 : vector<1x16x16xbf16> to vector<16x16xbf16>
    %cst_16 = arith.constant dense<0.000000e+00> : vector<16x4xf32>
    %19 = tpu.matmul %18, %9, %cst_16 {dimension_numbers = #tpu.dot_dimension_numbers<[1], [0], [0], [1], [0, 0, 1, 1], [], []>} : vector<16x16xbf16>, vector<16x4xbf16>, vector<16x4xf32> -> vector<16x4xf32>
    %c1_17 = arith.constant 1 : index
    %c0_18 = arith.constant 0 : index
    %c0_19 = arith.constant 0 : index
    %20 = vector.load %arg5[%c1_17, %c0_18, %c0_19] : memref<9x1x4xf32, #tpu.memory_space<vmem>>, vector<1x1x4xf32>
    %21 = vector.shape_cast %20 : vector<1x1x4xf32> to vector<1x4xf32>
    %22 = vector.broadcast %21 : vector<1x4xf32> to vector<16x4xf32>
    %23 = arith.mulf %19, %22 : vector<16x4xf32>
    %24 = arith.addf %16, %23 : vector<16x4xf32>
    %c2 = arith.constant 2 : index
    %c0_20 = arith.constant 0 : index
    %c0_21 = arith.constant 0 : index
    %25 = vector.load %arg4[%c2, %c0_20, %c0_21] : memref<9x16x16xbf16, #tpu.memory_space<vmem>>, vector<1x16x16xbf16>
    %26 = vector.shape_cast %25 : vector<1x16x16xbf16> to vector<16x16xbf16>
    %cst_22 = arith.constant dense<0.000000e+00> : vector<16x4xf32>
    %27 = tpu.matmul %26, %9, %cst_22 {dimension_numbers = #tpu.dot_dimension_numbers<[1], [0], [0], [1], [0, 0, 1, 1], [], []>} : vector<16x16xbf16>, vector<16x4xbf16>, vector<16x4xf32> -> vector<16x4xf32>
    %c2_23 = arith.constant 2 : index
    %c0_24 = arith.constant 0 : index
    %c0_25 = arith.constant 0 : index
    %28 = vector.load %arg5[%c2_23, %c0_24, %c0_25] : memref<9x1x4xf32, #tpu.memory_space<vmem>>, vector<1x1x4xf32>
    %29 = vector.shape_cast %28 : vector<1x1x4xf32> to vector<1x4xf32>
    %30 = vector.broadcast %29 : vector<1x4xf32> to vector<16x4xf32>
    %31 = arith.mulf %27, %30 : vector<16x4xf32>
    %32 = arith.addf %24, %31 : vector<16x4xf32>
    %c3 = arith.constant 3 : index
    %c0_26 = arith.constant 0 : index
    %c0_27 = arith.constant 0 : index
    %33 = vector.load %arg4[%c3, %c0_26, %c0_27] : memref<9x16x16xbf16, #tpu.memory_space<vmem>>, vector<1x16x16xbf16>
    %34 = vector.shape_cast %33 : vector<1x16x16xbf16> to vector<16x16xbf16>
    %cst_28 = arith.constant dense<0.000000e+00> : vector<16x4xf32>
    %35 = tpu.matmul %34, %9, %cst_28 {dimension_numbers = #tpu.dot_dimension_numbers<[1], [0], [0], [1], [0, 0, 1, 1], [], []>} : vector<16x16xbf16>, vector<16x4xbf16>, vector<16x4xf32> -> vector<16x4xf32>
    %c3_29 = arith.constant 3 : index
    %c0_30 = arith.constant 0 : index
    %c0_31 = arith.constant 0 : index
    %36 = vector.load %arg5[%c3_29, %c0_30, %c0_31] : memref<9x1x4xf32, #tpu.memory_space<vmem>>, vector<1x1x4xf32>
    %37 = vector.shape_cast %36 : vector<1x1x4xf32> to vector<1x4xf32>
    %38 = vector.broadcast %37 : vector<1x4xf32> to vector<16x4xf32>
    %39 = arith.mulf %35, %38 : vector<16x4xf32>
    %40 = arith.addf %32, %39 : vector<16x4xf32>
    %c4 = arith.constant 4 : index
    %c0_32 = arith.constant 0 : index
    %c0_33 = arith.constant 0 : index
    %41 = vector.load %arg4[%c4, %c0_32, %c0_33] : memref<9x16x16xbf16, #tpu.memory_space<vmem>>, vector<1x16x16xbf16>
    %42 = vector.shape_cast %41 : vector<1x16x16xbf16> to vector<16x16xbf16>
    %cst_34 = arith.constant dense<0.000000e+00> : vector<16x4xf32>
    %43 = tpu.matmul %42, %9, %cst_34 {dimension_numbers = #tpu.dot_dimension_numbers<[1], [0], [0], [1], [0, 0, 1, 1], [], []>} : vector<16x16xbf16>, vector<16x4xbf16>, vector<16x4xf32> -> vector<16x4xf32>
    %c4_35 = arith.constant 4 : index
    %c0_36 = arith.constant 0 : index
    %c0_37 = arith.constant 0 : index
    %44 = vector.load %arg5[%c4_35, %c0_36, %c0_37] : memref<9x1x4xf32, #tpu.memory_space<vmem>>, vector<1x1x4xf32>
    %45 = vector.shape_cast %44 : vector<1x1x4xf32> to vector<1x4xf32>
    %46 = vector.broadcast %45 : vector<1x4xf32> to vector<16x4xf32>
    %47 = arith.mulf %43, %46 : vector<16x4xf32>
    %48 = arith.addf %40, %47 : vector<16x4xf32>
    %c5 = arith.constant 5 : index
    %c0_38 = arith.constant 0 : index
    %c0_39 = arith.constant 0 : index
    %49 = vector.load %arg4[%c5, %c0_38, %c0_39] : memref<9x16x16xbf16, #tpu.memory_space<vmem>>, vector<1x16x16xbf16>
    %50 = vector.shape_cast %49 : vector<1x16x16xbf16> to vector<16x16xbf16>
    %cst_40 = arith.constant dense<0.000000e+00> : vector<16x4xf32>
    %51 = tpu.matmul %50, %9, %cst_40 {dimension_numbers = #tpu.dot_dimension_numbers<[1], [0], [0], [1], [0, 0, 1, 1], [], []>} : vector<16x16xbf16>, vector<16x4xbf16>, vector<16x4xf32> -> vector<16x4xf32>
    %c5_41 = arith.constant 5 : index
    %c0_42 = arith.constant 0 : index
    %c0_43 = arith.constant 0 : index
    %52 = vector.load %arg5[%c5_41, %c0_42, %c0_43] : memref<9x1x4xf32, #tpu.memory_space<vmem>>, vector<1x1x4xf32>
    %53 = vector.shape_cast %52 : vector<1x1x4xf32> to vector<1x4xf32>
    %54 = vector.broadcast %53 : vector<1x4xf32> to vector<16x4xf32>
    %55 = arith.mulf %51, %54 : vector<16x4xf32>
    %56 = arith.addf %48, %55 : vector<16x4xf32>
    %c6 = arith.constant 6 : index
    %c0_44 = arith.constant 0 : index
    %c0_45 = arith.constant 0 : index
    %57 = vector.load %arg4[%c6, %c0_44, %c0_45] : memref<9x16x16xbf16, #tpu.memory_space<vmem>>, vector<1x16x16xbf16>
    %58 = vector.shape_cast %57 : vector<1x16x16xbf16> to vector<16x16xbf16>
    %cst_46 = arith.constant dense<0.000000e+00> : vector<16x4xf32>
    %59 = tpu.matmul %58, %9, %cst_46 {dimension_numbers = #tpu.dot_dimension_numbers<[1], [0], [0], [1], [0, 0, 1, 1], [], []>} : vector<16x16xbf16>, vector<16x4xbf16>, vector<16x4xf32> -> vector<16x4xf32>
    %c6_47 = arith.constant 6 : index
    %c0_48 = arith.constant 0 : index
    %c0_49 = arith.constant 0 : index
    %60 = vector.load %arg5[%c6_47, %c0_48, %c0_49] : memref<9x1x4xf32, #tpu.memory_space<vmem>>, vector<1x1x4xf32>
    %61 = vector.shape_cast %60 : vector<1x1x4xf32> to vector<1x4xf32>
    %62 = vector.broadcast %61 : vector<1x4xf32> to vector<16x4xf32>
    %63 = arith.mulf %59, %62 : vector<16x4xf32>
    %64 = arith.addf %56, %63 : vector<16x4xf32>
    %c7 = arith.constant 7 : index
    %c0_50 = arith.constant 0 : index
    %c0_51 = arith.constant 0 : index
    %65 = vector.load %arg4[%c7, %c0_50, %c0_51] : memref<9x16x16xbf16, #tpu.memory_space<vmem>>, vector<1x16x16xbf16>
    %66 = vector.shape_cast %65 : vector<1x16x16xbf16> to vector<16x16xbf16>
    %cst_52 = arith.constant dense<0.000000e+00> : vector<16x4xf32>
    %67 = tpu.matmul %66, %9, %cst_52 {dimension_numbers = #tpu.dot_dimension_numbers<[1], [0], [0], [1], [0, 0, 1, 1], [], []>} : vector<16x16xbf16>, vector<16x4xbf16>, vector<16x4xf32> -> vector<16x4xf32>
    %c7_53 = arith.constant 7 : index
    %c0_54 = arith.constant 0 : index
    %c0_55 = arith.constant 0 : index
    %68 = vector.load %arg5[%c7_53, %c0_54, %c0_55] : memref<9x1x4xf32, #tpu.memory_space<vmem>>, vector<1x1x4xf32>
    %69 = vector.shape_cast %68 : vector<1x1x4xf32> to vector<1x4xf32>
    %70 = vector.broadcast %69 : vector<1x4xf32> to vector<16x4xf32>
    %71 = arith.mulf %67, %70 : vector<16x4xf32>
    %72 = arith.addf %64, %71 : vector<16x4xf32>
    %c8 = arith.constant 8 : index
    %c0_56 = arith.constant 0 : index
    %c0_57 = arith.constant 0 : index
    %73 = vector.load %arg4[%c8, %c0_56, %c0_57] : memref<9x16x16xbf16, #tpu.memory_space<vmem>>, vector<1x16x16xbf16>
    %74 = vector.shape_cast %73 : vector<1x16x16xbf16> to vector<16x16xbf16>
    %cst_58 = arith.constant dense<0.000000e+00> : vector<16x4xf32>
    %75 = tpu.matmul %74, %9, %cst_58 {dimension_numbers = #tpu.dot_dimension_numbers<[1], [0], [0], [1], [0, 0, 1, 1], [], []>} : vector<16x16xbf16>, vector<16x4xbf16>, vector<16x4xf32> -> vector<16x4xf32>
    %c8_59 = arith.constant 8 : index
    %c0_60 = arith.constant 0 : index
    %c0_61 = arith.constant 0 : index
    %76 = vector.load %arg5[%c8_59, %c0_60, %c0_61] : memref<9x1x4xf32, #tpu.memory_space<vmem>>, vector<1x1x4xf32>
    %77 = vector.shape_cast %76 : vector<1x1x4xf32> to vector<1x4xf32>
    %78 = vector.broadcast %77 : vector<1x4xf32> to vector<16x4xf32>
    %79 = arith.mulf %75, %78 : vector<16x4xf32>
    %80 = arith.addf %72, %79 : vector<16x4xf32>
    %c0_62 = arith.constant 0 : index
    %c0_63 = arith.constant 0 : index
    %81 = vector.load %arg6[%c0_62, %c0_63] : memref<1x4xf32, #tpu.memory_space<vmem>>, vector<1x4xf32>
    %82 = vector.broadcast %81 : vector<1x4xf32> to vector<16x4xf32>
    %83 = arith.addf %80, %82 : vector<16x4xf32>
    %84 = arith.truncf %83 : vector<16x4xf32> to vector<16x4xbf16>
    %c0_64 = arith.constant 0 : index
    %c0_65 = arith.constant 0 : index
    %85 = vector.load %arg7[%c0_64, %c0_65] : memref<4x16xbf16, #tpu.memory_space<vmem>>, vector<4x16xbf16>
    %cst_66 = arith.constant dense<0.000000e+00> : vector<16x16xf32>
    %86 = tpu.matmul %84, %85, %cst_66 {dimension_numbers = #tpu.dot_dimension_numbers<[1], [0], [0], [1], [0, 0, 1, 1], [], []>} : vector<16x4xbf16>, vector<4x16xbf16>, vector<16x16xf32> -> vector<16x16xf32>
    %c0_67 = arith.constant 0 : index
    %c0_68 = arith.constant 0 : index
    %87 = vector.load %arg8[%c0_67, %c0_68] : memref<1x16xf32, #tpu.memory_space<vmem>>, vector<1x16xf32>
    %88 = vector.broadcast %87 : vector<1x16xf32> to vector<16x16xf32>
    %89 = arith.addf %86, %88 : vector<16x16xf32>
    %90 = arith.extf %1 : vector<16x16xbf16> to vector<16x16xf32>
    %91 = arith.addf %89, %90 : vector<16x16xf32>
    %cst_69 = arith.constant 0.000000e+00 : f32
    %92 = vector.broadcast %cst_69 : f32 to vector<16x16xf32>
    %93 = arith.maximumf %91, %92 : vector<16x16xf32>
    %94 = arith.truncf %93 : vector<16x16xf32> to vector<16x16xbf16>
    %c0_70 = arith.constant 0 : index
    %c0_71 = arith.constant 0 : index
    %c0_72 = arith.constant 0 : index
    %95 = vector.load %arg9[%c0_70, %c0_71, %c0_72] : memref<1x16x16xbf16, #tpu.memory_space<vmem>>, vector<1x16x16xbf16>
    %96 = vector.shape_cast %95 : vector<1x16x16xbf16> to vector<16x16xbf16>
    %97 = vector.shape_cast %94 : vector<16x16xbf16> to vector<1x16x16xbf16>
    tpu.vector_store %arg9[%c0_70, %c0_71, %c0_72], %97 {strides = array<i32>} : memref<1x16x16xbf16, #tpu.memory_space<vmem>>, vector<1x16x16xbf16>,
    return
  }
  func.func @transform_0(%arg0: i32) -> (i32, i32, i32) {
    %c0_i32 = arith.constant 0 : i32
    %c0_i32_0 = arith.constant 0 : i32
    %c0_i32_1 = arith.constant 0 : i32
    return %arg0, %c0_i32, %c0_i32_0 : i32, i32, i32
  }
  func.func @transform_1(%arg0: i32) -> (i32, i32) {
    %c0_i32 = arith.constant 0 : i32
    %c0_i32_0 = arith.constant 0 : i32
    %c0_i32_1 = arith.constant 0 : i32
    return %c0_i32, %c0_i32_0 : i32, i32
  }
  func.func @transform_2(%arg0: i32) -> (i32, i32) {
    %c0_i32 = arith.constant 0 : i32
    %c0_i32_0 = arith.constant 0 : i32
    %c0_i32_1 = arith.constant 0 : i32
    return %c0_i32, %c0_i32_0 : i32, i32
  }
  func.func @transform_3(%arg0: i32) -> (i32, i32, i32) {
    %c0_i32 = arith.constant 0 : i32
    %c0_i32_0 = arith.constant 0 : i32
    %c0_i32_1 = arith.constant 0 : i32
    %c0_i32_2 = arith.constant 0 : i32
    return %c0_i32, %c0_i32_0, %c0_i32_1 : i32, i32, i32
  }
  func.func @transform_4(%arg0: i32) -> (i32, i32, i32) {
    %c0_i32 = arith.constant 0 : i32
    %c0_i32_0 = arith.constant 0 : i32
    %c0_i32_1 = arith.constant 0 : i32
    %c0_i32_2 = arith.constant 0 : i32
    return %c0_i32, %c0_i32_0, %c0_i32_1 : i32, i32, i32
  }
  func.func @transform_5(%arg0: i32) -> (i32, i32) {
    %c0_i32 = arith.constant 0 : i32
    %c0_i32_0 = arith.constant 0 : i32
    %c0_i32_1 = arith.constant 0 : i32
    return %c0_i32, %c0_i32_0 : i32, i32
  }
  func.func @transform_6(%arg0: i32) -> (i32, i32) {
    %c0_i32 = arith.constant 0 : i32
    %c0_i32_0 = arith.constant 0 : i32
    %c0_i32_1 = arith.constant 0 : i32
    return %c0_i32, %c0_i32_0 : i32, i32
  }
  func.func @transform_7(%arg0: i32) -> (i32, i32) {
    %c0_i32 = arith.constant 0 : i32
    %c0_i32_0 = arith.constant 0 : i32
    %c0_i32_1 = arith.constant 0 : i32
    return %c0_i32, %c0_i32_0 : i32, i32
  }
  func.func @transform_8(%arg0: i32) -> (i32, i32, i32) {
    %c0_i32 = arith.constant 0 : i32
    %c0_i32_0 = arith.constant 0 : i32
    %c0_i32_1 = arith.constant 0 : i32
    return %arg0, %c0_i32, %c0_i32_0 : i32, i32, i32
  }
}

module attributes {stable_mosaic.version = 11 : i64} {
  func.func @_unit_s1_kernel(%arg0: i32, %arg1: memref<1x4x32xbf16, #tpu.memory_space<vmem>>, %arg2: memref<32x8xbf16, #tpu.memory_space<vmem>>, %arg3: memref<1x8xf32, #tpu.memory_space<vmem>>, %arg4: memref<9x4x4xbf16, #tpu.memory_space<vmem>>, %arg5: memref<9x1x8xf32, #tpu.memory_space<vmem>>, %arg6: memref<1x8xf32, #tpu.memory_space<vmem>>, %arg7: memref<8x32xbf16, #tpu.memory_space<vmem>>, %arg8: memref<1x32xf32, #tpu.memory_space<vmem>>, %arg9: memref<1x4x32xbf16, #tpu.memory_space<vmem>>) attributes {dimension_semantics = [#tpu.dimension_semantics<parallel>], iteration_bounds = array<i64: 2>, scalar_prefetch = 0 : i64, scratch_operands = 0 : i64, tpu.core_type = #tpu.core_type<tc>, window_params = [{transform_indices = @transform_0, window_bounds = array<i64: 1, 4, 32>}, {pipeline_mode = #tpu.pipeline_mode<synchronous>, transform_indices = @transform_1, window_bounds = array<i64: 32, 8>}, {pipeline_mode = #tpu.pipeline_mode<synchronous>, transform_indices = @transform_2, window_bounds = array<i64: 1, 8>}, {pipeline_mode = #tpu.pipeline_mode<synchronous>, transform_indices = @transform_3, window_bounds = array<i64: 9, 4, 4>}, {pipeline_mode = #tpu.pipeline_mode<synchronous>, transform_indices = @transform_4, window_bounds = array<i64: 9, 1, 8>}, {pipeline_mode = #tpu.pipeline_mode<synchronous>, transform_indices = @transform_5, window_bounds = array<i64: 1, 8>}, {pipeline_mode = #tpu.pipeline_mode<synchronous>, transform_indices = @transform_6, window_bounds = array<i64: 8, 32>}, {pipeline_mode = #tpu.pipeline_mode<synchronous>, transform_indices = @transform_7, window_bounds = array<i64: 1, 32>}, {transform_indices = @transform_8, window_bounds = array<i64: 1, 4, 32>}]} {
    %c0 = arith.constant 0 : index
    %c0_0 = arith.constant 0 : index
    %c0_1 = arith.constant 0 : index
    %0 = vector.load %arg1[%c0, %c0_0, %c0_1] : memref<1x4x32xbf16, #tpu.memory_space<vmem>>, vector<1x4x32xbf16>
    %1 = vector.shape_cast %0 : vector<1x4x32xbf16> to vector<4x32xbf16>
    %c0_2 = arith.constant 0 : index
    %c0_3 = arith.constant 0 : index
    %2 = vector.load %arg2[%c0_2, %c0_3] : memref<32x8xbf16, #tpu.memory_space<vmem>>, vector<32x8xbf16>
    %cst = arith.constant dense<0.000000e+00> : vector<4x8xf32>
    %3 = tpu.matmul %1, %2, %cst {dimension_numbers = #tpu.dot_dimension_numbers<[1], [0], [0], [1], [0, 0, 1, 1], [], []>} : vector<4x32xbf16>, vector<32x8xbf16>, vector<4x8xf32> -> vector<4x8xf32>
    %c0_4 = arith.constant 0 : index
    %c0_5 = arith.constant 0 : index
    %4 = vector.load %arg3[%c0_4, %c0_5] : memref<1x8xf32, #tpu.memory_space<vmem>>, vector<1x8xf32>
    %5 = vector.broadcast %4 : vector<1x8xf32> to vector<4x8xf32>
    %6 = arith.addf %3, %5 : vector<4x8xf32>
    %cst_6 = arith.constant 0.000000e+00 : f32
    %7 = vector.broadcast %cst_6 : f32 to vector<4x8xf32>
    %8 = arith.maximumf %6, %7 : vector<4x8xf32>
    %9 = arith.truncf %8 : vector<4x8xf32> to vector<4x8xbf16>
    %c0_7 = arith.constant 0 : index
    %c0_8 = arith.constant 0 : index
    %c0_9 = arith.constant 0 : index
    %10 = vector.load %arg4[%c0_7, %c0_8, %c0_9] : memref<9x4x4xbf16, #tpu.memory_space<vmem>>, vector<1x4x4xbf16>
    %11 = vector.shape_cast %10 : vector<1x4x4xbf16> to vector<4x4xbf16>
    %cst_10 = arith.constant dense<0.000000e+00> : vector<4x8xf32>
    %12 = tpu.matmul %11, %9, %cst_10 {dimension_numbers = #tpu.dot_dimension_numbers<[1], [0], [0], [1], [0, 0, 1, 1], [], []>} : vector<4x4xbf16>, vector<4x8xbf16>, vector<4x8xf32> -> vector<4x8xf32>
    %c0_11 = arith.constant 0 : index
    %c0_12 = arith.constant 0 : index
    %c0_13 = arith.constant 0 : index
    %13 = vector.load %arg5[%c0_11, %c0_12, %c0_13] : memref<9x1x8xf32, #tpu.memory_space<vmem>>, vector<1x1x8xf32>
    %14 = vector.shape_cast %13 : vector<1x1x8xf32> to vector<1x8xf32>
    %15 = vector.broadcast %14 : vector<1x8xf32> to vector<4x8xf32>
    %16 = arith.mulf %12, %15 : vector<4x8xf32>
    %c1 = arith.constant 1 : index
    %c0_14 = arith.constant 0 : index
    %c0_15 = arith.constant 0 : index
    %17 = vector.load %arg4[%c1, %c0_14, %c0_15] : memref<9x4x4xbf16, #tpu.memory_space<vmem>>, vector<1x4x4xbf16>
    %18 = vector.shape_cast %17 : vector<1x4x4xbf16> to vector<4x4xbf16>
    %cst_16 = arith.constant dense<0.000000e+00> : vector<4x8xf32>
    %19 = tpu.matmul %18, %9, %cst_16 {dimension_numbers = #tpu.dot_dimension_numbers<[1], [0], [0], [1], [0, 0, 1, 1], [], []>} : vector<4x4xbf16>, vector<4x8xbf16>, vector<4x8xf32> -> vector<4x8xf32>
    %c1_17 = arith.constant 1 : index
    %c0_18 = arith.constant 0 : index
    %c0_19 = arith.constant 0 : index
    %20 = vector.load %arg5[%c1_17, %c0_18, %c0_19] : memref<9x1x8xf32, #tpu.memory_space<vmem>>, vector<1x1x8xf32>
    %21 = vector.shape_cast %20 : vector<1x1x8xf32> to vector<1x8xf32>
    %22 = vector.broadcast %21 : vector<1x8xf32> to vector<4x8xf32>
    %23 = arith.mulf %19, %22 : vector<4x8xf32>
    %24 = arith.addf %16, %23 : vector<4x8xf32>
    %c2 = arith.constant 2 : index
    %c0_20 = arith.constant 0 : index
    %c0_21 = arith.constant 0 : index
    %25 = vector.load %arg4[%c2, %c0_20, %c0_21] : memref<9x4x4xbf16, #tpu.memory_space<vmem>>, vector<1x4x4xbf16>
    %26 = vector.shape_cast %25 : vector<1x4x4xbf16> to vector<4x4xbf16>
    %cst_22 = arith.constant dense<0.000000e+00> : vector<4x8xf32>
    %27 = tpu.matmul %26, %9, %cst_22 {dimension_numbers = #tpu.dot_dimension_numbers<[1], [0], [0], [1], [0, 0, 1, 1], [], []>} : vector<4x4xbf16>, vector<4x8xbf16>, vector<4x8xf32> -> vector<4x8xf32>
    %c2_23 = arith.constant 2 : index
    %c0_24 = arith.constant 0 : index
    %c0_25 = arith.constant 0 : index
    %28 = vector.load %arg5[%c2_23, %c0_24, %c0_25] : memref<9x1x8xf32, #tpu.memory_space<vmem>>, vector<1x1x8xf32>
    %29 = vector.shape_cast %28 : vector<1x1x8xf32> to vector<1x8xf32>
    %30 = vector.broadcast %29 : vector<1x8xf32> to vector<4x8xf32>
    %31 = arith.mulf %27, %30 : vector<4x8xf32>
    %32 = arith.addf %24, %31 : vector<4x8xf32>
    %c3 = arith.constant 3 : index
    %c0_26 = arith.constant 0 : index
    %c0_27 = arith.constant 0 : index
    %33 = vector.load %arg4[%c3, %c0_26, %c0_27] : memref<9x4x4xbf16, #tpu.memory_space<vmem>>, vector<1x4x4xbf16>
    %34 = vector.shape_cast %33 : vector<1x4x4xbf16> to vector<4x4xbf16>
    %cst_28 = arith.constant dense<0.000000e+00> : vector<4x8xf32>
    %35 = tpu.matmul %34, %9, %cst_28 {dimension_numbers = #tpu.dot_dimension_numbers<[1], [0], [0], [1], [0, 0, 1, 1], [], []>} : vector<4x4xbf16>, vector<4x8xbf16>, vector<4x8xf32> -> vector<4x8xf32>
    %c3_29 = arith.constant 3 : index
    %c0_30 = arith.constant 0 : index
    %c0_31 = arith.constant 0 : index
    %36 = vector.load %arg5[%c3_29, %c0_30, %c0_31] : memref<9x1x8xf32, #tpu.memory_space<vmem>>, vector<1x1x8xf32>
    %37 = vector.shape_cast %36 : vector<1x1x8xf32> to vector<1x8xf32>
    %38 = vector.broadcast %37 : vector<1x8xf32> to vector<4x8xf32>
    %39 = arith.mulf %35, %38 : vector<4x8xf32>
    %40 = arith.addf %32, %39 : vector<4x8xf32>
    %c4 = arith.constant 4 : index
    %c0_32 = arith.constant 0 : index
    %c0_33 = arith.constant 0 : index
    %41 = vector.load %arg4[%c4, %c0_32, %c0_33] : memref<9x4x4xbf16, #tpu.memory_space<vmem>>, vector<1x4x4xbf16>
    %42 = vector.shape_cast %41 : vector<1x4x4xbf16> to vector<4x4xbf16>
    %cst_34 = arith.constant dense<0.000000e+00> : vector<4x8xf32>
    %43 = tpu.matmul %42, %9, %cst_34 {dimension_numbers = #tpu.dot_dimension_numbers<[1], [0], [0], [1], [0, 0, 1, 1], [], []>} : vector<4x4xbf16>, vector<4x8xbf16>, vector<4x8xf32> -> vector<4x8xf32>
    %c4_35 = arith.constant 4 : index
    %c0_36 = arith.constant 0 : index
    %c0_37 = arith.constant 0 : index
    %44 = vector.load %arg5[%c4_35, %c0_36, %c0_37] : memref<9x1x8xf32, #tpu.memory_space<vmem>>, vector<1x1x8xf32>
    %45 = vector.shape_cast %44 : vector<1x1x8xf32> to vector<1x8xf32>
    %46 = vector.broadcast %45 : vector<1x8xf32> to vector<4x8xf32>
    %47 = arith.mulf %43, %46 : vector<4x8xf32>
    %48 = arith.addf %40, %47 : vector<4x8xf32>
    %c5 = arith.constant 5 : index
    %c0_38 = arith.constant 0 : index
    %c0_39 = arith.constant 0 : index
    %49 = vector.load %arg4[%c5, %c0_38, %c0_39] : memref<9x4x4xbf16, #tpu.memory_space<vmem>>, vector<1x4x4xbf16>
    %50 = vector.shape_cast %49 : vector<1x4x4xbf16> to vector<4x4xbf16>
    %cst_40 = arith.constant dense<0.000000e+00> : vector<4x8xf32>
    %51 = tpu.matmul %50, %9, %cst_40 {dimension_numbers = #tpu.dot_dimension_numbers<[1], [0], [0], [1], [0, 0, 1, 1], [], []>} : vector<4x4xbf16>, vector<4x8xbf16>, vector<4x8xf32> -> vector<4x8xf32>
    %c5_41 = arith.constant 5 : index
    %c0_42 = arith.constant 0 : index
    %c0_43 = arith.constant 0 : index
    %52 = vector.load %arg5[%c5_41, %c0_42, %c0_43] : memref<9x1x8xf32, #tpu.memory_space<vmem>>, vector<1x1x8xf32>
    %53 = vector.shape_cast %52 : vector<1x1x8xf32> to vector<1x8xf32>
    %54 = vector.broadcast %53 : vector<1x8xf32> to vector<4x8xf32>
    %55 = arith.mulf %51, %54 : vector<4x8xf32>
    %56 = arith.addf %48, %55 : vector<4x8xf32>
    %c6 = arith.constant 6 : index
    %c0_44 = arith.constant 0 : index
    %c0_45 = arith.constant 0 : index
    %57 = vector.load %arg4[%c6, %c0_44, %c0_45] : memref<9x4x4xbf16, #tpu.memory_space<vmem>>, vector<1x4x4xbf16>
    %58 = vector.shape_cast %57 : vector<1x4x4xbf16> to vector<4x4xbf16>
    %cst_46 = arith.constant dense<0.000000e+00> : vector<4x8xf32>
    %59 = tpu.matmul %58, %9, %cst_46 {dimension_numbers = #tpu.dot_dimension_numbers<[1], [0], [0], [1], [0, 0, 1, 1], [], []>} : vector<4x4xbf16>, vector<4x8xbf16>, vector<4x8xf32> -> vector<4x8xf32>
    %c6_47 = arith.constant 6 : index
    %c0_48 = arith.constant 0 : index
    %c0_49 = arith.constant 0 : index
    %60 = vector.load %arg5[%c6_47, %c0_48, %c0_49] : memref<9x1x8xf32, #tpu.memory_space<vmem>>, vector<1x1x8xf32>
    %61 = vector.shape_cast %60 : vector<1x1x8xf32> to vector<1x8xf32>
    %62 = vector.broadcast %61 : vector<1x8xf32> to vector<4x8xf32>
    %63 = arith.mulf %59, %62 : vector<4x8xf32>
    %64 = arith.addf %56, %63 : vector<4x8xf32>
    %c7 = arith.constant 7 : index
    %c0_50 = arith.constant 0 : index
    %c0_51 = arith.constant 0 : index
    %65 = vector.load %arg4[%c7, %c0_50, %c0_51] : memref<9x4x4xbf16, #tpu.memory_space<vmem>>, vector<1x4x4xbf16>
    %66 = vector.shape_cast %65 : vector<1x4x4xbf16> to vector<4x4xbf16>
    %cst_52 = arith.constant dense<0.000000e+00> : vector<4x8xf32>
    %67 = tpu.matmul %66, %9, %cst_52 {dimension_numbers = #tpu.dot_dimension_numbers<[1], [0], [0], [1], [0, 0, 1, 1], [], []>} : vector<4x4xbf16>, vector<4x8xbf16>, vector<4x8xf32> -> vector<4x8xf32>
    %c7_53 = arith.constant 7 : index
    %c0_54 = arith.constant 0 : index
    %c0_55 = arith.constant 0 : index
    %68 = vector.load %arg5[%c7_53, %c0_54, %c0_55] : memref<9x1x8xf32, #tpu.memory_space<vmem>>, vector<1x1x8xf32>
    %69 = vector.shape_cast %68 : vector<1x1x8xf32> to vector<1x8xf32>
    %70 = vector.broadcast %69 : vector<1x8xf32> to vector<4x8xf32>
    %71 = arith.mulf %67, %70 : vector<4x8xf32>
    %72 = arith.addf %64, %71 : vector<4x8xf32>
    %c8 = arith.constant 8 : index
    %c0_56 = arith.constant 0 : index
    %c0_57 = arith.constant 0 : index
    %73 = vector.load %arg4[%c8, %c0_56, %c0_57] : memref<9x4x4xbf16, #tpu.memory_space<vmem>>, vector<1x4x4xbf16>
    %74 = vector.shape_cast %73 : vector<1x4x4xbf16> to vector<4x4xbf16>
    %cst_58 = arith.constant dense<0.000000e+00> : vector<4x8xf32>
    %75 = tpu.matmul %74, %9, %cst_58 {dimension_numbers = #tpu.dot_dimension_numbers<[1], [0], [0], [1], [0, 0, 1, 1], [], []>} : vector<4x4xbf16>, vector<4x8xbf16>, vector<4x8xf32> -> vector<4x8xf32>
    %c8_59 = arith.constant 8 : index
    %c0_60 = arith.constant 0 : index
    %c0_61 = arith.constant 0 : index
    %76 = vector.load %arg5[%c8_59, %c0_60, %c0_61] : memref<9x1x8xf32, #tpu.memory_space<vmem>>, vector<1x1x8xf32>
    %77 = vector.shape_cast %76 : vector<1x1x8xf32> to vector<1x8xf32>
    %78 = vector.broadcast %77 : vector<1x8xf32> to vector<4x8xf32>
    %79 = arith.mulf %75, %78 : vector<4x8xf32>
    %80 = arith.addf %72, %79 : vector<4x8xf32>
    %c0_62 = arith.constant 0 : index
    %c0_63 = arith.constant 0 : index
    %81 = vector.load %arg6[%c0_62, %c0_63] : memref<1x8xf32, #tpu.memory_space<vmem>>, vector<1x8xf32>
    %82 = vector.broadcast %81 : vector<1x8xf32> to vector<4x8xf32>
    %83 = arith.addf %80, %82 : vector<4x8xf32>
    %84 = arith.truncf %83 : vector<4x8xf32> to vector<4x8xbf16>
    %c0_64 = arith.constant 0 : index
    %c0_65 = arith.constant 0 : index
    %85 = vector.load %arg7[%c0_64, %c0_65] : memref<8x32xbf16, #tpu.memory_space<vmem>>, vector<8x32xbf16>
    %cst_66 = arith.constant dense<0.000000e+00> : vector<4x32xf32>
    %86 = tpu.matmul %84, %85, %cst_66 {dimension_numbers = #tpu.dot_dimension_numbers<[1], [0], [0], [1], [0, 0, 1, 1], [], []>} : vector<4x8xbf16>, vector<8x32xbf16>, vector<4x32xf32> -> vector<4x32xf32>
    %c0_67 = arith.constant 0 : index
    %c0_68 = arith.constant 0 : index
    %87 = vector.load %arg8[%c0_67, %c0_68] : memref<1x32xf32, #tpu.memory_space<vmem>>, vector<1x32xf32>
    %88 = vector.broadcast %87 : vector<1x32xf32> to vector<4x32xf32>
    %89 = arith.addf %86, %88 : vector<4x32xf32>
    %90 = arith.extf %1 : vector<4x32xbf16> to vector<4x32xf32>
    %91 = arith.addf %89, %90 : vector<4x32xf32>
    %cst_69 = arith.constant 0.000000e+00 : f32
    %92 = vector.broadcast %cst_69 : f32 to vector<4x32xf32>
    %93 = arith.maximumf %91, %92 : vector<4x32xf32>
    %94 = arith.truncf %93 : vector<4x32xf32> to vector<4x32xbf16>
    %c0_70 = arith.constant 0 : index
    %c0_71 = arith.constant 0 : index
    %c0_72 = arith.constant 0 : index
    %95 = vector.load %arg9[%c0_70, %c0_71, %c0_72] : memref<1x4x32xbf16, #tpu.memory_space<vmem>>, vector<1x4x32xbf16>
    %96 = vector.shape_cast %95 : vector<1x4x32xbf16> to vector<4x32xbf16>
    %97 = vector.shape_cast %94 : vector<4x32xbf16> to vector<1x4x32xbf16>
    tpu.vector_store %arg9[%c0_70, %c0_71, %c0_72], %97 {strides = array<i32>} : memref<1x4x32xbf16, #tpu.memory_space<vmem>>, vector<1x4x32xbf16>,
    return
  }
  func.func @transform_0(%arg0: i32) -> (i32, i32, i32) {
    %c0_i32 = arith.constant 0 : i32
    %c0_i32_0 = arith.constant 0 : i32
    %c0_i32_1 = arith.constant 0 : i32
    return %arg0, %c0_i32, %c0_i32_0 : i32, i32, i32
  }
  func.func @transform_1(%arg0: i32) -> (i32, i32) {
    %c0_i32 = arith.constant 0 : i32
    %c0_i32_0 = arith.constant 0 : i32
    %c0_i32_1 = arith.constant 0 : i32
    return %c0_i32, %c0_i32_0 : i32, i32
  }
  func.func @transform_2(%arg0: i32) -> (i32, i32) {
    %c0_i32 = arith.constant 0 : i32
    %c0_i32_0 = arith.constant 0 : i32
    %c0_i32_1 = arith.constant 0 : i32
    return %c0_i32, %c0_i32_0 : i32, i32
  }
  func.func @transform_3(%arg0: i32) -> (i32, i32, i32) {
    %c0_i32 = arith.constant 0 : i32
    %c0_i32_0 = arith.constant 0 : i32
    %c0_i32_1 = arith.constant 0 : i32
    %c0_i32_2 = arith.constant 0 : i32
    return %c0_i32, %c0_i32_0, %c0_i32_1 : i32, i32, i32
  }
  func.func @transform_4(%arg0: i32) -> (i32, i32, i32) {
    %c0_i32 = arith.constant 0 : i32
    %c0_i32_0 = arith.constant 0 : i32
    %c0_i32_1 = arith.constant 0 : i32
    %c0_i32_2 = arith.constant 0 : i32
    return %c0_i32, %c0_i32_0, %c0_i32_1 : i32, i32, i32
  }
  func.func @transform_5(%arg0: i32) -> (i32, i32) {
    %c0_i32 = arith.constant 0 : i32
    %c0_i32_0 = arith.constant 0 : i32
    %c0_i32_1 = arith.constant 0 : i32
    return %c0_i32, %c0_i32_0 : i32, i32
  }
  func.func @transform_6(%arg0: i32) -> (i32, i32) {
    %c0_i32 = arith.constant 0 : i32
    %c0_i32_0 = arith.constant 0 : i32
    %c0_i32_1 = arith.constant 0 : i32
    return %c0_i32, %c0_i32_0 : i32, i32
  }
  func.func @transform_7(%arg0: i32) -> (i32, i32) {
    %c0_i32 = arith.constant 0 : i32
    %c0_i32_0 = arith.constant 0 : i32
    %c0_i32_1 = arith.constant 0 : i32
    return %c0_i32, %c0_i32_0 : i32, i32
  }
  func.func @transform_8(%arg0: i32) -> (i32, i32, i32) {
    %c0_i32 = arith.constant 0 : i32
    %c0_i32_0 = arith.constant 0 : i32
    %c0_i32_1 = arith.constant 0 : i32
    return %arg0, %c0_i32, %c0_i32_0 : i32, i32, i32
  }
}

module attributes {stable_mosaic.version = 11 : i64} {
  func.func @_unit_s2_kernel(%arg0: i32, %arg1: memref<1x16x16xbf16, #tpu.memory_space<vmem>>, %arg2: memref<16x8xbf16, #tpu.memory_space<vmem>>, %arg3: memref<1x8xf32, #tpu.memory_space<vmem>>, %arg4: memref<9x4x16xbf16, #tpu.memory_space<vmem>>, %arg5: memref<9x1x8xf32, #tpu.memory_space<vmem>>, %arg6: memref<1x8xf32, #tpu.memory_space<vmem>>, %arg7: memref<8x32xbf16, #tpu.memory_space<vmem>>, %arg8: memref<1x32xf32, #tpu.memory_space<vmem>>, %arg9: memref<4x16xbf16, #tpu.memory_space<vmem>>, %arg10: memref<16x32xbf16, #tpu.memory_space<vmem>>, %arg11: memref<1x4x32xbf16, #tpu.memory_space<vmem>>) attributes {dimension_semantics = [#tpu.dimension_semantics<parallel>], iteration_bounds = array<i64: 2>, scalar_prefetch = 0 : i64, scratch_operands = 0 : i64, tpu.core_type = #tpu.core_type<tc>, window_params = [{transform_indices = @transform_0, window_bounds = array<i64: 1, 16, 16>}, {pipeline_mode = #tpu.pipeline_mode<synchronous>, transform_indices = @transform_1, window_bounds = array<i64: 16, 8>}, {pipeline_mode = #tpu.pipeline_mode<synchronous>, transform_indices = @transform_2, window_bounds = array<i64: 1, 8>}, {pipeline_mode = #tpu.pipeline_mode<synchronous>, transform_indices = @transform_3, window_bounds = array<i64: 9, 4, 16>}, {pipeline_mode = #tpu.pipeline_mode<synchronous>, transform_indices = @transform_4, window_bounds = array<i64: 9, 1, 8>}, {pipeline_mode = #tpu.pipeline_mode<synchronous>, transform_indices = @transform_5, window_bounds = array<i64: 1, 8>}, {pipeline_mode = #tpu.pipeline_mode<synchronous>, transform_indices = @transform_6, window_bounds = array<i64: 8, 32>}, {pipeline_mode = #tpu.pipeline_mode<synchronous>, transform_indices = @transform_7, window_bounds = array<i64: 1, 32>}, {pipeline_mode = #tpu.pipeline_mode<synchronous>, transform_indices = @transform_8, window_bounds = array<i64: 4, 16>}, {pipeline_mode = #tpu.pipeline_mode<synchronous>, transform_indices = @transform_9, window_bounds = array<i64: 16, 32>}, {transform_indices = @transform_10, window_bounds = array<i64: 1, 4, 32>}]} {
    %c0 = arith.constant 0 : index
    %c0_0 = arith.constant 0 : index
    %c0_1 = arith.constant 0 : index
    %0 = vector.load %arg1[%c0, %c0_0, %c0_1] : memref<1x16x16xbf16, #tpu.memory_space<vmem>>, vector<1x16x16xbf16>
    %1 = vector.shape_cast %0 : vector<1x16x16xbf16> to vector<16x16xbf16>
    %c0_2 = arith.constant 0 : index
    %c0_3 = arith.constant 0 : index
    %2 = vector.load %arg2[%c0_2, %c0_3] : memref<16x8xbf16, #tpu.memory_space<vmem>>, vector<16x8xbf16>
    %cst = arith.constant dense<0.000000e+00> : vector<16x8xf32>
    %3 = tpu.matmul %1, %2, %cst {dimension_numbers = #tpu.dot_dimension_numbers<[1], [0], [0], [1], [0, 0, 1, 1], [], []>} : vector<16x16xbf16>, vector<16x8xbf16>, vector<16x8xf32> -> vector<16x8xf32>
    %c0_4 = arith.constant 0 : index
    %c0_5 = arith.constant 0 : index
    %4 = vector.load %arg3[%c0_4, %c0_5] : memref<1x8xf32, #tpu.memory_space<vmem>>, vector<1x8xf32>
    %5 = vector.broadcast %4 : vector<1x8xf32> to vector<16x8xf32>
    %6 = arith.addf %3, %5 : vector<16x8xf32>
    %cst_6 = arith.constant 0.000000e+00 : f32
    %7 = vector.broadcast %cst_6 : f32 to vector<16x8xf32>
    %8 = arith.maximumf %6, %7 : vector<16x8xf32>
    %9 = arith.truncf %8 : vector<16x8xf32> to vector<16x8xbf16>
    %c0_7 = arith.constant 0 : index
    %c0_8 = arith.constant 0 : index
    %c0_9 = arith.constant 0 : index
    %10 = vector.load %arg4[%c0_7, %c0_8, %c0_9] : memref<9x4x16xbf16, #tpu.memory_space<vmem>>, vector<1x4x16xbf16>
    %11 = vector.shape_cast %10 : vector<1x4x16xbf16> to vector<4x16xbf16>
    %cst_10 = arith.constant dense<0.000000e+00> : vector<4x8xf32>
    %12 = tpu.matmul %11, %9, %cst_10 {dimension_numbers = #tpu.dot_dimension_numbers<[1], [0], [0], [1], [0, 0, 1, 1], [], []>} : vector<4x16xbf16>, vector<16x8xbf16>, vector<4x8xf32> -> vector<4x8xf32>
    %c0_11 = arith.constant 0 : index
    %c0_12 = arith.constant 0 : index
    %c0_13 = arith.constant 0 : index
    %13 = vector.load %arg5[%c0_11, %c0_12, %c0_13] : memref<9x1x8xf32, #tpu.memory_space<vmem>>, vector<1x1x8xf32>
    %14 = vector.shape_cast %13 : vector<1x1x8xf32> to vector<1x8xf32>
    %15 = vector.broadcast %14 : vector<1x8xf32> to vector<4x8xf32>
    %16 = arith.mulf %12, %15 : vector<4x8xf32>
    %c1 = arith.constant 1 : index
    %c0_14 = arith.constant 0 : index
    %c0_15 = arith.constant 0 : index
    %17 = vector.load %arg4[%c1, %c0_14, %c0_15] : memref<9x4x16xbf16, #tpu.memory_space<vmem>>, vector<1x4x16xbf16>
    %18 = vector.shape_cast %17 : vector<1x4x16xbf16> to vector<4x16xbf16>
    %cst_16 = arith.constant dense<0.000000e+00> : vector<4x8xf32>
    %19 = tpu.matmul %18, %9, %cst_16 {dimension_numbers = #tpu.dot_dimension_numbers<[1], [0], [0], [1], [0, 0, 1, 1], [], []>} : vector<4x16xbf16>, vector<16x8xbf16>, vector<4x8xf32> -> vector<4x8xf32>
    %c1_17 = arith.constant 1 : index
    %c0_18 = arith.constant 0 : index
    %c0_19 = arith.constant 0 : index
    %20 = vector.load %arg5[%c1_17, %c0_18, %c0_19] : memref<9x1x8xf32, #tpu.memory_space<vmem>>, vector<1x1x8xf32>
    %21 = vector.shape_cast %20 : vector<1x1x8xf32> to vector<1x8xf32>
    %22 = vector.broadcast %21 : vector<1x8xf32> to vector<4x8xf32>
    %23 = arith.mulf %19, %22 : vector<4x8xf32>
    %24 = arith.addf %16, %23 : vector<4x8xf32>
    %c2 = arith.constant 2 : index
    %c0_20 = arith.constant 0 : index
    %c0_21 = arith.constant 0 : index
    %25 = vector.load %arg4[%c2, %c0_20, %c0_21] : memref<9x4x16xbf16, #tpu.memory_space<vmem>>, vector<1x4x16xbf16>
    %26 = vector.shape_cast %25 : vector<1x4x16xbf16> to vector<4x16xbf16>
    %cst_22 = arith.constant dense<0.000000e+00> : vector<4x8xf32>
    %27 = tpu.matmul %26, %9, %cst_22 {dimension_numbers = #tpu.dot_dimension_numbers<[1], [0], [0], [1], [0, 0, 1, 1], [], []>} : vector<4x16xbf16>, vector<16x8xbf16>, vector<4x8xf32> -> vector<4x8xf32>
    %c2_23 = arith.constant 2 : index
    %c0_24 = arith.constant 0 : index
    %c0_25 = arith.constant 0 : index
    %28 = vector.load %arg5[%c2_23, %c0_24, %c0_25] : memref<9x1x8xf32, #tpu.memory_space<vmem>>, vector<1x1x8xf32>
    %29 = vector.shape_cast %28 : vector<1x1x8xf32> to vector<1x8xf32>
    %30 = vector.broadcast %29 : vector<1x8xf32> to vector<4x8xf32>
    %31 = arith.mulf %27, %30 : vector<4x8xf32>
    %32 = arith.addf %24, %31 : vector<4x8xf32>
    %c3 = arith.constant 3 : index
    %c0_26 = arith.constant 0 : index
    %c0_27 = arith.constant 0 : index
    %33 = vector.load %arg4[%c3, %c0_26, %c0_27] : memref<9x4x16xbf16, #tpu.memory_space<vmem>>, vector<1x4x16xbf16>
    %34 = vector.shape_cast %33 : vector<1x4x16xbf16> to vector<4x16xbf16>
    %cst_28 = arith.constant dense<0.000000e+00> : vector<4x8xf32>
    %35 = tpu.matmul %34, %9, %cst_28 {dimension_numbers = #tpu.dot_dimension_numbers<[1], [0], [0], [1], [0, 0, 1, 1], [], []>} : vector<4x16xbf16>, vector<16x8xbf16>, vector<4x8xf32> -> vector<4x8xf32>
    %c3_29 = arith.constant 3 : index
    %c0_30 = arith.constant 0 : index
    %c0_31 = arith.constant 0 : index
    %36 = vector.load %arg5[%c3_29, %c0_30, %c0_31] : memref<9x1x8xf32, #tpu.memory_space<vmem>>, vector<1x1x8xf32>
    %37 = vector.shape_cast %36 : vector<1x1x8xf32> to vector<1x8xf32>
    %38 = vector.broadcast %37 : vector<1x8xf32> to vector<4x8xf32>
    %39 = arith.mulf %35, %38 : vector<4x8xf32>
    %40 = arith.addf %32, %39 : vector<4x8xf32>
    %c4 = arith.constant 4 : index
    %c0_32 = arith.constant 0 : index
    %c0_33 = arith.constant 0 : index
    %41 = vector.load %arg4[%c4, %c0_32, %c0_33] : memref<9x4x16xbf16, #tpu.memory_space<vmem>>, vector<1x4x16xbf16>
    %42 = vector.shape_cast %41 : vector<1x4x16xbf16> to vector<4x16xbf16>
    %cst_34 = arith.constant dense<0.000000e+00> : vector<4x8xf32>
    %43 = tpu.matmul %42, %9, %cst_34 {dimension_numbers = #tpu.dot_dimension_numbers<[1], [0], [0], [1], [0, 0, 1, 1], [], []>} : vector<4x16xbf16>, vector<16x8xbf16>, vector<4x8xf32> -> vector<4x8xf32>
    %c4_35 = arith.constant 4 : index
    %c0_36 = arith.constant 0 : index
    %c0_37 = arith.constant 0 : index
    %44 = vector.load %arg5[%c4_35, %c0_36, %c0_37] : memref<9x1x8xf32, #tpu.memory_space<vmem>>, vector<1x1x8xf32>
    %45 = vector.shape_cast %44 : vector<1x1x8xf32> to vector<1x8xf32>
    %46 = vector.broadcast %45 : vector<1x8xf32> to vector<4x8xf32>
    %47 = arith.mulf %43, %46 : vector<4x8xf32>
    %48 = arith.addf %40, %47 : vector<4x8xf32>
    %c5 = arith.constant 5 : index
    %c0_38 = arith.constant 0 : index
    %c0_39 = arith.constant 0 : index
    %49 = vector.load %arg4[%c5, %c0_38, %c0_39] : memref<9x4x16xbf16, #tpu.memory_space<vmem>>, vector<1x4x16xbf16>
    %50 = vector.shape_cast %49 : vector<1x4x16xbf16> to vector<4x16xbf16>
    %cst_40 = arith.constant dense<0.000000e+00> : vector<4x8xf32>
    %51 = tpu.matmul %50, %9, %cst_40 {dimension_numbers = #tpu.dot_dimension_numbers<[1], [0], [0], [1], [0, 0, 1, 1], [], []>} : vector<4x16xbf16>, vector<16x8xbf16>, vector<4x8xf32> -> vector<4x8xf32>
    %c5_41 = arith.constant 5 : index
    %c0_42 = arith.constant 0 : index
    %c0_43 = arith.constant 0 : index
    %52 = vector.load %arg5[%c5_41, %c0_42, %c0_43] : memref<9x1x8xf32, #tpu.memory_space<vmem>>, vector<1x1x8xf32>
    %53 = vector.shape_cast %52 : vector<1x1x8xf32> to vector<1x8xf32>
    %54 = vector.broadcast %53 : vector<1x8xf32> to vector<4x8xf32>
    %55 = arith.mulf %51, %54 : vector<4x8xf32>
    %56 = arith.addf %48, %55 : vector<4x8xf32>
    %c6 = arith.constant 6 : index
    %c0_44 = arith.constant 0 : index
    %c0_45 = arith.constant 0 : index
    %57 = vector.load %arg4[%c6, %c0_44, %c0_45] : memref<9x4x16xbf16, #tpu.memory_space<vmem>>, vector<1x4x16xbf16>
    %58 = vector.shape_cast %57 : vector<1x4x16xbf16> to vector<4x16xbf16>
    %cst_46 = arith.constant dense<0.000000e+00> : vector<4x8xf32>
    %59 = tpu.matmul %58, %9, %cst_46 {dimension_numbers = #tpu.dot_dimension_numbers<[1], [0], [0], [1], [0, 0, 1, 1], [], []>} : vector<4x16xbf16>, vector<16x8xbf16>, vector<4x8xf32> -> vector<4x8xf32>
    %c6_47 = arith.constant 6 : index
    %c0_48 = arith.constant 0 : index
    %c0_49 = arith.constant 0 : index
    %60 = vector.load %arg5[%c6_47, %c0_48, %c0_49] : memref<9x1x8xf32, #tpu.memory_space<vmem>>, vector<1x1x8xf32>
    %61 = vector.shape_cast %60 : vector<1x1x8xf32> to vector<1x8xf32>
    %62 = vector.broadcast %61 : vector<1x8xf32> to vector<4x8xf32>
    %63 = arith.mulf %59, %62 : vector<4x8xf32>
    %64 = arith.addf %56, %63 : vector<4x8xf32>
    %c7 = arith.constant 7 : index
    %c0_50 = arith.constant 0 : index
    %c0_51 = arith.constant 0 : index
    %65 = vector.load %arg4[%c7, %c0_50, %c0_51] : memref<9x4x16xbf16, #tpu.memory_space<vmem>>, vector<1x4x16xbf16>
    %66 = vector.shape_cast %65 : vector<1x4x16xbf16> to vector<4x16xbf16>
    %cst_52 = arith.constant dense<0.000000e+00> : vector<4x8xf32>
    %67 = tpu.matmul %66, %9, %cst_52 {dimension_numbers = #tpu.dot_dimension_numbers<[1], [0], [0], [1], [0, 0, 1, 1], [], []>} : vector<4x16xbf16>, vector<16x8xbf16>, vector<4x8xf32> -> vector<4x8xf32>
    %c7_53 = arith.constant 7 : index
    %c0_54 = arith.constant 0 : index
    %c0_55 = arith.constant 0 : index
    %68 = vector.load %arg5[%c7_53, %c0_54, %c0_55] : memref<9x1x8xf32, #tpu.memory_space<vmem>>, vector<1x1x8xf32>
    %69 = vector.shape_cast %68 : vector<1x1x8xf32> to vector<1x8xf32>
    %70 = vector.broadcast %69 : vector<1x8xf32> to vector<4x8xf32>
    %71 = arith.mulf %67, %70 : vector<4x8xf32>
    %72 = arith.addf %64, %71 : vector<4x8xf32>
    %c8 = arith.constant 8 : index
    %c0_56 = arith.constant 0 : index
    %c0_57 = arith.constant 0 : index
    %73 = vector.load %arg4[%c8, %c0_56, %c0_57] : memref<9x4x16xbf16, #tpu.memory_space<vmem>>, vector<1x4x16xbf16>
    %74 = vector.shape_cast %73 : vector<1x4x16xbf16> to vector<4x16xbf16>
    %cst_58 = arith.constant dense<0.000000e+00> : vector<4x8xf32>
    %75 = tpu.matmul %74, %9, %cst_58 {dimension_numbers = #tpu.dot_dimension_numbers<[1], [0], [0], [1], [0, 0, 1, 1], [], []>} : vector<4x16xbf16>, vector<16x8xbf16>, vector<4x8xf32> -> vector<4x8xf32>
    %c8_59 = arith.constant 8 : index
    %c0_60 = arith.constant 0 : index
    %c0_61 = arith.constant 0 : index
    %76 = vector.load %arg5[%c8_59, %c0_60, %c0_61] : memref<9x1x8xf32, #tpu.memory_space<vmem>>, vector<1x1x8xf32>
    %77 = vector.shape_cast %76 : vector<1x1x8xf32> to vector<1x8xf32>
    %78 = vector.broadcast %77 : vector<1x8xf32> to vector<4x8xf32>
    %79 = arith.mulf %75, %78 : vector<4x8xf32>
    %80 = arith.addf %72, %79 : vector<4x8xf32>
    %c0_62 = arith.constant 0 : index
    %c0_63 = arith.constant 0 : index
    %81 = vector.load %arg6[%c0_62, %c0_63] : memref<1x8xf32, #tpu.memory_space<vmem>>, vector<1x8xf32>
    %82 = vector.broadcast %81 : vector<1x8xf32> to vector<4x8xf32>
    %83 = arith.addf %80, %82 : vector<4x8xf32>
    %84 = arith.truncf %83 : vector<4x8xf32> to vector<4x8xbf16>
    %c0_64 = arith.constant 0 : index
    %c0_65 = arith.constant 0 : index
    %85 = vector.load %arg7[%c0_64, %c0_65] : memref<8x32xbf16, #tpu.memory_space<vmem>>, vector<8x32xbf16>
    %cst_66 = arith.constant dense<0.000000e+00> : vector<4x32xf32>
    %86 = tpu.matmul %84, %85, %cst_66 {dimension_numbers = #tpu.dot_dimension_numbers<[1], [0], [0], [1], [0, 0, 1, 1], [], []>} : vector<4x8xbf16>, vector<8x32xbf16>, vector<4x32xf32> -> vector<4x32xf32>
    %c0_67 = arith.constant 0 : index
    %c0_68 = arith.constant 0 : index
    %87 = vector.load %arg8[%c0_67, %c0_68] : memref<1x32xf32, #tpu.memory_space<vmem>>, vector<1x32xf32>
    %88 = vector.broadcast %87 : vector<1x32xf32> to vector<4x32xf32>
    %89 = arith.addf %86, %88 : vector<4x32xf32>
    %c0_69 = arith.constant 0 : index
    %c0_70 = arith.constant 0 : index
    %90 = vector.load %arg9[%c0_69, %c0_70] : memref<4x16xbf16, #tpu.memory_space<vmem>>, vector<4x16xbf16>
    %cst_71 = arith.constant dense<0.000000e+00> : vector<4x16xf32>
    %91 = tpu.matmul %90, %1, %cst_71 {dimension_numbers = #tpu.dot_dimension_numbers<[1], [0], [0], [1], [0, 0, 1, 1], [], []>} : vector<4x16xbf16>, vector<16x16xbf16>, vector<4x16xf32> -> vector<4x16xf32>
    %cst_72 = arith.constant 0.111111112 : f32
    %92 = vector.broadcast %cst_72 : f32 to vector<4x16xf32>
    %93 = arith.mulf %91, %92 : vector<4x16xf32>
    %94 = arith.truncf %93 : vector<4x16xf32> to vector<4x16xbf16>
    %c0_73 = arith.constant 0 : index
    %c0_74 = arith.constant 0 : index
    %95 = vector.load %arg10[%c0_73, %c0_74] : memref<16x32xbf16, #tpu.memory_space<vmem>>, vector<16x32xbf16>
    %cst_75 = arith.constant dense<0.000000e+00> : vector<4x32xf32>
    %96 = tpu.matmul %94, %95, %cst_75 {dimension_numbers = #tpu.dot_dimension_numbers<[1], [0], [0], [1], [0, 0, 1, 1], [], []>} : vector<4x16xbf16>, vector<16x32xbf16>, vector<4x32xf32> -> vector<4x32xf32>
    %97 = arith.addf %89, %96 : vector<4x32xf32>
    %cst_76 = arith.constant 0.000000e+00 : f32
    %98 = vector.broadcast %cst_76 : f32 to vector<4x32xf32>
    %99 = arith.maximumf %97, %98 : vector<4x32xf32>
    %100 = arith.truncf %99 : vector<4x32xf32> to vector<4x32xbf16>
    %c0_77 = arith.constant 0 : index
    %c0_78 = arith.constant 0 : index
    %c0_79 = arith.constant 0 : index
    %101 = vector.load %arg11[%c0_77, %c0_78, %c0_79] : memref<1x4x32xbf16, #tpu.memory_space<vmem>>, vector<1x4x32xbf16>
    %102 = vector.shape_cast %101 : vector<1x4x32xbf16> to vector<4x32xbf16>
    %103 = vector.shape_cast %100 : vector<4x32xbf16> to vector<1x4x32xbf16>
    tpu.vector_store %arg11[%c0_77, %c0_78, %c0_79], %103 {strides = array<i32>} : memref<1x4x32xbf16, #tpu.memory_space<vmem>>, vector<1x4x32xbf16>,
    return
  }
  func.func @transform_0(%arg0: i32) -> (i32, i32, i32) {
    %c0_i32 = arith.constant 0 : i32
    %c0_i32_0 = arith.constant 0 : i32
    %c0_i32_1 = arith.constant 0 : i32
    return %arg0, %c0_i32, %c0_i32_0 : i32, i32, i32
  }
  func.func @transform_1(%arg0: i32) -> (i32, i32) {
    %c0_i32 = arith.constant 0 : i32
    %c0_i32_0 = arith.constant 0 : i32
    %c0_i32_1 = arith.constant 0 : i32
    return %c0_i32, %c0_i32_0 : i32, i32
  }
  func.func @transform_2(%arg0: i32) -> (i32, i32) {
    %c0_i32 = arith.constant 0 : i32
    %c0_i32_0 = arith.constant 0 : i32
    %c0_i32_1 = arith.constant 0 : i32
    return %c0_i32, %c0_i32_0 : i32, i32
  }
  func.func @transform_3(%arg0: i32) -> (i32, i32, i32) {
    %c0_i32 = arith.constant 0 : i32
    %c0_i32_0 = arith.constant 0 : i32
    %c0_i32_1 = arith.constant 0 : i32
    %c0_i32_2 = arith.constant 0 : i32
    return %c0_i32, %c0_i32_0, %c0_i32_1 : i32, i32, i32
  }
  func.func @transform_4(%arg0: i32) -> (i32, i32, i32) {
    %c0_i32 = arith.constant 0 : i32
    %c0_i32_0 = arith.constant 0 : i32
    %c0_i32_1 = arith.constant 0 : i32
    %c0_i32_2 = arith.constant 0 : i32
    return %c0_i32, %c0_i32_0, %c0_i32_1 : i32, i32, i32
  }
  func.func @transform_5(%arg0: i32) -> (i32, i32) {
    %c0_i32 = arith.constant 0 : i32
    %c0_i32_0 = arith.constant 0 : i32
    %c0_i32_1 = arith.constant 0 : i32
    return %c0_i32, %c0_i32_0 : i32, i32
  }
  func.func @transform_6(%arg0: i32) -> (i32, i32) {
    %c0_i32 = arith.constant 0 : i32
    %c0_i32_0 = arith.constant 0 : i32
    %c0_i32_1 = arith.constant 0 : i32
    return %c0_i32, %c0_i32_0 : i32, i32
  }
  func.func @transform_7(%arg0: i32) -> (i32, i32) {
    %c0_i32 = arith.constant 0 : i32
    %c0_i32_0 = arith.constant 0 : i32
    %c0_i32_1 = arith.constant 0 : i32
    return %c0_i32, %c0_i32_0 : i32, i32
  }
  func.func @transform_8(%arg0: i32) -> (i32, i32) {
    %c0_i32 = arith.constant 0 : i32
    %c0_i32_0 = arith.constant 0 : i32
    %c0_i32_1 = arith.constant 0 : i32
    return %c0_i32, %c0_i32_0 : i32, i32
  }
  func.func @transform_9(%arg0: i32) -> (i32, i32) {
    %c0_i32 = arith.constant 0 : i32
    %c0_i32_0 = arith.constant 0 : i32
    %c0_i32_1 = arith.constant 0 : i32
    return %c0_i32, %c0_i32_0 : i32, i32
  }
  func.func @transform_10(%arg0: i32) -> (i32, i32, i32) {
    %c0_i32 = arith.constant 0 : i32
    %c0_i32_0 = arith.constant 0 : i32
    %c0_i32_1 = arith.constant 0 : i32
    return %arg0, %c0_i32, %c0_i32_0 : i32, i32, i32
  }
}

module attributes {stable_mosaic.version = 11 : i64} {
  func.func @_unit_s1_kernel(%arg0: i32, %arg1: memref<1x1x64xbf16, #tpu.memory_space<vmem>>, %arg2: memref<64x16xbf16, #tpu.memory_space<vmem>>, %arg3: memref<1x16xf32, #tpu.memory_space<vmem>>, %arg4: memref<9x1x1xbf16, #tpu.memory_space<vmem>>, %arg5: memref<9x1x16xf32, #tpu.memory_space<vmem>>, %arg6: memref<1x16xf32, #tpu.memory_space<vmem>>, %arg7: memref<16x64xbf16, #tpu.memory_space<vmem>>, %arg8: memref<1x64xf32, #tpu.memory_space<vmem>>, %arg9: memref<1x1x64xbf16, #tpu.memory_space<vmem>>) attributes {dimension_semantics = [#tpu.dimension_semantics<parallel>], iteration_bounds = array<i64: 2>, scalar_prefetch = 0 : i64, scratch_operands = 0 : i64, tpu.core_type = #tpu.core_type<tc>, window_params = [{transform_indices = @transform_0, window_bounds = array<i64: 1, 1, 64>}, {pipeline_mode = #tpu.pipeline_mode<synchronous>, transform_indices = @transform_1, window_bounds = array<i64: 64, 16>}, {pipeline_mode = #tpu.pipeline_mode<synchronous>, transform_indices = @transform_2, window_bounds = array<i64: 1, 16>}, {pipeline_mode = #tpu.pipeline_mode<synchronous>, transform_indices = @transform_3, window_bounds = array<i64: 9, 1, 1>}, {pipeline_mode = #tpu.pipeline_mode<synchronous>, transform_indices = @transform_4, window_bounds = array<i64: 9, 1, 16>}, {pipeline_mode = #tpu.pipeline_mode<synchronous>, transform_indices = @transform_5, window_bounds = array<i64: 1, 16>}, {pipeline_mode = #tpu.pipeline_mode<synchronous>, transform_indices = @transform_6, window_bounds = array<i64: 16, 64>}, {pipeline_mode = #tpu.pipeline_mode<synchronous>, transform_indices = @transform_7, window_bounds = array<i64: 1, 64>}, {transform_indices = @transform_8, window_bounds = array<i64: 1, 1, 64>}]} {
    %c0 = arith.constant 0 : index
    %c0_0 = arith.constant 0 : index
    %c0_1 = arith.constant 0 : index
    %0 = vector.load %arg1[%c0, %c0_0, %c0_1] : memref<1x1x64xbf16, #tpu.memory_space<vmem>>, vector<1x1x64xbf16>
    %1 = vector.shape_cast %0 : vector<1x1x64xbf16> to vector<1x64xbf16>
    %c0_2 = arith.constant 0 : index
    %c0_3 = arith.constant 0 : index
    %2 = vector.load %arg2[%c0_2, %c0_3] : memref<64x16xbf16, #tpu.memory_space<vmem>>, vector<64x16xbf16>
    %cst = arith.constant dense<0.000000e+00> : vector<1x16xf32>
    %3 = tpu.matmul %1, %2, %cst {dimension_numbers = #tpu.dot_dimension_numbers<[1], [0], [0], [1], [0, 0, 1, 1], [], []>} : vector<1x64xbf16>, vector<64x16xbf16>, vector<1x16xf32> -> vector<1x16xf32>
    %c0_4 = arith.constant 0 : index
    %c0_5 = arith.constant 0 : index
    %4 = vector.load %arg3[%c0_4, %c0_5] : memref<1x16xf32, #tpu.memory_space<vmem>>, vector<1x16xf32>
    %5 = arith.addf %3, %4 : vector<1x16xf32>
    %cst_6 = arith.constant 0.000000e+00 : f32
    %6 = vector.broadcast %cst_6 : f32 to vector<1x16xf32>
    %7 = arith.maximumf %5, %6 : vector<1x16xf32>
    %8 = arith.truncf %7 : vector<1x16xf32> to vector<1x16xbf16>
    %c0_7 = arith.constant 0 : index
    %c0_8 = arith.constant 0 : index
    %c0_9 = arith.constant 0 : index
    %9 = vector.load %arg4[%c0_7, %c0_8, %c0_9] : memref<9x1x1xbf16, #tpu.memory_space<vmem>>, vector<1x1x1xbf16>
    %10 = vector.shape_cast %9 : vector<1x1x1xbf16> to vector<1x1xbf16>
    %cst_10 = arith.constant dense<0.000000e+00> : vector<1x16xf32>
    %11 = tpu.matmul %10, %8, %cst_10 {dimension_numbers = #tpu.dot_dimension_numbers<[1], [0], [0], [1], [0, 0, 1, 1], [], []>} : vector<1x1xbf16>, vector<1x16xbf16>, vector<1x16xf32> -> vector<1x16xf32>
    %c0_11 = arith.constant 0 : index
    %c0_12 = arith.constant 0 : index
    %c0_13 = arith.constant 0 : index
    %12 = vector.load %arg5[%c0_11, %c0_12, %c0_13] : memref<9x1x16xf32, #tpu.memory_space<vmem>>, vector<1x1x16xf32>
    %13 = vector.shape_cast %12 : vector<1x1x16xf32> to vector<1x16xf32>
    %14 = arith.mulf %11, %13 : vector<1x16xf32>
    %c1 = arith.constant 1 : index
    %c0_14 = arith.constant 0 : index
    %c0_15 = arith.constant 0 : index
    %15 = vector.load %arg4[%c1, %c0_14, %c0_15] : memref<9x1x1xbf16, #tpu.memory_space<vmem>>, vector<1x1x1xbf16>
    %16 = vector.shape_cast %15 : vector<1x1x1xbf16> to vector<1x1xbf16>
    %cst_16 = arith.constant dense<0.000000e+00> : vector<1x16xf32>
    %17 = tpu.matmul %16, %8, %cst_16 {dimension_numbers = #tpu.dot_dimension_numbers<[1], [0], [0], [1], [0, 0, 1, 1], [], []>} : vector<1x1xbf16>, vector<1x16xbf16>, vector<1x16xf32> -> vector<1x16xf32>
    %c1_17 = arith.constant 1 : index
    %c0_18 = arith.constant 0 : index
    %c0_19 = arith.constant 0 : index
    %18 = vector.load %arg5[%c1_17, %c0_18, %c0_19] : memref<9x1x16xf32, #tpu.memory_space<vmem>>, vector<1x1x16xf32>
    %19 = vector.shape_cast %18 : vector<1x1x16xf32> to vector<1x16xf32>
    %20 = arith.mulf %17, %19 : vector<1x16xf32>
    %21 = arith.addf %14, %20 : vector<1x16xf32>
    %c2 = arith.constant 2 : index
    %c0_20 = arith.constant 0 : index
    %c0_21 = arith.constant 0 : index
    %22 = vector.load %arg4[%c2, %c0_20, %c0_21] : memref<9x1x1xbf16, #tpu.memory_space<vmem>>, vector<1x1x1xbf16>
    %23 = vector.shape_cast %22 : vector<1x1x1xbf16> to vector<1x1xbf16>
    %cst_22 = arith.constant dense<0.000000e+00> : vector<1x16xf32>
    %24 = tpu.matmul %23, %8, %cst_22 {dimension_numbers = #tpu.dot_dimension_numbers<[1], [0], [0], [1], [0, 0, 1, 1], [], []>} : vector<1x1xbf16>, vector<1x16xbf16>, vector<1x16xf32> -> vector<1x16xf32>
    %c2_23 = arith.constant 2 : index
    %c0_24 = arith.constant 0 : index
    %c0_25 = arith.constant 0 : index
    %25 = vector.load %arg5[%c2_23, %c0_24, %c0_25] : memref<9x1x16xf32, #tpu.memory_space<vmem>>, vector<1x1x16xf32>
    %26 = vector.shape_cast %25 : vector<1x1x16xf32> to vector<1x16xf32>
    %27 = arith.mulf %24, %26 : vector<1x16xf32>
    %28 = arith.addf %21, %27 : vector<1x16xf32>
    %c3 = arith.constant 3 : index
    %c0_26 = arith.constant 0 : index
    %c0_27 = arith.constant 0 : index
    %29 = vector.load %arg4[%c3, %c0_26, %c0_27] : memref<9x1x1xbf16, #tpu.memory_space<vmem>>, vector<1x1x1xbf16>
    %30 = vector.shape_cast %29 : vector<1x1x1xbf16> to vector<1x1xbf16>
    %cst_28 = arith.constant dense<0.000000e+00> : vector<1x16xf32>
    %31 = tpu.matmul %30, %8, %cst_28 {dimension_numbers = #tpu.dot_dimension_numbers<[1], [0], [0], [1], [0, 0, 1, 1], [], []>} : vector<1x1xbf16>, vector<1x16xbf16>, vector<1x16xf32> -> vector<1x16xf32>
    %c3_29 = arith.constant 3 : index
    %c0_30 = arith.constant 0 : index
    %c0_31 = arith.constant 0 : index
    %32 = vector.load %arg5[%c3_29, %c0_30, %c0_31] : memref<9x1x16xf32, #tpu.memory_space<vmem>>, vector<1x1x16xf32>
    %33 = vector.shape_cast %32 : vector<1x1x16xf32> to vector<1x16xf32>
    %34 = arith.mulf %31, %33 : vector<1x16xf32>
    %35 = arith.addf %28, %34 : vector<1x16xf32>
    %c4 = arith.constant 4 : index
    %c0_32 = arith.constant 0 : index
    %c0_33 = arith.constant 0 : index
    %36 = vector.load %arg4[%c4, %c0_32, %c0_33] : memref<9x1x1xbf16, #tpu.memory_space<vmem>>, vector<1x1x1xbf16>
    %37 = vector.shape_cast %36 : vector<1x1x1xbf16> to vector<1x1xbf16>
    %cst_34 = arith.constant dense<0.000000e+00> : vector<1x16xf32>
    %38 = tpu.matmul %37, %8, %cst_34 {dimension_numbers = #tpu.dot_dimension_numbers<[1], [0], [0], [1], [0, 0, 1, 1], [], []>} : vector<1x1xbf16>, vector<1x16xbf16>, vector<1x16xf32> -> vector<1x16xf32>
    %c4_35 = arith.constant 4 : index
    %c0_36 = arith.constant 0 : index
    %c0_37 = arith.constant 0 : index
    %39 = vector.load %arg5[%c4_35, %c0_36, %c0_37] : memref<9x1x16xf32, #tpu.memory_space<vmem>>, vector<1x1x16xf32>
    %40 = vector.shape_cast %39 : vector<1x1x16xf32> to vector<1x16xf32>
    %41 = arith.mulf %38, %40 : vector<1x16xf32>
    %42 = arith.addf %35, %41 : vector<1x16xf32>
    %c5 = arith.constant 5 : index
    %c0_38 = arith.constant 0 : index
    %c0_39 = arith.constant 0 : index
    %43 = vector.load %arg4[%c5, %c0_38, %c0_39] : memref<9x1x1xbf16, #tpu.memory_space<vmem>>, vector<1x1x1xbf16>
    %44 = vector.shape_cast %43 : vector<1x1x1xbf16> to vector<1x1xbf16>
    %cst_40 = arith.constant dense<0.000000e+00> : vector<1x16xf32>
    %45 = tpu.matmul %44, %8, %cst_40 {dimension_numbers = #tpu.dot_dimension_numbers<[1], [0], [0], [1], [0, 0, 1, 1], [], []>} : vector<1x1xbf16>, vector<1x16xbf16>, vector<1x16xf32> -> vector<1x16xf32>
    %c5_41 = arith.constant 5 : index
    %c0_42 = arith.constant 0 : index
    %c0_43 = arith.constant 0 : index
    %46 = vector.load %arg5[%c5_41, %c0_42, %c0_43] : memref<9x1x16xf32, #tpu.memory_space<vmem>>, vector<1x1x16xf32>
    %47 = vector.shape_cast %46 : vector<1x1x16xf32> to vector<1x16xf32>
    %48 = arith.mulf %45, %47 : vector<1x16xf32>
    %49 = arith.addf %42, %48 : vector<1x16xf32>
    %c6 = arith.constant 6 : index
    %c0_44 = arith.constant 0 : index
    %c0_45 = arith.constant 0 : index
    %50 = vector.load %arg4[%c6, %c0_44, %c0_45] : memref<9x1x1xbf16, #tpu.memory_space<vmem>>, vector<1x1x1xbf16>
    %51 = vector.shape_cast %50 : vector<1x1x1xbf16> to vector<1x1xbf16>
    %cst_46 = arith.constant dense<0.000000e+00> : vector<1x16xf32>
    %52 = tpu.matmul %51, %8, %cst_46 {dimension_numbers = #tpu.dot_dimension_numbers<[1], [0], [0], [1], [0, 0, 1, 1], [], []>} : vector<1x1xbf16>, vector<1x16xbf16>, vector<1x16xf32> -> vector<1x16xf32>
    %c6_47 = arith.constant 6 : index
    %c0_48 = arith.constant 0 : index
    %c0_49 = arith.constant 0 : index
    %53 = vector.load %arg5[%c6_47, %c0_48, %c0_49] : memref<9x1x16xf32, #tpu.memory_space<vmem>>, vector<1x1x16xf32>
    %54 = vector.shape_cast %53 : vector<1x1x16xf32> to vector<1x16xf32>
    %55 = arith.mulf %52, %54 : vector<1x16xf32>
    %56 = arith.addf %49, %55 : vector<1x16xf32>
    %c7 = arith.constant 7 : index
    %c0_50 = arith.constant 0 : index
    %c0_51 = arith.constant 0 : index
    %57 = vector.load %arg4[%c7, %c0_50, %c0_51] : memref<9x1x1xbf16, #tpu.memory_space<vmem>>, vector<1x1x1xbf16>
    %58 = vector.shape_cast %57 : vector<1x1x1xbf16> to vector<1x1xbf16>
    %cst_52 = arith.constant dense<0.000000e+00> : vector<1x16xf32>
    %59 = tpu.matmul %58, %8, %cst_52 {dimension_numbers = #tpu.dot_dimension_numbers<[1], [0], [0], [1], [0, 0, 1, 1], [], []>} : vector<1x1xbf16>, vector<1x16xbf16>, vector<1x16xf32> -> vector<1x16xf32>
    %c7_53 = arith.constant 7 : index
    %c0_54 = arith.constant 0 : index
    %c0_55 = arith.constant 0 : index
    %60 = vector.load %arg5[%c7_53, %c0_54, %c0_55] : memref<9x1x16xf32, #tpu.memory_space<vmem>>, vector<1x1x16xf32>
    %61 = vector.shape_cast %60 : vector<1x1x16xf32> to vector<1x16xf32>
    %62 = arith.mulf %59, %61 : vector<1x16xf32>
    %63 = arith.addf %56, %62 : vector<1x16xf32>
    %c8 = arith.constant 8 : index
    %c0_56 = arith.constant 0 : index
    %c0_57 = arith.constant 0 : index
    %64 = vector.load %arg4[%c8, %c0_56, %c0_57] : memref<9x1x1xbf16, #tpu.memory_space<vmem>>, vector<1x1x1xbf16>
    %65 = vector.shape_cast %64 : vector<1x1x1xbf16> to vector<1x1xbf16>
    %cst_58 = arith.constant dense<0.000000e+00> : vector<1x16xf32>
    %66 = tpu.matmul %65, %8, %cst_58 {dimension_numbers = #tpu.dot_dimension_numbers<[1], [0], [0], [1], [0, 0, 1, 1], [], []>} : vector<1x1xbf16>, vector<1x16xbf16>, vector<1x16xf32> -> vector<1x16xf32>
    %c8_59 = arith.constant 8 : index
    %c0_60 = arith.constant 0 : index
    %c0_61 = arith.constant 0 : index
    %67 = vector.load %arg5[%c8_59, %c0_60, %c0_61] : memref<9x1x16xf32, #tpu.memory_space<vmem>>, vector<1x1x16xf32>
    %68 = vector.shape_cast %67 : vector<1x1x16xf32> to vector<1x16xf32>
    %69 = arith.mulf %66, %68 : vector<1x16xf32>
    %70 = arith.addf %63, %69 : vector<1x16xf32>
    %c0_62 = arith.constant 0 : index
    %c0_63 = arith.constant 0 : index
    %71 = vector.load %arg6[%c0_62, %c0_63] : memref<1x16xf32, #tpu.memory_space<vmem>>, vector<1x16xf32>
    %72 = arith.addf %70, %71 : vector<1x16xf32>
    %73 = arith.truncf %72 : vector<1x16xf32> to vector<1x16xbf16>
    %c0_64 = arith.constant 0 : index
    %c0_65 = arith.constant 0 : index
    %74 = vector.load %arg7[%c0_64, %c0_65] : memref<16x64xbf16, #tpu.memory_space<vmem>>, vector<16x64xbf16>
    %cst_66 = arith.constant dense<0.000000e+00> : vector<1x64xf32>
    %75 = tpu.matmul %73, %74, %cst_66 {dimension_numbers = #tpu.dot_dimension_numbers<[1], [0], [0], [1], [0, 0, 1, 1], [], []>} : vector<1x16xbf16>, vector<16x64xbf16>, vector<1x64xf32> -> vector<1x64xf32>
    %c0_67 = arith.constant 0 : index
    %c0_68 = arith.constant 0 : index
    %76 = vector.load %arg8[%c0_67, %c0_68] : memref<1x64xf32, #tpu.memory_space<vmem>>, vector<1x64xf32>
    %77 = arith.addf %75, %76 : vector<1x64xf32>
    %78 = arith.extf %1 : vector<1x64xbf16> to vector<1x64xf32>
    %79 = arith.addf %77, %78 : vector<1x64xf32>
    %cst_69 = arith.constant 0.000000e+00 : f32
    %80 = vector.broadcast %cst_69 : f32 to vector<1x64xf32>
    %81 = arith.maximumf %79, %80 : vector<1x64xf32>
    %82 = arith.truncf %81 : vector<1x64xf32> to vector<1x64xbf16>
    %c0_70 = arith.constant 0 : index
    %c0_71 = arith.constant 0 : index
    %c0_72 = arith.constant 0 : index
    %83 = vector.load %arg9[%c0_70, %c0_71, %c0_72] : memref<1x1x64xbf16, #tpu.memory_space<vmem>>, vector<1x1x64xbf16>
    %84 = vector.shape_cast %83 : vector<1x1x64xbf16> to vector<1x64xbf16>
    %85 = vector.shape_cast %82 : vector<1x64xbf16> to vector<1x1x64xbf16>
    tpu.vector_store %arg9[%c0_70, %c0_71, %c0_72], %85 {strides = array<i32>} : memref<1x1x64xbf16, #tpu.memory_space<vmem>>, vector<1x1x64xbf16>,
    return
  }
  func.func @transform_0(%arg0: i32) -> (i32, i32, i32) {
    %c0_i32 = arith.constant 0 : i32
    %c0_i32_0 = arith.constant 0 : i32
    %c0_i32_1 = arith.constant 0 : i32
    return %arg0, %c0_i32, %c0_i32_0 : i32, i32, i32
  }
  func.func @transform_1(%arg0: i32) -> (i32, i32) {
    %c0_i32 = arith.constant 0 : i32
    %c0_i32_0 = arith.constant 0 : i32
    %c0_i32_1 = arith.constant 0 : i32
    return %c0_i32, %c0_i32_0 : i32, i32
  }
  func.func @transform_2(%arg0: i32) -> (i32, i32) {
    %c0_i32 = arith.constant 0 : i32
    %c0_i32_0 = arith.constant 0 : i32
    %c0_i32_1 = arith.constant 0 : i32
    return %c0_i32, %c0_i32_0 : i32, i32
  }
  func.func @transform_3(%arg0: i32) -> (i32, i32, i32) {
    %c0_i32 = arith.constant 0 : i32
    %c0_i32_0 = arith.constant 0 : i32
    %c0_i32_1 = arith.constant 0 : i32
    %c0_i32_2 = arith.constant 0 : i32
    return %c0_i32, %c0_i32_0, %c0_i32_1 : i32, i32, i32
  }
  func.func @transform_4(%arg0: i32) -> (i32, i32, i32) {
    %c0_i32 = arith.constant 0 : i32
    %c0_i32_0 = arith.constant 0 : i32
    %c0_i32_1 = arith.constant 0 : i32
    %c0_i32_2 = arith.constant 0 : i32
    return %c0_i32, %c0_i32_0, %c0_i32_1 : i32, i32, i32
  }
  func.func @transform_5(%arg0: i32) -> (i32, i32) {
    %c0_i32 = arith.constant 0 : i32
    %c0_i32_0 = arith.constant 0 : i32
    %c0_i32_1 = arith.constant 0 : i32
    return %c0_i32, %c0_i32_0 : i32, i32
  }
  func.func @transform_6(%arg0: i32) -> (i32, i32) {
    %c0_i32 = arith.constant 0 : i32
    %c0_i32_0 = arith.constant 0 : i32
    %c0_i32_1 = arith.constant 0 : i32
    return %c0_i32, %c0_i32_0 : i32, i32
  }
  func.func @transform_7(%arg0: i32) -> (i32, i32) {
    %c0_i32 = arith.constant 0 : i32
    %c0_i32_0 = arith.constant 0 : i32
    %c0_i32_1 = arith.constant 0 : i32
    return %c0_i32, %c0_i32_0 : i32, i32
  }
  func.func @transform_8(%arg0: i32) -> (i32, i32, i32) {
    %c0_i32 = arith.constant 0 : i32
    %c0_i32_0 = arith.constant 0 : i32
    %c0_i32_1 = arith.constant 0 : i32
    return %arg0, %c0_i32, %c0_i32_0 : i32, i32, i32
  }
}

module attributes {stable_mosaic.version = 11 : i64} {
  func.func @_unit_s2_kernel(%arg0: i32, %arg1: memref<1x4x32xbf16, #tpu.memory_space<vmem>>, %arg2: memref<32x16xbf16, #tpu.memory_space<vmem>>, %arg3: memref<1x16xf32, #tpu.memory_space<vmem>>, %arg4: memref<9x1x4xbf16, #tpu.memory_space<vmem>>, %arg5: memref<9x1x16xf32, #tpu.memory_space<vmem>>, %arg6: memref<1x16xf32, #tpu.memory_space<vmem>>, %arg7: memref<16x64xbf16, #tpu.memory_space<vmem>>, %arg8: memref<1x64xf32, #tpu.memory_space<vmem>>, %arg9: memref<1x4xbf16, #tpu.memory_space<vmem>>, %arg10: memref<32x64xbf16, #tpu.memory_space<vmem>>, %arg11: memref<1x1x64xbf16, #tpu.memory_space<vmem>>) attributes {dimension_semantics = [#tpu.dimension_semantics<parallel>], iteration_bounds = array<i64: 2>, scalar_prefetch = 0 : i64, scratch_operands = 0 : i64, tpu.core_type = #tpu.core_type<tc>, window_params = [{transform_indices = @transform_0, window_bounds = array<i64: 1, 4, 32>}, {pipeline_mode = #tpu.pipeline_mode<synchronous>, transform_indices = @transform_1, window_bounds = array<i64: 32, 16>}, {pipeline_mode = #tpu.pipeline_mode<synchronous>, transform_indices = @transform_2, window_bounds = array<i64: 1, 16>}, {pipeline_mode = #tpu.pipeline_mode<synchronous>, transform_indices = @transform_3, window_bounds = array<i64: 9, 1, 4>}, {pipeline_mode = #tpu.pipeline_mode<synchronous>, transform_indices = @transform_4, window_bounds = array<i64: 9, 1, 16>}, {pipeline_mode = #tpu.pipeline_mode<synchronous>, transform_indices = @transform_5, window_bounds = array<i64: 1, 16>}, {pipeline_mode = #tpu.pipeline_mode<synchronous>, transform_indices = @transform_6, window_bounds = array<i64: 16, 64>}, {pipeline_mode = #tpu.pipeline_mode<synchronous>, transform_indices = @transform_7, window_bounds = array<i64: 1, 64>}, {pipeline_mode = #tpu.pipeline_mode<synchronous>, transform_indices = @transform_8, window_bounds = array<i64: 1, 4>}, {pipeline_mode = #tpu.pipeline_mode<synchronous>, transform_indices = @transform_9, window_bounds = array<i64: 32, 64>}, {transform_indices = @transform_10, window_bounds = array<i64: 1, 1, 64>}]} {
    %c0 = arith.constant 0 : index
    %c0_0 = arith.constant 0 : index
    %c0_1 = arith.constant 0 : index
    %0 = vector.load %arg1[%c0, %c0_0, %c0_1] : memref<1x4x32xbf16, #tpu.memory_space<vmem>>, vector<1x4x32xbf16>
    %1 = vector.shape_cast %0 : vector<1x4x32xbf16> to vector<4x32xbf16>
    %c0_2 = arith.constant 0 : index
    %c0_3 = arith.constant 0 : index
    %2 = vector.load %arg2[%c0_2, %c0_3] : memref<32x16xbf16, #tpu.memory_space<vmem>>, vector<32x16xbf16>
    %cst = arith.constant dense<0.000000e+00> : vector<4x16xf32>
    %3 = tpu.matmul %1, %2, %cst {dimension_numbers = #tpu.dot_dimension_numbers<[1], [0], [0], [1], [0, 0, 1, 1], [], []>} : vector<4x32xbf16>, vector<32x16xbf16>, vector<4x16xf32> -> vector<4x16xf32>
    %c0_4 = arith.constant 0 : index
    %c0_5 = arith.constant 0 : index
    %4 = vector.load %arg3[%c0_4, %c0_5] : memref<1x16xf32, #tpu.memory_space<vmem>>, vector<1x16xf32>
    %5 = vector.broadcast %4 : vector<1x16xf32> to vector<4x16xf32>
    %6 = arith.addf %3, %5 : vector<4x16xf32>
    %cst_6 = arith.constant 0.000000e+00 : f32
    %7 = vector.broadcast %cst_6 : f32 to vector<4x16xf32>
    %8 = arith.maximumf %6, %7 : vector<4x16xf32>
    %9 = arith.truncf %8 : vector<4x16xf32> to vector<4x16xbf16>
    %c0_7 = arith.constant 0 : index
    %c0_8 = arith.constant 0 : index
    %c0_9 = arith.constant 0 : index
    %10 = vector.load %arg4[%c0_7, %c0_8, %c0_9] : memref<9x1x4xbf16, #tpu.memory_space<vmem>>, vector<1x1x4xbf16>
    %11 = vector.shape_cast %10 : vector<1x1x4xbf16> to vector<1x4xbf16>
    %cst_10 = arith.constant dense<0.000000e+00> : vector<1x16xf32>
    %12 = tpu.matmul %11, %9, %cst_10 {dimension_numbers = #tpu.dot_dimension_numbers<[1], [0], [0], [1], [0, 0, 1, 1], [], []>} : vector<1x4xbf16>, vector<4x16xbf16>, vector<1x16xf32> -> vector<1x16xf32>
    %c0_11 = arith.constant 0 : index
    %c0_12 = arith.constant 0 : index
    %c0_13 = arith.constant 0 : index
    %13 = vector.load %arg5[%c0_11, %c0_12, %c0_13] : memref<9x1x16xf32, #tpu.memory_space<vmem>>, vector<1x1x16xf32>
    %14 = vector.shape_cast %13 : vector<1x1x16xf32> to vector<1x16xf32>
    %15 = arith.mulf %12, %14 : vector<1x16xf32>
    %c1 = arith.constant 1 : index
    %c0_14 = arith.constant 0 : index
    %c0_15 = arith.constant 0 : index
    %16 = vector.load %arg4[%c1, %c0_14, %c0_15] : memref<9x1x4xbf16, #tpu.memory_space<vmem>>, vector<1x1x4xbf16>
    %17 = vector.shape_cast %16 : vector<1x1x4xbf16> to vector<1x4xbf16>
    %cst_16 = arith.constant dense<0.000000e+00> : vector<1x16xf32>
    %18 = tpu.matmul %17, %9, %cst_16 {dimension_numbers = #tpu.dot_dimension_numbers<[1], [0], [0], [1], [0, 0, 1, 1], [], []>} : vector<1x4xbf16>, vector<4x16xbf16>, vector<1x16xf32> -> vector<1x16xf32>
    %c1_17 = arith.constant 1 : index
    %c0_18 = arith.constant 0 : index
    %c0_19 = arith.constant 0 : index
    %19 = vector.load %arg5[%c1_17, %c0_18, %c0_19] : memref<9x1x16xf32, #tpu.memory_space<vmem>>, vector<1x1x16xf32>
    %20 = vector.shape_cast %19 : vector<1x1x16xf32> to vector<1x16xf32>
    %21 = arith.mulf %18, %20 : vector<1x16xf32>
    %22 = arith.addf %15, %21 : vector<1x16xf32>
    %c2 = arith.constant 2 : index
    %c0_20 = arith.constant 0 : index
    %c0_21 = arith.constant 0 : index
    %23 = vector.load %arg4[%c2, %c0_20, %c0_21] : memref<9x1x4xbf16, #tpu.memory_space<vmem>>, vector<1x1x4xbf16>
    %24 = vector.shape_cast %23 : vector<1x1x4xbf16> to vector<1x4xbf16>
    %cst_22 = arith.constant dense<0.000000e+00> : vector<1x16xf32>
    %25 = tpu.matmul %24, %9, %cst_22 {dimension_numbers = #tpu.dot_dimension_numbers<[1], [0], [0], [1], [0, 0, 1, 1], [], []>} : vector<1x4xbf16>, vector<4x16xbf16>, vector<1x16xf32> -> vector<1x16xf32>
    %c2_23 = arith.constant 2 : index
    %c0_24 = arith.constant 0 : index
    %c0_25 = arith.constant 0 : index
    %26 = vector.load %arg5[%c2_23, %c0_24, %c0_25] : memref<9x1x16xf32, #tpu.memory_space<vmem>>, vector<1x1x16xf32>
    %27 = vector.shape_cast %26 : vector<1x1x16xf32> to vector<1x16xf32>
    %28 = arith.mulf %25, %27 : vector<1x16xf32>
    %29 = arith.addf %22, %28 : vector<1x16xf32>
    %c3 = arith.constant 3 : index
    %c0_26 = arith.constant 0 : index
    %c0_27 = arith.constant 0 : index
    %30 = vector.load %arg4[%c3, %c0_26, %c0_27] : memref<9x1x4xbf16, #tpu.memory_space<vmem>>, vector<1x1x4xbf16>
    %31 = vector.shape_cast %30 : vector<1x1x4xbf16> to vector<1x4xbf16>
    %cst_28 = arith.constant dense<0.000000e+00> : vector<1x16xf32>
    %32 = tpu.matmul %31, %9, %cst_28 {dimension_numbers = #tpu.dot_dimension_numbers<[1], [0], [0], [1], [0, 0, 1, 1], [], []>} : vector<1x4xbf16>, vector<4x16xbf16>, vector<1x16xf32> -> vector<1x16xf32>
    %c3_29 = arith.constant 3 : index
    %c0_30 = arith.constant 0 : index
    %c0_31 = arith.constant 0 : index
    %33 = vector.load %arg5[%c3_29, %c0_30, %c0_31] : memref<9x1x16xf32, #tpu.memory_space<vmem>>, vector<1x1x16xf32>
    %34 = vector.shape_cast %33 : vector<1x1x16xf32> to vector<1x16xf32>
    %35 = arith.mulf %32, %34 : vector<1x16xf32>
    %36 = arith.addf %29, %35 : vector<1x16xf32>
    %c4 = arith.constant 4 : index
    %c0_32 = arith.constant 0 : index
    %c0_33 = arith.constant 0 : index
    %37 = vector.load %arg4[%c4, %c0_32, %c0_33] : memref<9x1x4xbf16, #tpu.memory_space<vmem>>, vector<1x1x4xbf16>
    %38 = vector.shape_cast %37 : vector<1x1x4xbf16> to vector<1x4xbf16>
    %cst_34 = arith.constant dense<0.000000e+00> : vector<1x16xf32>
    %39 = tpu.matmul %38, %9, %cst_34 {dimension_numbers = #tpu.dot_dimension_numbers<[1], [0], [0], [1], [0, 0, 1, 1], [], []>} : vector<1x4xbf16>, vector<4x16xbf16>, vector<1x16xf32> -> vector<1x16xf32>
    %c4_35 = arith.constant 4 : index
    %c0_36 = arith.constant 0 : index
    %c0_37 = arith.constant 0 : index
    %40 = vector.load %arg5[%c4_35, %c0_36, %c0_37] : memref<9x1x16xf32, #tpu.memory_space<vmem>>, vector<1x1x16xf32>
    %41 = vector.shape_cast %40 : vector<1x1x16xf32> to vector<1x16xf32>
    %42 = arith.mulf %39, %41 : vector<1x16xf32>
    %43 = arith.addf %36, %42 : vector<1x16xf32>
    %c5 = arith.constant 5 : index
    %c0_38 = arith.constant 0 : index
    %c0_39 = arith.constant 0 : index
    %44 = vector.load %arg4[%c5, %c0_38, %c0_39] : memref<9x1x4xbf16, #tpu.memory_space<vmem>>, vector<1x1x4xbf16>
    %45 = vector.shape_cast %44 : vector<1x1x4xbf16> to vector<1x4xbf16>
    %cst_40 = arith.constant dense<0.000000e+00> : vector<1x16xf32>
    %46 = tpu.matmul %45, %9, %cst_40 {dimension_numbers = #tpu.dot_dimension_numbers<[1], [0], [0], [1], [0, 0, 1, 1], [], []>} : vector<1x4xbf16>, vector<4x16xbf16>, vector<1x16xf32> -> vector<1x16xf32>
    %c5_41 = arith.constant 5 : index
    %c0_42 = arith.constant 0 : index
    %c0_43 = arith.constant 0 : index
    %47 = vector.load %arg5[%c5_41, %c0_42, %c0_43] : memref<9x1x16xf32, #tpu.memory_space<vmem>>, vector<1x1x16xf32>
    %48 = vector.shape_cast %47 : vector<1x1x16xf32> to vector<1x16xf32>
    %49 = arith.mulf %46, %48 : vector<1x16xf32>
    %50 = arith.addf %43, %49 : vector<1x16xf32>
    %c6 = arith.constant 6 : index
    %c0_44 = arith.constant 0 : index
    %c0_45 = arith.constant 0 : index
    %51 = vector.load %arg4[%c6, %c0_44, %c0_45] : memref<9x1x4xbf16, #tpu.memory_space<vmem>>, vector<1x1x4xbf16>
    %52 = vector.shape_cast %51 : vector<1x1x4xbf16> to vector<1x4xbf16>
    %cst_46 = arith.constant dense<0.000000e+00> : vector<1x16xf32>
    %53 = tpu.matmul %52, %9, %cst_46 {dimension_numbers = #tpu.dot_dimension_numbers<[1], [0], [0], [1], [0, 0, 1, 1], [], []>} : vector<1x4xbf16>, vector<4x16xbf16>, vector<1x16xf32> -> vector<1x16xf32>
    %c6_47 = arith.constant 6 : index
    %c0_48 = arith.constant 0 : index
    %c0_49 = arith.constant 0 : index
    %54 = vector.load %arg5[%c6_47, %c0_48, %c0_49] : memref<9x1x16xf32, #tpu.memory_space<vmem>>, vector<1x1x16xf32>
    %55 = vector.shape_cast %54 : vector<1x1x16xf32> to vector<1x16xf32>
    %56 = arith.mulf %53, %55 : vector<1x16xf32>
    %57 = arith.addf %50, %56 : vector<1x16xf32>
    %c7 = arith.constant 7 : index
    %c0_50 = arith.constant 0 : index
    %c0_51 = arith.constant 0 : index
    %58 = vector.load %arg4[%c7, %c0_50, %c0_51] : memref<9x1x4xbf16, #tpu.memory_space<vmem>>, vector<1x1x4xbf16>
    %59 = vector.shape_cast %58 : vector<1x1x4xbf16> to vector<1x4xbf16>
    %cst_52 = arith.constant dense<0.000000e+00> : vector<1x16xf32>
    %60 = tpu.matmul %59, %9, %cst_52 {dimension_numbers = #tpu.dot_dimension_numbers<[1], [0], [0], [1], [0, 0, 1, 1], [], []>} : vector<1x4xbf16>, vector<4x16xbf16>, vector<1x16xf32> -> vector<1x16xf32>
    %c7_53 = arith.constant 7 : index
    %c0_54 = arith.constant 0 : index
    %c0_55 = arith.constant 0 : index
    %61 = vector.load %arg5[%c7_53, %c0_54, %c0_55] : memref<9x1x16xf32, #tpu.memory_space<vmem>>, vector<1x1x16xf32>
    %62 = vector.shape_cast %61 : vector<1x1x16xf32> to vector<1x16xf32>
    %63 = arith.mulf %60, %62 : vector<1x16xf32>
    %64 = arith.addf %57, %63 : vector<1x16xf32>
    %c8 = arith.constant 8 : index
    %c0_56 = arith.constant 0 : index
    %c0_57 = arith.constant 0 : index
    %65 = vector.load %arg4[%c8, %c0_56, %c0_57] : memref<9x1x4xbf16, #tpu.memory_space<vmem>>, vector<1x1x4xbf16>
    %66 = vector.shape_cast %65 : vector<1x1x4xbf16> to vector<1x4xbf16>
    %cst_58 = arith.constant dense<0.000000e+00> : vector<1x16xf32>
    %67 = tpu.matmul %66, %9, %cst_58 {dimension_numbers = #tpu.dot_dimension_numbers<[1], [0], [0], [1], [0, 0, 1, 1], [], []>} : vector<1x4xbf16>, vector<4x16xbf16>, vector<1x16xf32> -> vector<1x16xf32>
    %c8_59 = arith.constant 8 : index
    %c0_60 = arith.constant 0 : index
    %c0_61 = arith.constant 0 : index
    %68 = vector.load %arg5[%c8_59, %c0_60, %c0_61] : memref<9x1x16xf32, #tpu.memory_space<vmem>>, vector<1x1x16xf32>
    %69 = vector.shape_cast %68 : vector<1x1x16xf32> to vector<1x16xf32>
    %70 = arith.mulf %67, %69 : vector<1x16xf32>
    %71 = arith.addf %64, %70 : vector<1x16xf32>
    %c0_62 = arith.constant 0 : index
    %c0_63 = arith.constant 0 : index
    %72 = vector.load %arg6[%c0_62, %c0_63] : memref<1x16xf32, #tpu.memory_space<vmem>>, vector<1x16xf32>
    %73 = arith.addf %71, %72 : vector<1x16xf32>
    %74 = arith.truncf %73 : vector<1x16xf32> to vector<1x16xbf16>
    %c0_64 = arith.constant 0 : index
    %c0_65 = arith.constant 0 : index
    %75 = vector.load %arg7[%c0_64, %c0_65] : memref<16x64xbf16, #tpu.memory_space<vmem>>, vector<16x64xbf16>
    %cst_66 = arith.constant dense<0.000000e+00> : vector<1x64xf32>
    %76 = tpu.matmul %74, %75, %cst_66 {dimension_numbers = #tpu.dot_dimension_numbers<[1], [0], [0], [1], [0, 0, 1, 1], [], []>} : vector<1x16xbf16>, vector<16x64xbf16>, vector<1x64xf32> -> vector<1x64xf32>
    %c0_67 = arith.constant 0 : index
    %c0_68 = arith.constant 0 : index
    %77 = vector.load %arg8[%c0_67, %c0_68] : memref<1x64xf32, #tpu.memory_space<vmem>>, vector<1x64xf32>
    %78 = arith.addf %76, %77 : vector<1x64xf32>
    %c0_69 = arith.constant 0 : index
    %c0_70 = arith.constant 0 : index
    %79 = vector.load %arg9[%c0_69, %c0_70] : memref<1x4xbf16, #tpu.memory_space<vmem>>, vector<1x4xbf16>
    %cst_71 = arith.constant dense<0.000000e+00> : vector<1x32xf32>
    %80 = tpu.matmul %79, %1, %cst_71 {dimension_numbers = #tpu.dot_dimension_numbers<[1], [0], [0], [1], [0, 0, 1, 1], [], []>} : vector<1x4xbf16>, vector<4x32xbf16>, vector<1x32xf32> -> vector<1x32xf32>
    %cst_72 = arith.constant 0.111111112 : f32
    %81 = vector.broadcast %cst_72 : f32 to vector<1x32xf32>
    %82 = arith.mulf %80, %81 : vector<1x32xf32>
    %83 = arith.truncf %82 : vector<1x32xf32> to vector<1x32xbf16>
    %c0_73 = arith.constant 0 : index
    %c0_74 = arith.constant 0 : index
    %84 = vector.load %arg10[%c0_73, %c0_74] : memref<32x64xbf16, #tpu.memory_space<vmem>>, vector<32x64xbf16>
    %cst_75 = arith.constant dense<0.000000e+00> : vector<1x64xf32>
    %85 = tpu.matmul %83, %84, %cst_75 {dimension_numbers = #tpu.dot_dimension_numbers<[1], [0], [0], [1], [0, 0, 1, 1], [], []>} : vector<1x32xbf16>, vector<32x64xbf16>, vector<1x64xf32> -> vector<1x64xf32>
    %86 = arith.addf %78, %85 : vector<1x64xf32>
    %cst_76 = arith.constant 0.000000e+00 : f32
    %87 = vector.broadcast %cst_76 : f32 to vector<1x64xf32>
    %88 = arith.maximumf %86, %87 : vector<1x64xf32>
    %89 = arith.truncf %88 : vector<1x64xf32> to vector<1x64xbf16>
    %c0_77 = arith.constant 0 : index
    %c0_78 = arith.constant 0 : index
    %c0_79 = arith.constant 0 : index
    %90 = vector.load %arg11[%c0_77, %c0_78, %c0_79] : memref<1x1x64xbf16, #tpu.memory_space<vmem>>, vector<1x1x64xbf16>
    %91 = vector.shape_cast %90 : vector<1x1x64xbf16> to vector<1x64xbf16>
    %92 = vector.shape_cast %89 : vector<1x64xbf16> to vector<1x1x64xbf16>
    tpu.vector_store %arg11[%c0_77, %c0_78, %c0_79], %92 {strides = array<i32>} : memref<1x1x64xbf16, #tpu.memory_space<vmem>>, vector<1x1x64xbf16>,
    return
  }
  func.func @transform_0(%arg0: i32) -> (i32, i32, i32) {
    %c0_i32 = arith.constant 0 : i32
    %c0_i32_0 = arith.constant 0 : i32
    %c0_i32_1 = arith.constant 0 : i32
    return %arg0, %c0_i32, %c0_i32_0 : i32, i32, i32
  }
  func.func @transform_1(%arg0: i32) -> (i32, i32) {
    %c0_i32 = arith.constant 0 : i32
    %c0_i32_0 = arith.constant 0 : i32
    %c0_i32_1 = arith.constant 0 : i32
    return %c0_i32, %c0_i32_0 : i32, i32
  }
  func.func @transform_2(%arg0: i32) -> (i32, i32) {
    %c0_i32 = arith.constant 0 : i32
    %c0_i32_0 = arith.constant 0 : i32
    %c0_i32_1 = arith.constant 0 : i32
    return %c0_i32, %c0_i32_0 : i32, i32
  }
  func.func @transform_3(%arg0: i32) -> (i32, i32, i32) {
    %c0_i32 = arith.constant 0 : i32
    %c0_i32_0 = arith.constant 0 : i32
    %c0_i32_1 = arith.constant 0 : i32
    %c0_i32_2 = arith.constant 0 : i32
    return %c0_i32, %c0_i32_0, %c0_i32_1 : i32, i32, i32
  }
  func.func @transform_4(%arg0: i32) -> (i32, i32, i32) {
    %c0_i32 = arith.constant 0 : i32
    %c0_i32_0 = arith.constant 0 : i32
    %c0_i32_1 = arith.constant 0 : i32
    %c0_i32_2 = arith.constant 0 : i32
    return %c0_i32, %c0_i32_0, %c0_i32_1 : i32, i32, i32
  }
  func.func @transform_5(%arg0: i32) -> (i32, i32) {
    %c0_i32 = arith.constant 0 : i32
    %c0_i32_0 = arith.constant 0 : i32
    %c0_i32_1 = arith.constant 0 : i32
    return %c0_i32, %c0_i32_0 : i32, i32
  }
  func.func @transform_6(%arg0: i32) -> (i32, i32) {
    %c0_i32 = arith.constant 0 : i32
    %c0_i32_0 = arith.constant 0 : i32
    %c0_i32_1 = arith.constant 0 : i32
    return %c0_i32, %c0_i32_0 : i32, i32
  }
  func.func @transform_7(%arg0: i32) -> (i32, i32) {
    %c0_i32 = arith.constant 0 : i32
    %c0_i32_0 = arith.constant 0 : i32
    %c0_i32_1 = arith.constant 0 : i32
    return %c0_i32, %c0_i32_0 : i32, i32
  }
  func.func @transform_8(%arg0: i32) -> (i32, i32) {
    %c0_i32 = arith.constant 0 : i32
    %c0_i32_0 = arith.constant 0 : i32
    %c0_i32_1 = arith.constant 0 : i32
    return %c0_i32, %c0_i32_0 : i32, i32
  }
  func.func @transform_9(%arg0: i32) -> (i32, i32) {
    %c0_i32 = arith.constant 0 : i32
    %c0_i32_0 = arith.constant 0 : i32
    %c0_i32_1 = arith.constant 0 : i32
    return %c0_i32, %c0_i32_0 : i32, i32
  }
  func.func @transform_10(%arg0: i32) -> (i32, i32, i32) {
    %c0_i32 = arith.constant 0 : i32
    %c0_i32_0 = arith.constant 0 : i32
    %c0_i32_1 = arith.constant 0 : i32
    return %arg0, %c0_i32, %c0_i32_0 : i32, i32, i32
  }
}

module attributes {stable_mosaic.version = 11 : i64} {
  func.func @_heads_kernel(%arg0: i32, %arg1: memref<2x64xbf16, #tpu.memory_space<vmem>>, %arg2: memref<64x10xbf16, #tpu.memory_space<vmem>>, %arg3: memref<64x1000xbf16, #tpu.memory_space<vmem>>, %arg4: memref<2x10xf32, #tpu.memory_space<vmem>>, %arg5: memref<2x1000xf32, #tpu.memory_space<vmem>>) attributes {dimension_semantics = [#tpu.dimension_semantics<parallel>], iteration_bounds = array<i64: 1>, scalar_prefetch = 0 : i64, scratch_operands = 0 : i64, tpu.core_type = #tpu.core_type<tc>, window_params = [{pipeline_mode = #tpu.pipeline_mode<synchronous>, transform_indices = @transform_0, window_bounds = array<i64: 2, 64>}, {pipeline_mode = #tpu.pipeline_mode<synchronous>, transform_indices = @transform_1, window_bounds = array<i64: 64, 10>}, {pipeline_mode = #tpu.pipeline_mode<synchronous>, transform_indices = @transform_2, window_bounds = array<i64: 64, 1000>}, {pipeline_mode = #tpu.pipeline_mode<synchronous>, transform_indices = @transform_3, window_bounds = array<i64: 2, 10>}, {pipeline_mode = #tpu.pipeline_mode<synchronous>, transform_indices = @transform_4, window_bounds = array<i64: 2, 1000>}]} {
    %c0 = arith.constant 0 : index
    %c0_0 = arith.constant 0 : index
    %0 = vector.load %arg1[%c0, %c0_0] : memref<2x64xbf16, #tpu.memory_space<vmem>>, vector<2x64xbf16>
    %c0_1 = arith.constant 0 : index
    %c0_2 = arith.constant 0 : index
    %1 = vector.load %arg2[%c0_1, %c0_2] : memref<64x10xbf16, #tpu.memory_space<vmem>>, vector<64x10xbf16>
    %cst = arith.constant dense<0.000000e+00> : vector<2x10xf32>
    %2 = tpu.matmul %0, %1, %cst {dimension_numbers = #tpu.dot_dimension_numbers<[1], [0], [0], [1], [0, 0, 1, 1], [], []>} : vector<2x64xbf16>, vector<64x10xbf16>, vector<2x10xf32> -> vector<2x10xf32>
    %c0_3 = arith.constant 0 : index
    %c0_4 = arith.constant 0 : index
    %3 = vector.load %arg4[%c0_3, %c0_4] : memref<2x10xf32, #tpu.memory_space<vmem>>, vector<2x10xf32>
    tpu.vector_store %arg4[%c0_3, %c0_4], %2 {strides = array<i32>} : memref<2x10xf32, #tpu.memory_space<vmem>>, vector<2x10xf32>,
    %c0_5 = arith.constant 0 : index
    %c0_6 = arith.constant 0 : index
    %4 = vector.load %arg3[%c0_5, %c0_6] : memref<64x1000xbf16, #tpu.memory_space<vmem>>, vector<64x1000xbf16>
    %cst_7 = arith.constant dense<0.000000e+00> : vector<2x1000xf32>
    %5 = tpu.matmul %0, %4, %cst_7 {dimension_numbers = #tpu.dot_dimension_numbers<[1], [0], [0], [1], [0, 0, 1, 1], [], []>} : vector<2x64xbf16>, vector<64x1000xbf16>, vector<2x1000xf32> -> vector<2x1000xf32>
    %cst_8 = arith.constant 0.000000e+00 : f32
    %6 = vector.broadcast %cst_8 : f32 to vector<2x1000xf32>
    %7 = arith.maximumf %5, %6 : vector<2x1000xf32>
    %c0_9 = arith.constant 0 : index
    %c0_10 = arith.constant 0 : index
    %8 = vector.load %arg5[%c0_9, %c0_10] : memref<2x1000xf32, #tpu.memory_space<vmem>>, vector<2x1000xf32>
    tpu.vector_store %arg5[%c0_9, %c0_10], %7 {strides = array<i32>} : memref<2x1000xf32, #tpu.memory_space<vmem>>, vector<2x1000xf32>,
    return
  }
  func.func @transform_0(%arg0: i32) -> (i32, i32) {
    %c0_i32 = arith.constant 0 : i32
    %c0_i32_0 = arith.constant 0 : i32
    %c0_i32_1 = arith.constant 0 : i32
    return %c0_i32, %c0_i32_0 : i32, i32
  }
  func.func @transform_1(%arg0: i32) -> (i32, i32) {
    %c0_i32 = arith.constant 0 : i32
    %c0_i32_0 = arith.constant 0 : i32
    %c0_i32_1 = arith.constant 0 : i32
    return %c0_i32, %c0_i32_0 : i32, i32
  }
  func.func @transform_2(%arg0: i32) -> (i32, i32) {
    %c0_i32 = arith.constant 0 : i32
    %c0_i32_0 = arith.constant 0 : i32
    %c0_i32_1 = arith.constant 0 : i32
    return %c0_i32, %c0_i32_0 : i32, i32
  }
  func.func @transform_3(%arg0: i32) -> (i32, i32) {
    %c0_i32 = arith.constant 0 : i32
    %c0_i32_0 = arith.constant 0 : i32
    %c0_i32_1 = arith.constant 0 : i32
    return %c0_i32, %c0_i32_0 : i32, i32
  }
  func.func @transform_4(%arg0: i32) -> (i32, i32) {
    %c0_i32 = arith.constant 0 : i32
    %c0_i32_0 = arith.constant 0 : i32
    %c0_i32_1 = arith.constant 0 : i32
    return %c0_i32, %c0_i32_0 : i32, i32
  }
}

</mosaic_0001>

<llo_original>
// kernel: shufflenet_forward.9
$region0: #{shufflenet_forward.9}
  #allocation0 [shape = 'u32[]', space=smem, size = 0x4, offset = 0x4, fixed_abs, tag = 'smem constant byte address 0x4 - core index']
  #allocation1 [shape = 'u32[144,128]{1,0:T(1,128)}', space=vmem, size = 0x12000, scoped, tag = 'internal scratch']
  %s0 = inlined_call_operand.vmem [shape: bf16[2,64,8], index: 0, kind: input, shape index: {}]
  %s1 = inlined_call_operand.vmem [shape: bf16[8,4], index: 1, kind: input, shape index: {}]
  %s2 = inlined_call_operand.vmem [shape: f32[1,4], index: 2, kind: input, shape index: {}]
  %s3 = inlined_call_operand.vmem [shape: bf16[9,16,64], index: 3, kind: input, shape index: {}]
  %s4 = inlined_call_operand.vmem [shape: f32[9,1,4], index: 4, kind: input, shape index: {}]
  %s5 = inlined_call_operand.vmem [shape: f32[1,4], index: 5, kind: input, shape index: {}]
  %s6 = inlined_call_operand.vmem [shape: bf16[4,16], index: 6, kind: input, shape index: {}]
  %s7 = inlined_call_operand.vmem [shape: f32[1,16], index: 7, kind: input, shape index: {}]
  %s8 = inlined_call_operand.vmem [shape: bf16[16,64], index: 8, kind: input, shape index: {}]
  %s9 = inlined_call_operand.vmem [shape: bf16[8,16], index: 9, kind: input, shape index: {}]
  %s10 = inlined_call_operand.vmem [shape: bf16[2,16,16], index: 10, kind: output, shape index: {}]
  %s11 = sld [smem:[#allocation0]]
  $region73: #{shufflenet_forward.9} parent=0
    _
  %s13 = ssub.s32 1, %s11
  %s14 = scalar_select 0, %s13, %s11
  loop: start=0, step=1, limit=4
  $region2: #{shufflenet_forward.9} parent=0 // loop_pre_header
    _
  $region3: #{shufflenet_forward.9} parent=0 // loop_header
    %s16 = sphi 0, %s20
    %p17 = scmp.ge.s32.totalorder %s16, 4
    %s26 = sphi 0, %s28
    %s29 = sphi 0, %s26
    %s30 = sphi 0, %s29
    %s46 = sphi 0, %s30
    %s50 = sphi 0, %s50
    %s52 = sphi 0, %s50
    %s53 = sphi 0, %s52
    %s67 = sphi 0, %s53
    %s71 = sphi 0, %s71
    %s73 = sphi 0, %s71
    %s74 = sphi 0, %s73
    %s88 = sphi 0, %s74
    %s92 = sphi 0, %s92
    %s94 = sphi 0, %s92
    %s95 = sphi 0, %s94
    %s109 = sphi 0, %s95
    %s113 = sphi 0, %s113
    %s115 = sphi 0, %s113
    %s116 = sphi 0, %s115
    %s130 = sphi 0, %s116
    %s134 = sphi 0, %s134
    %s136 = sphi 0, %s134
    %s137 = sphi 0, %s136
    %s151 = sphi 0, %s137
    %s155 = sphi 0, %s155
    %s157 = sphi 0, %s155
    %s158 = sphi 0, %s157
    %s172 = sphi 0, %s158
    %s176 = sphi 0, %s176
    %s178 = sphi 0, %s176
    %s179 = sphi 0, %s178
    %s193 = sphi 0, %s179
    %s197 = sphi 0, %s197
    %s199 = sphi 0, %s197
    %s200 = sphi 0, %s199
    %s214 = sphi 0, %s200
    %s218 = sphi 0, %s218
    %s220 = sphi 0, %s218
    %s221 = sphi 0, %s220
    %s235 = sphi 0, %s221
    %s241 = sphi 0, %s243
    %s244 = sphi 0, %s241
    %s245 = sphi 0, %s244
    %s261 = sphi 0, %s245
  $region4: #{shufflenet_forward.9} parent=0 // loop_header_branch
    %19 = sbr.rel (%p17) target = $region8
  $region5: #{shufflenet_forward.9} parent=0 // loop_body
    %s21 = ssub.s32 %s16, 1
    %s22 = ssub.s32 %s16, 2
    %s23 = sadd.s32 %s16, 1
    %s24 = ssub.s32 %s16, %s23
    %p25 = scmp.eq.s32.totalorder %s24, 0
    %s27 = sadd.s32 %s26, 1
    %s28 = scalar_select %p25, %s26, %s27
    %p31 = pneg %p25
    %p32 = scmp.eq.s32.totalorder %s16, 1
    %p33 = por %p31, %p32
    %p34 = scmp.ne.s32.totalorder %s26, %s29
    %p35 = scmp.eq.s32.totalorder %s16, 0
    %p36 = por %p34, %p35
    %p37 = scmp.ne.s32.totalorder %s26, %s29
    %p38 = scmp.eq.s32.totalorder %s21, 1
    %p39 = por %p37, %p38
    %p40 = scmp.ne.s32.totalorder %s29, %s30
    %p41 = scmp.eq.s32.totalorder %s21, 0
    %p42 = por %p40, %p41
    %p43 = scmp.ne.s32.totalorder %s29, %s30
    %p44 = scmp.eq.s32.totalorder %s22, 1
    %p45 = por %p43, %p44
    %p47 = scmp.ne.s32.totalorder %s30, %s46
    %p48 = scmp.eq.s32.totalorder %s22, 0
    %p49 = por %p47, %p48
    %s51 = sadd.s32 %s50, 1
    %p54 = scmp.eq.s32.totalorder %s16, 1
    %p55 = scmp.ne.s32.totalorder %s50, %s52
    %p56 = scmp.eq.s32.totalorder %s16, 0
    %p57 = por %p55, %p56
    %p58 = scmp.ne.s32.totalorder %s50, %s52
    %p59 = scmp.eq.s32.totalorder %s21, 1
    %p60 = por %p58, %p59
    %p61 = scmp.ne.s32.totalorder %s52, %s53
    %p62 = scmp.eq.s32.totalorder %s21, 0
    %p63 = por %p61, %p62
    %p64 = scmp.ne.s32.totalorder %s52, %s53
    %p65 = scmp.eq.s32.totalorder %s22, 1
    %p66 = por %p64, %p65
    %p68 = scmp.ne.s32.totalorder %s53, %s67
    %p69 = scmp.eq.s32.totalorder %s22, 0
    %p70 = por %p68, %p69
    %s72 = sadd.s32 %s71, 1
    %p75 = scmp.eq.s32.totalorder %s16, 1
    %p76 = scmp.ne.s32.totalorder %s71, %s73
    %p77 = scmp.eq.s32.totalorder %s16, 0
    %p78 = por %p76, %p77
    %p79 = scmp.ne.s32.totalorder %s71, %s73
    %p80 = scmp.eq.s32.totalorder %s21, 1
    %p81 = por %p79, %p80
    %p82 = scmp.ne.s32.totalorder %s73, %s74
    %p83 = scmp.eq.s32.totalorder %s21, 0
    %p84 = por %p82, %p83
    %p85 = scmp.ne.s32.totalorder %s73, %s74
    %p86 = scmp.eq.s32.totalorder %s22, 1
    %p87 = por %p85, %p86
    %p89 = scmp.ne.s32.totalorder %s74, %s88
    %p90 = scmp.eq.s32.totalorder %s22, 0
    %p91 = por %p89, %p90
    %s93 = sadd.s32 %s92, 1
    %p96 = scmp.eq.s32.totalorder %s16, 1
    %p97 = scmp.ne.s32.totalorder %s92, %s94
    %p98 = scmp.eq.s32.totalorder %s16, 0
    %p99 = por %p97, %p98
    %p100 = scmp.ne.s32.totalorder %s92, %s94
    %p101 = scmp.eq.s32.totalorder %s21, 1
    %p102 = por %p100, %p101
    %p103 = scmp.ne.s32.totalorder %s94, %s95
    %p104 = scmp.eq.s32.totalorder %s21, 0
    %p105 = por %p103, %p104
    %p106 = scmp.ne.s32.totalorder %s94, %s95
    %p107 = scmp.eq.s32.totalorder %s22, 1
    %p108 = por %p106, %p107
    %p110 = scmp.ne.s32.totalorder %s95, %s109
    %p111 = scmp.eq.s32.totalorder %s22, 0
    %p112 = por %p110, %p111
    %s114 = sadd.s32 %s113, 1
    %p117 = scmp.eq.s32.totalorder %s16, 1
    %p118 = scmp.ne.s32.totalorder %s113, %s115
    %p119 = scmp.eq.s32.totalorder %s16, 0
    %p120 = por %p118, %p119
    %p121 = scmp.ne.s32.totalorder %s113, %s115
    %p122 = scmp.eq.s32.totalorder %s21, 1
    %p123 = por %p121, %p122
    %p124 = scmp.ne.s32.totalorder %s115, %s116
    %p125 = scmp.eq.s32.totalorder %s21, 0
    %p126 = por %p124, %p125
    %p127 = scmp.ne.s32.totalorder %s115, %s116
    %p128 = scmp.eq.s32.totalorder %s22, 1
    %p129 = por %p127, %p128
    %p131 = scmp.ne.s32.totalorder %s116, %s130
    %p132 = scmp.eq.s32.totalorder %s22, 0
    %p133 = por %p131, %p132
    %s135 = sadd.s32 %s134, 1
    %p138 = scmp.eq.s32.totalorder %s16, 1
    %p139 = scmp.ne.s32.totalorder %s134, %s136
    %p140 = scmp.eq.s32.totalorder %s16, 0
    %p141 = por %p139, %p140
    %p142 = scmp.ne.s32.totalorder %s134, %s136
    %p143 = scmp.eq.s32.totalorder %s21, 1
    %p144 = por %p142, %p143
    %p145 = scmp.ne.s32.totalorder %s136, %s137
    %p146 = scmp.eq.s32.totalorder %s21, 0
    %p147 = por %p145, %p146
    %p148 = scmp.ne.s32.totalorder %s136, %s137
    %p149 = scmp.eq.s32.totalorder %s22, 1
    %p150 = por %p148, %p149
    %p152 = scmp.ne.s32.totalorder %s137, %s151
    %p153 = scmp.eq.s32.totalorder %s22, 0
    %p154 = por %p152, %p153
    %s156 = sadd.s32 %s155, 1
    %p159 = scmp.eq.s32.totalorder %s16, 1
    %p160 = scmp.ne.s32.totalorder %s155, %s157
    %p161 = scmp.eq.s32.totalorder %s16, 0
    %p162 = por %p160, %p161
    %p163 = scmp.ne.s32.totalorder %s155, %s157
    %p164 = scmp.eq.s32.totalorder %s21, 1
    %p165 = por %p163, %p164
    %p166 = scmp.ne.s32.totalorder %s157, %s158
    %p167 = scmp.eq.s32.totalorder %s21, 0
    %p168 = por %p166, %p167
    %p169 = scmp.ne.s32.totalorder %s157, %s158
    %p170 = scmp.eq.s32.totalorder %s22, 1
    %p171 = por %p169, %p170
    %p173 = scmp.ne.s32.totalorder %s158, %s172
    %p174 = scmp.eq.s32.totalorder %s22, 0
    %p175 = por %p173, %p174
    %s177 = sadd.s32 %s176, 1
    %p180 = scmp.eq.s32.totalorder %s16, 1
    %p181 = scmp.ne.s32.totalorder %s176, %s178
    %p182 = scmp.eq.s32.totalorder %s16, 0
    %p183 = por %p181, %p182
    %p184 = scmp.ne.s32.totalorder %s176, %s178
    %p185 = scmp.eq.s32.totalorder %s21, 1
    %p186 = por %p184, %p185
    %p187 = scmp.ne.s32.totalorder %s178, %s179
    %p188 = scmp.eq.s32.totalorder %s21, 0
    %p189 = por %p187, %p188
    %p190 = scmp.ne.s32.totalorder %s178, %s179
    %p191 = scmp.eq.s32.totalorder %s22, 1
    %p192 = por %p190, %p191
    %p194 = scmp.ne.s32.totalorder %s179, %s193
    %p195 = scmp.eq.s32.totalorder %s22, 0
    %p196 = por %p194, %p195
    %s198 = sadd.s32 %s197, 1
    %p201 = scmp.eq.s32.totalorder %s16, 1
    %p202 = scmp.ne.s32.totalorder %s197, %s199
    %p203 = scmp.eq.s32.totalorder %s16, 0
    %p204 = por %p202, %p203
    %p205 = scmp.ne.s32.totalorder %s197, %s199
    %p206 = scmp.eq.s32.totalorder %s21, 1
    %p207 = por %p205, %p206
    %p208 = scmp.ne.s32.totalorder %s199, %s200
    %p209 = scmp.eq.s32.totalorder %s21, 0
    %p210 = por %p208, %p209
    %p211 = scmp.ne.s32.totalorder %s199, %s200
    %p212 = scmp.eq.s32.totalorder %s22, 1
    %p213 = por %p211, %p212
    %p215 = scmp.ne.s32.totalorder %s200, %s214
    %p216 = scmp.eq.s32.totalorder %s22, 0
    %p217 = por %p215, %p216
    %s219 = sadd.s32 %s218, 1
    %p222 = scmp.eq.s32.totalorder %s16, 1
    %p223 = scmp.ne.s32.totalorder %s218, %s220
    %p224 = scmp.eq.s32.totalorder %s16, 0
    %p225 = por %p223, %p224
    %p226 = scmp.ne.s32.totalorder %s218, %s220
    %p227 = scmp.eq.s32.totalorder %s21, 1
    %p228 = por %p226, %p227
    %p229 = scmp.ne.s32.totalorder %s220, %s221
    %p230 = scmp.eq.s32.totalorder %s21, 0
    %p231 = por %p229, %p230
    %p232 = scmp.ne.s32.totalorder %s220, %s221
    %p233 = scmp.eq.s32.totalorder %s22, 1
    %p234 = por %p232, %p233
    %p236 = scmp.ne.s32.totalorder %s221, %s235
    %p237 = scmp.eq.s32.totalorder %s22, 0
    %p238 = por %p236, %p237
    %s239 = ssub.s32 %s16, %s23
    %p240 = scmp.eq.s32.totalorder %s239, 0
    %s242 = sadd.s32 %s241, 1
    %s243 = scalar_select %p240, %s241, %s242
    %p246 = pneg %p240
    %p247 = scmp.eq.s32.totalorder %s16, 1
    %p248 = por %p246, %p247
    %p249 = scmp.ne.s32.totalorder %s241, %s244
    %p250 = scmp.eq.s32.totalorder %s16, 0
    %p251 = por %p249, %p250
    %p252 = scmp.ne.s32.totalorder %s241, %s244
    %p253 = scmp.eq.s32.totalorder %s21, 1
    %p254 = por %p252, %p253
    %p255 = scmp.ne.s32.totalorder %s244, %s245
    %p256 = scmp.eq.s32.totalorder %s21, 0
    %p257 = por %p255, %p256
    %p258 = scmp.ne.s32.totalorder %s244, %s245
    %p259 = scmp.eq.s32.totalorder %s22, 1
    %p260 = por %p258, %p259
    %p262 = scmp.ne.s32.totalorder %s245, %s261
    %p263 = scmp.eq.s32.totalorder %s22, 0
    %p264 = por %p262, %p263
    %p265 = scmp.le.s32.totalorder 1, %s16
    %p266 = scmp.lt.s32.totalorder %s16, 3
    %p267 = pnand %p265, %p266
    %p268 = pneg %p267
    // Predicated region
    $region9: #{shufflenet_forward.9} parent=5 // pred_check
      _
    $region10: #{shufflenet_forward.9} parent=5 // pred_check_branch
      %270 = sbr.rel (%p267) target = $region12
    $region11: #{shufflenet_forward.9} parent=5 // pred_region
      %s271 = ssub.s32 %s16, 1
      // Predicated region
      $region13: #{shufflenet_forward.9} parent=11 // pred_check
        %p272 = pneg %p63
      $region14: #{shufflenet_forward.9} parent=11 // pred_check_branch
        %274 = sbr.rel (%p272) target = $region16
      $region15: #{shufflenet_forward.9} parent=11 // pred_region
        _
      $region16: #{shufflenet_forward.9} parent=11 // pred_fallthru
        _
      // Predicated region
      $region17: #{shufflenet_forward.9} parent=11 // pred_check
        %p275 = pneg %p84
      $region18: #{shufflenet_forward.9} parent=11 // pred_check_branch
        %277 = sbr.rel (%p275) target = $region20
      $region19: #{shufflenet_forward.9} parent=11 // pred_region
        _
      $region20: #{shufflenet_forward.9} parent=11 // pred_fallthru
        _
      // Predicated region
      $region21: #{shufflenet_forward.9} parent=11 // pred_check
        %p278 = pneg %p105
      $region22: #{shufflenet_forward.9} parent=11 // pred_check_branch
        %280 = sbr.rel (%p278) target = $region24
      $region23: #{shufflenet_forward.9} parent=11 // pred_region
        _
      $region24: #{shufflenet_forward.9} parent=11 // pred_fallthru
        _
      // Predicated region
      $region25: #{shufflenet_forward.9} parent=11 // pred_check
        %p281 = pneg %p126
      $region26: #{shufflenet_forward.9} parent=11 // pred_check_branch
        %283 = sbr.rel (%p281) target = $region28
      $region27: #{shufflenet_forward.9} parent=11 // pred_region
        _
      $region28: #{shufflenet_forward.9} parent=11 // pred_fallthru
        _
      // Predicated region
      $region29: #{shufflenet_forward.9} parent=11 // pred_check
        %p284 = pneg %p147
      $region30: #{shufflenet_forward.9} parent=11 // pred_check_branch
        %286 = sbr.rel (%p284) target = $region32
      $region31: #{shufflenet_forward.9} parent=11 // pred_region
        _
      $region32: #{shufflenet_forward.9} parent=11 // pred_fallthru
        _
      // Predicated region
      $region33: #{shufflenet_forward.9} parent=11 // pred_check
        %p287 = pneg %p168
      $region34: #{shufflenet_forward.9} parent=11 // pred_check_branch
        %289 = sbr.rel (%p287) target = $region36
      $region35: #{shufflenet_forward.9} parent=11 // pred_region
        _
      $region36: #{shufflenet_forward.9} parent=11 // pred_fallthru
        _
      // Predicated region
      $region37: #{shufflenet_forward.9} parent=11 // pred_check
        %p290 = pneg %p189
      $region38: #{shufflenet_forward.9} parent=11 // pred_check_branch
        %292 = sbr.rel (%p290) target = $region40
      $region39: #{shufflenet_forward.9} parent=11 // pred_region
        _
      $region40: #{shufflenet_forward.9} parent=11 // pred_fallthru
        _
      // Predicated region
      $region41: #{shufflenet_forward.9} parent=11 // pred_check
        %p293 = pneg %p210
      $region42: #{shufflenet_forward.9} parent=11 // pred_check_branch
        %295 = sbr.rel (%p293) target = $region44
      $region43: #{shufflenet_forward.9} parent=11 // pred_region
        _
      $region44: #{shufflenet_forward.9} parent=11 // pred_fallthru
        _
      // Predicated region
      $region45: #{shufflenet_forward.9} parent=11 // pred_check
        %p296 = pneg %p231
      $region46: #{shufflenet_forward.9} parent=11 // pred_check_branch
        %298 = sbr.rel (%p296) target = $region48
      $region47: #{shufflenet_forward.9} parent=11 // pred_region
        _
      $region48: #{shufflenet_forward.9} parent=11 // pred_fallthru
        _
    $region12: #{shufflenet_forward.9} parent=5 // pred_fallthru
      _
    %p299 = scmp.lt.s32.totalorder %s16, 2
    // Predicated region
    $region49: #{shufflenet_forward.9} parent=5 // pred_check
      %p300 = pneg %p299
    $region50: #{shufflenet_forward.9} parent=5 // pred_check_branch
      %302 = sbr.rel (%p300) target = $region52
    $region51: #{shufflenet_forward.9} parent=5 // pred_region
      // Predicated region
      $region53: #{shufflenet_forward.9} parent=51 // pred_check
        %p303 = pneg %p36
      $region54: #{shufflenet_forward.9} parent=51 // pred_check_branch
        %305 = sbr.rel (%p303) target = $region56
      $region55: #{shufflenet_forward.9} parent=51 // pred_region
        %p306 = scmp.lt.s32.totalorder %s16, 1
        %s307 = scalar_select %p306, %s16, 1
        %s308 = smul.addr %s307, 8
        %s309 = smul.addr %s308, 4
        %s310 = scalar_lea.vmem %s0, %s309
      $region56: #{shufflenet_forward.9} parent=51 // pred_fallthru
        _
    $region52: #{shufflenet_forward.9} parent=5 // pred_fallthru
      _
    %p311 = scmp.le.s32.totalorder 1, %s16
    %p312 = scmp.lt.s32.totalorder %s16, 3
    %p313 = pnand %p311, %p312
    %p314 = pneg %p313
    // Predicated region
    $region57: #{shufflenet_forward.9} parent=5 // pred_check
      _
    $region58: #{shufflenet_forward.9} parent=5 // pred_check_branch
      %316 = sbr.rel (%p313) target = $region60
    $region59: #{shufflenet_forward.9} parent=5 // pred_region
      %s317 = ssub.s32 %s16, 1
      %p318 = scmp.lt.s32.totalorder %s21, 1
      %s319 = scalar_select %p318, %s21, 1
      %s320 = smul.addr %s319, 8
      %s321 = smul.addr %s320, 4
      %s322 = scalar_lea.vmem %s0, %s321
      %p323 = pneg %p42
      %p324 = pneg %p39
      %p325 = pneg %p63
      %p326 = pneg %p60
      %p327 = pneg %p84
      %p328 = pneg %p81
      %p329 = pneg %p105
      %p330 = pneg %p102
      %p331 = pneg %p126
      %p332 = pneg %p123
      %p333 = pneg %p147
      %p334 = pneg %p144
      %p335 = pneg %p168
      %p336 = pneg %p165
      %p337 = pneg %p189
      %p338 = pneg %p186
      %p339 = pneg %p210
      %p340 = pneg %p207
      %p341 = pneg %p231
      %p342 = pneg %p228
      %p343 = pneg %p257
      %p344 = pneg %p254
      %p345 = scmp.lt.s32.totalorder %s21, 1
      %s346 = scalar_select %p345, %s21, 1
      %s347 = smul.addr %s346, 2
      %s348 = smul.addr %s347, 4
      %s349 = scalar_lea.vmem %s10, %s348
      %p350 = scmp.lt.s32.totalorder %s21, 1
      %s351 = scalar_select %p350, %s21, 1
      %s352 = smul.addr %s351, 8
      %s353 = smul.addr %s352, 4
      %s354 = scalar_lea.vmem %s0, %s353
      %p355 = scmp.lt.s32.totalorder %s21, 1
      %s356 = scalar_select %p355, %s21, 1
      %s357 = smul.addr %s356, 2
      %s358 = smul.addr %s357, 4
      %s359 = scalar_lea.vmem %s10, %s358
      %v361 = vld [vmem:[%s354] sm:$0xf]
      %v362 = vld [vmem:[%s354 + $0x4] sm:$0xf]
      %v363 = vld [vmem:[%s354 + $0x8] sm:$0xf]
      %v364 = vld [vmem:[%s354 + $0xc] sm:$0xf]
      %v365 = vld [vmem:[%s354 + $0x10] sm:$0xf]
      %v366 = vld [vmem:[%s354 + $0x14] sm:$0xf]
      %v367 = vld [vmem:[%s354 + $0x18] sm:$0xf]
      %v368 = vld [vmem:[%s354 + $0x1c] sm:$0xf]
      %v369 = vld [vmem:[%s1] sm:$0xf]
      %v370 = vld [vmem:[%s2] sm:$0x1]
      %v372 = vlaneseq
      %v373 = vshrl.u32 %v372, 7
      %v374 = vsub.s32 0, %v373
      %v375 = vrot.slane %v370, %v374
      %v385 = vunpack.c.l.b16 %v361
      %v386 = vunpack.c.l.b16 %v362
      %v387 = vunpack.c.l.b16 %v363
      %v388 = vunpack.c.l.b16 %v364
      %v389 = vunpack.c.l.b16 %v365
      %v390 = vunpack.c.l.b16 %v366
      %v391 = vunpack.c.l.b16 %v367
      %v392 = vunpack.c.l.b16 %v368
      %v393 = vpack.c.b16 %v386, %v385
      %v394 = vpack.c.b16 %v388, %v387
      %v395 = vpack.c.b16 %v390, %v389
      %v396 = vpack.c.b16 %v392, %v391
      %vm397 = vcmask 64512
      %v399 = vsel %vm397, %v393, 0
      %v402 = vsel %vm397, %v394, 0
      %v405 = vsel %vm397, %v395, 0
      %v408 = vsel %vm397, %v396, 0
      %vm410 = vcmask 1043456
      %v412 = vsel %vm410, %v369, 0
      %414 = vmatprep.subr.bf16.mxu0 0
      %415 = vmatpush1.bf16.msra.mxu0 %v412
      %416 = vmatprep.subr.bf16.mxu0 0
      %417 = vmatpush1.bf16.msra.mxu0 0
      %418 = vmatprep.subr.bf16.mxu0 0
      %419 = vmatpush1.bf16.msra.mxu0 0
      %420 = vmatprep.subr.bf16.mxu0 0
      %421 = vmatpush1.bf16.msra.mxu0 0
      %422 = vmatprep.subr.bf16.mxu0 0
      %423 = vmatpush1.bf16.msra.mxu0 0
      %424 = vmatprep.subr.bf16.mxu0 0
      %425 = vmatpush1.bf16.msra.mxu0 0
      %426 = vmatprep.subr.bf16.mxu0 0
      %427 = vmatpush1.bf16.msra.mxu0 0
      %428 = vmatprep.subr.bf16.mxu0 0
      %429 = vmatpush1.bf16.msra.mxu0 0
      %430 = vmatprep.subr.bf16.mxu0 0
      %431 = vmatpush1.bf16.msra.mxu0 0
      %432 = vmatprep.subr.bf16.mxu0 0
      %433 = vmatpush1.bf16.msra.mxu0 0
      %434 = vmatprep.subr.bf16.mxu0 0
      %435 = vmatpush1.bf16.msra.mxu0 0
      %436 = vmatprep.subr.bf16.mxu0 0
      %437 = vmatpush1.bf16.msra.mxu0 0
      %438 = vmatprep.subr.bf16.mxu0 0
      %439 = vmatpush1.bf16.msra.mxu0 0
      %440 = vmatprep.subr.bf16.mxu0 0
      %441 = vmatpush1.bf16.msra.mxu0 0
      %442 = vmatprep.subr.bf16.mxu0 0
      %443 = vmatpush1.bf16.msra.mxu0 0
      %444 = vmatprep.subr.bf16.mxu0 0
      %445 = vmatpush1.bf16.msra.mxu0 0
      %446 = vmatprep.mubr.bf16.mxu0 0
      %447 = vmatmul.mubr.bf16.gmra.mrb[0].mxu0 %v399
      %v448 = vpop.f32.mrb[0].mxu0
      %v449 = vadd.f32 %v375, %v448
      %v450 = vpop.f32.mrb[0].mxu0
      %v451 = vpop.f32.mrb[0].mxu0
      %v452 = vadd.f32 %v375, %v451
      %v453 = vpop.f32.mrb[0].mxu0
      %454 = vmatprep.mubr.bf16.mxu0 0
      %455 = vmatmul.mubr.bf16.gmra.mrb[0].mxu0 %v402
      %v456 = vpop.f32.mrb[0].mxu0
      %v457 = vadd.f32 %v375, %v456
      %v458 = vpop.f32.mrb[0].mxu0
      %v459 = vpop.f32.mrb[0].mxu0
      %v460 = vadd.f32 %v375, %v459
      %v461 = vpop.f32.mrb[0].mxu0
      %462 = vmatprep.mubr.bf16.mxu0 0
      %463 = vmatmul.mubr.bf16.gmra.mrb[0].mxu0 %v405
      %v464 = vpop.f32.mrb[0].mxu0
      %v465 = vadd.f32 %v375, %v464
      %v466 = vpop.f32.mrb[0].mxu0
      %v467 = vpop.f32.mrb[0].mxu0
      %v468 = vadd.f32 %v375, %v467
      %v469 = vpop.f32.mrb[0].mxu0
      %470 = vmatprep.mubr.bf16.mxu0 0
      %471 = vmatmul.mubr.bf16.gmra.mrb[0].mxu0 %v408
      %v472 = vpop.f32.mrb[0].mxu0
      %v473 = vadd.f32 %v375, %v472
      %v474 = vpop.f32.mrb[0].mxu0
      %v475 = vpop.f32.mrb[0].mxu0
      %v476 = vadd.f32 %v375, %v475
      %v477 = vpop.f32.mrb[0].mxu0
      %478 = vdwg.mxu0
      %v479 = vmax.f32 %v449, 0.0
      %v480 = vmax.f32 %v452, 0.0
      %v481 = vmax.f32 %v457, 0.0
      %v482 = vmax.f32 %v460, 0.0
      %v483 = vmax.f32 %v465, 0.0
      %v484 = vmax.f32 %v468, 0.0
      %v485 = vmax.f32 %v473, 0.0
      %v486 = vmax.f32 %v476, 0.0
      %v487 = vpack.c.bf16 %v480, %v479
      %v488 = vpack.c.bf16 %v482, %v481
      %v489 = vpack.c.bf16 %v484, %v483
      %v490 = vpack.c.bf16 %v486, %v485
      %v491 = vld [vmem:[%s3] sm:$0xf]
      %v492 = vld [vmem:[%s3 + $0x4] sm:$0xf]
      %v495 = vunpack.c.l.b16 %v491
      %v496 = vunpack.c.l.b16 %v492
      %v497 = vpack.c.b16 %v496, %v495
      %vm498 = vcmask 523264
      %v500 = vsel %vm498, %v497, 0
      %502 = vmatprep.subr.bf16.mxu0 0
      %503 = vmatpush1.bf16.msra.mxu0 %v487
      %504 = vmatprep.subr.bf16.mxu0 0
      %505 = vmatpush1.bf16.msra.mxu0 %v488
      %506 = vmatprep.subr.bf16.mxu0 0
      %507 = vmatpush1.bf16.msra.mxu0 %v489
      %508 = vmatprep.subr.bf16.mxu0 0
      %509 = vmatpush1.bf16.msra.mxu0 %v490
      %510 = vmatprep.subr.bf16.mxu0 0
      %511 = vmatpush1.bf16.msra.mxu0 0
      %512 = vmatprep.subr.bf16.mxu0 0
      %513 = vmatpush1.bf16.msra.mxu0 0
      %514 = vmatprep.subr.bf16.mxu0 0
      %515 = vmatpush1.bf16.msra.mxu0 0
      %516 = vmatprep.subr.bf16.mxu0 0
      %517 = vmatpush1.bf16.msra.mxu0 0
      %518 = vmatprep.subr.bf16.mxu0 0
      %519 = vmatpush1.bf16.msra.mxu0 0
      %520 = vmatprep.subr.bf16.mxu0 0
      %521 = vmatpush1.bf16.msra.mxu0 0
      %522 = vmatprep.subr.bf16.mxu0 0
      %523 = vmatpush1.bf16.msra.mxu0 0
      %524 = vmatprep.subr.bf16.mxu0 0
      %525 = vmatpush1.bf16.msra.mxu0 0
      %526 = vmatprep.subr.bf16.mxu0 0
      %527 = vmatpush1.bf16.msra.mxu0 0
      %528 = vmatprep.subr.bf16.mxu0 0
      %529 = vmatpush1.bf16.msra.mxu0 0
      %530 = vmatprep.subr.bf16.mxu0 0
      %531 = vmatpush1.bf16.msra.mxu0 0
      %532 = vmatprep.subr.bf16.mxu0 0
      %533 = vmatpush1.bf16.msra.mxu0 0
      %534 = vmatprep.mubr.bf16.mxu0 0
      %535 = vmatmul.mubr.bf16.gmra.mrb[0].mxu0 %v500
      %v536 = vpop.f32.mrb[0].mxu0
      %v537 = vadd.f32 0.0, %v536
      %v538 = vpop.f32.mrb[0].mxu0
      %v539 = vpop.f32.mrb[0].mxu0
      %v540 = vadd.f32 0.0, %v539
      %v541 = vpop.f32.mrb[0].mxu0
      %542 = vdwg.mxu0
      %v543 = vld [vmem:[%s4] sm:$0x1]
      %v545 = vlaneseq
      %v546 = vshrl.u32 %v545, 7
      %v547 = vsub.s32 0, %v546
      %v548 = vrot.slane %v543, %v547
      %v550 = vmul.f32 %v537, %v548
      %v551 = vmul.f32 %v540, %v548
      %s552 = scalar_lea.vmem %s3, 8
      %v553 = vld [vmem:[%s552] sm:$0xf]
      %v554 = vld [vmem:[%s552 + $0x4] sm:$0xf]
      %v557 = vunpack.c.l.b16 %v553
      %v558 = vunpack.c.l.b16 %v554
      %v559 = vpack.c.b16 %v558, %v557
      %v561 = vsel %vm498, %v559, 0
      %563 = vmatprep.subr.bf16.mxu0 0
      %564 = vmatpush1.bf16.msra.mxu0 %v487
      %565 = vmatprep.subr.bf16.mxu0 0
      %566 = vmatpush1.bf16.msra.mxu0 %v488
      %567 = vmatprep.subr.bf16.mxu0 0
      %568 = vmatpush1.bf16.msra.mxu0 %v489
      %569 = vmatprep.subr.bf16.mxu0 0
      %570 = vmatpush1.bf16.msra.mxu0 %v490
      %571 = vmatprep.subr.bf16.mxu0 0
      %572 = vmatpush1.bf16.msra.mxu0 0
      %573 = vmatprep.subr.bf16.mxu0 0
      %574 = vmatpush1.bf16.msra.mxu0 0
      %575 = vmatprep.subr.bf16.mxu0 0
      %576 = vmatpush1.bf16.msra.mxu0 0
      %577 = vmatprep.subr.bf16.mxu0 0
      %578 = vmatpush1.bf16.msra.mxu0 0
      %579 = vmatprep.subr.bf16.mxu0 0
      %580 = vmatpush1.bf16.msra.mxu0 0
      %581 = vmatprep.subr.bf16.mxu0 0
      %582 = vmatpush1.bf16.msra.mxu0 0
      %583 = vmatprep.subr.bf16.mxu0 0
      %584 = vmatpush1.bf16.msra.mxu0 0
      %585 = vmatprep.subr.bf16.mxu0 0
      %586 = vmatpush1.bf16.msra.mxu0 0
      %587 = vmatprep.subr.bf16.mxu0 0
      %588 = vmatpush1.bf16.msra.mxu0 0
      %589 = vmatprep.subr.bf16.mxu0 0
      %590 = vmatpush1.bf16.msra.mxu0 0
      %591 = vmatprep.subr.bf16.mxu0 0
      %592 = vmatpush1.bf16.msra.mxu0 0
      %593 = vmatprep.subr.bf16.mxu0 0
      %594 = vmatpush1.bf16.msra.mxu0 0
      %595 = vmatprep.mubr.bf16.mxu0 0
      %596 = vmatmul.mubr.bf16.gmra.mrb[0].mxu0 %v561
      %v597 = vpop.f32.mrb[0].mxu0
      %v598 = vadd.f32 0.0, %v597
      %v599 = vpop.f32.mrb[0].mxu0
      %v600 = vpop.f32.mrb[0].mxu0
      %v601 = vadd.f32 0.0, %v600
      %v602 = vpop.f32.mrb[0].mxu0
      %603 = vdwg.mxu0
      %s604 = scalar_lea.vmem %s4, 1
      %v605 = vld [vmem:[%s604] sm:$0x1]
      %v607 = vlaneseq
      %v608 = vshrl.u32 %v607, 7
      %v609 = vsub.s32 0, %v608
      %v610 = vrot.slane %v605, %v609
      %v612 = vmul.f32 %v598, %v610
      %v613 = vmul.f32 %v601, %v610
      %v614 = vadd.f32 %v550, %v612
      %v615 = vadd.f32 %v551, %v613
      %s616 = scalar_lea.vmem %s3, 16
      %v617 = vld [vmem:[%s616] sm:$0xf]
      %v618 = vld [vmem:[%s616 + $0x4] sm:$0xf]
      %v621 = vunpack.c.l.b16 %v617
      %v622 = vunpack.c.l.b16 %v618
      %v623 = vpack.c.b16 %v622, %v621
      %v625 = vsel %vm498, %v623, 0
      %627 = vmatprep.subr.bf16.mxu0 0
      %628 = vmatpush1.bf16.msra.mxu0 %v487
      %629 = vmatprep.subr.bf16.mxu0 0
      %630 = vmatpush1.bf16.msra.mxu0 %v488
      %631 = vmatprep.subr.bf16.mxu0 0
      %632 = vmatpush1.bf16.msra.mxu0 %v489
      %633 = vmatprep.subr.bf16.mxu0 0
      %634 = vmatpush1.bf16.msra.mxu0 %v490
      %635 = vmatprep.subr.bf16.mxu0 0
      %636 = vmatpush1.bf16.msra.mxu0 0
      %637 = vmatprep.subr.bf16.mxu0 0
      %638 = vmatpush1.bf16.msra.mxu0 0
      %639 = vmatprep.subr.bf16.mxu0 0
      %640 = vmatpush1.bf16.msra.mxu0 0
      %641 = vmatprep.subr.bf16.mxu0 0
      %642 = vmatpush1.bf16.msra.mxu0 0
      %643 = vmatprep.subr.bf16.mxu0 0
      %644 = vmatpush1.bf16.msra.mxu0 0
      %645 = vmatprep.subr.bf16.mxu0 0
      %646 = vmatpush1.bf16.msra.mxu0 0
      %647 = vmatprep.subr.bf16.mxu0 0
      %648 = vmatpush1.bf16.msra.mxu0 0
      %649 = vmatprep.subr.bf16.mxu0 0
      %650 = vmatpush1.bf16.msra.mxu0 0
      %651 = vmatprep.subr.bf16.mxu0 0
      %652 = vmatpush1.bf16.msra.mxu0 0
      %653 = vmatprep.subr.bf16.mxu0 0
      %654 = vmatpush1.bf16.msra.mxu0 0
      %655 = vmatprep.subr.bf16.mxu0 0
      %656 = vmatpush1.bf16.msra.mxu0 0
      %657 = vmatprep.subr.bf16.mxu0 0
      %658 = vmatpush1.bf16.msra.mxu0 0
      %659 = vmatprep.mubr.bf16.mxu0 0
      %660 = vmatmul.mubr.bf16.gmra.mrb[0].mxu0 %v625
      %v661 = vpop.f32.mrb[0].mxu0
      %v662 = vadd.f32 0.0, %v661
      %v663 = vpop.f32.mrb[0].mxu0
      %v664 = vpop.f32.mrb[0].mxu0
      %v665 = vadd.f32 0.0, %v664
      %v666 = vpop.f32.mrb[0].mxu0
      %667 = vdwg.mxu0
      %s668 = scalar_lea.vmem %s4, 2
      %v669 = vld [vmem:[%s668] sm:$0x1]
      %v671 = vlaneseq
      %v672 = vshrl.u32 %v671, 7
      %v673 = vsub.s32 0, %v672
      %v674 = vrot.slane %v669, %v673
      %v676 = vmul.f32 %v662, %v674
      %v677 = vmul.f32 %v665, %v674
      %v678 = vadd.f32 %v614, %v676
      %v679 = vadd.f32 %v615, %v677
      %s680 = scalar_lea.vmem %s3, 24
      %v681 = vld [vmem:[%s680] sm:$0xf]
      %v682 = vld [vmem:[%s680 + $0x4] sm:$0xf]
      %v685 = vunpack.c.l.b16 %v681
      %v686 = vunpack.c.l.b16 %v682
      %v687 = vpack.c.b16 %v686, %v685
      %v689 = vsel %vm498, %v687, 0
      %691 = vmatprep.subr.bf16.mxu0 0
      %692 = vmatpush1.bf16.msra.mxu0 %v487
      %693 = vmatprep.subr.bf16.mxu0 0
      %694 = vmatpush1.bf16.msra.mxu0 %v488
      %695 = vmatprep.subr.bf16.mxu0 0
      %696 = vmatpush1.bf16.msra.mxu0 %v489
      %697 = vmatprep.subr.bf16.mxu0 0
      %698 = vmatpush1.bf16.msra.mxu0 %v490
      %699 = vmatprep.subr.bf16.mxu0 0
      %700 = vmatpush1.bf16.msra.mxu0 0
      %701 = vmatprep.subr.bf16.mxu0 0
      %702 = vmatpush1.bf16.msra.mxu0 0
      %703 = vmatprep.subr.bf16.mxu0 0
      %704 = vmatpush1.bf16.msra.mxu0 0
      %705 = vmatprep.subr.bf16.mxu0 0
      %706 = vmatpush1.bf16.msra.mxu0 0
      %707 = vmatprep.subr.bf16.mxu0 0
      %708 = vmatpush1.bf16.msra.mxu0 0
      %709 = vmatprep.subr.bf16.mxu0 0
      %710 = vmatpush1.bf16.msra.mxu0 0
      %711 = vmatprep.subr.bf16.mxu0 0
      %712 = vmatpush1.bf16.msra.mxu0 0
      %713 = vmatprep.subr.bf16.mxu0 0
      %714 = vmatpush1.bf16.msra.mxu0 0
      %715 = vmatprep.subr.bf16.mxu0 0
      %716 = vmatpush1.bf16.msra.mxu0 0
      %717 = vmatprep.subr.bf16.mxu0 0
      %718 = vmatpush1.bf16.msra.mxu0 0
      %719 = vmatprep.subr.bf16.mxu0 0
      %720 = vmatpush1.bf16.msra.mxu0 0
      %721 = vmatprep.subr.bf16.mxu0 0
      %722 = vmatpush1.bf16.msra.mxu0 0
      %723 = vmatprep.mubr.bf16.mxu0 0
      %724 = vmatmul.mubr.bf16.gmra.mrb[0].mxu0 %v689
      %v725 = vpop.f32.mrb[0].mxu0
      %v726 = vadd.f32 0.0, %v725
      %v727 = vpop.f32.mrb[0].mxu0
      %v728 = vpop.f32.mrb[0].mxu0
      %v729 = vadd.f32 0.0, %v728
      %v730 = vpop.f32.mrb[0].mxu0
      %731 = vdwg.mxu0
      %s732 = scalar_lea.vmem %s4, 3
      %v733 = vld [vmem:[%s732] sm:$0x1]
      %v735 = vlaneseq
      %v736 = vshrl.u32 %v735, 7
      %v737 = vsub.s32 0, %v736
      %v738 = vrot.slane %v733, %v737
      %v740 = vmul.f32 %v726, %v738
      %v741 = vmul.f32 %v729, %v738
      %v742 = vadd.f32 %v678, %v740
      %v743 = vadd.f32 %v679, %v741
      %s744 = scalar_lea.vmem %s3, 32
      %v745 = vld [vmem:[%s744] sm:$0xf]
      %v746 = vld [vmem:[%s744 + $0x4] sm:$0xf]
      %v749 = vunpack.c.l.b16 %v745
      %v750 = vunpack.c.l.b16 %v746
      %v751 = vpack.c.b16 %v750, %v749
      %v753 = vsel %vm498, %v751, 0
      %755 = vmatprep.subr.bf16.mxu0 0
      %756 = vmatpush1.bf16.msra.mxu0 %v487
      %757 = vmatprep.subr.bf16.mxu0 0
      %758 = vmatpush1.bf16.msra.mxu0 %v488
      %759 = vmatprep.subr.bf16.mxu0 0
      %760 = vmatpush1.bf16.msra.mxu0 %v489
      %761 = vmatprep.subr.bf16.mxu0 0
      %762 = vmatpush1.bf16.msra.mxu0 %v490
      %763 = vmatprep.subr.bf16.mxu0 0
      %764 = vmatpush1.bf16.msra.mxu0 0
      %765 = vmatprep.subr.bf16.mxu0 0
      %766 = vmatpush1.bf16.msra.mxu0 0
      %767 = vmatprep.subr.bf16.mxu0 0
      %768 = vmatpush1.bf16.msra.mxu0 0
      %769 = vmatprep.subr.bf16.mxu0 0
      %770 = vmatpush1.bf16.msra.mxu0 0
      %771 = vmatprep.subr.bf16.mxu0 0
      %772 = vmatpush1.bf16.msra.mxu0 0
      %773 = vmatprep.subr.bf16.mxu0 0
      %774 = vmatpush1.bf16.msra.mxu0 0
      %775 = vmatprep.subr.bf16.mxu0 0
      %776 = vmatpush1.bf16.msra.mxu0 0
      %777 = vmatprep.subr.bf16.mxu0 0
      %778 = vmatpush1.bf16.msra.mxu0 0
      %779 = vmatprep.subr.bf16.mxu0 0
      %780 = vmatpush1.bf16.msra.mxu0 0
      %781 = vmatprep.subr.bf16.mxu0 0
      %782 = vmatpush1.bf16.msra.mxu0 0
      %783 = vmatprep.subr.bf16.mxu0 0
      %784 = vmatpush1.bf16.msra.mxu0 0
      %785 = vmatprep.subr.bf16.mxu0 0
      %786 = vmatpush1.bf16.msra.mxu0 0
      %787 = vmatprep.mubr.bf16.mxu0 0
      %788 = vmatmul.mubr.bf16.gmra.mrb[0].mxu0 %v753
      %v789 = vpop.f32.mrb[0].mxu0
      %v790 = vadd.f32 0.0, %v789
      %v791 = vpop.f32.mrb[0].mxu0
      %v792 = vpop.f32.mrb[0].mxu0
      %v793 = vadd.f32 0.0, %v792
      %v794 = vpop.f32.mrb[0].mxu0
      %795 = vdwg.mxu0
      %s796 = scalar_lea.vmem %s4, 4
      %v797 = vld [vmem:[%s796] sm:$0x1]
      %v799 = vlaneseq
      %v800 = vshrl.u32 %v799, 7
      %v801 = vsub.s32 0, %v800
      %v802 = vrot.slane %v797, %v801
      %v804 = vmul.f32 %v790, %v802
      %v805 = vmul.f32 %v793, %v802
      %v806 = vadd.f32 %v742, %v804
      %v807 = vadd.f32 %v743, %v805
      %s808 = scalar_lea.vmem %s3, 40
      %v809 = vld [vmem:[%s808] sm:$0xf]
      %v810 = vld [vmem:[%s808 + $0x4] sm:$0xf]
      %v813 = vunpack.c.l.b16 %v809
      %v814 = vunpack.c.l.b16 %v810
      %v815 = vpack.c.b16 %v814, %v813
      %v817 = vsel %vm498, %v815, 0
      %819 = vmatprep.subr.bf16.mxu0 0
      %820 = vmatpush1.bf16.msra.mxu0 %v487
      %821 = vmatprep.subr.bf16.mxu0 0
      %822 = vmatpush1.bf16.msra.mxu0 %v488
      %823 = vmatprep.subr.bf16.mxu0 0
      %824 = vmatpush1.bf16.msra.mxu0 %v489
      %825 = vmatprep.subr.bf16.mxu0 0
      %826 = vmatpush1.bf16.msra.mxu0 %v490
      %827 = vmatprep.subr.bf16.mxu0 0
      %828 = vmatpush1.bf16.msra.mxu0 0
      %829 = vmatprep.subr.bf16.mxu0 0
      %830 = vmatpush1.bf16.msra.mxu0 0
      %831 = vmatprep.subr.bf16.mxu0 0
      %832 = vmatpush1.bf16.msra.mxu0 0
      %833 = vmatprep.subr.bf16.mxu0 0
      %834 = vmatpush1.bf16.msra.mxu0 0
      %835 = vmatprep.subr.bf16.mxu0 0
      %836 = vmatpush1.bf16.msra.mxu0 0
      %837 = vmatprep.subr.bf16.mxu0 0
      %838 = vmatpush1.bf16.msra.mxu0 0
      %839 = vmatprep.subr.bf16.mxu0 0
      %840 = vmatpush1.bf16.msra.mxu0 0
      %841 = vmatprep.subr.bf16.mxu0 0
      %842 = vmatpush1.bf16.msra.mxu0 0
      %843 = vmatprep.subr.bf16.mxu0 0
      %844 = vmatpush1.bf16.msra.mxu0 0
      %845 = vmatprep.subr.bf16.mxu0 0
      %846 = vmatpush1.bf16.msra.mxu0 0
      %847 = vmatprep.subr.bf16.mxu0 0
      %848 = vmatpush1.bf16.msra.mxu0 0
      %849 = vmatprep.subr.bf16.mxu0 0
      %850 = vmatpush1.bf16.msra.mxu0 0
      %851 = vmatprep.mubr.bf16.mxu0 0
      %852 = vmatmul.mubr.bf16.gmra.mrb[0].mxu0 %v817
      %v853 = vpop.f32.mrb[0].mxu0
      %v854 = vadd.f32 0.0, %v853
      %v855 = vpop.f32.mrb[0].mxu0
      %v856 = vpop.f32.mrb[0].mxu0
      %v857 = vadd.f32 0.0, %v856
      %v858 = vpop.f32.mrb[0].mxu0
      %859 = vdwg.mxu0
      %s860 = scalar_lea.vmem %s4, 5
      %v861 = vld [vmem:[%s860] sm:$0x1]
      %v863 = vlaneseq
      %v864 = vshrl.u32 %v863, 7
      %v865 = vsub.s32 0, %v864
      %v866 = vrot.slane %v861, %v865
      %v868 = vmul.f32 %v854, %v866
      %v869 = vmul.f32 %v857, %v866
      %v870 = vadd.f32 %v806, %v868
      %v871 = vadd.f32 %v807, %v869
      %s872 = scalar_lea.vmem %s3, 48
      %v873 = vld [vmem:[%s872] sm:$0xf]
      %v874 = vld [vmem:[%s872 + $0x4] sm:$0xf]
      %v877 = vunpack.c.l.b16 %v873
      %v878 = vunpack.c.l.b16 %v874
      %v879 = vpack.c.b16 %v878, %v877
      %v881 = vsel %vm498, %v879, 0
      %883 = vmatprep.subr.bf16.mxu0 0
      %884 = vmatpush1.bf16.msra.mxu0 %v487
      %885 = vmatprep.subr.bf16.mxu0 0
      %886 = vmatpush1.bf16.msra.mxu0 %v488
      %887 = vmatprep.subr.bf16.mxu0 0
      %888 = vmatpush1.bf16.msra.mxu0 %v489
      %889 = vmatprep.subr.bf16.mxu0 0
      %890 = vmatpush1.bf16.msra.mxu0 %v490
      %891 = vmatprep.subr.bf16.mxu0 0
      %892 = vmatpush1.bf16.msra.mxu0 0
      %893 = vmatprep.subr.bf16.mxu0 0
      %894 = vmatpush1.bf16.msra.mxu0 0
      %895 = vmatprep.subr.bf16.mxu0 0
      %896 = vmatpush1.bf16.msra.mxu0 0
      %897 = vmatprep.subr.bf16.mxu0 0
      %898 = vmatpush1.bf16.msra.mxu0 0
      %899 = vmatprep.subr.bf16.mxu0 0
      %900 = vmatpush1.bf16.msra.mxu0 0
      %901 = vmatprep.subr.bf16.mxu0 0
      %902 = vmatpush1.bf16.msra.mxu0 0
      %903 = vmatprep.subr.bf16.mxu0 0
      %904 = vmatpush1.bf16.msra.mxu0 0
      %905 = vmatprep.subr.bf16.mxu0 0
      %906 = vmatpush1.bf16.msra.mxu0 0
      %907 = vmatprep.subr.bf16.mxu0 0
      %908 = vmatpush1.bf16.msra.mxu0 0
      %909 = vmatprep.subr.bf16.mxu0 0
      %910 = vmatpush1.bf16.msra.mxu0 0
      %911 = vmatprep.subr.bf16.mxu0 0
      %912 = vmatpush1.bf16.msra.mxu0 0
      %913 = vmatprep.subr.bf16.mxu0 0
      %914 = vmatpush1.bf16.msra.mxu0 0
      %915 = vmatprep.mubr.bf16.mxu0 0
      %916 = vmatmul.mubr.bf16.gmra.mrb[0].mxu0 %v881
      %v917 = vpop.f32.mrb[0].mxu0
      %v918 = vadd.f32 0.0, %v917
      %v919 = vpop.f32.mrb[0].mxu0
      %v920 = vpop.f32.mrb[0].mxu0
      %v921 = vadd.f32 0.0, %v920
      %v922 = vpop.f32.mrb[0].mxu0
      %923 = vdwg.mxu0
      %s924 = scalar_lea.vmem %s4, 6
      %v925 = vld [vmem:[%s924] sm:$0x1]
      %v927 = vlaneseq
      %v928 = vshrl.u32 %v927, 7
      %v929 = vsub.s32 0, %v928
      %v930 = vrot.slane %v925, %v929
      %v932 = vmul.f32 %v918, %v930
      %v933 = vmul.f32 %v921, %v930
      %v934 = vadd.f32 %v870, %v932
      %v935 = vadd.f32 %v871, %v933
      %s936 = scalar_lea.vmem %s3, 56
      %v937 = vld [vmem:[%s936] sm:$0xf]
      %v938 = vld [vmem:[%s936 + $0x4] sm:$0xf]
      %v941 = vunpack.c.l.b16 %v937
      %v942 = vunpack.c.l.b16 %v938
      %v943 = vpack.c.b16 %v942, %v941
      %v945 = vsel %vm498, %v943, 0
      %947 = vmatprep.subr.bf16.mxu0 0
      %948 = vmatpush1.bf16.msra.mxu0 %v487
      %949 = vmatprep.subr.bf16.mxu0 0
      %950 = vmatpush1.bf16.msra.mxu0 %v488
      %951 = vmatprep.subr.bf16.mxu0 0
      %952 = vmatpush1.bf16.msra.mxu0 %v489
      %953 = vmatprep.subr.bf16.mxu0 0
      %954 = vmatpush1.bf16.msra.mxu0 %v490
      %955 = vmatprep.subr.bf16.mxu0 0
      %956 = vmatpush1.bf16.msra.mxu0 0
      %957 = vmatprep.subr.bf16.mxu0 0
      %958 = vmatpush1.bf16.msra.mxu0 0
      %959 = vmatprep.subr.bf16.mxu0 0
      %960 = vmatpush1.bf16.msra.mxu0 0
      %961 = vmatprep.subr.bf16.mxu0 0
      %962 = vmatpush1.bf16.msra.mxu0 0
      %963 = vmatprep.subr.bf16.mxu0 0
      %964 = vmatpush1.bf16.msra.mxu0 0
      %965 = vmatprep.subr.bf16.mxu0 0
      %966 = vmatpush1.bf16.msra.mxu0 0
      %967 = vmatprep.subr.bf16.mxu0 0
      %968 = vmatpush1.bf16.msra.mxu0 0
      %969 = vmatprep.subr.bf16.mxu0 0
      %970 = vmatpush1.bf16.msra.mxu0 0
      %971 = vmatprep.subr.bf16.mxu0 0
      %972 = vmatpush1.bf16.msra.mxu0 0
      %973 = vmatprep.subr.bf16.mxu0 0
      %974 = vmatpush1.bf16.msra.mxu0 0
      %975 = vmatprep.subr.bf16.mxu0 0
      %976 = vmatpush1.bf16.msra.mxu0 0
      %977 = vmatprep.subr.bf16.mxu0 0
      %978 = vmatpush1.bf16.msra.mxu0 0
      %979 = vmatprep.mubr.bf16.mxu0 0
      %980 = vmatmul.mubr.bf16.gmra.mrb[0].mxu0 %v945
      %v981 = vpop.f32.mrb[0].mxu0
      %v982 = vadd.f32 0.0, %v981
      %v983 = vpop.f32.mrb[0].mxu0
      %v984 = vpop.f32.mrb[0].mxu0
      %v985 = vadd.f32 0.0, %v984
      %v986 = vpop.f32.mrb[0].mxu0
      %987 = vdwg.mxu0
      %s988 = scalar_lea.vmem %s4, 7
      %v989 = vld [vmem:[%s988] sm:$0x1]
      %v991 = vlaneseq
      %v992 = vshrl.u32 %v991, 7
      %v993 = vsub.s32 0, %v992
      %v994 = vrot.slane %v989, %v993
      %v996 = vmul.f32 %v982, %v994
      %v997 = vmul.f32 %v985, %v994
      %v998 = vadd.f32 %v934, %v996
      %v999 = vadd.f32 %v935, %v997
      %s1000 = scalar_lea.vmem %s3, 64
      %v1001 = vld [vmem:[%s1000] sm:$0xf]
      %v1002 = vld [vmem:[%s1000 + $0x4] sm:$0xf]
      %v1005 = vunpack.c.l.b16 %v1001
      %v1006 = vunpack.c.l.b16 %v1002
      %v1007 = vpack.c.b16 %v1006, %v1005
      %v1009 = vsel %vm498, %v1007, 0
      %1011 = vmatprep.subr.bf16.mxu0 0
      %1012 = vmatpush1.bf16.msra.mxu0 %v487
      %1013 = vmatprep.subr.bf16.mxu0 0
      %1014 = vmatpush1.bf16.msra.mxu0 %v488
      %1015 = vmatprep.subr.bf16.mxu0 0
      %1016 = vmatpush1.bf16.msra.mxu0 %v489
      %1017 = vmatprep.subr.bf16.mxu0 0
      %1018 = vmatpush1.bf16.msra.mxu0 %v490
      %1019 = vmatprep.subr.bf16.mxu0 0
      %1020 = vmatpush1.bf16.msra.mxu0 0
      %1021 = vmatprep.subr.bf16.mxu0 0
      %1022 = vmatpush1.bf16.msra.mxu0 0
      %1023 = vmatprep.subr.bf16.mxu0 0
      %1024 = vmatpush1.bf16.msra.mxu0 0
      %1025 = vmatprep.subr.bf16.mxu0 0
      %1026 = vmatpush1.bf16.msra.mxu0 0
      %1027 = vmatprep.subr.bf16.mxu0 0
      %1028 = vmatpush1.bf16.msra.mxu0 0
      %1029 = vmatprep.subr.bf16.mxu0 0
      %1030 = vmatpush1.bf16.msra.mxu0 0
      %1031 = vmatprep.subr.bf16.mxu0 0
      %1032 = vmatpush1.bf16.msra.mxu0 0
      %1033 = vmatprep.subr.bf16.mxu0 0
      %1034 = vmatpush1.bf16.msra.mxu0 0
      %1035 = vmatprep.subr.bf16.mxu0 0
      %1036 = vmatpush1.bf16.msra.mxu0 0
      %1037 = vmatprep.subr.bf16.mxu0 0
      %1038 = vmatpush1.bf16.msra.mxu0 0
      %1039 = vmatprep.subr.bf16.mxu0 0
      %1040 = vmatpush1.bf16.msra.mxu0 0
      %1041 = vmatprep.subr.bf16.mxu0 0
      %1042 = vmatpush1.bf16.msra.mxu0 0
      %1043 = vmatprep.mubr.bf16.mxu0 0
      %1044 = vmatmul.mubr.bf16.gmra.mrb[0].mxu0 %v1009
      %v1045 = vpop.f32.mrb[0].mxu0
      %v1046 = vadd.f32 0.0, %v1045
      %v1047 = vpop.f32.mrb[0].mxu0
      %v1048 = vpop.f32.mrb[0].mxu0
      %v1049 = vadd.f32 0.0, %v1048
      %v1050 = vpop.f32.mrb[0].mxu0
      %1051 = vdwg.mxu0
      %s1052 = scalar_lea.vmem %s4, 8
      %v1053 = vld [vmem:[%s1052] sm:$0x1]
      %v1055 = vlaneseq
      %v1056 = vshrl.u32 %v1055, 7
      %v1057 = vsub.s32 0, %v1056
      %v1058 = vrot.slane %v1053, %v1057
      %v1060 = vmul.f32 %v1046, %v1058
      %v1061 = vmul.f32 %v1049, %v1058
      %v1062 = vadd.f32 %v998, %v1060
      %v1063 = vadd.f32 %v999, %v1061
      %v1064 = vld [vmem:[%s5] sm:$0x1]
      %v1066 = vlaneseq
      %v1067 = vshrl.u32 %v1066, 7
      %v1068 = vsub.s32 0, %v1067
      %v1069 = vrot.slane %v1064, %v1068
      %v1071 = vadd.f32 %v1062, %v1069
      %v1072 = vadd.f32 %v1063, %v1069
      %v1073 = vpack.c.bf16 %v1072, %v1071
      %v1074 = vld [vmem:[%s6] sm:$0x3]
      %v1075 = vld [vmem:[%s7] sm:$0x1]
      %v1077 = vlaneseq
      %v1078 = vshrl.u32 %v1077, 7
      %v1079 = vsub.s32 0, %v1078
      %v1080 = vrot.slane %v1075, %v1079
      %vm1082 = vcmask 31744
      %v1084 = vsel %vm1082, %v1073, 0
      %vm1086 = vcmask 1041408
      %v1088 = vsel %vm1086, %v1074, 0
      %1090 = vmatprep.subr.bf16.mxu0 0
      %1091 = vmatpush1.bf16.msra.mxu0 %v1088
      %1092 = vmatprep.subr.bf16.mxu0 0
      %1093 = vmatpush1.bf16.msra.mxu0 0
      %1094 = vmatprep.subr.bf16.mxu0 0
      %1095 = vmatpush1.bf16.msra.mxu0 0
      %1096 = vmatprep.subr.bf16.mxu0 0
      %1097 = vmatpush1.bf16.msra.mxu0 0
      %1098 = vmatprep.subr.bf16.mxu0 0
      %1099 = vmatpush1.bf16.msra.mxu0 0
      %1100 = vmatprep.subr.bf16.mxu0 0
      %1101 = vmatpush1.bf16.msra.mxu0 0
      %1102 = vmatprep.subr.bf16.mxu0 0
      %1103 = vmatpush1.bf16.msra.mxu0 0
      %1104 = vmatprep.subr.bf16.mxu0 0
      %1105 = vmatpush1.bf16.msra.mxu0 0
      %1106 = vmatprep.subr.bf16.mxu0 0
      %1107 = vmatpush1.bf16.msra.mxu0 0
      %1108 = vmatprep.subr.bf16.mxu0 0
      %1109 = vmatpush1.bf16.msra.mxu0 0
      %1110 = vmatprep.subr.bf16.mxu0 0
      %1111 = vmatpush1.bf16.msra.mxu0 0
      %1112 = vmatprep.subr.bf16.mxu0 0
      %1113 = vmatpush1.bf16.msra.mxu0 0
      %1114 = vmatprep.subr.bf16.mxu0 0
      %1115 = vmatpush1.bf16.msra.mxu0 0
      %1116 = vmatprep.subr.bf16.mxu0 0
      %1117 = vmatpush1.bf16.msra.mxu0 0
      %1118 = vmatprep.subr.bf16.mxu0 0
      %1119 = vmatpush1.bf16.msra.mxu0 0
      %1120 = vmatprep.subr.bf16.mxu0 0
      %1121 = vmatpush1.bf16.msra.mxu0 0
      %1122 = vmatprep.mubr.bf16.mxu0 0
      %1123 = vmatmul.mubr.bf16.gmra.mrb[0].mxu0 %v1084
      %v1124 = vpop.f32.mrb[0].mxu0
      %v1125 = vadd.f32 %v1080, %v1124
      %v1126 = vpop.f32.mrb[0].mxu0
      %v1127 = vpop.f32.mrb[0].mxu0
      %v1128 = vadd.f32 %v1080, %v1127
      %v1129 = vpop.f32.mrb[0].mxu0
      %1130 = vdwg.mxu0
      %v1131 = vld [vmem:[%s8] sm:$0xf]
      %v1132 = vld [vmem:[%s8 + $0x4] sm:$0xf]
      %v1135 = vunpack.c.l.b16 %v1131
      %v1136 = vunpack.c.l.b16 %v1132
      %v1137 = vpack.c.b16 %v1136, %v1135
      %v1143 = vsel %vm498, %v1137, 0
      %1145 = vmatprep.subr.bf16.mxu0 0
      %1146 = vmatpush1.bf16.msra.mxu0 %v393
      %1147 = vmatprep.subr.bf16.mxu0 0
      %1148 = vmatpush1.bf16.msra.mxu0 %v394
      %1149 = vmatprep.subr.bf16.mxu0 0
      %1150 = vmatpush1.bf16.msra.mxu0 %v395
      %1151 = vmatprep.subr.bf16.mxu0 0
      %1152 = vmatpush1.bf16.msra.mxu0 %v396
      %1153 = vmatprep.subr.bf16.mxu0 0
      %1154 = vmatpush1.bf16.msra.mxu0 0
      %1155 = vmatprep.subr.bf16.mxu0 0
      %1156 = vmatpush1.bf16.msra.mxu0 0
      %1157 = vmatprep.subr.bf16.mxu0 0
      %1158 = vmatpush1.bf16.msra.mxu0 0
      %1159 = vmatprep.subr.bf16.mxu0 0
      %1160 = vmatpush1.bf16.msra.mxu0 0
      %1161 = vmatprep.subr.bf16.mxu0 0
      %1162 = vmatpush1.bf16.msra.mxu0 0
      %1163 = vmatprep.subr.bf16.mxu0 0
      %1164 = vmatpush1.bf16.msra.mxu0 0
      %1165 = vmatprep.subr.bf16.mxu0 0
      %1166 = vmatpush1.bf16.msra.mxu0 0
      %1167 = vmatprep.subr.bf16.mxu0 0
      %1168 = vmatpush1.bf16.msra.mxu0 0
      %1169 = vmatprep.subr.bf16.mxu0 0
      %1170 = vmatpush1.bf16.msra.mxu0 0
      %1171 = vmatprep.subr.bf16.mxu0 0
      %1172 = vmatpush1.bf16.msra.mxu0 0
      %1173 = vmatprep.subr.bf16.mxu0 0
      %1174 = vmatpush1.bf16.msra.mxu0 0
      %1175 = vmatprep.subr.bf16.mxu0 0
      %1176 = vmatpush1.bf16.msra.mxu0 0
      %1177 = vmatprep.mubr.bf16.mxu0 0
      %1178 = vmatmul.mubr.bf16.gmra.mrb[0].mxu0 %v1143
      %v1179 = vpop.f32.mrb[0].mxu0
      %v1180 = vadd.f32 0.0, %v1179
      %v1181 = vpop.f32.mrb[0].mxu0
      %v1182 = vpop.f32.mrb[0].mxu0
      %v1183 = vadd.f32 0.0, %v1182
      %v1184 = vpop.f32.mrb[0].mxu0
      %1185 = vdwg.mxu0
      %v1186 = vmul.f32 %v1180, 0.11111111
      %v1187 = vmul.f32 %v1183, 0.11111111
      %v1188 = vpack.c.bf16 %v1187, %v1186
      %v1189 = vld [vmem:[%s9] sm:$0xf]
      %v1191 = vsel %vm397, %v1188, 0
      %v1194 = vsel %vm410, %v1189, 0
      %1196 = vmatprep.subr.bf16.mxu0 0
      %1197 = vmatpush1.bf16.msra.mxu0 %v1194
      %1198 = vmatprep.subr.bf16.mxu0 0
      %1199 = vmatpush1.bf16.msra.mxu0 0
      %1200 = vmatprep.subr.bf16.mxu0 0
      %1201 = vmatpush1.bf16.msra.mxu0 0
      %1202 = vmatprep.subr.bf16.mxu0 0
      %1203 = vmatpush1.bf16.msra.mxu0 0
      %1204 = vmatprep.subr.bf16.mxu0 0
      %1205 = vmatpush1.bf16.msra.mxu0 0
      %1206 = vmatprep.subr.bf16.mxu0 0
      %1207 = vmatpush1.bf16.msra.mxu0 0
      %1208 = vmatprep.subr.bf16.mxu0 0
      %1209 = vmatpush1.bf16.msra.mxu0 0
      %1210 = vmatprep.subr.bf16.mxu0 0
      %1211 = vmatpush1.bf16.msra.mxu0 0
      %1212 = vmatprep.subr.bf16.mxu0 0
      %1213 = vmatpush1.bf16.msra.mxu0 0
      %1214 = vmatprep.subr.bf16.mxu0 0
      %1215 = vmatpush1.bf16.msra.mxu0 0
      %1216 = vmatprep.subr.bf16.mxu0 0
      %1217 = vmatpush1.bf16.msra.mxu0 0
      %1218 = vmatprep.subr.bf16.mxu0 0
      %1219 = vmatpush1.bf16.msra.mxu0 0
      %1220 = vmatprep.subr.bf16.mxu0 0
      %1221 = vmatpush1.bf16.msra.mxu0 0
      %1222 = vmatprep.subr.bf16.mxu0 0
      %1223 = vmatpush1.bf16.msra.mxu0 0
      %1224 = vmatprep.subr.bf16.mxu0 0
      %1225 = vmatpush1.bf16.msra.mxu0 0
      %1226 = vmatprep.subr.bf16.mxu0 0
      %1227 = vmatpush1.bf16.msra.mxu0 0
      %1228 = vmatprep.mubr.bf16.mxu0 0
      %1229 = vmatmul.mubr.bf16.gmra.mrb[0].mxu0 %v1191
      %v1230 = vpop.f32.mrb[0].mxu0
      %v1231 = vadd.f32 0.0, %v1230
      %v1232 = vpop.f32.mrb[0].mxu0
      %v1233 = vpop.f32.mrb[0].mxu0
      %v1234 = vadd.f32 0.0, %v1233
      %v1235 = vpop.f32.mrb[0].mxu0
      %1236 = vdwg.mxu0
      %v1237 = vadd.f32 %v1125, %v1231
      %v1238 = vadd.f32 %v1128, %v1234
      %v1239 = vmax.f32 %v1237, 0.0
      %v1240 = vmax.f32 %v1238, 0.0
      %v1241 = vpack.c.bf16 %v1240, %v1239
      %v1243 = vunpack.c.l.b16 %v1241
      %v1244 = vunpack.c.h.b16 %v1241
      %v1245 = vpack.c.b16 %v1243, %v1243
      %v1246 = vpack.c.b16 %v1244, %v1244
      %vm1249 = vcmask 125952
      %1250 = vst.msk [vmem:[%s359] sm:$0xf] %vm1249, %v1245
      %1251 = vst.msk [vmem:[%s359 + $0x4] sm:$0xf] %vm1249, %v1246
      %p1252 = scmp.lt.s32.totalorder %s21, 1
      %s1253 = scalar_select %p1252, %s21, 1
      %s1254 = smul.addr %s1253, 2
      %s1255 = smul.addr %s1254, 4
      %s1256 = scalar_lea.vmem %s10, %s1255
      // Predicated region
      $region61: #{shufflenet_forward.9} parent=59 // pred_check
        %p1257 = pneg %p254
      $region62: #{shufflenet_forward.9} parent=59 // pred_check_branch
        %1259 = sbr.rel (%p1257) target = $region64
      $region63: #{shufflenet_forward.9} parent=59 // pred_region
        _
      $region64: #{shufflenet_forward.9} parent=59 // pred_fallthru
        _
    $region60: #{shufflenet_forward.9} parent=5 // pred_fallthru
      _
    %p1260 = scmp.le.s32.totalorder 2, %s16
    // Predicated region
    $region65: #{shufflenet_forward.9} parent=5 // pred_check
      %p1261 = pneg %p1260
    $region66: #{shufflenet_forward.9} parent=5 // pred_check_branch
      %1263 = sbr.rel (%p1261) target = $region68
    $region67: #{shufflenet_forward.9} parent=5 // pred_region
      %s1264 = ssub.s32 %s16, 2
      // Predicated region
      $region69: #{shufflenet_forward.9} parent=67 // pred_check
        %p1265 = pneg %p260
      $region70: #{shufflenet_forward.9} parent=67 // pred_check_branch
        %1267 = sbr.rel (%p1265) target = $region72
      $region71: #{shufflenet_forward.9} parent=67 // pred_region
        %p1268 = scmp.lt.s32.totalorder %s22, 1
        %s1269 = scalar_select %p1268, %s22, 1
        %s1270 = smul.addr %s1269, 2
        %s1271 = smul.addr %s1270, 4
        %s1272 = scalar_lea.vmem %s10, %s1271
      $region72: #{shufflenet_forward.9} parent=67 // pred_fallthru
        _
    $region68: #{shufflenet_forward.9} parent=5 // pred_fallthru
      _
  $region6: #{shufflenet_forward.9} parent=0 // loop_footer
    %s20 = sadd.s32 1, %s16
  $region7: #{shufflenet_forward.9} parent=0 // loop_footer_branch
    %15 = sbr.rel target = $region3
  $region8: #{shufflenet_forward.9} parent=0 // loop_exit
    _

// kernel: shufflenet_forward.10
$region0: #{shufflenet_forward.10}
  #allocation0 [shape = 'u32[]', space=smem, size = 0x4, offset = 0x4, fixed_abs, tag = 'smem constant byte address 0x4 - core index']
  #allocation1 [shape = 'u32[144,128]{1,0:T(1,128)}', space=vmem, size = 0x12000, scoped, tag = 'internal scratch']
  %s0 = inlined_call_operand.vmem [shape: bf16[2,16,16], index: 0, kind: input, shape index: {}]
  %s1 = inlined_call_operand.vmem [shape: bf16[16,4], index: 1, kind: input, shape index: {}]
  %s2 = inlined_call_operand.vmem [shape: f32[1,4], index: 2, kind: input, shape index: {}]
  %s3 = inlined_call_operand.vmem [shape: bf16[9,16,16], index: 3, kind: input, shape index: {}]
  %s4 = inlined_call_operand.vmem [shape: f32[9,1,4], index: 4, kind: input, shape index: {}]
  %s5 = inlined_call_operand.vmem [shape: f32[1,4], index: 5, kind: input, shape index: {}]
  %s6 = inlined_call_operand.vmem [shape: bf16[4,16], index: 6, kind: input, shape index: {}]
  %s7 = inlined_call_operand.vmem [shape: f32[1,16], index: 7, kind: input, shape index: {}]
  %s8 = inlined_call_operand.vmem [shape: bf16[2,16,16], index: 8, kind: output, shape index: {}]
  %s9 = sld [smem:[#allocation0]]
  $region65: #{shufflenet_forward.10} parent=0
    _
  %s11 = ssub.s32 1, %s9
  %s12 = scalar_select 0, %s11, %s9
  loop: start=0, step=1, limit=4
  $region2: #{shufflenet_forward.10} parent=0 // loop_pre_header
    _
  $region3: #{shufflenet_forward.10} parent=0 // loop_header
    %s14 = sphi 0, %s18
    %p15 = scmp.ge.s32.totalorder %s14, 4
    %s24 = sphi 0, %s26
    %s27 = sphi 0, %s24
    %s28 = sphi 0, %s27
    %s44 = sphi 0, %s28
    %s48 = sphi 0, %s48
    %s50 = sphi 0, %s48
    %s51 = sphi 0, %s50
    %s65 = sphi 0, %s51
    %s69 = sphi 0, %s69
    %s71 = sphi 0, %s69
    %s72 = sphi 0, %s71
    %s86 = sphi 0, %s72
    %s90 = sphi 0, %s90
    %s92 = sphi 0, %s90
    %s93 = sphi 0, %s92
    %s107 = sphi 0, %s93
    %s111 = sphi 0, %s111
    %s113 = sphi 0, %s111
    %s114 = sphi 0, %s113
    %s128 = sphi 0, %s114
    %s132 = sphi 0, %s132
    %s134 = sphi 0, %s132
    %s135 = sphi 0, %s134
    %s149 = sphi 0, %s135
    %s153 = sphi 0, %s153
    %s155 = sphi 0, %s153
    %s156 = sphi 0, %s155
    %s170 = sphi 0, %s156
    %s174 = sphi 0, %s174
    %s176 = sphi 0, %s174
    %s177 = sphi 0, %s176
    %s191 = sphi 0, %s177
    %s197 = sphi 0, %s199
    %s200 = sphi 0, %s197
    %s201 = sphi 0, %s200
    %s217 = sphi 0, %s201
  $region4: #{shufflenet_forward.10} parent=0 // loop_header_branch
    %17 = sbr.rel (%p15) target = $region8
  $region5: #{shufflenet_forward.10} parent=0 // loop_body
    %s19 = ssub.s32 %s14, 1
    %s20 = ssub.s32 %s14, 2
    %s21 = sadd.s32 %s14, 1
    %s22 = ssub.s32 %s14, %s21
    %p23 = scmp.eq.s32.totalorder %s22, 0
    %s25 = sadd.s32 %s24, 1
    %s26 = scalar_select %p23, %s24, %s25
    %p29 = pneg %p23
    %p30 = scmp.eq.s32.totalorder %s14, 1
    %p31 = por %p29, %p30
    %p32 = scmp.ne.s32.totalorder %s24, %s27
    %p33 = scmp.eq.s32.totalorder %s14, 0
    %p34 = por %p32, %p33
    %p35 = scmp.ne.s32.totalorder %s24, %s27
    %p36 = scmp.eq.s32.totalorder %s19, 1
    %p37 = por %p35, %p36
    %p38 = scmp.ne.s32.totalorder %s27, %s28
    %p39 = scmp.eq.s32.totalorder %s19, 0
    %p40 = por %p38, %p39
    %p41 = scmp.ne.s32.totalorder %s27, %s28
    %p42 = scmp.eq.s32.totalorder %s20, 1
    %p43 = por %p41, %p42
    %p45 = scmp.ne.s32.totalorder %s28, %s44
    %p46 = scmp.eq.s32.totalorder %s20, 0
    %p47 = por %p45, %p46
    %s49 = sadd.s32 %s48, 1
    %p52 = scmp.eq.s32.totalorder %s14, 1
    %p53 = scmp.ne.s32.totalorder %s48, %s50
    %p54 = scmp.eq.s32.totalorder %s14, 0
    %p55 = por %p53, %p54
    %p56 = scmp.ne.s32.totalorder %s48, %s50
    %p57 = scmp.eq.s32.totalorder %s19, 1
    %p58 = por %p56, %p57
    %p59 = scmp.ne.s32.totalorder %s50, %s51
    %p60 = scmp.eq.s32.totalorder %s19, 0
    %p61 = por %p59, %p60
    %p62 = scmp.ne.s32.totalorder %s50, %s51
    %p63 = scmp.eq.s32.totalorder %s20, 1
    %p64 = por %p62, %p63
    %p66 = scmp.ne.s32.totalorder %s51, %s65
    %p67 = scmp.eq.s32.totalorder %s20, 0
    %p68 = por %p66, %p67
    %s70 = sadd.s32 %s69, 1
    %p73 = scmp.eq.s32.totalorder %s14, 1
    %p74 = scmp.ne.s32.totalorder %s69, %s71
    %p75 = scmp.eq.s32.totalorder %s14, 0
    %p76 = por %p74, %p75
    %p77 = scmp.ne.s32.totalorder %s69, %s71
    %p78 = scmp.eq.s32.totalorder %s19, 1
    %p79 = por %p77, %p78
    %p80 = scmp.ne.s32.totalorder %s71, %s72
    %p81 = scmp.eq.s32.totalorder %s19, 0
    %p82 = por %p80, %p81
    %p83 = scmp.ne.s32.totalorder %s71, %s72
    %p84 = scmp.eq.s32.totalorder %s20, 1
    %p85 = por %p83, %p84
    %p87 = scmp.ne.s32.totalorder %s72, %s86
    %p88 = scmp.eq.s32.totalorder %s20, 0
    %p89 = por %p87, %p88
    %s91 = sadd.s32 %s90, 1
    %p94 = scmp.eq.s32.totalorder %s14, 1
    %p95 = scmp.ne.s32.totalorder %s90, %s92
    %p96 = scmp.eq.s32.totalorder %s14, 0
    %p97 = por %p95, %p96
    %p98 = scmp.ne.s32.totalorder %s90, %s92
    %p99 = scmp.eq.s32.totalorder %s19, 1
    %p100 = por %p98, %p99
    %p101 = scmp.ne.s32.totalorder %s92, %s93
    %p102 = scmp.eq.s32.totalorder %s19, 0
    %p103 = por %p101, %p102
    %p104 = scmp.ne.s32.totalorder %s92, %s93
    %p105 = scmp.eq.s32.totalorder %s20, 1
    %p106 = por %p104, %p105
    %p108 = scmp.ne.s32.totalorder %s93, %s107
    %p109 = scmp.eq.s32.totalorder %s20, 0
    %p110 = por %p108, %p109
    %s112 = sadd.s32 %s111, 1
    %p115 = scmp.eq.s32.totalorder %s14, 1
    %p116 = scmp.ne.s32.totalorder %s111, %s113
    %p117 = scmp.eq.s32.totalorder %s14, 0
    %p118 = por %p116, %p117
    %p119 = scmp.ne.s32.totalorder %s111, %s113
    %p120 = scmp.eq.s32.totalorder %s19, 1
    %p121 = por %p119, %p120
    %p122 = scmp.ne.s32.totalorder %s113, %s114
    %p123 = scmp.eq.s32.totalorder %s19, 0
    %p124 = por %p122, %p123
    %p125 = scmp.ne.s32.totalorder %s113, %s114
    %p126 = scmp.eq.s32.totalorder %s20, 1
    %p127 = por %p125, %p126
    %p129 = scmp.ne.s32.totalorder %s114, %s128
    %p130 = scmp.eq.s32.totalorder %s20, 0
    %p131 = por %p129, %p130
    %s133 = sadd.s32 %s132, 1
    %p136 = scmp.eq.s32.totalorder %s14, 1
    %p137 = scmp.ne.s32.totalorder %s132, %s134
    %p138 = scmp.eq.s32.totalorder %s14, 0
    %p139 = por %p137, %p138
    %p140 = scmp.ne.s32.totalorder %s132, %s134
    %p141 = scmp.eq.s32.totalorder %s19, 1
    %p142 = por %p140, %p141
    %p143 = scmp.ne.s32.totalorder %s134, %s135
    %p144 = scmp.eq.s32.totalorder %s19, 0
    %p145 = por %p143, %p144
    %p146 = scmp.ne.s32.totalorder %s134, %s135
    %p147 = scmp.eq.s32.totalorder %s20, 1
    %p148 = por %p146, %p147
    %p150 = scmp.ne.s32.totalorder %s135, %s149
    %p151 = scmp.eq.s32.totalorder %s20, 0
    %p152 = por %p150, %p151
    %s154 = sadd.s32 %s153, 1
    %p157 = scmp.eq.s32.totalorder %s14, 1
    %p158 = scmp.ne.s32.totalorder %s153, %s155
    %p159 = scmp.eq.s32.totalorder %s14, 0
    %p160 = por %p158, %p159
    %p161 = scmp.ne.s32.totalorder %s153, %s155
    %p162 = scmp.eq.s32.totalorder %s19, 1
    %p163 = por %p161, %p162
    %p164 = scmp.ne.s32.totalorder %s155, %s156
    %p165 = scmp.eq.s32.totalorder %s19, 0
    %p166 = por %p164, %p165
    %p167 = scmp.ne.s32.totalorder %s155, %s156
    %p168 = scmp.eq.s32.totalorder %s20, 1
    %p169 = por %p167, %p168
    %p171 = scmp.ne.s32.totalorder %s156, %s170
    %p172 = scmp.eq.s32.totalorder %s20, 0
    %p173 = por %p171, %p172
    %s175 = sadd.s32 %s174, 1
    %p178 = scmp.eq.s32.totalorder %s14, 1
    %p179 = scmp.ne.s32.totalorder %s174, %s176
    %p180 = scmp.eq.s32.totalorder %s14, 0
    %p181 = por %p179, %p180
    %p182 = scmp.ne.s32.totalorder %s174, %s176
    %p183 = scmp.eq.s32.totalorder %s19, 1
    %p184 = por %p182, %p183
    %p185 = scmp.ne.s32.totalorder %s176, %s177
    %p186 = scmp.eq.s32.totalorder %s19, 0
    %p187 = por %p185, %p186
    %p188 = scmp.ne.s32.totalorder %s176, %s177
    %p189 = scmp.eq.s32.totalorder %s20, 1
    %p190 = por %p188, %p189
    %p192 = scmp.ne.s32.totalorder %s177, %s191
    %p193 = scmp.eq.s32.totalorder %s20, 0
    %p194 = por %p192, %p193
    %s195 = ssub.s32 %s14, %s21
    %p196 = scmp.eq.s32.totalorder %s195, 0
    %s198 = sadd.s32 %s197, 1
    %s199 = scalar_select %p196, %s197, %s198
    %p202 = pneg %p196
    %p203 = scmp.eq.s32.totalorder %s14, 1
    %p204 = por %p202, %p203
    %p205 = scmp.ne.s32.totalorder %s197, %s200
    %p206 = scmp.eq.s32.totalorder %s14, 0
    %p207 = por %p205, %p206
    %p208 = scmp.ne.s32.totalorder %s197, %s200
    %p209 = scmp.eq.s32.totalorder %s19, 1
    %p210 = por %p208, %p209
    %p211 = scmp.ne.s32.totalorder %s200, %s201
    %p212 = scmp.eq.s32.totalorder %s19, 0
    %p213 = por %p211, %p212
    %p214 = scmp.ne.s32.totalorder %s200, %s201
    %p215 = scmp.eq.s32.totalorder %s20, 1
    %p216 = por %p214, %p215
    %p218 = scmp.ne.s32.totalorder %s201, %s217
    %p219 = scmp.eq.s32.totalorder %s20, 0
    %p220 = por %p218, %p219
    %p221 = scmp.le.s32.totalorder 1, %s14
    %p222 = scmp.lt.s32.totalorder %s14, 3
    %p223 = pnand %p221, %p222
    %p224 = pneg %p223
    // Predicated region
    $region9: #{shufflenet_forward.10} parent=5 // pred_check
      _
    $region10: #{shufflenet_forward.10} parent=5 // pred_check_branch
      %226 = sbr.rel (%p223) target = $region12
    $region11: #{shufflenet_forward.10} parent=5 // pred_region
      %s227 = ssub.s32 %s14, 1
      // Predicated region
      $region13: #{shufflenet_forward.10} parent=11 // pred_check
        %p228 = pneg %p61
      $region14: #{shufflenet_forward.10} parent=11 // pred_check_branch
        %230 = sbr.rel (%p228) target = $region16
      $region15: #{shufflenet_forward.10} parent=11 // pred_region
        _
      $region16: #{shufflenet_forward.10} parent=11 // pred_fallthru
        _
      // Predicated region
      $region17: #{shufflenet_forward.10} parent=11 // pred_check
        %p231 = pneg %p82
      $region18: #{shufflenet_forward.10} parent=11 // pred_check_branch
        %233 = sbr.rel (%p231) target = $region20
      $region19: #{shufflenet_forward.10} parent=11 // pred_region
        _
      $region20: #{shufflenet_forward.10} parent=11 // pred_fallthru
        _
      // Predicated region
      $region21: #{shufflenet_forward.10} parent=11 // pred_check
        %p234 = pneg %p103
      $region22: #{shufflenet_forward.10} parent=11 // pred_check_branch
        %236 = sbr.rel (%p234) target = $region24
      $region23: #{shufflenet_forward.10} parent=11 // pred_region
        _
      $region24: #{shufflenet_forward.10} parent=11 // pred_fallthru
        _
      // Predicated region
      $region25: #{shufflenet_forward.10} parent=11 // pred_check
        %p237 = pneg %p124
      $region26: #{shufflenet_forward.10} parent=11 // pred_check_branch
        %239 = sbr.rel (%p237) target = $region28
      $region27: #{shufflenet_forward.10} parent=11 // pred_region
        _
      $region28: #{shufflenet_forward.10} parent=11 // pred_fallthru
        _
      // Predicated region
      $region29: #{shufflenet_forward.10} parent=11 // pred_check
        %p240 = pneg %p145
      $region30: #{shufflenet_forward.10} parent=11 // pred_check_branch
        %242 = sbr.rel (%p240) target = $region32
      $region31: #{shufflenet_forward.10} parent=11 // pred_region
        _
      $region32: #{shufflenet_forward.10} parent=11 // pred_fallthru
        _
      // Predicated region
      $region33: #{shufflenet_forward.10} parent=11 // pred_check
        %p243 = pneg %p166
      $region34: #{shufflenet_forward.10} parent=11 // pred_check_branch
        %245 = sbr.rel (%p243) target = $region36
      $region35: #{shufflenet_forward.10} parent=11 // pred_region
        _
      $region36: #{shufflenet_forward.10} parent=11 // pred_fallthru
        _
      // Predicated region
      $region37: #{shufflenet_forward.10} parent=11 // pred_check
        %p246 = pneg %p187
      $region38: #{shufflenet_forward.10} parent=11 // pred_check_branch
        %248 = sbr.rel (%p246) target = $region40
      $region39: #{shufflenet_forward.10} parent=11 // pred_region
        _
      $region40: #{shufflenet_forward.10} parent=11 // pred_fallthru
        _
    $region12: #{shufflenet_forward.10} parent=5 // pred_fallthru
      _
    %p249 = scmp.lt.s32.totalorder %s14, 2
    // Predicated region
    $region41: #{shufflenet_forward.10} parent=5 // pred_check
      %p250 = pneg %p249
    $region42: #{shufflenet_forward.10} parent=5 // pred_check_branch
      %252 = sbr.rel (%p250) target = $region44
    $region43: #{shufflenet_forward.10} parent=5 // pred_region
      // Predicated region
      $region45: #{shufflenet_forward.10} parent=43 // pred_check
        %p253 = pneg %p34
      $region46: #{shufflenet_forward.10} parent=43 // pred_check_branch
        %255 = sbr.rel (%p253) target = $region48
      $region47: #{shufflenet_forward.10} parent=43 // pred_region
        %p256 = scmp.lt.s32.totalorder %s14, 1
        %s257 = scalar_select %p256, %s14, 1
        %s258 = smul.addr %s257, 2
        %s259 = smul.addr %s258, 4
        %s260 = scalar_lea.vmem %s0, %s259
      $region48: #{shufflenet_forward.10} parent=43 // pred_fallthru
        _
    $region44: #{shufflenet_forward.10} parent=5 // pred_fallthru
      _
    %p261 = scmp.le.s32.totalorder 1, %s14
    %p262 = scmp.lt.s32.totalorder %s14, 3
    %p263 = pnand %p261, %p262
    %p264 = pneg %p263
    // Predicated region
    $region49: #{shufflenet_forward.10} parent=5 // pred_check
      _
    $region50: #{shufflenet_forward.10} parent=5 // pred_check_branch
      %266 = sbr.rel (%p263) target = $region52
    $region51: #{shufflenet_forward.10} parent=5 // pred_region
      %s267 = ssub.s32 %s14, 1
      %p268 = scmp.lt.s32.totalorder %s19, 1
      %s269 = scalar_select %p268, %s19, 1
      %s270 = smul.addr %s269, 2
      %s271 = smul.addr %s270, 4
      %s272 = scalar_lea.vmem %s0, %s271
      %p273 = pneg %p40
      %p274 = pneg %p37
      %p275 = pneg %p61
      %p276 = pneg %p58
      %p277 = pneg %p82
      %p278 = pneg %p79
      %p279 = pneg %p103
      %p280 = pneg %p100
      %p281 = pneg %p124
      %p282 = pneg %p121
      %p283 = pneg %p145
      %p284 = pneg %p142
      %p285 = pneg %p166
      %p286 = pneg %p163
      %p287 = pneg %p187
      %p288 = pneg %p184
      %p289 = pneg %p213
      %p290 = pneg %p210
      %p291 = scmp.lt.s32.totalorder %s19, 1
      %s292 = scalar_select %p291, %s19, 1
      %s293 = smul.addr %s292, 2
      %s294 = smul.addr %s293, 4
      %s295 = scalar_lea.vmem %s8, %s294
      %p296 = scmp.lt.s32.totalorder %s19, 1
      %s297 = scalar_select %p296, %s19, 1
      %s298 = smul.addr %s297, 2
      %s299 = smul.addr %s298, 4
      %s300 = scalar_lea.vmem %s0, %s299
      %p301 = scmp.lt.s32.totalorder %s19, 1
      %s302 = scalar_select %p301, %s19, 1
      %s303 = smul.addr %s302, 2
      %s304 = smul.addr %s303, 4
      %s305 = scalar_lea.vmem %s8, %s304
      %v307 = vld [vmem:[%s300] sm:$0xf]
      %v308 = vld [vmem:[%s300 + $0x4] sm:$0xf]
      %v309 = vld [vmem:[%s1] sm:$0xf]
      %v310 = vld [vmem:[%s1 + $0x4] sm:$0xf]
      %v311 = vld [vmem:[%s2] sm:$0x1]
      %v313 = vlaneseq
      %v314 = vshrl.u32 %v313, 7
      %v315 = vsub.s32 0, %v314
      %v316 = vrot.slane %v311, %v315
      %v320 = vunpack.c.l.b16 %v307
      %v321 = vunpack.c.l.b16 %v308
      %v322 = vpack.c.b16 %v321, %v320
      %v325 = vunpack.c.l.b16 %v309
      %v326 = vunpack.c.l.b16 %v310
      %v327 = vpack.c.b16 %v326, %v325
      %vm329 = vcmask 130048
      %v331 = vsel %vm329, %v322, 0
      %333 = vmatprep.subr.bf16.mxu0 0
      %334 = vmatpush1.bf16.msra.mxu0 %v327
      %335 = vmatprep.subr.bf16.mxu0 0
      %336 = vmatpush1.bf16.msra.mxu0 0
      %337 = vmatprep.subr.bf16.mxu0 0
      %338 = vmatpush1.bf16.msra.mxu0 0
      %339 = vmatprep.subr.bf16.mxu0 0
      %340 = vmatpush1.bf16.msra.mxu0 0
      %341 = vmatprep.subr.bf16.mxu0 0
      %342 = vmatpush1.bf16.msra.mxu0 0
      %343 = vmatprep.subr.bf16.mxu0 0
      %344 = vmatpush1.bf16.msra.mxu0 0
      %345 = vmatprep.subr.bf16.mxu0 0
      %346 = vmatpush1.bf16.msra.mxu0 0
      %347 = vmatprep.subr.bf16.mxu0 0
      %348 = vmatpush1.bf16.msra.mxu0 0
      %349 = vmatprep.subr.bf16.mxu0 0
      %350 = vmatpush1.bf16.msra.mxu0 0
      %351 = vmatprep.subr.bf16.mxu0 0
      %352 = vmatpush1.bf16.msra.mxu0 0
      %353 = vmatprep.subr.bf16.mxu0 0
      %354 = vmatpush1.bf16.msra.mxu0 0
      %355 = vmatprep.subr.bf16.mxu0 0
      %356 = vmatpush1.bf16.msra.mxu0 0
      %357 = vmatprep.subr.bf16.mxu0 0
      %358 = vmatpush1.bf16.msra.mxu0 0
      %359 = vmatprep.subr.bf16.mxu0 0
      %360 = vmatpush1.bf16.msra.mxu0 0
      %361 = vmatprep.subr.bf16.mxu0 0
      %362 = vmatpush1.bf16.msra.mxu0 0
      %363 = vmatprep.subr.bf16.mxu0 0
      %364 = vmatpush1.bf16.msra.mxu0 0
      %365 = vmatprep.mubr.bf16.mxu0 0
      %366 = vmatmul.mubr.bf16.gmra.mrb[0].mxu0 %v331
      %v367 = vpop.f32.mrb[0].mxu0
      %v368 = vadd.f32 %v316, %v367
      %v369 = vpop.f32.mrb[0].mxu0
      %v370 = vpop.f32.mrb[0].mxu0
      %v371 = vadd.f32 %v316, %v370
      %v372 = vpop.f32.mrb[0].mxu0
      %373 = vdwg.mxu0
      %v374 = vmax.f32 %v368, 0.0
      %v375 = vmax.f32 %v371, 0.0
      %v376 = vpack.c.bf16 %v375, %v374
      %v377 = vld [vmem:[%s3] sm:$0xf]
      %v378 = vld [vmem:[%s3 + $0x4] sm:$0xf]
      %v381 = vunpack.c.l.b16 %v377
      %v382 = vunpack.c.l.b16 %v378
      %v383 = vpack.c.b16 %v382, %v381
      %v385 = vsel %vm329, %v383, 0
      %387 = vmatprep.subr.bf16.mxu0 0
      %388 = vmatpush1.bf16.msra.mxu0 %v376
      %389 = vmatprep.subr.bf16.mxu0 0
      %390 = vmatpush1.bf16.msra.mxu0 0
      %391 = vmatprep.subr.bf16.mxu0 0
      %392 = vmatpush1.bf16.msra.mxu0 0
      %393 = vmatprep.subr.bf16.mxu0 0
      %394 = vmatpush1.bf16.msra.mxu0 0
      %395 = vmatprep.subr.bf16.mxu0 0
      %396 = vmatpush1.bf16.msra.mxu0 0
      %397 = vmatprep.subr.bf16.mxu0 0
      %398 = vmatpush1.bf16.msra.mxu0 0
      %399 = vmatprep.subr.bf16.mxu0 0
      %400 = vmatpush1.bf16.msra.mxu0 0
      %401 = vmatprep.subr.bf16.mxu0 0
      %402 = vmatpush1.bf16.msra.mxu0 0
      %403 = vmatprep.subr.bf16.mxu0 0
      %404 = vmatpush1.bf16.msra.mxu0 0
      %405 = vmatprep.subr.bf16.mxu0 0
      %406 = vmatpush1.bf16.msra.mxu0 0
      %407 = vmatprep.subr.bf16.mxu0 0
      %408 = vmatpush1.bf16.msra.mxu0 0
      %409 = vmatprep.subr.bf16.mxu0 0
      %410 = vmatpush1.bf16.msra.mxu0 0
      %411 = vmatprep.subr.bf16.mxu0 0
      %412 = vmatpush1.bf16.msra.mxu0 0
      %413 = vmatprep.subr.bf16.mxu0 0
      %414 = vmatpush1.bf16.msra.mxu0 0
      %415 = vmatprep.subr.bf16.mxu0 0
      %416 = vmatpush1.bf16.msra.mxu0 0
      %417 = vmatprep.subr.bf16.mxu0 0
      %418 = vmatpush1.bf16.msra.mxu0 0
      %419 = vmatprep.mubr.bf16.mxu0 0
      %420 = vmatmul.mubr.bf16.gmra.mrb[0].mxu0 %v385
      %v421 = vpop.f32.mrb[0].mxu0
      %v422 = vadd.f32 0.0, %v421
      %v423 = vpop.f32.mrb[0].mxu0
      %v424 = vpop.f32.mrb[0].mxu0
      %v425 = vadd.f32 0.0, %v424
      %v426 = vpop.f32.mrb[0].mxu0
      %427 = vdwg.mxu0
      %v428 = vld [vmem:[%s4] sm:$0x1]
      %v430 = vlaneseq
      %v431 = vshrl.u32 %v430, 7
      %v432 = vsub.s32 0, %v431
      %v433 = vrot.slane %v428, %v432
      %v435 = vmul.f32 %v422, %v433
      %v436 = vmul.f32 %v425, %v433
      %s437 = scalar_lea.vmem %s3, 8
      %v438 = vld [vmem:[%s437] sm:$0xf]
      %v439 = vld [vmem:[%s437 + $0x4] sm:$0xf]
      %v442 = vunpack.c.l.b16 %v438
      %v443 = vunpack.c.l.b16 %v439
      %v444 = vpack.c.b16 %v443, %v442
      %v446 = vsel %vm329, %v444, 0
      %448 = vmatprep.subr.bf16.mxu0 0
      %449 = vmatpush1.bf16.msra.mxu0 %v376
      %450 = vmatprep.subr.bf16.mxu0 0
      %451 = vmatpush1.bf16.msra.mxu0 0
      %452 = vmatprep.subr.bf16.mxu0 0
      %453 = vmatpush1.bf16.msra.mxu0 0
      %454 = vmatprep.subr.bf16.mxu0 0
      %455 = vmatpush1.bf16.msra.mxu0 0
      %456 = vmatprep.subr.bf16.mxu0 0
      %457 = vmatpush1.bf16.msra.mxu0 0
      %458 = vmatprep.subr.bf16.mxu0 0
      %459 = vmatpush1.bf16.msra.mxu0 0
      %460 = vmatprep.subr.bf16.mxu0 0
      %461 = vmatpush1.bf16.msra.mxu0 0
      %462 = vmatprep.subr.bf16.mxu0 0
      %463 = vmatpush1.bf16.msra.mxu0 0
      %464 = vmatprep.subr.bf16.mxu0 0
      %465 = vmatpush1.bf16.msra.mxu0 0
      %466 = vmatprep.subr.bf16.mxu0 0
      %467 = vmatpush1.bf16.msra.mxu0 0
      %468 = vmatprep.subr.bf16.mxu0 0
      %469 = vmatpush1.bf16.msra.mxu0 0
      %470 = vmatprep.subr.bf16.mxu0 0
      %471 = vmatpush1.bf16.msra.mxu0 0
      %472 = vmatprep.subr.bf16.mxu0 0
      %473 = vmatpush1.bf16.msra.mxu0 0
      %474 = vmatprep.subr.bf16.mxu0 0
      %475 = vmatpush1.bf16.msra.mxu0 0
      %476 = vmatprep.subr.bf16.mxu0 0
      %477 = vmatpush1.bf16.msra.mxu0 0
      %478 = vmatprep.subr.bf16.mxu0 0
      %479 = vmatpush1.bf16.msra.mxu0 0
      %480 = vmatprep.mubr.bf16.mxu0 0
      %481 = vmatmul.mubr.bf16.gmra.mrb[0].mxu0 %v446
      %v482 = vpop.f32.mrb[0].mxu0
      %v483 = vadd.f32 0.0, %v482
      %v484 = vpop.f32.mrb[0].mxu0
      %v485 = vpop.f32.mrb[0].mxu0
      %v486 = vadd.f32 0.0, %v485
      %v487 = vpop.f32.mrb[0].mxu0
      %488 = vdwg.mxu0
      %s489 = scalar_lea.vmem %s4, 1
      %v490 = vld [vmem:[%s489] sm:$0x1]
      %v492 = vlaneseq
      %v493 = vshrl.u32 %v492, 7
      %v494 = vsub.s32 0, %v493
      %v495 = vrot.slane %v490, %v494
      %v497 = vmul.f32 %v483, %v495
      %v498 = vmul.f32 %v486, %v495
      %v499 = vadd.f32 %v435, %v497
      %v500 = vadd.f32 %v436, %v498
      %s501 = scalar_lea.vmem %s3, 16
      %v502 = vld [vmem:[%s501] sm:$0xf]
      %v503 = vld [vmem:[%s501 + $0x4] sm:$0xf]
      %v506 = vunpack.c.l.b16 %v502
      %v507 = vunpack.c.l.b16 %v503
      %v508 = vpack.c.b16 %v507, %v506
      %v510 = vsel %vm329, %v508, 0
      %512 = vmatprep.subr.bf16.mxu0 0
      %513 = vmatpush1.bf16.msra.mxu0 %v376
      %514 = vmatprep.subr.bf16.mxu0 0
      %515 = vmatpush1.bf16.msra.mxu0 0
      %516 = vmatprep.subr.bf16.mxu0 0
      %517 = vmatpush1.bf16.msra.mxu0 0
      %518 = vmatprep.subr.bf16.mxu0 0
      %519 = vmatpush1.bf16.msra.mxu0 0
      %520 = vmatprep.subr.bf16.mxu0 0
      %521 = vmatpush1.bf16.msra.mxu0 0
      %522 = vmatprep.subr.bf16.mxu0 0
      %523 = vmatpush1.bf16.msra.mxu0 0
      %524 = vmatprep.subr.bf16.mxu0 0
      %525 = vmatpush1.bf16.msra.mxu0 0
      %526 = vmatprep.subr.bf16.mxu0 0
      %527 = vmatpush1.bf16.msra.mxu0 0
      %528 = vmatprep.subr.bf16.mxu0 0
      %529 = vmatpush1.bf16.msra.mxu0 0
      %530 = vmatprep.subr.bf16.mxu0 0
      %531 = vmatpush1.bf16.msra.mxu0 0
      %532 = vmatprep.subr.bf16.mxu0 0
      %533 = vmatpush1.bf16.msra.mxu0 0
      %534 = vmatprep.subr.bf16.mxu0 0
      %535 = vmatpush1.bf16.msra.mxu0 0
      %536 = vmatprep.subr.bf16.mxu0 0
      %537 = vmatpush1.bf16.msra.mxu0 0
      %538 = vmatprep.subr.bf16.mxu0 0
      %539 = vmatpush1.bf16.msra.mxu0 0
      %540 = vmatprep.subr.bf16.mxu0 0
      %541 = vmatpush1.bf16.msra.mxu0 0
      %542 = vmatprep.subr.bf16.mxu0 0
      %543 = vmatpush1.bf16.msra.mxu0 0
      %544 = vmatprep.mubr.bf16.mxu0 0
      %545 = vmatmul.mubr.bf16.gmra.mrb[0].mxu0 %v510
      %v546 = vpop.f32.mrb[0].mxu0
      %v547 = vadd.f32 0.0, %v546
      %v548 = vpop.f32.mrb[0].mxu0
      %v549 = vpop.f32.mrb[0].mxu0
      %v550 = vadd.f32 0.0, %v549
      %v551 = vpop.f32.mrb[0].mxu0
      %552 = vdwg.mxu0
      %s553 = scalar_lea.vmem %s4, 2
      %v554 = vld [vmem:[%s553] sm:$0x1]
      %v556 = vlaneseq
      %v557 = vshrl.u32 %v556, 7
      %v558 = vsub.s32 0, %v557
      %v559 = vrot.slane %v554, %v558
      %v561 = vmul.f32 %v547, %v559
      %v562 = vmul.f32 %v550, %v559
      %v563 = vadd.f32 %v499, %v561
      %v564 = vadd.f32 %v500, %v562
      %s565 = scalar_lea.vmem %s3, 24
      %v566 = vld [vmem:[%s565] sm:$0xf]
      %v567 = vld [vmem:[%s565 + $0x4] sm:$0xf]
      %v570 = vunpack.c.l.b16 %v566
      %v571 = vunpack.c.l.b16 %v567
      %v572 = vpack.c.b16 %v571, %v570
      %v574 = vsel %vm329, %v572, 0
      %576 = vmatprep.subr.bf16.mxu0 0
      %577 = vmatpush1.bf16.msra.mxu0 %v376
      %578 = vmatprep.subr.bf16.mxu0 0
      %579 = vmatpush1.bf16.msra.mxu0 0
      %580 = vmatprep.subr.bf16.mxu0 0
      %581 = vmatpush1.bf16.msra.mxu0 0
      %582 = vmatprep.subr.bf16.mxu0 0
      %583 = vmatpush1.bf16.msra.mxu0 0
      %584 = vmatprep.subr.bf16.mxu0 0
      %585 = vmatpush1.bf16.msra.mxu0 0
      %586 = vmatprep.subr.bf16.mxu0 0
      %587 = vmatpush1.bf16.msra.mxu0 0
      %588 = vmatprep.subr.bf16.mxu0 0
      %589 = vmatpush1.bf16.msra.mxu0 0
      %590 = vmatprep.subr.bf16.mxu0 0
      %591 = vmatpush1.bf16.msra.mxu0 0
      %592 = vmatprep.subr.bf16.mxu0 0
      %593 = vmatpush1.bf16.msra.mxu0 0
      %594 = vmatprep.subr.bf16.mxu0 0
      %595 = vmatpush1.bf16.msra.mxu0 0
      %596 = vmatprep.subr.bf16.mxu0 0
      %597 = vmatpush1.bf16.msra.mxu0 0
      %598 = vmatprep.subr.bf16.mxu0 0
      %599 = vmatpush1.bf16.msra.mxu0 0
      %600 = vmatprep.subr.bf16.mxu0 0
      %601 = vmatpush1.bf16.msra.mxu0 0
      %602 = vmatprep.subr.bf16.mxu0 0
      %603 = vmatpush1.bf16.msra.mxu0 0
      %604 = vmatprep.subr.bf16.mxu0 0
      %605 = vmatpush1.bf16.msra.mxu0 0
      %606 = vmatprep.subr.bf16.mxu0 0
      %607 = vmatpush1.bf16.msra.mxu0 0
      %608 = vmatprep.mubr.bf16.mxu0 0
      %609 = vmatmul.mubr.bf16.gmra.mrb[0].mxu0 %v574
      %v610 = vpop.f32.mrb[0].mxu0
      %v611 = vadd.f32 0.0, %v610
      %v612 = vpop.f32.mrb[0].mxu0
      %v613 = vpop.f32.mrb[0].mxu0
      %v614 = vadd.f32 0.0, %v613
      %v615 = vpop.f32.mrb[0].mxu0
      %616 = vdwg.mxu0
      %s617 = scalar_lea.vmem %s4, 3
      %v618 = vld [vmem:[%s617] sm:$0x1]
      %v620 = vlaneseq
      %v621 = vshrl.u32 %v620, 7
      %v622 = vsub.s32 0, %v621
      %v623 = vrot.slane %v618, %v622
      %v625 = vmul.f32 %v611, %v623
      %v626 = vmul.f32 %v614, %v623
      %v627 = vadd.f32 %v563, %v625
      %v628 = vadd.f32 %v564, %v626
      %s629 = scalar_lea.vmem %s3, 32
      %v630 = vld [vmem:[%s629] sm:$0xf]
      %v631 = vld [vmem:[%s629 + $0x4] sm:$0xf]
      %v634 = vunpack.c.l.b16 %v630
      %v635 = vunpack.c.l.b16 %v631
      %v636 = vpack.c.b16 %v635, %v634
      %v638 = vsel %vm329, %v636, 0
      %640 = vmatprep.subr.bf16.mxu0 0
      %641 = vmatpush1.bf16.msra.mxu0 %v376
      %642 = vmatprep.subr.bf16.mxu0 0
      %643 = vmatpush1.bf16.msra.mxu0 0
      %644 = vmatprep.subr.bf16.mxu0 0
      %645 = vmatpush1.bf16.msra.mxu0 0
      %646 = vmatprep.subr.bf16.mxu0 0
      %647 = vmatpush1.bf16.msra.mxu0 0
      %648 = vmatprep.subr.bf16.mxu0 0
      %649 = vmatpush1.bf16.msra.mxu0 0
      %650 = vmatprep.subr.bf16.mxu0 0
      %651 = vmatpush1.bf16.msra.mxu0 0
      %652 = vmatprep.subr.bf16.mxu0 0
      %653 = vmatpush1.bf16.msra.mxu0 0
      %654 = vmatprep.subr.bf16.mxu0 0
      %655 = vmatpush1.bf16.msra.mxu0 0
      %656 = vmatprep.subr.bf16.mxu0 0
      %657 = vmatpush1.bf16.msra.mxu0 0
      %658 = vmatprep.subr.bf16.mxu0 0
      %659 = vmatpush1.bf16.msra.mxu0 0
      %660 = vmatprep.subr.bf16.mxu0 0
      %661 = vmatpush1.bf16.msra.mxu0 0
      %662 = vmatprep.subr.bf16.mxu0 0
      %663 = vmatpush1.bf16.msra.mxu0 0
      %664 = vmatprep.subr.bf16.mxu0 0
      %665 = vmatpush1.bf16.msra.mxu0 0
      %666 = vmatprep.subr.bf16.mxu0 0
      %667 = vmatpush1.bf16.msra.mxu0 0
      %668 = vmatprep.subr.bf16.mxu0 0
      %669 = vmatpush1.bf16.msra.mxu0 0
      %670 = vmatprep.subr.bf16.mxu0 0
      %671 = vmatpush1.bf16.msra.mxu0 0
      %672 = vmatprep.mubr.bf16.mxu0 0
      %673 = vmatmul.mubr.bf16.gmra.mrb[0].mxu0 %v638
      %v674 = vpop.f32.mrb[0].mxu0
      %v675 = vadd.f32 0.0, %v674
      %v676 = vpop.f32.mrb[0].mxu0
      %v677 = vpop.f32.mrb[0].mxu0
      %v678 = vadd.f32 0.0, %v677
      %v679 = vpop.f32.mrb[0].mxu0
      %680 = vdwg.mxu0
      %s681 = scalar_lea.vmem %s4, 4
      %v682 = vld [vmem:[%s681] sm:$0x1]
      %v684 = vlaneseq
      %v685 = vshrl.u32 %v684, 7
      %v686 = vsub.s32 0, %v685
      %v687 = vrot.slane %v682, %v686
      %v689 = vmul.f32 %v675, %v687
      %v690 = vmul.f32 %v678, %v687
      %v691 = vadd.f32 %v627, %v689
      %v692 = vadd.f32 %v628, %v690
      %s693 = scalar_lea.vmem %s3, 40
      %v694 = vld [vmem:[%s693] sm:$0xf]
      %v695 = vld [vmem:[%s693 + $0x4] sm:$0xf]
      %v698 = vunpack.c.l.b16 %v694
      %v699 = vunpack.c.l.b16 %v695
      %v700 = vpack.c.b16 %v699, %v698
      %v702 = vsel %vm329, %v700, 0
      %704 = vmatprep.subr.bf16.mxu0 0
      %705 = vmatpush1.bf16.msra.mxu0 %v376
      %706 = vmatprep.subr.bf16.mxu0 0
      %707 = vmatpush1.bf16.msra.mxu0 0
      %708 = vmatprep.subr.bf16.mxu0 0
      %709 = vmatpush1.bf16.msra.mxu0 0
      %710 = vmatprep.subr.bf16.mxu0 0
      %711 = vmatpush1.bf16.msra.mxu0 0
      %712 = vmatprep.subr.bf16.mxu0 0
      %713 = vmatpush1.bf16.msra.mxu0 0
      %714 = vmatprep.subr.bf16.mxu0 0
      %715 = vmatpush1.bf16.msra.mxu0 0
      %716 = vmatprep.subr.bf16.mxu0 0
      %717 = vmatpush1.bf16.msra.mxu0 0
      %718 = vmatprep.subr.bf16.mxu0 0
      %719 = vmatpush1.bf16.msra.mxu0 0
      %720 = vmatprep.subr.bf16.mxu0 0
      %721 = vmatpush1.bf16.msra.mxu0 0
      %722 = vmatprep.subr.bf16.mxu0 0
      %723 = vmatpush1.bf16.msra.mxu0 0
      %724 = vmatprep.subr.bf16.mxu0 0
      %725 = vmatpush1.bf16.msra.mxu0 0
      %726 = vmatprep.subr.bf16.mxu0 0
      %727 = vmatpush1.bf16.msra.mxu0 0
      %728 = vmatprep.subr.bf16.mxu0 0
      %729 = vmatpush1.bf16.msra.mxu0 0
      %730 = vmatprep.subr.bf16.mxu0 0
      %731 = vmatpush1.bf16.msra.mxu0 0
      %732 = vmatprep.subr.bf16.mxu0 0
      %733 = vmatpush1.bf16.msra.mxu0 0
      %734 = vmatprep.subr.bf16.mxu0 0
      %735 = vmatpush1.bf16.msra.mxu0 0
      %736 = vmatprep.mubr.bf16.mxu0 0
      %737 = vmatmul.mubr.bf16.gmra.mrb[0].mxu0 %v702
      %v738 = vpop.f32.mrb[0].mxu0
      %v739 = vadd.f32 0.0, %v738
      %v740 = vpop.f32.mrb[0].mxu0
      %v741 = vpop.f32.mrb[0].mxu0
      %v742 = vadd.f32 0.0, %v741
      %v743 = vpop.f32.mrb[0].mxu0
      %744 = vdwg.mxu0
      %s745 = scalar_lea.vmem %s4, 5
      %v746 = vld [vmem:[%s745] sm:$0x1]
      %v748 = vlaneseq
      %v749 = vshrl.u32 %v748, 7
      %v750 = vsub.s32 0, %v749
      %v751 = vrot.slane %v746, %v750
      %v753 = vmul.f32 %v739, %v751
      %v754 = vmul.f32 %v742, %v751
      %v755 = vadd.f32 %v691, %v753
      %v756 = vadd.f32 %v692, %v754
      %s757 = scalar_lea.vmem %s3, 48
      %v758 = vld [vmem:[%s757] sm:$0xf]
      %v759 = vld [vmem:[%s757 + $0x4] sm:$0xf]
      %v762 = vunpack.c.l.b16 %v758
      %v763 = vunpack.c.l.b16 %v759
      %v764 = vpack.c.b16 %v763, %v762
      %v766 = vsel %vm329, %v764, 0
      %768 = vmatprep.subr.bf16.mxu0 0
      %769 = vmatpush1.bf16.msra.mxu0 %v376
      %770 = vmatprep.subr.bf16.mxu0 0
      %771 = vmatpush1.bf16.msra.mxu0 0
      %772 = vmatprep.subr.bf16.mxu0 0
      %773 = vmatpush1.bf16.msra.mxu0 0
      %774 = vmatprep.subr.bf16.mxu0 0
      %775 = vmatpush1.bf16.msra.mxu0 0
      %776 = vmatprep.subr.bf16.mxu0 0
      %777 = vmatpush1.bf16.msra.mxu0 0
      %778 = vmatprep.subr.bf16.mxu0 0
      %779 = vmatpush1.bf16.msra.mxu0 0
      %780 = vmatprep.subr.bf16.mxu0 0
      %781 = vmatpush1.bf16.msra.mxu0 0
      %782 = vmatprep.subr.bf16.mxu0 0
      %783 = vmatpush1.bf16.msra.mxu0 0
      %784 = vmatprep.subr.bf16.mxu0 0
      %785 = vmatpush1.bf16.msra.mxu0 0
      %786 = vmatprep.subr.bf16.mxu0 0
      %787 = vmatpush1.bf16.msra.mxu0 0
      %788 = vmatprep.subr.bf16.mxu0 0
      %789 = vmatpush1.bf16.msra.mxu0 0
      %790 = vmatprep.subr.bf16.mxu0 0
      %791 = vmatpush1.bf16.msra.mxu0 0
      %792 = vmatprep.subr.bf16.mxu0 0
      %793 = vmatpush1.bf16.msra.mxu0 0
      %794 = vmatprep.subr.bf16.mxu0 0
      %795 = vmatpush1.bf16.msra.mxu0 0
      %796 = vmatprep.subr.bf16.mxu0 0
      %797 = vmatpush1.bf16.msra.mxu0 0
      %798 = vmatprep.subr.bf16.mxu0 0
      %799 = vmatpush1.bf16.msra.mxu0 0
      %800 = vmatprep.mubr.bf16.mxu0 0
      %801 = vmatmul.mubr.bf16.gmra.mrb[0].mxu0 %v766
      %v802 = vpop.f32.mrb[0].mxu0
      %v803 = vadd.f32 0.0, %v802
      %v804 = vpop.f32.mrb[0].mxu0
      %v805 = vpop.f32.mrb[0].mxu0
      %v806 = vadd.f32 0.0, %v805
      %v807 = vpop.f32.mrb[0].mxu0
      %808 = vdwg.mxu0
      %s809 = scalar_lea.vmem %s4, 6
      %v810 = vld [vmem:[%s809] sm:$0x1]
      %v812 = vlaneseq
      %v813 = vshrl.u32 %v812, 7
      %v814 = vsub.s32 0, %v813
      %v815 = vrot.slane %v810, %v814
      %v817 = vmul.f32 %v803, %v815
      %v818 = vmul.f32 %v806, %v815
      %v819 = vadd.f32 %v755, %v817
      %v820 = vadd.f32 %v756, %v818
      %s821 = scalar_lea.vmem %s3, 56
      %v822 = vld [vmem:[%s821] sm:$0xf]
      %v823 = vld [vmem:[%s821 + $0x4] sm:$0xf]
      %v826 = vunpack.c.l.b16 %v822
      %v827 = vunpack.c.l.b16 %v823
      %v828 = vpack.c.b16 %v827, %v826
      %v830 = vsel %vm329, %v828, 0
      %832 = vmatprep.subr.bf16.mxu0 0
      %833 = vmatpush1.bf16.msra.mxu0 %v376
      %834 = vmatprep.subr.bf16.mxu0 0
      %835 = vmatpush1.bf16.msra.mxu0 0
      %836 = vmatprep.subr.bf16.mxu0 0
      %837 = vmatpush1.bf16.msra.mxu0 0
      %838 = vmatprep.subr.bf16.mxu0 0
      %839 = vmatpush1.bf16.msra.mxu0 0
      %840 = vmatprep.subr.bf16.mxu0 0
      %841 = vmatpush1.bf16.msra.mxu0 0
      %842 = vmatprep.subr.bf16.mxu0 0
      %843 = vmatpush1.bf16.msra.mxu0 0
      %844 = vmatprep.subr.bf16.mxu0 0
      %845 = vmatpush1.bf16.msra.mxu0 0
      %846 = vmatprep.subr.bf16.mxu0 0
      %847 = vmatpush1.bf16.msra.mxu0 0
      %848 = vmatprep.subr.bf16.mxu0 0
      %849 = vmatpush1.bf16.msra.mxu0 0
      %850 = vmatprep.subr.bf16.mxu0 0
      %851 = vmatpush1.bf16.msra.mxu0 0
      %852 = vmatprep.subr.bf16.mxu0 0
      %853 = vmatpush1.bf16.msra.mxu0 0
      %854 = vmatprep.subr.bf16.mxu0 0
      %855 = vmatpush1.bf16.msra.mxu0 0
      %856 = vmatprep.subr.bf16.mxu0 0
      %857 = vmatpush1.bf16.msra.mxu0 0
      %858 = vmatprep.subr.bf16.mxu0 0
      %859 = vmatpush1.bf16.msra.mxu0 0
      %860 = vmatprep.subr.bf16.mxu0 0
      %861 = vmatpush1.bf16.msra.mxu0 0
      %862 = vmatprep.subr.bf16.mxu0 0
      %863 = vmatpush1.bf16.msra.mxu0 0
      %864 = vmatprep.mubr.bf16.mxu0 0
      %865 = vmatmul.mubr.bf16.gmra.mrb[0].mxu0 %v830
      %v866 = vpop.f32.mrb[0].mxu0
      %v867 = vadd.f32 0.0, %v866
      %v868 = vpop.f32.mrb[0].mxu0
      %v869 = vpop.f32.mrb[0].mxu0
      %v870 = vadd.f32 0.0, %v869
      %v871 = vpop.f32.mrb[0].mxu0
      %872 = vdwg.mxu0
      %s873 = scalar_lea.vmem %s4, 7
      %v874 = vld [vmem:[%s873] sm:$0x1]
      %v876 = vlaneseq
      %v877 = vshrl.u32 %v876, 7
      %v878 = vsub.s32 0, %v877
      %v879 = vrot.slane %v874, %v878
      %v881 = vmul.f32 %v867, %v879
      %v882 = vmul.f32 %v870, %v879
      %v883 = vadd.f32 %v819, %v881
      %v884 = vadd.f32 %v820, %v882
      %s885 = scalar_lea.vmem %s3, 64
      %v886 = vld [vmem:[%s885] sm:$0xf]
      %v887 = vld [vmem:[%s885 + $0x4] sm:$0xf]
      %v890 = vunpack.c.l.b16 %v886
      %v891 = vunpack.c.l.b16 %v887
      %v892 = vpack.c.b16 %v891, %v890
      %v894 = vsel %vm329, %v892, 0
      %896 = vmatprep.subr.bf16.mxu0 0
      %897 = vmatpush1.bf16.msra.mxu0 %v376
      %898 = vmatprep.subr.bf16.mxu0 0
      %899 = vmatpush1.bf16.msra.mxu0 0
      %900 = vmatprep.subr.bf16.mxu0 0
      %901 = vmatpush1.bf16.msra.mxu0 0
      %902 = vmatprep.subr.bf16.mxu0 0
      %903 = vmatpush1.bf16.msra.mxu0 0
      %904 = vmatprep.subr.bf16.mxu0 0
      %905 = vmatpush1.bf16.msra.mxu0 0
      %906 = vmatprep.subr.bf16.mxu0 0
      %907 = vmatpush1.bf16.msra.mxu0 0
      %908 = vmatprep.subr.bf16.mxu0 0
      %909 = vmatpush1.bf16.msra.mxu0 0
      %910 = vmatprep.subr.bf16.mxu0 0
      %911 = vmatpush1.bf16.msra.mxu0 0
      %912 = vmatprep.subr.bf16.mxu0 0
      %913 = vmatpush1.bf16.msra.mxu0 0
      %914 = vmatprep.subr.bf16.mxu0 0
      %915 = vmatpush1.bf16.msra.mxu0 0
      %916 = vmatprep.subr.bf16.mxu0 0
      %917 = vmatpush1.bf16.msra.mxu0 0
      %918 = vmatprep.subr.bf16.mxu0 0
      %919 = vmatpush1.bf16.msra.mxu0 0
      %920 = vmatprep.subr.bf16.mxu0 0
      %921 = vmatpush1.bf16.msra.mxu0 0
      %922 = vmatprep.subr.bf16.mxu0 0
      %923 = vmatpush1.bf16.msra.mxu0 0
      %924 = vmatprep.subr.bf16.mxu0 0
      %925 = vmatpush1.bf16.msra.mxu0 0
      %926 = vmatprep.subr.bf16.mxu0 0
      %927 = vmatpush1.bf16.msra.mxu0 0
      %928 = vmatprep.mubr.bf16.mxu0 0
      %929 = vmatmul.mubr.bf16.gmra.mrb[0].mxu0 %v894
      %v930 = vpop.f32.mrb[0].mxu0
      %v931 = vadd.f32 0.0, %v930
      %v932 = vpop.f32.mrb[0].mxu0
      %v933 = vpop.f32.mrb[0].mxu0
      %v934 = vadd.f32 0.0, %v933
      %v935 = vpop.f32.mrb[0].mxu0
      %936 = vdwg.mxu0
      %s937 = scalar_lea.vmem %s4, 8
      %v938 = vld [vmem:[%s937] sm:$0x1]
      %v940 = vlaneseq
      %v941 = vshrl.u32 %v940, 7
      %v942 = vsub.s32 0, %v941
      %v943 = vrot.slane %v938, %v942
      %v945 = vmul.f32 %v931, %v943
      %v946 = vmul.f32 %v934, %v943
      %v947 = vadd.f32 %v883, %v945
      %v948 = vadd.f32 %v884, %v946
      %v949 = vld [vmem:[%s5] sm:$0x1]
      %v951 = vlaneseq
      %v952 = vshrl.u32 %v951, 7
      %v953 = vsub.s32 0, %v952
      %v954 = vrot.slane %v949, %v953
      %v956 = vadd.f32 %v947, %v954
      %v957 = vadd.f32 %v948, %v954
      %v958 = vpack.c.bf16 %v957, %v956
      %v959 = vld [vmem:[%s6] sm:$0x3]
      %v960 = vld [vmem:[%s7] sm:$0x1]
      %v962 = vlaneseq
      %v963 = vshrl.u32 %v962, 7
      %v964 = vsub.s32 0, %v963
      %v965 = vrot.slane %v960, %v964
      %vm967 = vcmask 31744
      %v969 = vsel %vm967, %v958, 0
      %vm971 = vcmask 1041408
      %v973 = vsel %vm971, %v959, 0
      %975 = vmatprep.subr.bf16.mxu0 0
      %976 = vmatpush1.bf16.msra.mxu0 %v973
      %977 = vmatprep.subr.bf16.mxu0 0
      %978 = vmatpush1.bf16.msra.mxu0 0
      %979 = vmatprep.subr.bf16.mxu0 0
      %980 = vmatpush1.bf16.msra.mxu0 0
      %981 = vmatprep.subr.bf16.mxu0 0
      %982 = vmatpush1.bf16.msra.mxu0 0
      %983 = vmatprep.subr.bf16.mxu0 0
      %984 = vmatpush1.bf16.msra.mxu0 0
      %985 = vmatprep.subr.bf16.mxu0 0
      %986 = vmatpush1.bf16.msra.mxu0 0
      %987 = vmatprep.subr.bf16.mxu0 0
      %988 = vmatpush1.bf16.msra.mxu0 0
      %989 = vmatprep.subr.bf16.mxu0 0
      %990 = vmatpush1.bf16.msra.mxu0 0
      %991 = vmatprep.subr.bf16.mxu0 0
      %992 = vmatpush1.bf16.msra.mxu0 0
      %993 = vmatprep.subr.bf16.mxu0 0
      %994 = vmatpush1.bf16.msra.mxu0 0
      %995 = vmatprep.subr.bf16.mxu0 0
      %996 = vmatpush1.bf16.msra.mxu0 0
      %997 = vmatprep.subr.bf16.mxu0 0
      %998 = vmatpush1.bf16.msra.mxu0 0
      %999 = vmatprep.subr.bf16.mxu0 0
      %1000 = vmatpush1.bf16.msra.mxu0 0
      %1001 = vmatprep.subr.bf16.mxu0 0
      %1002 = vmatpush1.bf16.msra.mxu0 0
      %1003 = vmatprep.subr.bf16.mxu0 0
      %1004 = vmatpush1.bf16.msra.mxu0 0
      %1005 = vmatprep.subr.bf16.mxu0 0
      %1006 = vmatpush1.bf16.msra.mxu0 0
      %1007 = vmatprep.mubr.bf16.mxu0 0
      %1008 = vmatmul.mubr.bf16.gmra.mrb[0].mxu0 %v969
      %v1009 = vpop.f32.mrb[0].mxu0
      %v1010 = vadd.f32 %v965, %v1009
      %v1011 = vpop.f32.mrb[0].mxu0
      %v1012 = vpop.f32.mrb[0].mxu0
      %v1013 = vadd.f32 %v965, %v1012
      %v1014 = vpop.f32.mrb[0].mxu0
      %1015 = vdwg.mxu0
      %v1016 = vunpack.c.l.bf16 %v307
      %v1017 = vunpack.c.l.bf16 %v308
      %v1018 = vadd.f32 %v1010, %v1016
      %v1019 = vadd.f32 %v1013, %v1017
      %v1020 = vmax.f32 %v1018, 0.0
      %v1021 = vmax.f32 %v1019, 0.0
      %v1022 = vpack.c.bf16 %v1021, %v1020
      %v1024 = vunpack.c.l.b16 %v1022
      %v1025 = vunpack.c.h.b16 %v1022
      %v1026 = vpack.c.b16 %v1024, %v1024
      %v1027 = vpack.c.b16 %v1025, %v1025
      %vm1030 = vcmask 125952
      %1031 = vst.msk [vmem:[%s305] sm:$0xf] %vm1030, %v1026
      %1032 = vst.msk [vmem:[%s305 + $0x4] sm:$0xf] %vm1030, %v1027
      %p1033 = scmp.lt.s32.totalorder %s19, 1
      %s1034 = scalar_select %p1033, %s19, 1
      %s1035 = smul.addr %s1034, 2
      %s1036 = smul.addr %s1035, 4
      %s1037 = scalar_lea.vmem %s8, %s1036
      // Predicated region
      $region53: #{shufflenet_forward.10} parent=51 // pred_check
        %p1038 = pneg %p210
      $region54: #{shufflenet_forward.10} parent=51 // pred_check_branch
        %1040 = sbr.rel (%p1038) target = $region56
      $region55: #{shufflenet_forward.10} parent=51 // pred_region
        _
      $region56: #{shufflenet_forward.10} parent=51 // pred_fallthru
        _
    $region52: #{shufflenet_forward.10} parent=5 // pred_fallthru
      _
    %p1041 = scmp.le.s32.totalorder 2, %s14
    // Predicated region
    $region57: #{shufflenet_forward.10} parent=5 // pred_check
      %p1042 = pneg %p1041
    $region58: #{shufflenet_forward.10} parent=5 // pred_check_branch
      %1044 = sbr.rel (%p1042) target = $region60
    $region59: #{shufflenet_forward.10} parent=5 // pred_region
      %s1045 = ssub.s32 %s14, 2
      // Predicated region
      $region61: #{shufflenet_forward.10} parent=59 // pred_check
        %p1046 = pneg %p216
      $region62: #{shufflenet_forward.10} parent=59 // pred_check_branch
        %1048 = sbr.rel (%p1046) target = $region64
      $region63: #{shufflenet_forward.10} parent=59 // pred_region
        %p1049 = scmp.lt.s32.totalorder %s20, 1
        %s1050 = scalar_select %p1049, %s20, 1
        %s1051 = smul.addr %s1050, 2
        %s1052 = smul.addr %s1051, 4
        %s1053 = scalar_lea.vmem %s8, %s1052
      $region64: #{shufflenet_forward.10} parent=59 // pred_fallthru
        _
    $region60: #{shufflenet_forward.10} parent=5 // pred_fallthru
      _
  $region6: #{shufflenet_forward.10} parent=0 // loop_footer
    %s18 = sadd.s32 1, %s14
  $region7: #{shufflenet_forward.10} parent=0 // loop_footer_branch
    %13 = sbr.rel target = $region3
  $region8: #{shufflenet_forward.10} parent=0 // loop_exit
    _

// kernel: shufflenet_forward.8
$region0: #{shufflenet_forward.8}
  #allocation0 [shape = 'u32[]', space=smem, size = 0x4, offset = 0x4, fixed_abs, tag = 'smem constant byte address 0x4 - core index']
  #allocation1 [shape = 'u32[144,128]{1,0:T(1,128)}', space=vmem, size = 0x12000, scoped, tag = 'internal scratch']
  %s0 = inlined_call_operand.vmem [shape: bf16[2,256,27], index: 0, kind: input, shape index: {}]
  %s1 = inlined_call_operand.vmem [shape: bf16[27,8], index: 1, kind: input, shape index: {}]
  %s2 = inlined_call_operand.vmem [shape: f32[1,8], index: 2, kind: input, shape index: {}]
  %s3 = inlined_call_operand.vmem [shape: bf16[9,64,256], index: 3, kind: input, shape index: {}]
  %s4 = inlined_call_operand.vmem [shape: bf16[2,64,8], index: 4, kind: output, shape index: {}]
  %s5 = sld [smem:[#allocation0]]
  $region49: #{shufflenet_forward.8} parent=0
    _
  %s7 = ssub.s32 1, %s5
  %s8 = scalar_select 0, %s7, %s5
  loop: start=0, step=1, limit=4
  $region2: #{shufflenet_forward.8} parent=0 // loop_pre_header
    _
  $region3: #{shufflenet_forward.8} parent=0 // loop_header
    %s10 = sphi 0, %s14
    %p11 = scmp.ge.s32.totalorder %s10, 4
    %s20 = sphi 0, %s22
    %s23 = sphi 0, %s20
    %s24 = sphi 0, %s23
    %s40 = sphi 0, %s24
    %s44 = sphi 0, %s44
    %s46 = sphi 0, %s44
    %s47 = sphi 0, %s46
    %s61 = sphi 0, %s47
    %s65 = sphi 0, %s65
    %s67 = sphi 0, %s65
    %s68 = sphi 0, %s67
    %s82 = sphi 0, %s68
    %s86 = sphi 0, %s86
    %s88 = sphi 0, %s86
    %s89 = sphi 0, %s88
    %s103 = sphi 0, %s89
    %s109 = sphi 0, %s111
    %s112 = sphi 0, %s109
    %s113 = sphi 0, %s112
    %s129 = sphi 0, %s113
  $region4: #{shufflenet_forward.8} parent=0 // loop_header_branch
    %13 = sbr.rel (%p11) target = $region8
  $region5: #{shufflenet_forward.8} parent=0 // loop_body
    %s15 = ssub.s32 %s10, 1
    %s16 = ssub.s32 %s10, 2
    %s17 = sadd.s32 %s10, 1
    %s18 = ssub.s32 %s10, %s17
    %p19 = scmp.eq.s32.totalorder %s18, 0
    %s21 = sadd.s32 %s20, 1
    %s22 = scalar_select %p19, %s20, %s21
    %p25 = pneg %p19
    %p26 = scmp.eq.s32.totalorder %s10, 1
    %p27 = por %p25, %p26
    %p28 = scmp.ne.s32.totalorder %s20, %s23
    %p29 = scmp.eq.s32.totalorder %s10, 0
    %p30 = por %p28, %p29
    %p31 = scmp.ne.s32.totalorder %s20, %s23
    %p32 = scmp.eq.s32.totalorder %s15, 1
    %p33 = por %p31, %p32
    %p34 = scmp.ne.s32.totalorder %s23, %s24
    %p35 = scmp.eq.s32.totalorder %s15, 0
    %p36 = por %p34, %p35
    %p37 = scmp.ne.s32.totalorder %s23, %s24
    %p38 = scmp.eq.s32.totalorder %s16, 1
    %p39 = por %p37, %p38
    %p41 = scmp.ne.s32.totalorder %s24, %s40
    %p42 = scmp.eq.s32.totalorder %s16, 0
    %p43 = por %p41, %p42
    %s45 = sadd.s32 %s44, 1
    %p48 = scmp.eq.s32.totalorder %s10, 1
    %p49 = scmp.ne.s32.totalorder %s44, %s46
    %p50 = scmp.eq.s32.totalorder %s10, 0
    %p51 = por %p49, %p50
    %p52 = scmp.ne.s32.totalorder %s44, %s46
    %p53 = scmp.eq.s32.totalorder %s15, 1
    %p54 = por %p52, %p53
    %p55 = scmp.ne.s32.totalorder %s46, %s47
    %p56 = scmp.eq.s32.totalorder %s15, 0
    %p57 = por %p55, %p56
    %p58 = scmp.ne.s32.totalorder %s46, %s47
    %p59 = scmp.eq.s32.totalorder %s16, 1
    %p60 = por %p58, %p59
    %p62 = scmp.ne.s32.totalorder %s47, %s61
    %p63 = scmp.eq.s32.totalorder %s16, 0
    %p64 = por %p62, %p63
    %s66 = sadd.s32 %s65, 1
    %p69 = scmp.eq.s32.totalorder %s10, 1
    %p70 = scmp.ne.s32.totalorder %s65, %s67
    %p71 = scmp.eq.s32.totalorder %s10, 0
    %p72 = por %p70, %p71
    %p73 = scmp.ne.s32.totalorder %s65, %s67
    %p74 = scmp.eq.s32.totalorder %s15, 1
    %p75 = por %p73, %p74
    %p76 = scmp.ne.s32.totalorder %s67, %s68
    %p77 = scmp.eq.s32.totalorder %s15, 0
    %p78 = por %p76, %p77
    %p79 = scmp.ne.s32.totalorder %s67, %s68
    %p80 = scmp.eq.s32.totalorder %s16, 1
    %p81 = por %p79, %p80
    %p83 = scmp.ne.s32.totalorder %s68, %s82
    %p84 = scmp.eq.s32.totalorder %s16, 0
    %p85 = por %p83, %p84
    %s87 = sadd.s32 %s86, 1
    %p90 = scmp.eq.s32.totalorder %s10, 1
    %p91 = scmp.ne.s32.totalorder %s86, %s88
    %p92 = scmp.eq.s32.totalorder %s10, 0
    %p93 = por %p91, %p92
    %p94 = scmp.ne.s32.totalorder %s86, %s88
    %p95 = scmp.eq.s32.totalorder %s15, 1
    %p96 = por %p94, %p95
    %p97 = scmp.ne.s32.totalorder %s88, %s89
    %p98 = scmp.eq.s32.totalorder %s15, 0
    %p99 = por %p97, %p98
    %p100 = scmp.ne.s32.totalorder %s88, %s89
    %p101 = scmp.eq.s32.totalorder %s16, 1
    %p102 = por %p100, %p101
    %p104 = scmp.ne.s32.totalorder %s89, %s103
    %p105 = scmp.eq.s32.totalorder %s16, 0
    %p106 = por %p104, %p105
    %s107 = ssub.s32 %s10, %s17
    %p108 = scmp.eq.s32.totalorder %s107, 0
    %s110 = sadd.s32 %s109, 1
    %s111 = scalar_select %p108, %s109, %s110
    %p114 = pneg %p108
    %p115 = scmp.eq.s32.totalorder %s10, 1
    %p116 = por %p114, %p115
    %p117 = scmp.ne.s32.totalorder %s109, %s112
    %p118 = scmp.eq.s32.totalorder %s10, 0
    %p119 = por %p117, %p118
    %p120 = scmp.ne.s32.totalorder %s109, %s112
    %p121 = scmp.eq.s32.totalorder %s15, 1
    %p122 = por %p120, %p121
    %p123 = scmp.ne.s32.totalorder %s112, %s113
    %p124 = scmp.eq.s32.totalorder %s15, 0
    %p125 = por %p123, %p124
    %p126 = scmp.ne.s32.totalorder %s112, %s113
    %p127 = scmp.eq.s32.totalorder %s16, 1
    %p128 = por %p126, %p127
    %p130 = scmp.ne.s32.totalorder %s113, %s129
    %p131 = scmp.eq.s32.totalorder %s16, 0
    %p132 = por %p130, %p131
    %p133 = scmp.le.s32.totalorder 1, %s10
    %p134 = scmp.lt.s32.totalorder %s10, 3
    %p135 = pnand %p133, %p134
    %p136 = pneg %p135
    // Predicated region
    $region9: #{shufflenet_forward.8} parent=5 // pred_check
      _
    $region10: #{shufflenet_forward.8} parent=5 // pred_check_branch
      %138 = sbr.rel (%p135) target = $region12
    $region11: #{shufflenet_forward.8} parent=5 // pred_region
      %s139 = ssub.s32 %s10, 1
      // Predicated region
      $region13: #{shufflenet_forward.8} parent=11 // pred_check
        %p140 = pneg %p57
      $region14: #{shufflenet_forward.8} parent=11 // pred_check_branch
        %142 = sbr.rel (%p140) target = $region16
      $region15: #{shufflenet_forward.8} parent=11 // pred_region
        _
      $region16: #{shufflenet_forward.8} parent=11 // pred_fallthru
        _
      // Predicated region
      $region17: #{shufflenet_forward.8} parent=11 // pred_check
        %p143 = pneg %p78
      $region18: #{shufflenet_forward.8} parent=11 // pred_check_branch
        %145 = sbr.rel (%p143) target = $region20
      $region19: #{shufflenet_forward.8} parent=11 // pred_region
        _
      $region20: #{shufflenet_forward.8} parent=11 // pred_fallthru
        _
      // Predicated region
      $region21: #{shufflenet_forward.8} parent=11 // pred_check
        %p146 = pneg %p99
      $region22: #{shufflenet_forward.8} parent=11 // pred_check_branch
        %148 = sbr.rel (%p146) target = $region24
      $region23: #{shufflenet_forward.8} parent=11 // pred_region
        _
      $region24: #{shufflenet_forward.8} parent=11 // pred_fallthru
        _
    $region12: #{shufflenet_forward.8} parent=5 // pred_fallthru
      _
    %p149 = scmp.lt.s32.totalorder %s10, 2
    // Predicated region
    $region25: #{shufflenet_forward.8} parent=5 // pred_check
      %p150 = pneg %p149
    $region26: #{shufflenet_forward.8} parent=5 // pred_check_branch
      %152 = sbr.rel (%p150) target = $region28
    $region27: #{shufflenet_forward.8} parent=5 // pred_region
      // Predicated region
      $region29: #{shufflenet_forward.8} parent=27 // pred_check
        %p153 = pneg %p30
      $region30: #{shufflenet_forward.8} parent=27 // pred_check_branch
        %155 = sbr.rel (%p153) target = $region32
      $region31: #{shufflenet_forward.8} parent=27 // pred_region
        %p156 = scmp.lt.s32.totalorder %s10, 1
        %s157 = scalar_select %p156, %s10, 1
        %s158 = smul.addr %s157, 32
        %s159 = smul.addr %s158, 4
        %s160 = scalar_lea.vmem %s0, %s159
      $region32: #{shufflenet_forward.8} parent=27 // pred_fallthru
        _
    $region28: #{shufflenet_forward.8} parent=5 // pred_fallthru
      _
    %p161 = scmp.le.s32.totalorder 1, %s10
    %p162 = scmp.lt.s32.totalorder %s10, 3
    %p163 = pnand %p161, %p162
    %p164 = pneg %p163
    // Predicated region
    $region33: #{shufflenet_forward.8} parent=5 // pred_check
      _
    $region34: #{shufflenet_forward.8} parent=5 // pred_check_branch
      %166 = sbr.rel (%p163) target = $region36
    $region35: #{shufflenet_forward.8} parent=5 // pred_region
      %s167 = ssub.s32 %s10, 1
      %p168 = scmp.lt.s32.totalorder %s15, 1
      %s169 = scalar_select %p168, %s15, 1
      %s170 = smul.addr %s169, 32
      %s171 = smul.addr %s170, 4
      %s172 = scalar_lea.vmem %s0, %s171
      %p173 = pneg %p36
      %p174 = pneg %p33
      %p175 = pneg %p57
      %p176 = pneg %p54
      %p177 = pneg %p78
      %p178 = pneg %p75
      %p179 = pneg %p99
      %p180 = pneg %p96
      %p181 = pneg %p125
      %p182 = pneg %p122
      %p183 = scmp.lt.s32.totalorder %s15, 1
      %s184 = scalar_select %p183, %s15, 1
      %s185 = smul.addr %s184, 8
      %s186 = smul.addr %s185, 4
      %s187 = scalar_lea.vmem %s4, %s186
      %p188 = scmp.lt.s32.totalorder %s15, 1
      %s189 = scalar_select %p188, %s15, 1
      %s190 = smul.addr %s189, 32
      %s191 = smul.addr %s190, 4
      %s192 = scalar_lea.vmem %s0, %s191
      %p193 = scmp.lt.s32.totalorder %s15, 1
      %s194 = scalar_select %p193, %s15, 1
      %s195 = smul.addr %s194, 8
      %s196 = smul.addr %s195, 4
      %s197 = scalar_lea.vmem %s4, %s196
      %v199 = vld [vmem:[%s192] sm:$0xf]
      %v200 = vld [vmem:[%s192 + $0x4] sm:$0xf]
      %v201 = vld [vmem:[%s192 + $0x8] sm:$0xf]
      %v202 = vld [vmem:[%s192 + $0xc] sm:$0xf]
      %v203 = vld [vmem:[%s192 + $0x10] sm:$0xf]
      %v204 = vld [vmem:[%s192 + $0x14] sm:$0xf]
      %v205 = vld [vmem:[%s192 + $0x18] sm:$0xf]
      %v206 = vld [vmem:[%s192 + $0x1c] sm:$0xf]
      %v207 = vld [vmem:[%s192 + $0x20] sm:$0xf]
      %v208 = vld [vmem:[%s192 + $0x24] sm:$0xf]
      %v209 = vld [vmem:[%s192 + $0x28] sm:$0xf]
      %v210 = vld [vmem:[%s192 + $0x2c] sm:$0xf]
      %v211 = vld [vmem:[%s192 + $0x30] sm:$0xf]
      %v212 = vld [vmem:[%s192 + $0x34] sm:$0xf]
      %v213 = vld [vmem:[%s192 + $0x38] sm:$0xf]
      %v214 = vld [vmem:[%s192 + $0x3c] sm:$0xf]
      %v215 = vld [vmem:[%s192 + $0x40] sm:$0xf]
      %v216 = vld [vmem:[%s192 + $0x44] sm:$0xf]
      %v217 = vld [vmem:[%s192 + $0x48] sm:$0xf]
      %v218 = vld [vmem:[%s192 + $0x4c] sm:$0xf]
      %v219 = vld [vmem:[%s192 + $0x50] sm:$0xf]
      %v220 = vld [vmem:[%s192 + $0x54] sm:$0xf]
      %v221 = vld [vmem:[%s192 + $0x58] sm:$0xf]
      %v222 = vld [vmem:[%s192 + $0x5c] sm:$0xf]
      %v223 = vld [vmem:[%s192 + $0x60] sm:$0xf]
      %v224 = vld [vmem:[%s192 + $0x64] sm:$0xf]
      %v225 = vld [vmem:[%s192 + $0x68] sm:$0xf]
      %v226 = vld [vmem:[%s192 + $0x6c] sm:$0xf]
      %v227 = vld [vmem:[%s192 + $0x70] sm:$0xf]
      %v228 = vld [vmem:[%s192 + $0x74] sm:$0xf]
      %v229 = vld [vmem:[%s192 + $0x78] sm:$0xf]
      %v230 = vld [vmem:[%s192 + $0x7c] sm:$0xf]
      %v231 = vld [vmem:[%s1] sm:$0xf]
      %v232 = vld [vmem:[%s1 + $0x4] sm:$0xf]
      %v233 = vld [vmem:[%s1 + $0x8] sm:$0xf]
      %v234 = vld [vmem:[%s1 + $0xc] sm:$0x3]
      %v235 = vld [vmem:[%s2] sm:$0x1]
      %v237 = vlaneseq
      %v238 = vshrl.u32 %v237, 7
      %v239 = vsub.s32 0, %v238
      %v240 = vrot.slane %v235, %v239
      %v274 = vunpack.c.l.b16 %v199
      %v275 = vunpack.c.l.b16 %v200
      %v276 = vunpack.c.l.b16 %v201
      %v277 = vunpack.c.l.b16 %v202
      %v278 = vunpack.c.l.b16 %v203
      %v279 = vunpack.c.l.b16 %v204
      %v280 = vunpack.c.l.b16 %v205
      %v281 = vunpack.c.l.b16 %v206
      %v282 = vunpack.c.l.b16 %v207
      %v283 = vunpack.c.l.b16 %v208
      %v284 = vunpack.c.l.b16 %v209
      %v285 = vunpack.c.l.b16 %v210
      %v286 = vunpack.c.l.b16 %v211
      %v287 = vunpack.c.l.b16 %v212
      %v288 = vunpack.c.l.b16 %v213
      %v289 = vunpack.c.l.b16 %v214
      %v290 = vunpack.c.l.b16 %v215
      %v291 = vunpack.c.l.b16 %v216
      %v292 = vunpack.c.l.b16 %v217
      %v293 = vunpack.c.l.b16 %v218
      %v294 = vunpack.c.l.b16 %v219
      %v295 = vunpack.c.l.b16 %v220
      %v296 = vunpack.c.l.b16 %v221
      %v297 = vunpack.c.l.b16 %v222
      %v298 = vunpack.c.l.b16 %v223
      %v299 = vunpack.c.l.b16 %v224
      %v300 = vunpack.c.l.b16 %v225
      %v301 = vunpack.c.l.b16 %v226
      %v302 = vunpack.c.l.b16 %v227
      %v303 = vunpack.c.l.b16 %v228
      %v304 = vunpack.c.l.b16 %v229
      %v305 = vunpack.c.l.b16 %v230
      %v306 = vpack.c.b16 %v275, %v274
      %v307 = vpack.c.b16 %v277, %v276
      %v308 = vpack.c.b16 %v279, %v278
      %v309 = vpack.c.b16 %v281, %v280
      %v310 = vpack.c.b16 %v283, %v282
      %v311 = vpack.c.b16 %v285, %v284
      %v312 = vpack.c.b16 %v287, %v286
      %v313 = vpack.c.b16 %v289, %v288
      %v314 = vpack.c.b16 %v291, %v290
      %v315 = vpack.c.b16 %v293, %v292
      %v316 = vpack.c.b16 %v295, %v294
      %v317 = vpack.c.b16 %v297, %v296
      %v318 = vpack.c.b16 %v299, %v298
      %v319 = vpack.c.b16 %v301, %v300
      %v320 = vpack.c.b16 %v303, %v302
      %v321 = vpack.c.b16 %v305, %v304
      %v326 = vunpack.c.l.b16 %v231
      %v327 = vunpack.c.l.b16 %v232
      %v328 = vunpack.c.l.b16 %v233
      %v329 = vunpack.c.l.b16 %v234
      %v330 = vpack.c.b16 %v327, %v326
      %v331 = vpack.c.b16 %v329, %v328
      %vm333 = vcmask 220160
      %v335 = vsel %vm333, %v306, 0
      %v338 = vsel %vm333, %v307, 0
      %v341 = vsel %vm333, %v308, 0
      %v344 = vsel %vm333, %v309, 0
      %v347 = vsel %vm333, %v310, 0
      %v350 = vsel %vm333, %v311, 0
      %v353 = vsel %vm333, %v312, 0
      %v356 = vsel %vm333, %v313, 0
      %v359 = vsel %vm333, %v314, 0
      %v362 = vsel %vm333, %v315, 0
      %v365 = vsel %vm333, %v316, 0
      %v368 = vsel %vm333, %v317, 0
      %v371 = vsel %vm333, %v318, 0
      %v374 = vsel %vm333, %v319, 0
      %v377 = vsel %vm333, %v320, 0
      %v380 = vsel %vm333, %v321, 0
      %vm382 = vcmask 1044480
      %vm383 = vcmask 1045504
      %v384 = vsel %vm382, 4294967295, 65535
      %v385 = vsel %vm383, %v384, 0
      %v387 = vand.u32 %v331, %v385
      %389 = vmatprep.subr.bf16.mxu0 0
      %390 = vmatpush1.bf16.msra.mxu0 %v330
      %391 = vmatprep.subr.bf16.mxu0 0
      %392 = vmatpush1.bf16.msra.mxu0 %v387
      %393 = vmatprep.subr.bf16.mxu0 0
      %394 = vmatpush1.bf16.msra.mxu0 0
      %395 = vmatprep.subr.bf16.mxu0 0
      %396 = vmatpush1.bf16.msra.mxu0 0
      %397 = vmatprep.subr.bf16.mxu0 0
      %398 = vmatpush1.bf16.msra.mxu0 0
      %399 = vmatprep.subr.bf16.mxu0 0
      %400 = vmatpush1.bf16.msra.mxu0 0
      %401 = vmatprep.subr.bf16.mxu0 0
      %402 = vmatpush1.bf16.msra.mxu0 0
      %403 = vmatprep.subr.bf16.mxu0 0
      %404 = vmatpush1.bf16.msra.mxu0 0
      %405 = vmatprep.subr.bf16.mxu0 0
      %406 = vmatpush1.bf16.msra.mxu0 0
      %407 = vmatprep.subr.bf16.mxu0 0
      %408 = vmatpush1.bf16.msra.mxu0 0
      %409 = vmatprep.subr.bf16.mxu0 0
      %410 = vmatpush1.bf16.msra.mxu0 0
      %411 = vmatprep.subr.bf16.mxu0 0
      %412 = vmatpush1.bf16.msra.mxu0 0
      %413 = vmatprep.subr.bf16.mxu0 0
      %414 = vmatpush1.bf16.msra.mxu0 0
      %415 = vmatprep.subr.bf16.mxu0 0
      %416 = vmatpush1.bf16.msra.mxu0 0
      %417 = vmatprep.subr.bf16.mxu0 0
      %418 = vmatpush1.bf16.msra.mxu0 0
      %419 = vmatprep.subr.bf16.mxu0 0
      %420 = vmatpush1.bf16.msra.mxu0 0
      %421 = vmatprep.mubr.bf16.mxu0 0
      %422 = vmatmul.mubr.bf16.gmra.mrb[0].mxu0 %v335
      %v423 = vpop.f32.mrb[0].mxu0
      %v424 = vadd.f32 %v240, %v423
      %v425 = vpop.f32.mrb[0].mxu0
      %v426 = vpop.f32.mrb[0].mxu0
      %v427 = vadd.f32 %v240, %v426
      %v428 = vpop.f32.mrb[0].mxu0
      %429 = vmatprep.mubr.bf16.mxu0 0
      %430 = vmatmul.mubr.bf16.gmra.mrb[0].mxu0 %v338
      %v431 = vpop.f32.mrb[0].mxu0
      %v432 = vadd.f32 %v240, %v431
      %v433 = vpop.f32.mrb[0].mxu0
      %v434 = vpop.f32.mrb[0].mxu0
      %v435 = vadd.f32 %v240, %v434
      %v436 = vpop.f32.mrb[0].mxu0
      %437 = vmatprep.mubr.bf16.mxu0 0
      %438 = vmatmul.mubr.bf16.gmra.mrb[0].mxu0 %v341
      %v439 = vpop.f32.mrb[0].mxu0
      %v440 = vadd.f32 %v240, %v439
      %v441 = vpop.f32.mrb[0].mxu0
      %v442 = vpop.f32.mrb[0].mxu0
      %v443 = vadd.f32 %v240, %v442
      %v444 = vpop.f32.mrb[0].mxu0
      %445 = vmatprep.mubr.bf16.mxu0 0
      %446 = vmatmul.mubr.bf16.gmra.mrb[0].mxu0 %v344
      %v447 = vpop.f32.mrb[0].mxu0
      %v448 = vadd.f32 %v240, %v447
      %v449 = vpop.f32.mrb[0].mxu0
      %v450 = vpop.f32.mrb[0].mxu0
      %v451 = vadd.f32 %v240, %v450
      %v452 = vpop.f32.mrb[0].mxu0
      %453 = vmatprep.mubr.bf16.mxu0 0
      %454 = vmatmul.mubr.bf16.gmra.mrb[0].mxu0 %v347
      %v455 = vpop.f32.mrb[0].mxu0
      %v456 = vadd.f32 %v240, %v455
      %v457 = vpop.f32.mrb[0].mxu0
      %v458 = vpop.f32.mrb[0].mxu0
      %v459 = vadd.f32 %v240, %v458
      %v460 = vpop.f32.mrb[0].mxu0
      %461 = vmatprep.mubr.bf16.mxu0 0
      %462 = vmatmul.mubr.bf16.gmra.mrb[0].mxu0 %v350
      %v463 = vpop.f32.mrb[0].mxu0
      %v464 = vadd.f32 %v240, %v463
      %v465 = vpop.f32.mrb[0].mxu0
      %v466 = vpop.f32.mrb[0].mxu0
      %v467 = vadd.f32 %v240, %v466
      %v468 = vpop.f32.mrb[0].mxu0
      %469 = vmatprep.mubr.bf16.mxu0 0
      %470 = vmatmul.mubr.bf16.gmra.mrb[0].mxu0 %v353
      %v471 = vpop.f32.mrb[0].mxu0
      %v472 = vadd.f32 %v240, %v471
      %v473 = vpop.f32.mrb[0].mxu0
      %v474 = vpop.f32.mrb[0].mxu0
      %v475 = vadd.f32 %v240, %v474
      %v476 = vpop.f32.mrb[0].mxu0
      %477 = vmatprep.mubr.bf16.mxu0 0
      %478 = vmatmul.mubr.bf16.gmra.mrb[0].mxu0 %v356
      %v479 = vpop.f32.mrb[0].mxu0
      %v480 = vadd.f32 %v240, %v479
      %v481 = vpop.f32.mrb[0].mxu0
      %v482 = vpop.f32.mrb[0].mxu0
      %v483 = vadd.f32 %v240, %v482
      %v484 = vpop.f32.mrb[0].mxu0
      %485 = vmatprep.mubr.bf16.mxu0 0
      %486 = vmatmul.mubr.bf16.gmra.mrb[0].mxu0 %v359
      %v487 = vpop.f32.mrb[0].mxu0
      %v488 = vadd.f32 %v240, %v487
      %v489 = vpop.f32.mrb[0].mxu0
      %v490 = vpop.f32.mrb[0].mxu0
      %v491 = vadd.f32 %v240, %v490
      %v492 = vpop.f32.mrb[0].mxu0
      %493 = vmatprep.mubr.bf16.mxu0 0
      %494 = vmatmul.mubr.bf16.gmra.mrb[0].mxu0 %v362
      %v495 = vpop.f32.mrb[0].mxu0
      %v496 = vadd.f32 %v240, %v495
      %v497 = vpop.f32.mrb[0].mxu0
      %v498 = vpop.f32.mrb[0].mxu0
      %v499 = vadd.f32 %v240, %v498
      %v500 = vpop.f32.mrb[0].mxu0
      %501 = vmatprep.mubr.bf16.mxu0 0
      %502 = vmatmul.mubr.bf16.gmra.mrb[0].mxu0 %v365
      %v503 = vpop.f32.mrb[0].mxu0
      %v504 = vadd.f32 %v240, %v503
      %v505 = vpop.f32.mrb[0].mxu0
      %v506 = vpop.f32.mrb[0].mxu0
      %v507 = vadd.f32 %v240, %v506
      %v508 = vpop.f32.mrb[0].mxu0
      %509 = vmatprep.mubr.bf16.mxu0 0
      %510 = vmatmul.mubr.bf16.gmra.mrb[0].mxu0 %v368
      %v511 = vpop.f32.mrb[0].mxu0
      %v512 = vadd.f32 %v240, %v511
      %v513 = vpop.f32.mrb[0].mxu0
      %v514 = vpop.f32.mrb[0].mxu0
      %v515 = vadd.f32 %v240, %v514
      %v516 = vpop.f32.mrb[0].mxu0
      %517 = vmatprep.mubr.bf16.mxu0 0
      %518 = vmatmul.mubr.bf16.gmra.mrb[0].mxu0 %v371
      %v519 = vpop.f32.mrb[0].mxu0
      %v520 = vadd.f32 %v240, %v519
      %v521 = vpop.f32.mrb[0].mxu0
      %v522 = vpop.f32.mrb[0].mxu0
      %v523 = vadd.f32 %v240, %v522
      %v524 = vpop.f32.mrb[0].mxu0
      %525 = vmatprep.mubr.bf16.mxu0 0
      %526 = vmatmul.mubr.bf16.gmra.mrb[0].mxu0 %v374
      %v527 = vpop.f32.mrb[0].mxu0
      %v528 = vadd.f32 %v240, %v527
      %v529 = vpop.f32.mrb[0].mxu0
      %v530 = vpop.f32.mrb[0].mxu0
      %v531 = vadd.f32 %v240, %v530
      %v532 = vpop.f32.mrb[0].mxu0
      %533 = vmatprep.mubr.bf16.mxu0 0
      %534 = vmatmul.mubr.bf16.gmra.mrb[0].mxu0 %v377
      %v535 = vpop.f32.mrb[0].mxu0
      %v536 = vadd.f32 %v240, %v535
      %v537 = vpop.f32.mrb[0].mxu0
      %v538 = vpop.f32.mrb[0].mxu0
      %v539 = vadd.f32 %v240, %v538
      %v540 = vpop.f32.mrb[0].mxu0
      %541 = vmatprep.mubr.bf16.mxu0 0
      %542 = vmatmul.mubr.bf16.gmra.mrb[0].mxu0 %v380
      %v543 = vpop.f32.mrb[0].mxu0
      %v544 = vadd.f32 %v240, %v543
      %v545 = vpop.f32.mrb[0].mxu0
      %v546 = vpop.f32.mrb[0].mxu0
      %v547 = vadd.f32 %v240, %v546
      %v548 = vpop.f32.mrb[0].mxu0
      %549 = vdwg.mxu0
      %v550 = vmax.f32 %v424, 0.0
      %v551 = vmax.f32 %v427, 0.0
      %v552 = vmax.f32 %v432, 0.0
      %v553 = vmax.f32 %v435, 0.0
      %v554 = vmax.f32 %v440, 0.0
      %v555 = vmax.f32 %v443, 0.0
      %v556 = vmax.f32 %v448, 0.0
      %v557 = vmax.f32 %v451, 0.0
      %v558 = vmax.f32 %v456, 0.0
      %v559 = vmax.f32 %v459, 0.0
      %v560 = vmax.f32 %v464, 0.0
      %v561 = vmax.f32 %v467, 0.0
      %v562 = vmax.f32 %v472, 0.0
      %v563 = vmax.f32 %v475, 0.0
      %v564 = vmax.f32 %v480, 0.0
      %v565 = vmax.f32 %v483, 0.0
      %v566 = vmax.f32 %v488, 0.0
      %v567 = vmax.f32 %v491, 0.0
      %v568 = vmax.f32 %v496, 0.0
      %v569 = vmax.f32 %v499, 0.0
      %v570 = vmax.f32 %v504, 0.0
      %v571 = vmax.f32 %v507, 0.0
      %v572 = vmax.f32 %v512, 0.0
      %v573 = vmax.f32 %v515, 0.0
      %v574 = vmax.f32 %v520, 0.0
      %v575 = vmax.f32 %v523, 0.0
      %v576 = vmax.f32 %v528, 0.0
      %v577 = vmax.f32 %v531, 0.0
      %v578 = vmax.f32 %v536, 0.0
      %v579 = vmax.f32 %v539, 0.0
      %v580 = vmax.f32 %v544, 0.0
      %v581 = vmax.f32 %v547, 0.0
      %v582 = vpack.c.bf16 %v551, %v550
      %v583 = vpack.c.bf16 %v553, %v552
      %v584 = vpack.c.bf16 %v555, %v554
      %v585 = vpack.c.bf16 %v557, %v556
      %v586 = vpack.c.bf16 %v559, %v558
      %v587 = vpack.c.bf16 %v561, %v560
      %v588 = vpack.c.bf16 %v563, %v562
      %v589 = vpack.c.bf16 %v565, %v564
      %v590 = vpack.c.bf16 %v567, %v566
      %v591 = vpack.c.bf16 %v569, %v568
      %v592 = vpack.c.bf16 %v571, %v570
      %v593 = vpack.c.bf16 %v573, %v572
      %v594 = vpack.c.bf16 %v575, %v574
      %v595 = vpack.c.bf16 %v577, %v576
      %v596 = vpack.c.bf16 %v579, %v578
      %v597 = vpack.c.bf16 %v581, %v580
      %v598 = vld [vmem:[%s3] sm:$0xff]
      %v599 = vld [vmem:[%s3 + $0x8] sm:$0xff]
      %v600 = vld [vmem:[%s3 + $0x10] sm:$0xff]
      %v601 = vld [vmem:[%s3 + $0x18] sm:$0xff]
      %v602 = vld [vmem:[%s3 + $0x20] sm:$0xff]
      %v603 = vld [vmem:[%s3 + $0x28] sm:$0xff]
      %v604 = vld [vmem:[%s3 + $0x30] sm:$0xff]
      %v605 = vld [vmem:[%s3 + $0x38] sm:$0xff]
      %v614 = vunpack.c.l.b16 %v598
      %v615 = vunpack.c.h.b16 %v598
      %v616 = vunpack.c.l.b16 %v599
      %v617 = vunpack.c.h.b16 %v599
      %v618 = vunpack.c.l.b16 %v600
      %v619 = vunpack.c.h.b16 %v600
      %v620 = vunpack.c.l.b16 %v601
      %v621 = vunpack.c.h.b16 %v601
      %v622 = vunpack.c.l.b16 %v602
      %v623 = vunpack.c.h.b16 %v602
      %v624 = vunpack.c.l.b16 %v603
      %v625 = vunpack.c.h.b16 %v603
      %v626 = vunpack.c.l.b16 %v604
      %v627 = vunpack.c.h.b16 %v604
      %v628 = vunpack.c.l.b16 %v605
      %v629 = vunpack.c.h.b16 %v605
      %v630 = vpack.c.b16 %v616, %v614
      %v631 = vpack.c.b16 %v617, %v615
      %v632 = vpack.c.b16 %v620, %v618
      %v633 = vpack.c.b16 %v621, %v619
      %v634 = vpack.c.b16 %v624, %v622
      %v635 = vpack.c.b16 %v625, %v623
      %v636 = vpack.c.b16 %v628, %v626
      %v637 = vpack.c.b16 %v629, %v627
      %646 = vmatprep.subr.bf16.mxu0 0
      %647 = vmatpush1.bf16.msra.mxu0 %v582
      %648 = vmatprep.subr.bf16.mxu0 0
      %649 = vmatpush1.bf16.msra.mxu0 %v583
      %650 = vmatprep.subr.bf16.mxu0 0
      %651 = vmatpush1.bf16.msra.mxu0 %v584
      %652 = vmatprep.subr.bf16.mxu0 0
      %653 = vmatpush1.bf16.msra.mxu0 %v585
      %654 = vmatprep.subr.bf16.mxu0 0
      %655 = vmatpush1.bf16.msra.mxu0 %v586
      %656 = vmatprep.subr.bf16.mxu0 0
      %657 = vmatpush1.bf16.msra.mxu0 %v587
      %658 = vmatprep.subr.bf16.mxu0 0
      %659 = vmatpush1.bf16.msra.mxu0 %v588
      %660 = vmatprep.subr.bf16.mxu0 0
      %661 = vmatpush1.bf16.msra.mxu0 %v589
      %662 = vmatprep.subr.bf16.mxu0 0
      %663 = vmatpush1.bf16.msra.mxu0 %v590
      %664 = vmatprep.subr.bf16.mxu0 0
      %665 = vmatpush1.bf16.msra.mxu0 %v591
      %666 = vmatprep.subr.bf16.mxu0 0
      %667 = vmatpush1.bf16.msra.mxu0 %v592
      %668 = vmatprep.subr.bf16.mxu0 0
      %669 = vmatpush1.bf16.msra.mxu0 %v593
      %670 = vmatprep.subr.bf16.mxu0 0
      %671 = vmatpush1.bf16.msra.mxu0 %v594
      %672 = vmatprep.subr.bf16.mxu0 0
      %673 = vmatpush1.bf16.msra.mxu0 %v595
      %674 = vmatprep.subr.bf16.mxu0 0
      %675 = vmatpush1.bf16.msra.mxu0 %v596
      %676 = vmatprep.subr.bf16.mxu0 0
      %677 = vmatpush1.bf16.msra.mxu0 %v597
      %678 = vmatprep.mubr.bf16.mxu0 %v631
      %679 = vmatmul.mubr.bf16.gmra.mrb[0].mxu0 %v630
      %v680 = vpop.f32.mrb[0].mxu0
      %v681 = vadd.f32 0.0, %v680
      %v682 = vpop.f32.mrb[0].mxu0
      %v683 = vpop.f32.mrb[0].mxu0
      %v684 = vadd.f32 0.0, %v683
      %v685 = vpop.f32.mrb[0].mxu0
      %686 = vmatprep.mubr.bf16.mxu0 %v633
      %687 = vmatmul.mubr.bf16.gmra.mrb[0].mxu0 %v632
      %v688 = vpop.f32.mrb[0].mxu0
      %v689 = vadd.f32 0.0, %v688
      %v690 = vpop.f32.mrb[0].mxu0
      %v691 = vpop.f32.mrb[0].mxu0
      %v692 = vadd.f32 0.0, %v691
      %v693 = vpop.f32.mrb[0].mxu0
      %694 = vmatprep.mubr.bf16.mxu0 %v635
      %695 = vmatmul.mubr.bf16.gmra.mrb[0].mxu0 %v634
      %v696 = vpop.f32.mrb[0].mxu0
      %v697 = vadd.f32 0.0, %v696
      %v698 = vpop.f32.mrb[0].mxu0
      %v699 = vpop.f32.mrb[0].mxu0
      %v700 = vadd.f32 0.0, %v699
      %v701 = vpop.f32.mrb[0].mxu0
      %702 = vmatprep.mubr.bf16.mxu0 %v637
      %703 = vmatmul.mubr.bf16.gmra.mrb[0].mxu0 %v636
      %v704 = vpop.f32.mrb[0].mxu0
      %v705 = vadd.f32 0.0, %v704
      %v706 = vpop.f32.mrb[0].mxu0
      %v707 = vpop.f32.mrb[0].mxu0
      %v708 = vadd.f32 0.0, %v707
      %v709 = vpop.f32.mrb[0].mxu0
      %710 = vdwg.mxu0
      %s711 = scalar_lea.vmem %s3, 64
      %v712 = vld [vmem:[%s711] sm:$0xff]
      %v713 = vld [vmem:[%s711 + $0x8] sm:$0xff]
      %v714 = vld [vmem:[%s711 + $0x10] sm:$0xff]
      %v715 = vld [vmem:[%s711 + $0x18] sm:$0xff]
      %v716 = vld [vmem:[%s711 + $0x20] sm:$0xff]
      %v717 = vld [vmem:[%s711 + $0x28] sm:$0xff]
      %v718 = vld [vmem:[%s711 + $0x30] sm:$0xff]
      %v719 = vld [vmem:[%s711 + $0x38] sm:$0xff]
      %v728 = vunpack.c.l.b16 %v712
      %v729 = vunpack.c.h.b16 %v712
      %v730 = vunpack.c.l.b16 %v713
      %v731 = vunpack.c.h.b16 %v713
      %v732 = vunpack.c.l.b16 %v714
      %v733 = vunpack.c.h.b16 %v714
      %v734 = vunpack.c.l.b16 %v715
      %v735 = vunpack.c.h.b16 %v715
      %v736 = vunpack.c.l.b16 %v716
      %v737 = vunpack.c.h.b16 %v716
      %v738 = vunpack.c.l.b16 %v717
      %v739 = vunpack.c.h.b16 %v717
      %v740 = vunpack.c.l.b16 %v718
      %v741 = vunpack.c.h.b16 %v718
      %v742 = vunpack.c.l.b16 %v719
      %v743 = vunpack.c.h.b16 %v719
      %v744 = vpack.c.b16 %v730, %v728
      %v745 = vpack.c.b16 %v731, %v729
      %v746 = vpack.c.b16 %v734, %v732
      %v747 = vpack.c.b16 %v735, %v733
      %v748 = vpack.c.b16 %v738, %v736
      %v749 = vpack.c.b16 %v739, %v737
      %v750 = vpack.c.b16 %v742, %v740
      %v751 = vpack.c.b16 %v743, %v741
      %760 = vmatprep.subr.bf16.mxu0 0
      %761 = vmatpush1.bf16.msra.mxu0 %v582
      %762 = vmatprep.subr.bf16.mxu0 0
      %763 = vmatpush1.bf16.msra.mxu0 %v583
      %764 = vmatprep.subr.bf16.mxu0 0
      %765 = vmatpush1.bf16.msra.mxu0 %v584
      %766 = vmatprep.subr.bf16.mxu0 0
      %767 = vmatpush1.bf16.msra.mxu0 %v585
      %768 = vmatprep.subr.bf16.mxu0 0
      %769 = vmatpush1.bf16.msra.mxu0 %v586
      %770 = vmatprep.subr.bf16.mxu0 0
      %771 = vmatpush1.bf16.msra.mxu0 %v587
      %772 = vmatprep.subr.bf16.mxu0 0
      %773 = vmatpush1.bf16.msra.mxu0 %v588
      %774 = vmatprep.subr.bf16.mxu0 0
      %775 = vmatpush1.bf16.msra.mxu0 %v589
      %776 = vmatprep.subr.bf16.mxu0 0
      %777 = vmatpush1.bf16.msra.mxu0 %v590
      %778 = vmatprep.subr.bf16.mxu0 0
      %779 = vmatpush1.bf16.msra.mxu0 %v591
      %780 = vmatprep.subr.bf16.mxu0 0
      %781 = vmatpush1.bf16.msra.mxu0 %v592
      %782 = vmatprep.subr.bf16.mxu0 0
      %783 = vmatpush1.bf16.msra.mxu0 %v593
      %784 = vmatprep.subr.bf16.mxu0 0
      %785 = vmatpush1.bf16.msra.mxu0 %v594
      %786 = vmatprep.subr.bf16.mxu0 0
      %787 = vmatpush1.bf16.msra.mxu0 %v595
      %788 = vmatprep.subr.bf16.mxu0 0
      %789 = vmatpush1.bf16.msra.mxu0 %v596
      %790 = vmatprep.subr.bf16.mxu0 0
      %791 = vmatpush1.bf16.msra.mxu0 %v597
      %792 = vmatprep.mubr.bf16.mxu0 %v745
      %793 = vmatmul.mubr.bf16.gmra.mrb[0].mxu0 %v744
      %v794 = vpop.f32.mrb[0].mxu0
      %v795 = vadd.f32 0.0, %v794
      %v796 = vpop.f32.mrb[0].mxu0
      %v797 = vpop.f32.mrb[0].mxu0
      %v798 = vadd.f32 0.0, %v797
      %v799 = vpop.f32.mrb[0].mxu0
      %800 = vmatprep.mubr.bf16.mxu0 %v747
      %801 = vmatmul.mubr.bf16.gmra.mrb[0].mxu0 %v746
      %v802 = vpop.f32.mrb[0].mxu0
      %v803 = vadd.f32 0.0, %v802
      %v804 = vpop.f32.mrb[0].mxu0
      %v805 = vpop.f32.mrb[0].mxu0
      %v806 = vadd.f32 0.0, %v805
      %v807 = vpop.f32.mrb[0].mxu0
      %808 = vmatprep.mubr.bf16.mxu0 %v749
      %809 = vmatmul.mubr.bf16.gmra.mrb[0].mxu0 %v748
      %v810 = vpop.f32.mrb[0].mxu0
      %v811 = vadd.f32 0.0, %v810
      %v812 = vpop.f32.mrb[0].mxu0
      %v813 = vpop.f32.mrb[0].mxu0
      %v814 = vadd.f32 0.0, %v813
      %v815 = vpop.f32.mrb[0].mxu0
      %816 = vmatprep.mubr.bf16.mxu0 %v751
      %817 = vmatmul.mubr.bf16.gmra.mrb[0].mxu0 %v750
      %v818 = vpop.f32.mrb[0].mxu0
      %v819 = vadd.f32 0.0, %v818
      %v820 = vpop.f32.mrb[0].mxu0
      %v821 = vpop.f32.mrb[0].mxu0
      %v822 = vadd.f32 0.0, %v821
      %v823 = vpop.f32.mrb[0].mxu0
      %824 = vdwg.mxu0
      %v825 = vmax.f32 %v681, %v795
      %v826 = vmax.f32 %v684, %v798
      %v827 = vmax.f32 %v689, %v803
      %v828 = vmax.f32 %v692, %v806
      %v829 = vmax.f32 %v697, %v811
      %v830 = vmax.f32 %v700, %v814
      %v831 = vmax.f32 %v705, %v819
      %v832 = vmax.f32 %v708, %v822
      %s833 = scalar_lea.vmem %s3, 128
      %v834 = vld [vmem:[%s833] sm:$0xff]
      %v835 = vld [vmem:[%s833 + $0x8] sm:$0xff]
      %v836 = vld [vmem:[%s833 + $0x10] sm:$0xff]
      %v837 = vld [vmem:[%s833 + $0x18] sm:$0xff]
      %v838 = vld [vmem:[%s833 + $0x20] sm:$0xff]
      %v839 = vld [vmem:[%s833 + $0x28] sm:$0xff]
      %v840 = vld [vmem:[%s833 + $0x30] sm:$0xff]
      %v841 = vld [vmem:[%s833 + $0x38] sm:$0xff]
      %v850 = vunpack.c.l.b16 %v834
      %v851 = vunpack.c.h.b16 %v834
      %v852 = vunpack.c.l.b16 %v835
      %v853 = vunpack.c.h.b16 %v835
      %v854 = vunpack.c.l.b16 %v836
      %v855 = vunpack.c.h.b16 %v836
      %v856 = vunpack.c.l.b16 %v837
      %v857 = vunpack.c.h.b16 %v837
      %v858 = vunpack.c.l.b16 %v838
      %v859 = vunpack.c.h.b16 %v838
      %v860 = vunpack.c.l.b16 %v839
      %v861 = vunpack.c.h.b16 %v839
      %v862 = vunpack.c.l.b16 %v840
      %v863 = vunpack.c.h.b16 %v840
      %v864 = vunpack.c.l.b16 %v841
      %v865 = vunpack.c.h.b16 %v841
      %v866 = vpack.c.b16 %v852, %v850
      %v867 = vpack.c.b16 %v853, %v851
      %v868 = vpack.c.b16 %v856, %v854
      %v869 = vpack.c.b16 %v857, %v855
      %v870 = vpack.c.b16 %v860, %v858
      %v871 = vpack.c.b16 %v861, %v859
      %v872 = vpack.c.b16 %v864, %v862
      %v873 = vpack.c.b16 %v865, %v863
      %882 = vmatprep.subr.bf16.mxu0 0
      %883 = vmatpush1.bf16.msra.mxu0 %v582
      %884 = vmatprep.subr.bf16.mxu0 0
      %885 = vmatpush1.bf16.msra.mxu0 %v583
      %886 = vmatprep.subr.bf16.mxu0 0
      %887 = vmatpush1.bf16.msra.mxu0 %v584
      %888 = vmatprep.subr.bf16.mxu0 0
      %889 = vmatpush1.bf16.msra.mxu0 %v585
      %890 = vmatprep.subr.bf16.mxu0 0
      %891 = vmatpush1.bf16.msra.mxu0 %v586
      %892 = vmatprep.subr.bf16.mxu0 0
      %893 = vmatpush1.bf16.msra.mxu0 %v587
      %894 = vmatprep.subr.bf16.mxu0 0
      %895 = vmatpush1.bf16.msra.mxu0 %v588
      %896 = vmatprep.subr.bf16.mxu0 0
      %897 = vmatpush1.bf16.msra.mxu0 %v589
      %898 = vmatprep.subr.bf16.mxu0 0
      %899 = vmatpush1.bf16.msra.mxu0 %v590
      %900 = vmatprep.subr.bf16.mxu0 0
      %901 = vmatpush1.bf16.msra.mxu0 %v591
      %902 = vmatprep.subr.bf16.mxu0 0
      %903 = vmatpush1.bf16.msra.mxu0 %v592
      %904 = vmatprep.subr.bf16.mxu0 0
      %905 = vmatpush1.bf16.msra.mxu0 %v593
      %906 = vmatprep.subr.bf16.mxu0 0
      %907 = vmatpush1.bf16.msra.mxu0 %v594
      %908 = vmatprep.subr.bf16.mxu0 0
      %909 = vmatpush1.bf16.msra.mxu0 %v595
      %910 = vmatprep.subr.bf16.mxu0 0
      %911 = vmatpush1.bf16.msra.mxu0 %v596
      %912 = vmatprep.subr.bf16.mxu0 0
      %913 = vmatpush1.bf16.msra.mxu0 %v597
      %914 = vmatprep.mubr.bf16.mxu0 %v867
      %915 = vmatmul.mubr.bf16.gmra.mrb[0].mxu0 %v866
      %v916 = vpop.f32.mrb[0].mxu0
      %v917 = vadd.f32 0.0, %v916
      %v918 = vpop.f32.mrb[0].mxu0
      %v919 = vpop.f32.mrb[0].mxu0
      %v920 = vadd.f32 0.0, %v919
      %v921 = vpop.f32.mrb[0].mxu0
      %922 = vmatprep.mubr.bf16.mxu0 %v869
      %923 = vmatmul.mubr.bf16.gmra.mrb[0].mxu0 %v868
      %v924 = vpop.f32.mrb[0].mxu0
      %v925 = vadd.f32 0.0, %v924
      %v926 = vpop.f32.mrb[0].mxu0
      %v927 = vpop.f32.mrb[0].mxu0
      %v928 = vadd.f32 0.0, %v927
      %v929 = vpop.f32.mrb[0].mxu0
      %930 = vmatprep.mubr.bf16.mxu0 %v871
      %931 = vmatmul.mubr.bf16.gmra.mrb[0].mxu0 %v870
      %v932 = vpop.f32.mrb[0].mxu0
      %v933 = vadd.f32 0.0, %v932
      %v934 = vpop.f32.mrb[0].mxu0
      %v935 = vpop.f32.mrb[0].mxu0
      %v936 = vadd.f32 0.0, %v935
      %v937 = vpop.f32.mrb[0].mxu0
      %938 = vmatprep.mubr.bf16.mxu0 %v873
      %939 = vmatmul.mubr.bf16.gmra.mrb[0].mxu0 %v872
      %v940 = vpop.f32.mrb[0].mxu0
      %v941 = vadd.f32 0.0, %v940
      %v942 = vpop.f32.mrb[0].mxu0
      %v943 = vpop.f32.mrb[0].mxu0
      %v944 = vadd.f32 0.0, %v943
      %v945 = vpop.f32.mrb[0].mxu0
      %946 = vdwg.mxu0
      %v947 = vmax.f32 %v825, %v917
      %v948 = vmax.f32 %v826, %v920
      %v949 = vmax.f32 %v827, %v925
      %v950 = vmax.f32 %v828, %v928
      %v951 = vmax.f32 %v829, %v933
      %v952 = vmax.f32 %v830, %v936
      %v953 = vmax.f32 %v831, %v941
      %v954 = vmax.f32 %v832, %v944
      %s955 = scalar_lea.vmem %s3, 192
      %v956 = vld [vmem:[%s955] sm:$0xff]
      %v957 = vld [vmem:[%s955 + $0x8] sm:$0xff]
      %v958 = vld [vmem:[%s955 + $0x10] sm:$0xff]
      %v959 = vld [vmem:[%s955 + $0x18] sm:$0xff]
      %v960 = vld [vmem:[%s955 + $0x20] sm:$0xff]
      %v961 = vld [vmem:[%s955 + $0x28] sm:$0xff]
      %v962 = vld [vmem:[%s955 + $0x30] sm:$0xff]
      %v963 = vld [vmem:[%s955 + $0x38] sm:$0xff]
      %v972 = vunpack.c.l.b16 %v956
      %v973 = vunpack.c.h.b16 %v956
      %v974 = vunpack.c.l.b16 %v957
      %v975 = vunpack.c.h.b16 %v957
      %v976 = vunpack.c.l.b16 %v958
      %v977 = vunpack.c.h.b16 %v958
      %v978 = vunpack.c.l.b16 %v959
      %v979 = vunpack.c.h.b16 %v959
      %v980 = vunpack.c.l.b16 %v960
      %v981 = vunpack.c.h.b16 %v960
      %v982 = vunpack.c.l.b16 %v961
      %v983 = vunpack.c.h.b16 %v961
      %v984 = vunpack.c.l.b16 %v962
      %v985 = vunpack.c.h.b16 %v962
      %v986 = vunpack.c.l.b16 %v963
      %v987 = vunpack.c.h.b16 %v963
      %v988 = vpack.c.b16 %v974, %v972
      %v989 = vpack.c.b16 %v975, %v973
      %v990 = vpack.c.b16 %v978, %v976
      %v991 = vpack.c.b16 %v979, %v977
      %v992 = vpack.c.b16 %v982, %v980
      %v993 = vpack.c.b16 %v983, %v981
      %v994 = vpack.c.b16 %v986, %v984
      %v995 = vpack.c.b16 %v987, %v985
      %1004 = vmatprep.subr.bf16.mxu0 0
      %1005 = vmatpush1.bf16.msra.mxu0 %v582
      %1006 = vmatprep.subr.bf16.mxu0 0
      %1007 = vmatpush1.bf16.msra.mxu0 %v583
      %1008 = vmatprep.subr.bf16.mxu0 0
      %1009 = vmatpush1.bf16.msra.mxu0 %v584
      %1010 = vmatprep.subr.bf16.mxu0 0
      %1011 = vmatpush1.bf16.msra.mxu0 %v585
      %1012 = vmatprep.subr.bf16.mxu0 0
      %1013 = vmatpush1.bf16.msra.mxu0 %v586
      %1014 = vmatprep.subr.bf16.mxu0 0
      %1015 = vmatpush1.bf16.msra.mxu0 %v587
      %1016 = vmatprep.subr.bf16.mxu0 0
      %1017 = vmatpush1.bf16.msra.mxu0 %v588
      %1018 = vmatprep.subr.bf16.mxu0 0
      %1019 = vmatpush1.bf16.msra.mxu0 %v589
      %1020 = vmatprep.subr.bf16.mxu0 0
      %1021 = vmatpush1.bf16.msra.mxu0 %v590
      %1022 = vmatprep.subr.bf16.mxu0 0
      %1023 = vmatpush1.bf16.msra.mxu0 %v591
      %1024 = vmatprep.subr.bf16.mxu0 0
      %1025 = vmatpush1.bf16.msra.mxu0 %v592
      %1026 = vmatprep.subr.bf16.mxu0 0
      %1027 = vmatpush1.bf16.msra.mxu0 %v593
      %1028 = vmatprep.subr.bf16.mxu0 0
      %1029 = vmatpush1.bf16.msra.mxu0 %v594
      %1030 = vmatprep.subr.bf16.mxu0 0
      %1031 = vmatpush1.bf16.msra.mxu0 %v595
      %1032 = vmatprep.subr.bf16.mxu0 0
      %1033 = vmatpush1.bf16.msra.mxu0 %v596
      %1034 = vmatprep.subr.bf16.mxu0 0
      %1035 = vmatpush1.bf16.msra.mxu0 %v597
      %1036 = vmatprep.mubr.bf16.mxu0 %v989
      %1037 = vmatmul.mubr.bf16.gmra.mrb[0].mxu0 %v988
      %v1038 = vpop.f32.mrb[0].mxu0
      %v1039 = vadd.f32 0.0, %v1038
      %v1040 = vpop.f32.mrb[0].mxu0
      %v1041 = vpop.f32.mrb[0].mxu0
      %v1042 = vadd.f32 0.0, %v1041
      %v1043 = vpop.f32.mrb[0].mxu0
      %1044 = vmatprep.mubr.bf16.mxu0 %v991
      %1045 = vmatmul.mubr.bf16.gmra.mrb[0].mxu0 %v990
      %v1046 = vpop.f32.mrb[0].mxu0
      %v1047 = vadd.f32 0.0, %v1046
      %v1048 = vpop.f32.mrb[0].mxu0
      %v1049 = vpop.f32.mrb[0].mxu0
      %v1050 = vadd.f32 0.0, %v1049
      %v1051 = vpop.f32.mrb[0].mxu0
      %1052 = vmatprep.mubr.bf16.mxu0 %v993
      %1053 = vmatmul.mubr.bf16.gmra.mrb[0].mxu0 %v992
      %v1054 = vpop.f32.mrb[0].mxu0
      %v1055 = vadd.f32 0.0, %v1054
      %v1056 = vpop.f32.mrb[0].mxu0
      %v1057 = vpop.f32.mrb[0].mxu0
      %v1058 = vadd.f32 0.0, %v1057
      %v1059 = vpop.f32.mrb[0].mxu0
      %1060 = vmatprep.mubr.bf16.mxu0 %v995
      %1061 = vmatmul.mubr.bf16.gmra.mrb[0].mxu0 %v994
      %v1062 = vpop.f32.mrb[0].mxu0
      %v1063 = vadd.f32 0.0, %v1062
      %v1064 = vpop.f32.mrb[0].mxu0
      %v1065 = vpop.f32.mrb[0].mxu0
      %v1066 = vadd.f32 0.0, %v1065
      %v1067 = vpop.f32.mrb[0].mxu0
      %1068 = vdwg.mxu0
      %v1069 = vmax.f32 %v947, %v1039
      %v1070 = vmax.f32 %v948, %v1042
      %v1071 = vmax.f32 %v949, %v1047
      %v1072 = vmax.f32 %v950, %v1050
      %v1073 = vmax.f32 %v951, %v1055
      %v1074 = vmax.f32 %v952, %v1058
      %v1075 = vmax.f32 %v953, %v1063
      %v1076 = vmax.f32 %v954, %v1066
      %s1077 = scalar_lea.vmem %s3, 256
      %v1078 = vld [vmem:[%s1077] sm:$0xff]
      %v1079 = vld [vmem:[%s1077 + $0x8] sm:$0xff]
      %v1080 = vld [vmem:[%s1077 + $0x10] sm:$0xff]
      %v1081 = vld [vmem:[%s1077 + $0x18] sm:$0xff]
      %v1082 = vld [vmem:[%s1077 + $0x20] sm:$0xff]
      %v1083 = vld [vmem:[%s1077 + $0x28] sm:$0xff]
      %v1084 = vld [vmem:[%s1077 + $0x30] sm:$0xff]
      %v1085 = vld [vmem:[%s1077 + $0x38] sm:$0xff]
      %v1094 = vunpack.c.l.b16 %v1078
      %v1095 = vunpack.c.h.b16 %v1078
      %v1096 = vunpack.c.l.b16 %v1079
      %v1097 = vunpack.c.h.b16 %v1079
      %v1098 = vunpack.c.l.b16 %v1080
      %v1099 = vunpack.c.h.b16 %v1080
      %v1100 = vunpack.c.l.b16 %v1081
      %v1101 = vunpack.c.h.b16 %v1081
      %v1102 = vunpack.c.l.b16 %v1082
      %v1103 = vunpack.c.h.b16 %v1082
      %v1104 = vunpack.c.l.b16 %v1083
      %v1105 = vunpack.c.h.b16 %v1083
      %v1106 = vunpack.c.l.b16 %v1084
      %v1107 = vunpack.c.h.b16 %v1084
      %v1108 = vunpack.c.l.b16 %v1085
      %v1109 = vunpack.c.h.b16 %v1085
      %v1110 = vpack.c.b16 %v1096, %v1094
      %v1111 = vpack.c.b16 %v1097, %v1095
      %v1112 = vpack.c.b16 %v1100, %v1098
      %v1113 = vpack.c.b16 %v1101, %v1099
      %v1114 = vpack.c.b16 %v1104, %v1102
      %v1115 = vpack.c.b16 %v1105, %v1103
      %v1116 = vpack.c.b16 %v1108, %v1106
      %v1117 = vpack.c.b16 %v1109, %v1107
      %1126 = vmatprep.subr.bf16.mxu0 0
      %1127 = vmatpush1.bf16.msra.mxu0 %v582
      %1128 = vmatprep.subr.bf16.mxu0 0
      %1129 = vmatpush1.bf16.msra.mxu0 %v583
      %1130 = vmatprep.subr.bf16.mxu0 0
      %1131 = vmatpush1.bf16.msra.mxu0 %v584
      %1132 = vmatprep.subr.bf16.mxu0 0
      %1133 = vmatpush1.bf16.msra.mxu0 %v585
      %1134 = vmatprep.subr.bf16.mxu0 0
      %1135 = vmatpush1.bf16.msra.mxu0 %v586
      %1136 = vmatprep.subr.bf16.mxu0 0
      %1137 = vmatpush1.bf16.msra.mxu0 %v587
      %1138 = vmatprep.subr.bf16.mxu0 0
      %1139 = vmatpush1.bf16.msra.mxu0 %v588
      %1140 = vmatprep.subr.bf16.mxu0 0
      %1141 = vmatpush1.bf16.msra.mxu0 %v589
      %1142 = vmatprep.subr.bf16.mxu0 0
      %1143 = vmatpush1.bf16.msra.mxu0 %v590
      %1144 = vmatprep.subr.bf16.mxu0 0
      %1145 = vmatpush1.bf16.msra.mxu0 %v591
      %1146 = vmatprep.subr.bf16.mxu0 0
      %1147 = vmatpush1.bf16.msra.mxu0 %v592
      %1148 = vmatprep.subr.bf16.mxu0 0
      %1149 = vmatpush1.bf16.msra.mxu0 %v593
      %1150 = vmatprep.subr.bf16.mxu0 0
      %1151 = vmatpush1.bf16.msra.mxu0 %v594
      %1152 = vmatprep.subr.bf16.mxu0 0
      %1153 = vmatpush1.bf16.msra.mxu0 %v595
      %1154 = vmatprep.subr.bf16.mxu0 0
      %1155 = vmatpush1.bf16.msra.mxu0 %v596
      %1156 = vmatprep.subr.bf16.mxu0 0
      %1157 = vmatpush1.bf16.msra.mxu0 %v597
      %1158 = vmatprep.mubr.bf16.mxu0 %v1111
      %1159 = vmatmul.mubr.bf16.gmra.mrb[0].mxu0 %v1110
      %v1160 = vpop.f32.mrb[0].mxu0
      %v1161 = vadd.f32 0.0, %v1160
      %v1162 = vpop.f32.mrb[0].mxu0
      %v1163 = vpop.f32.mrb[0].mxu0
      %v1164 = vadd.f32 0.0, %v1163
      %v1165 = vpop.f32.mrb[0].mxu0
      %1166 = vmatprep.mubr.bf16.mxu0 %v1113
      %1167 = vmatmul.mubr.bf16.gmra.mrb[0].mxu0 %v1112
      %v1168 = vpop.f32.mrb[0].mxu0
      %v1169 = vadd.f32 0.0, %v1168
      %v1170 = vpop.f32.mrb[0].mxu0
      %v1171 = vpop.f32.mrb[0].mxu0
      %v1172 = vadd.f32 0.0, %v1171
      %v1173 = vpop.f32.mrb[0].mxu0
      %1174 = vmatprep.mubr.bf16.mxu0 %v1115
      %1175 = vmatmul.mubr.bf16.gmra.mrb[0].mxu0 %v1114
      %v1176 = vpop.f32.mrb[0].mxu0
      %v1177 = vadd.f32 0.0, %v1176
      %v1178 = vpop.f32.mrb[0].mxu0
      %v1179 = vpop.f32.mrb[0].mxu0
      %v1180 = vadd.f32 0.0, %v1179
      %v1181 = vpop.f32.mrb[0].mxu0
      %1182 = vmatprep.mubr.bf16.mxu0 %v1117
      %1183 = vmatmul.mubr.bf16.gmra.mrb[0].mxu0 %v1116
      %v1184 = vpop.f32.mrb[0].mxu0
      %v1185 = vadd.f32 0.0, %v1184
      %v1186 = vpop.f32.mrb[0].mxu0
      %v1187 = vpop.f32.mrb[0].mxu0
      %v1188 = vadd.f32 0.0, %v1187
      %v1189 = vpop.f32.mrb[0].mxu0
      %1190 = vdwg.mxu0
      %v1191 = vmax.f32 %v1069, %v1161
      %v1192 = vmax.f32 %v1070, %v1164
      %v1193 = vmax.f32 %v1071, %v1169
      %v1194 = vmax.f32 %v1072, %v1172
      %v1195 = vmax.f32 %v1073, %v1177
      %v1196 = vmax.f32 %v1074, %v1180
      %v1197 = vmax.f32 %v1075, %v1185
      %v1198 = vmax.f32 %v1076, %v1188
      %s1199 = scalar_lea.vmem %s3, 320
      %v1200 = vld [vmem:[%s1199] sm:$0xff]
      %v1201 = vld [vmem:[%s1199 + $0x8] sm:$0xff]
      %v1202 = vld [vmem:[%s1199 + $0x10] sm:$0xff]
      %v1203 = vld [vmem:[%s1199 + $0x18] sm:$0xff]
      %v1204 = vld [vmem:[%s1199 + $0x20] sm:$0xff]
      %v1205 = vld [vmem:[%s1199 + $0x28] sm:$0xff]
      %v1206 = vld [vmem:[%s1199 + $0x30] sm:$0xff]
      %v1207 = vld [vmem:[%s1199 + $0x38] sm:$0xff]
      %v1216 = vunpack.c.l.b16 %v1200
      %v1217 = vunpack.c.h.b16 %v1200
      %v1218 = vunpack.c.l.b16 %v1201
      %v1219 = vunpack.c.h.b16 %v1201
      %v1220 = vunpack.c.l.b16 %v1202
      %v1221 = vunpack.c.h.b16 %v1202
      %v1222 = vunpack.c.l.b16 %v1203
      %v1223 = vunpack.c.h.b16 %v1203
      %v1224 = vunpack.c.l.b16 %v1204
      %v1225 = vunpack.c.h.b16 %v1204
      %v1226 = vunpack.c.l.b16 %v1205
      %v1227 = vunpack.c.h.b16 %v1205
      %v1228 = vunpack.c.l.b16 %v1206
      %v1229 = vunpack.c.h.b16 %v1206
      %v1230 = vunpack.c.l.b16 %v1207
      %v1231 = vunpack.c.h.b16 %v1207
      %v1232 = vpack.c.b16 %v1218, %v1216
      %v1233 = vpack.c.b16 %v1219, %v1217
      %v1234 = vpack.c.b16 %v1222, %v1220
      %v1235 = vpack.c.b16 %v1223, %v1221
      %v1236 = vpack.c.b16 %v1226, %v1224
      %v1237 = vpack.c.b16 %v1227, %v1225
      %v1238 = vpack.c.b16 %v1230, %v1228
      %v1239 = vpack.c.b16 %v1231, %v1229
      %1248 = vmatprep.subr.bf16.mxu0 0
      %1249 = vmatpush1.bf16.msra.mxu0 %v582
      %1250 = vmatprep.subr.bf16.mxu0 0
      %1251 = vmatpush1.bf16.msra.mxu0 %v583
      %1252 = vmatprep.subr.bf16.mxu0 0
      %1253 = vmatpush1.bf16.msra.mxu0 %v584
      %1254 = vmatprep.subr.bf16.mxu0 0
      %1255 = vmatpush1.bf16.msra.mxu0 %v585
      %1256 = vmatprep.subr.bf16.mxu0 0
      %1257 = vmatpush1.bf16.msra.mxu0 %v586
      %1258 = vmatprep.subr.bf16.mxu0 0
      %1259 = vmatpush1.bf16.msra.mxu0 %v587
      %1260 = vmatprep.subr.bf16.mxu0 0
      %1261 = vmatpush1.bf16.msra.mxu0 %v588
      %1262 = vmatprep.subr.bf16.mxu0 0
      %1263 = vmatpush1.bf16.msra.mxu0 %v589
      %1264 = vmatprep.subr.bf16.mxu0 0
      %1265 = vmatpush1.bf16.msra.mxu0 %v590
      %1266 = vmatprep.subr.bf16.mxu0 0
      %1267 = vmatpush1.bf16.msra.mxu0 %v591
      %1268 = vmatprep.subr.bf16.mxu0 0
      %1269 = vmatpush1.bf16.msra.mxu0 %v592
      %1270 = vmatprep.subr.bf16.mxu0 0
      %1271 = vmatpush1.bf16.msra.mxu0 %v593
      %1272 = vmatprep.subr.bf16.mxu0 0
      %1273 = vmatpush1.bf16.msra.mxu0 %v594
      %1274 = vmatprep.subr.bf16.mxu0 0
      %1275 = vmatpush1.bf16.msra.mxu0 %v595
      %1276 = vmatprep.subr.bf16.mxu0 0
      %1277 = vmatpush1.bf16.msra.mxu0 %v596
      %1278 = vmatprep.subr.bf16.mxu0 0
      %1279 = vmatpush1.bf16.msra.mxu0 %v597
      %1280 = vmatprep.mubr.bf16.mxu0 %v1233
      %1281 = vmatmul.mubr.bf16.gmra.mrb[0].mxu0 %v1232
      %v1282 = vpop.f32.mrb[0].mxu0
      %v1283 = vadd.f32 0.0, %v1282
      %v1284 = vpop.f32.mrb[0].mxu0
      %v1285 = vpop.f32.mrb[0].mxu0
      %v1286 = vadd.f32 0.0, %v1285
      %v1287 = vpop.f32.mrb[0].mxu0
      %1288 = vmatprep.mubr.bf16.mxu0 %v1235
      %1289 = vmatmul.mubr.bf16.gmra.mrb[0].mxu0 %v1234
      %v1290 = vpop.f32.mrb[0].mxu0
      %v1291 = vadd.f32 0.0, %v1290
      %v1292 = vpop.f32.mrb[0].mxu0
      %v1293 = vpop.f32.mrb[0].mxu0
      %v1294 = vadd.f32 0.0, %v1293
      %v1295 = vpop.f32.mrb[0].mxu0
      %1296 = vmatprep.mubr.bf16.mxu0 %v1237
      %1297 = vmatmul.mubr.bf16.gmra.mrb[0].mxu0 %v1236
      %v1298 = vpop.f32.mrb[0].mxu0
      %v1299 = vadd.f32 0.0, %v1298
      %v1300 = vpop.f32.mrb[0].mxu0
      %v1301 = vpop.f32.mrb[0].mxu0
      %v1302 = vadd.f32 0.0, %v1301
      %v1303 = vpop.f32.mrb[0].mxu0
      %1304 = vmatprep.mubr.bf16.mxu0 %v1239
      %1305 = vmatmul.mubr.bf16.gmra.mrb[0].mxu0 %v1238
      %v1306 = vpop.f32.mrb[0].mxu0
      %v1307 = vadd.f32 0.0, %v1306
      %v1308 = vpop.f32.mrb[0].mxu0
      %v1309 = vpop.f32.mrb[0].mxu0
      %v1310 = vadd.f32 0.0, %v1309
      %v1311 = vpop.f32.mrb[0].mxu0
      %1312 = vdwg.mxu0
      %v1313 = vmax.f32 %v1191, %v1283
      %v1314 = vmax.f32 %v1192, %v1286
      %v1315 = vmax.f32 %v1193, %v1291
      %v1316 = vmax.f32 %v1194, %v1294
      %v1317 = vmax.f32 %v1195, %v1299
      %v1318 = vmax.f32 %v1196, %v1302
      %v1319 = vmax.f32 %v1197, %v1307
      %v1320 = vmax.f32 %v1198, %v1310
      %s1321 = scalar_lea.vmem %s3, 384
      %v1322 = vld [vmem:[%s1321] sm:$0xff]
      %v1323 = vld [vmem:[%s1321 + $0x8] sm:$0xff]
      %v1324 = vld [vmem:[%s1321 + $0x10] sm:$0xff]
      %v1325 = vld [vmem:[%s1321 + $0x18] sm:$0xff]
      %v1326 = vld [vmem:[%s1321 + $0x20] sm:$0xff]
      %v1327 = vld [vmem:[%s1321 + $0x28] sm:$0xff]
      %v1328 = vld [vmem:[%s1321 + $0x30] sm:$0xff]
      %v1329 = vld [vmem:[%s1321 + $0x38] sm:$0xff]
      %v1338 = vunpack.c.l.b16 %v1322
      %v1339 = vunpack.c.h.b16 %v1322
      %v1340 = vunpack.c.l.b16 %v1323
      %v1341 = vunpack.c.h.b16 %v1323
      %v1342 = vunpack.c.l.b16 %v1324
      %v1343 = vunpack.c.h.b16 %v1324
      %v1344 = vunpack.c.l.b16 %v1325
      %v1345 = vunpack.c.h.b16 %v1325
      %v1346 = vunpack.c.l.b16 %v1326
      %v1347 = vunpack.c.h.b16 %v1326
      %v1348 = vunpack.c.l.b16 %v1327
      %v1349 = vunpack.c.h.b16 %v1327
      %v1350 = vunpack.c.l.b16 %v1328
      %v1351 = vunpack.c.h.b16 %v1328
      %v1352 = vunpack.c.l.b16 %v1329
      %v1353 = vunpack.c.h.b16 %v1329
      %v1354 = vpack.c.b16 %v1340, %v1338
      %v1355 = vpack.c.b16 %v1341, %v1339
      %v1356 = vpack.c.b16 %v1344, %v1342
      %v1357 = vpack.c.b16 %v1345, %v1343
      %v1358 = vpack.c.b16 %v1348, %v1346
      %v1359 = vpack.c.b16 %v1349, %v1347
      %v1360 = vpack.c.b16 %v1352, %v1350
      %v1361 = vpack.c.b16 %v1353, %v1351
      %1370 = vmatprep.subr.bf16.mxu0 0
      %1371 = vmatpush1.bf16.msra.mxu0 %v582
      %1372 = vmatprep.subr.bf16.mxu0 0
      %1373 = vmatpush1.bf16.msra.mxu0 %v583
      %1374 = vmatprep.subr.bf16.mxu0 0
      %1375 = vmatpush1.bf16.msra.mxu0 %v584
      %1376 = vmatprep.subr.bf16.mxu0 0
      %1377 = vmatpush1.bf16.msra.mxu0 %v585
      %1378 = vmatprep.subr.bf16.mxu0 0
      %1379 = vmatpush1.bf16.msra.mxu0 %v586
      %1380 = vmatprep.subr.bf16.mxu0 0
      %1381 = vmatpush1.bf16.msra.mxu0 %v587
      %1382 = vmatprep.subr.bf16.mxu0 0
      %1383 = vmatpush1.bf16.msra.mxu0 %v588
      %1384 = vmatprep.subr.bf16.mxu0 0
      %1385 = vmatpush1.bf16.msra.mxu0 %v589
      %1386 = vmatprep.subr.bf16.mxu0 0
      %1387 = vmatpush1.bf16.msra.mxu0 %v590
      %1388 = vmatprep.subr.bf16.mxu0 0
      %1389 = vmatpush1.bf16.msra.mxu0 %v591
      %1390 = vmatprep.subr.bf16.mxu0 0
      %1391 = vmatpush1.bf16.msra.mxu0 %v592
      %1392 = vmatprep.subr.bf16.mxu0 0
      %1393 = vmatpush1.bf16.msra.mxu0 %v593
      %1394 = vmatprep.subr.bf16.mxu0 0
      %1395 = vmatpush1.bf16.msra.mxu0 %v594
      %1396 = vmatprep.subr.bf16.mxu0 0
      %1397 = vmatpush1.bf16.msra.mxu0 %v595
      %1398 = vmatprep.subr.bf16.mxu0 0
      %1399 = vmatpush1.bf16.msra.mxu0 %v596
      %1400 = vmatprep.subr.bf16.mxu0 0
      %1401 = vmatpush1.bf16.msra.mxu0 %v597
      %1402 = vmatprep.mubr.bf16.mxu0 %v1355
      %1403 = vmatmul.mubr.bf16.gmra.mrb[0].mxu0 %v1354
      %v1404 = vpop.f32.mrb[0].mxu0
      %v1405 = vadd.f32 0.0, %v1404
      %v1406 = vpop.f32.mrb[0].mxu0
      %v1407 = vpop.f32.mrb[0].mxu0
      %v1408 = vadd.f32 0.0, %v1407
      %v1409 = vpop.f32.mrb[0].mxu0
      %1410 = vmatprep.mubr.bf16.mxu0 %v1357
      %1411 = vmatmul.mubr.bf16.gmra.mrb[0].mxu0 %v1356
      %v1412 = vpop.f32.mrb[0].mxu0
      %v1413 = vadd.f32 0.0, %v1412
      %v1414 = vpop.f32.mrb[0].mxu0
      %v1415 = vpop.f32.mrb[0].mxu0
      %v1416 = vadd.f32 0.0, %v1415
      %v1417 = vpop.f32.mrb[0].mxu0
      %1418 = vmatprep.mubr.bf16.mxu0 %v1359
      %1419 = vmatmul.mubr.bf16.gmra.mrb[0].mxu0 %v1358
      %v1420 = vpop.f32.mrb[0].mxu0
      %v1421 = vadd.f32 0.0, %v1420
      %v1422 = vpop.f32.mrb[0].mxu0
      %v1423 = vpop.f32.mrb[0].mxu0
      %v1424 = vadd.f32 0.0, %v1423
      %v1425 = vpop.f32.mrb[0].mxu0
      %1426 = vmatprep.mubr.bf16.mxu0 %v1361
      %1427 = vmatmul.mubr.bf16.gmra.mrb[0].mxu0 %v1360
      %v1428 = vpop.f32.mrb[0].mxu0
      %v1429 = vadd.f32 0.0, %v1428
      %v1430 = vpop.f32.mrb[0].mxu0
      %v1431 = vpop.f32.mrb[0].mxu0
      %v1432 = vadd.f32 0.0, %v1431
      %v1433 = vpop.f32.mrb[0].mxu0
      %1434 = vdwg.mxu0
      %v1435 = vmax.f32 %v1313, %v1405
      %v1436 = vmax.f32 %v1314, %v1408
      %v1437 = vmax.f32 %v1315, %v1413
      %v1438 = vmax.f32 %v1316, %v1416
      %v1439 = vmax.f32 %v1317, %v1421
      %v1440 = vmax.f32 %v1318, %v1424
      %v1441 = vmax.f32 %v1319, %v1429
      %v1442 = vmax.f32 %v1320, %v1432
      %s1443 = scalar_lea.vmem %s3, 448
      %v1444 = vld [vmem:[%s1443] sm:$0xff]
      %v1445 = vld [vmem:[%s1443 + $0x8] sm:$0xff]
      %v1446 = vld [vmem:[%s1443 + $0x10] sm:$0xff]
      %v1447 = vld [vmem:[%s1443 + $0x18] sm:$0xff]
      %v1448 = vld [vmem:[%s1443 + $0x20] sm:$0xff]
      %v1449 = vld [vmem:[%s1443 + $0x28] sm:$0xff]
      %v1450 = vld [vmem:[%s1443 + $0x30] sm:$0xff]
      %v1451 = vld [vmem:[%s1443 + $0x38] sm:$0xff]
      %v1460 = vunpack.c.l.b16 %v1444
      %v1461 = vunpack.c.h.b16 %v1444
      %v1462 = vunpack.c.l.b16 %v1445
      %v1463 = vunpack.c.h.b16 %v1445
      %v1464 = vunpack.c.l.b16 %v1446
      %v1465 = vunpack.c.h.b16 %v1446
      %v1466 = vunpack.c.l.b16 %v1447
      %v1467 = vunpack.c.h.b16 %v1447
      %v1468 = vunpack.c.l.b16 %v1448
      %v1469 = vunpack.c.h.b16 %v1448
      %v1470 = vunpack.c.l.b16 %v1449
      %v1471 = vunpack.c.h.b16 %v1449
      %v1472 = vunpack.c.l.b16 %v1450
      %v1473 = vunpack.c.h.b16 %v1450
      %v1474 = vunpack.c.l.b16 %v1451
      %v1475 = vunpack.c.h.b16 %v1451
      %v1476 = vpack.c.b16 %v1462, %v1460
      %v1477 = vpack.c.b16 %v1463, %v1461
      %v1478 = vpack.c.b16 %v1466, %v1464
      %v1479 = vpack.c.b16 %v1467, %v1465
      %v1480 = vpack.c.b16 %v1470, %v1468
      %v1481 = vpack.c.b16 %v1471, %v1469
      %v1482 = vpack.c.b16 %v1474, %v1472
      %v1483 = vpack.c.b16 %v1475, %v1473
      %1492 = vmatprep.subr.bf16.mxu0 0
      %1493 = vmatpush1.bf16.msra.mxu0 %v582
      %1494 = vmatprep.subr.bf16.mxu0 0
      %1495 = vmatpush1.bf16.msra.mxu0 %v583
      %1496 = vmatprep.subr.bf16.mxu0 0
      %1497 = vmatpush1.bf16.msra.mxu0 %v584
      %1498 = vmatprep.subr.bf16.mxu0 0
      %1499 = vmatpush1.bf16.msra.mxu0 %v585
      %1500 = vmatprep.subr.bf16.mxu0 0
      %1501 = vmatpush1.bf16.msra.mxu0 %v586
      %1502 = vmatprep.subr.bf16.mxu0 0
      %1503 = vmatpush1.bf16.msra.mxu0 %v587
      %1504 = vmatprep.subr.bf16.mxu0 0
      %1505 = vmatpush1.bf16.msra.mxu0 %v588
      %1506 = vmatprep.subr.bf16.mxu0 0
      %1507 = vmatpush1.bf16.msra.mxu0 %v589
      %1508 = vmatprep.subr.bf16.mxu0 0
      %1509 = vmatpush1.bf16.msra.mxu0 %v590
      %1510 = vmatprep.subr.bf16.mxu0 0
      %1511 = vmatpush1.bf16.msra.mxu0 %v591
      %1512 = vmatprep.subr.bf16.mxu0 0
      %1513 = vmatpush1.bf16.msra.mxu0 %v592
      %1514 = vmatprep.subr.bf16.mxu0 0
      %1515 = vmatpush1.bf16.msra.mxu0 %v593
      %1516 = vmatprep.subr.bf16.mxu0 0
      %1517 = vmatpush1.bf16.msra.mxu0 %v594
      %1518 = vmatprep.subr.bf16.mxu0 0
      %1519 = vmatpush1.bf16.msra.mxu0 %v595
      %1520 = vmatprep.subr.bf16.mxu0 0
      %1521 = vmatpush1.bf16.msra.mxu0 %v596
      %1522 = vmatprep.subr.bf16.mxu0 0
      %1523 = vmatpush1.bf16.msra.mxu0 %v597
      %1524 = vmatprep.mubr.bf16.mxu0 %v1477
      %1525 = vmatmul.mubr.bf16.gmra.mrb[0].mxu0 %v1476
      %v1526 = vpop.f32.mrb[0].mxu0
      %v1527 = vadd.f32 0.0, %v1526
      %v1528 = vpop.f32.mrb[0].mxu0
      %v1529 = vpop.f32.mrb[0].mxu0
      %v1530 = vadd.f32 0.0, %v1529
      %v1531 = vpop.f32.mrb[0].mxu0
      %1532 = vmatprep.mubr.bf16.mxu0 %v1479
      %1533 = vmatmul.mubr.bf16.gmra.mrb[0].mxu0 %v1478
      %v1534 = vpop.f32.mrb[0].mxu0
      %v1535 = vadd.f32 0.0, %v1534
      %v1536 = vpop.f32.mrb[0].mxu0
      %v1537 = vpop.f32.mrb[0].mxu0
      %v1538 = vadd.f32 0.0, %v1537
      %v1539 = vpop.f32.mrb[0].mxu0
      %1540 = vmatprep.mubr.bf16.mxu0 %v1481
      %1541 = vmatmul.mubr.bf16.gmra.mrb[0].mxu0 %v1480
      %v1542 = vpop.f32.mrb[0].mxu0
      %v1543 = vadd.f32 0.0, %v1542
      %v1544 = vpop.f32.mrb[0].mxu0
      %v1545 = vpop.f32.mrb[0].mxu0
      %v1546 = vadd.f32 0.0, %v1545
      %v1547 = vpop.f32.mrb[0].mxu0
      %1548 = vmatprep.mubr.bf16.mxu0 %v1483
      %1549 = vmatmul.mubr.bf16.gmra.mrb[0].mxu0 %v1482
      %v1550 = vpop.f32.mrb[0].mxu0
      %v1551 = vadd.f32 0.0, %v1550
      %v1552 = vpop.f32.mrb[0].mxu0
      %v1553 = vpop.f32.mrb[0].mxu0
      %v1554 = vadd.f32 0.0, %v1553
      %v1555 = vpop.f32.mrb[0].mxu0
      %1556 = vdwg.mxu0
      %v1557 = vmax.f32 %v1435, %v1527
      %v1558 = vmax.f32 %v1436, %v1530
      %v1559 = vmax.f32 %v1437, %v1535
      %v1560 = vmax.f32 %v1438, %v1538
      %v1561 = vmax.f32 %v1439, %v1543
      %v1562 = vmax.f32 %v1440, %v1546
      %v1563 = vmax.f32 %v1441, %v1551
      %v1564 = vmax.f32 %v1442, %v1554
      %s1565 = scalar_lea.vmem %s3, 512
      %v1566 = vld [vmem:[%s1565] sm:$0xff]
      %v1567 = vld [vmem:[%s1565 + $0x8] sm:$0xff]
      %v1568 = vld [vmem:[%s1565 + $0x10] sm:$0xff]
      %v1569 = vld [vmem:[%s1565 + $0x18] sm:$0xff]
      %v1570 = vld [vmem:[%s1565 + $0x20] sm:$0xff]
      %v1571 = vld [vmem:[%s1565 + $0x28] sm:$0xff]
      %v1572 = vld [vmem:[%s1565 + $0x30] sm:$0xff]
      %v1573 = vld [vmem:[%s1565 + $0x38] sm:$0xff]
      %v1582 = vunpack.c.l.b16 %v1566
      %v1583 = vunpack.c.h.b16 %v1566
      %v1584 = vunpack.c.l.b16 %v1567
      %v1585 = vunpack.c.h.b16 %v1567
      %v1586 = vunpack.c.l.b16 %v1568
      %v1587 = vunpack.c.h.b16 %v1568
      %v1588 = vunpack.c.l.b16 %v1569
      %v1589 = vunpack.c.h.b16 %v1569
      %v1590 = vunpack.c.l.b16 %v1570
      %v1591 = vunpack.c.h.b16 %v1570
      %v1592 = vunpack.c.l.b16 %v1571
      %v1593 = vunpack.c.h.b16 %v1571
      %v1594 = vunpack.c.l.b16 %v1572
      %v1595 = vunpack.c.h.b16 %v1572
      %v1596 = vunpack.c.l.b16 %v1573
      %v1597 = vunpack.c.h.b16 %v1573
      %v1598 = vpack.c.b16 %v1584, %v1582
      %v1599 = vpack.c.b16 %v1585, %v1583
      %v1600 = vpack.c.b16 %v1588, %v1586
      %v1601 = vpack.c.b16 %v1589, %v1587
      %v1602 = vpack.c.b16 %v1592, %v1590
      %v1603 = vpack.c.b16 %v1593, %v1591
      %v1604 = vpack.c.b16 %v1596, %v1594
      %v1605 = vpack.c.b16 %v1597, %v1595
      %1614 = vmatprep.subr.bf16.mxu0 0
      %1615 = vmatpush1.bf16.msra.mxu0 %v582
      %1616 = vmatprep.subr.bf16.mxu0 0
      %1617 = vmatpush1.bf16.msra.mxu0 %v583
      %1618 = vmatprep.subr.bf16.mxu0 0
      %1619 = vmatpush1.bf16.msra.mxu0 %v584
      %1620 = vmatprep.subr.bf16.mxu0 0
      %1621 = vmatpush1.bf16.msra.mxu0 %v585
      %1622 = vmatprep.subr.bf16.mxu0 0
      %1623 = vmatpush1.bf16.msra.mxu0 %v586
      %1624 = vmatprep.subr.bf16.mxu0 0
      %1625 = vmatpush1.bf16.msra.mxu0 %v587
      %1626 = vmatprep.subr.bf16.mxu0 0
      %1627 = vmatpush1.bf16.msra.mxu0 %v588
      %1628 = vmatprep.subr.bf16.mxu0 0
      %1629 = vmatpush1.bf16.msra.mxu0 %v589
      %1630 = vmatprep.subr.bf16.mxu0 0
      %1631 = vmatpush1.bf16.msra.mxu0 %v590
      %1632 = vmatprep.subr.bf16.mxu0 0
      %1633 = vmatpush1.bf16.msra.mxu0 %v591
      %1634 = vmatprep.subr.bf16.mxu0 0
      %1635 = vmatpush1.bf16.msra.mxu0 %v592
      %1636 = vmatprep.subr.bf16.mxu0 0
      %1637 = vmatpush1.bf16.msra.mxu0 %v593
      %1638 = vmatprep.subr.bf16.mxu0 0
      %1639 = vmatpush1.bf16.msra.mxu0 %v594
      %1640 = vmatprep.subr.bf16.mxu0 0
      %1641 = vmatpush1.bf16.msra.mxu0 %v595
      %1642 = vmatprep.subr.bf16.mxu0 0
      %1643 = vmatpush1.bf16.msra.mxu0 %v596
      %1644 = vmatprep.subr.bf16.mxu0 0
      %1645 = vmatpush1.bf16.msra.mxu0 %v597
      %1646 = vmatprep.mubr.bf16.mxu0 %v1599
      %1647 = vmatmul.mubr.bf16.gmra.mrb[0].mxu0 %v1598
      %v1648 = vpop.f32.mrb[0].mxu0
      %v1649 = vadd.f32 0.0, %v1648
      %v1650 = vpop.f32.mrb[0].mxu0
      %v1651 = vpop.f32.mrb[0].mxu0
      %v1652 = vadd.f32 0.0, %v1651
      %v1653 = vpop.f32.mrb[0].mxu0
      %1654 = vmatprep.mubr.bf16.mxu0 %v1601
      %1655 = vmatmul.mubr.bf16.gmra.mrb[0].mxu0 %v1600
      %v1656 = vpop.f32.mrb[0].mxu0
      %v1657 = vadd.f32 0.0, %v1656
      %v1658 = vpop.f32.mrb[0].mxu0
      %v1659 = vpop.f32.mrb[0].mxu0
      %v1660 = vadd.f32 0.0, %v1659
      %v1661 = vpop.f32.mrb[0].mxu0
      %1662 = vmatprep.mubr.bf16.mxu0 %v1603
      %1663 = vmatmul.mubr.bf16.gmra.mrb[0].mxu0 %v1602
      %v1664 = vpop.f32.mrb[0].mxu0
      %v1665 = vadd.f32 0.0, %v1664
      %v1666 = vpop.f32.mrb[0].mxu0
      %v1667 = vpop.f32.mrb[0].mxu0
      %v1668 = vadd.f32 0.0, %v1667
      %v1669 = vpop.f32.mrb[0].mxu0
      %1670 = vmatprep.mubr.bf16.mxu0 %v1605
      %1671 = vmatmul.mubr.bf16.gmra.mrb[0].mxu0 %v1604
      %v1672 = vpop.f32.mrb[0].mxu0
      %v1673 = vadd.f32 0.0, %v1672
      %v1674 = vpop.f32.mrb[0].mxu0
      %v1675 = vpop.f32.mrb[0].mxu0
      %v1676 = vadd.f32 0.0, %v1675
      %v1677 = vpop.f32.mrb[0].mxu0
      %1678 = vdwg.mxu0
      %v1679 = vmax.f32 %v1557, %v1649
      %v1680 = vmax.f32 %v1558, %v1652
      %v1681 = vmax.f32 %v1559, %v1657
      %v1682 = vmax.f32 %v1560, %v1660
      %v1683 = vmax.f32 %v1561, %v1665
      %v1684 = vmax.f32 %v1562, %v1668
      %v1685 = vmax.f32 %v1563, %v1673
      %v1686 = vmax.f32 %v1564, %v1676
      %v1687 = vpack.c.bf16 %v1680, %v1679
      %v1688 = vpack.c.bf16 %v1682, %v1681
      %v1689 = vpack.c.bf16 %v1684, %v1683
      %v1690 = vpack.c.bf16 %v1686, %v1685
      %v1695 = vunpack.c.l.b16 %v1687
      %v1696 = vunpack.c.h.b16 %v1687
      %v1697 = vunpack.c.l.b16 %v1688
      %v1698 = vunpack.c.h.b16 %v1688
      %v1699 = vunpack.c.l.b16 %v1689
      %v1700 = vunpack.c.h.b16 %v1689
      %v1701 = vunpack.c.l.b16 %v1690
      %v1702 = vunpack.c.h.b16 %v1690
      %v1703 = vpack.c.b16 %v1695, %v1695
      %v1704 = vpack.c.b16 %v1696, %v1696
      %v1705 = vpack.c.b16 %v1697, %v1697
      %v1706 = vpack.c.b16 %v1698, %v1698
      %v1707 = vpack.c.b16 %v1699, %v1699
      %v1708 = vpack.c.b16 %v1700, %v1700
      %v1709 = vpack.c.b16 %v1701, %v1701
      %v1710 = vpack.c.b16 %v1702, %v1702
      %vm1719 = vcmask 60416
      %1720 = vst.msk [vmem:[%s197] sm:$0xf] %vm1719, %v1703
      %1721 = vst.msk [vmem:[%s197 + $0x4] sm:$0xf] %vm1719, %v1704
      %1722 = vst.msk [vmem:[%s197 + $0x8] sm:$0xf] %vm1719, %v1705
      %1723 = vst.msk [vmem:[%s197 + $0xc] sm:$0xf] %vm1719, %v1706
      %1724 = vst.msk [vmem:[%s197 + $0x10] sm:$0xf] %vm1719, %v1707
      %1725 = vst.msk [vmem:[%s197 + $0x14] sm:$0xf] %vm1719, %v1708
      %1726 = vst.msk [vmem:[%s197 + $0x18] sm:$0xf] %vm1719, %v1709
      %1727 = vst.msk [vmem:[%s197 + $0x1c] sm:$0xf] %vm1719, %v1710
      %p1728 = scmp.lt.s32.totalorder %s15, 1
      %s1729 = scalar_select %p1728, %s15, 1
      %s1730 = smul.addr %s1729, 8
      %s1731 = smul.addr %s1730, 4
      %s1732 = scalar_lea.vmem %s4, %s1731
      // Predicated region
      $region37: #{shufflenet_forward.8} parent=35 // pred_check
        %p1733 = pneg %p122
      $region38: #{shufflenet_forward.8} parent=35 // pred_check_branch
        %1735 = sbr.rel (%p1733) target = $region40
      $region39: #{shufflenet_forward.8} parent=35 // pred_region
        _
      $region40: #{shufflenet_forward.8} parent=35 // pred_fallthru
        _
    $region36: #{shufflenet_forward.8} parent=5 // pred_fallthru
      _
    %p1736 = scmp.le.s32.totalorder 2, %s10
    // Predicated region
    $region41: #{shufflenet_forward.8} parent=5 // pred_check
      %p1737 = pneg %p1736
    $region42: #{shufflenet_forward.8} parent=5 // pred_check_branch
      %1739 = sbr.rel (%p1737) target = $region44
    $region43: #{shufflenet_forward.8} parent=5 // pred_region
      %s1740 = ssub.s32 %s10, 2
      // Predicated region
      $region45: #{shufflenet_forward.8} parent=43 // pred_check
        %p1741 = pneg %p128
      $region46: #{shufflenet_forward.8} parent=43 // pred_check_branch
        %1743 = sbr.rel (%p1741) target = $region48
      $region47: #{shufflenet_forward.8} parent=43 // pred_region
        %p1744 = scmp.lt.s32.totalorder %s16, 1
        %s1745 = scalar_select %p1744, %s16, 1
        %s1746 = smul.addr %s1745, 8
        %s1747 = smul.addr %s1746, 4
        %s1748 = scalar_lea.vmem %s4, %s1747
      $region48: #{shufflenet_forward.8} parent=43 // pred_fallthru
        _
    $region44: #{shufflenet_forward.8} parent=5 // pred_fallthru
      _
  $region6: #{shufflenet_forward.8} parent=0 // loop_footer
    %s14 = sadd.s32 1, %s10
  $region7: #{shufflenet_forward.8} parent=0 // loop_footer_branch
    %9 = sbr.rel target = $region3
  $region8: #{shufflenet_forward.8} parent=0 // loop_exit
    _

// kernel: shufflenet_forward.12
$region0: #{shufflenet_forward.12}
  #allocation0 [shape = 'u32[]', space=smem, size = 0x4, offset = 0x4, fixed_abs, tag = 'smem constant byte address 0x4 - core index']
  #allocation1 [shape = 'u32[144,128]{1,0:T(1,128)}', space=vmem, size = 0x12000, scoped, tag = 'internal scratch']
  %s0 = inlined_call_operand.vmem [shape: bf16[2,4,32], index: 0, kind: input, shape index: {}]
  %s1 = inlined_call_operand.vmem [shape: bf16[32,8], index: 1, kind: input, shape index: {}]
  %s2 = inlined_call_operand.vmem [shape: f32[1,8], index: 2, kind: input, shape index: {}]
  %s3 = inlined_call_operand.vmem [shape: bf16[9,4,4], index: 3, kind: input, shape index: {}]
  %s4 = inlined_call_operand.vmem [shape: f32[9,1,8], index: 4, kind: input, shape index: {}]
  %s5 = inlined_call_operand.vmem [shape: f32[1,8], index: 5, kind: input, shape index: {}]
  %s6 = inlined_call_operand.vmem [shape: bf16[8,32], index: 6, kind: input, shape index: {}]
  %s7 = inlined_call_operand.vmem [shape: f32[1,32], index: 7, kind: input, shape index: {}]
  %s8 = inlined_call_operand.vmem [shape: bf16[2,4,32], index: 8, kind: output, shape index: {}]
  %s9 = sld [smem:[#allocation0]]
  $region65: #{shufflenet_forward.12} parent=0
    _
  %s11 = ssub.s32 1, %s9
  %s12 = scalar_select 0, %s11, %s9
  loop: start=0, step=1, limit=4
  $region2: #{shufflenet_forward.12} parent=0 // loop_pre_header
    _
  $region3: #{shufflenet_forward.12} parent=0 // loop_header
    %s14 = sphi 0, %s18
    %p15 = scmp.ge.s32.totalorder %s14, 4
    %s24 = sphi 0, %s26
    %s27 = sphi 0, %s24
    %s28 = sphi 0, %s27
    %s44 = sphi 0, %s28
    %s48 = sphi 0, %s48
    %s50 = sphi 0, %s48
    %s51 = sphi 0, %s50
    %s65 = sphi 0, %s51
    %s69 = sphi 0, %s69
    %s71 = sphi 0, %s69
    %s72 = sphi 0, %s71
    %s86 = sphi 0, %s72
    %s90 = sphi 0, %s90
    %s92 = sphi 0, %s90
    %s93 = sphi 0, %s92
    %s107 = sphi 0, %s93
    %s111 = sphi 0, %s111
    %s113 = sphi 0, %s111
    %s114 = sphi 0, %s113
    %s128 = sphi 0, %s114
    %s132 = sphi 0, %s132
    %s134 = sphi 0, %s132
    %s135 = sphi 0, %s134
    %s149 = sphi 0, %s135
    %s153 = sphi 0, %s153
    %s155 = sphi 0, %s153
    %s156 = sphi 0, %s155
    %s170 = sphi 0, %s156
    %s174 = sphi 0, %s174
    %s176 = sphi 0, %s174
    %s177 = sphi 0, %s176
    %s191 = sphi 0, %s177
    %s197 = sphi 0, %s199
    %s200 = sphi 0, %s197
    %s201 = sphi 0, %s200
    %s217 = sphi 0, %s201
  $region4: #{shufflenet_forward.12} parent=0 // loop_header_branch
    %17 = sbr.rel (%p15) target = $region8
  $region5: #{shufflenet_forward.12} parent=0 // loop_body
    %s19 = ssub.s32 %s14, 1
    %s20 = ssub.s32 %s14, 2
    %s21 = sadd.s32 %s14, 1
    %s22 = ssub.s32 %s14, %s21
    %p23 = scmp.eq.s32.totalorder %s22, 0
    %s25 = sadd.s32 %s24, 1
    %s26 = scalar_select %p23, %s24, %s25
    %p29 = pneg %p23
    %p30 = scmp.eq.s32.totalorder %s14, 1
    %p31 = por %p29, %p30
    %p32 = scmp.ne.s32.totalorder %s24, %s27
    %p33 = scmp.eq.s32.totalorder %s14, 0
    %p34 = por %p32, %p33
    %p35 = scmp.ne.s32.totalorder %s24, %s27
    %p36 = scmp.eq.s32.totalorder %s19, 1
    %p37 = por %p35, %p36
    %p38 = scmp.ne.s32.totalorder %s27, %s28
    %p39 = scmp.eq.s32.totalorder %s19, 0
    %p40 = por %p38, %p39
    %p41 = scmp.ne.s32.totalorder %s27, %s28
    %p42 = scmp.eq.s32.totalorder %s20, 1
    %p43 = por %p41, %p42
    %p45 = scmp.ne.s32.totalorder %s28, %s44
    %p46 = scmp.eq.s32.totalorder %s20, 0
    %p47 = por %p45, %p46
    %s49 = sadd.s32 %s48, 1
    %p52 = scmp.eq.s32.totalorder %s14, 1
    %p53 = scmp.ne.s32.totalorder %s48, %s50
    %p54 = scmp.eq.s32.totalorder %s14, 0
    %p55 = por %p53, %p54
    %p56 = scmp.ne.s32.totalorder %s48, %s50
    %p57 = scmp.eq.s32.totalorder %s19, 1
    %p58 = por %p56, %p57
    %p59 = scmp.ne.s32.totalorder %s50, %s51
    %p60 = scmp.eq.s32.totalorder %s19, 0
    %p61 = por %p59, %p60
    %p62 = scmp.ne.s32.totalorder %s50, %s51
    %p63 = scmp.eq.s32.totalorder %s20, 1
    %p64 = por %p62, %p63
    %p66 = scmp.ne.s32.totalorder %s51, %s65
    %p67 = scmp.eq.s32.totalorder %s20, 0
    %p68 = por %p66, %p67
    %s70 = sadd.s32 %s69, 1
    %p73 = scmp.eq.s32.totalorder %s14, 1
    %p74 = scmp.ne.s32.totalorder %s69, %s71
    %p75 = scmp.eq.s32.totalorder %s14, 0
    %p76 = por %p74, %p75
    %p77 = scmp.ne.s32.totalorder %s69, %s71
    %p78 = scmp.eq.s32.totalorder %s19, 1
    %p79 = por %p77, %p78
    %p80 = scmp.ne.s32.totalorder %s71, %s72
    %p81 = scmp.eq.s32.totalorder %s19, 0
    %p82 = por %p80, %p81
    %p83 = scmp.ne.s32.totalorder %s71, %s72
    %p84 = scmp.eq.s32.totalorder %s20, 1
    %p85 = por %p83, %p84
    %p87 = scmp.ne.s32.totalorder %s72, %s86
    %p88 = scmp.eq.s32.totalorder %s20, 0
    %p89 = por %p87, %p88
    %s91 = sadd.s32 %s90, 1
    %p94 = scmp.eq.s32.totalorder %s14, 1
    %p95 = scmp.ne.s32.totalorder %s90, %s92
    %p96 = scmp.eq.s32.totalorder %s14, 0
    %p97 = por %p95, %p96
    %p98 = scmp.ne.s32.totalorder %s90, %s92
    %p99 = scmp.eq.s32.totalorder %s19, 1
    %p100 = por %p98, %p99
    %p101 = scmp.ne.s32.totalorder %s92, %s93
    %p102 = scmp.eq.s32.totalorder %s19, 0
    %p103 = por %p101, %p102
    %p104 = scmp.ne.s32.totalorder %s92, %s93
    %p105 = scmp.eq.s32.totalorder %s20, 1
    %p106 = por %p104, %p105
    %p108 = scmp.ne.s32.totalorder %s93, %s107
    %p109 = scmp.eq.s32.totalorder %s20, 0
    %p110 = por %p108, %p109
    %s112 = sadd.s32 %s111, 1
    %p115 = scmp.eq.s32.totalorder %s14, 1
    %p116 = scmp.ne.s32.totalorder %s111, %s113
    %p117 = scmp.eq.s32.totalorder %s14, 0
    %p118 = por %p116, %p117
    %p119 = scmp.ne.s32.totalorder %s111, %s113
    %p120 = scmp.eq.s32.totalorder %s19, 1
    %p121 = por %p119, %p120
    %p122 = scmp.ne.s32.totalorder %s113, %s114
    %p123 = scmp.eq.s32.totalorder %s19, 0
    %p124 = por %p122, %p123
    %p125 = scmp.ne.s32.totalorder %s113, %s114
    %p126 = scmp.eq.s32.totalorder %s20, 1
    %p127 = por %p125, %p126
    %p129 = scmp.ne.s32.totalorder %s114, %s128
    %p130 = scmp.eq.s32.totalorder %s20, 0
    %p131 = por %p129, %p130
    %s133 = sadd.s32 %s132, 1
    %p136 = scmp.eq.s32.totalorder %s14, 1
    %p137 = scmp.ne.s32.totalorder %s132, %s134
    %p138 = scmp.eq.s32.totalorder %s14, 0
    %p139 = por %p137, %p138
    %p140 = scmp.ne.s32.totalorder %s132, %s134
    %p141 = scmp.eq.s32.totalorder %s19, 1
    %p142 = por %p140, %p141
    %p143 = scmp.ne.s32.totalorder %s134, %s135
    %p144 = scmp.eq.s32.totalorder %s19, 0
    %p145 = por %p143, %p144
    %p146 = scmp.ne.s32.totalorder %s134, %s135
    %p147 = scmp.eq.s32.totalorder %s20, 1
    %p148 = por %p146, %p147
    %p150 = scmp.ne.s32.totalorder %s135, %s149
    %p151 = scmp.eq.s32.totalorder %s20, 0
    %p152 = por %p150, %p151
    %s154 = sadd.s32 %s153, 1
    %p157 = scmp.eq.s32.totalorder %s14, 1
    %p158 = scmp.ne.s32.totalorder %s153, %s155
    %p159 = scmp.eq.s32.totalorder %s14, 0
    %p160 = por %p158, %p159
    %p161 = scmp.ne.s32.totalorder %s153, %s155
    %p162 = scmp.eq.s32.totalorder %s19, 1
    %p163 = por %p161, %p162
    %p164 = scmp.ne.s32.totalorder %s155, %s156
    %p165 = scmp.eq.s32.totalorder %s19, 0
    %p166 = por %p164, %p165
    %p167 = scmp.ne.s32.totalorder %s155, %s156
    %p168 = scmp.eq.s32.totalorder %s20, 1
    %p169 = por %p167, %p168
    %p171 = scmp.ne.s32.totalorder %s156, %s170
    %p172 = scmp.eq.s32.totalorder %s20, 0
    %p173 = por %p171, %p172
    %s175 = sadd.s32 %s174, 1
    %p178 = scmp.eq.s32.totalorder %s14, 1
    %p179 = scmp.ne.s32.totalorder %s174, %s176
    %p180 = scmp.eq.s32.totalorder %s14, 0
    %p181 = por %p179, %p180
    %p182 = scmp.ne.s32.totalorder %s174, %s176
    %p183 = scmp.eq.s32.totalorder %s19, 1
    %p184 = por %p182, %p183
    %p185 = scmp.ne.s32.totalorder %s176, %s177
    %p186 = scmp.eq.s32.totalorder %s19, 0
    %p187 = por %p185, %p186
    %p188 = scmp.ne.s32.totalorder %s176, %s177
    %p189 = scmp.eq.s32.totalorder %s20, 1
    %p190 = por %p188, %p189
    %p192 = scmp.ne.s32.totalorder %s177, %s191
    %p193 = scmp.eq.s32.totalorder %s20, 0
    %p194 = por %p192, %p193
    %s195 = ssub.s32 %s14, %s21
    %p196 = scmp.eq.s32.totalorder %s195, 0
    %s198 = sadd.s32 %s197, 1
    %s199 = scalar_select %p196, %s197, %s198
    %p202 = pneg %p196
    %p203 = scmp.eq.s32.totalorder %s14, 1
    %p204 = por %p202, %p203
    %p205 = scmp.ne.s32.totalorder %s197, %s200
    %p206 = scmp.eq.s32.totalorder %s14, 0
    %p207 = por %p205, %p206
    %p208 = scmp.ne.s32.totalorder %s197, %s200
    %p209 = scmp.eq.s32.totalorder %s19, 1
    %p210 = por %p208, %p209
    %p211 = scmp.ne.s32.totalorder %s200, %s201
    %p212 = scmp.eq.s32.totalorder %s19, 0
    %p213 = por %p211, %p212
    %p214 = scmp.ne.s32.totalorder %s200, %s201
    %p215 = scmp.eq.s32.totalorder %s20, 1
    %p216 = por %p214, %p215
    %p218 = scmp.ne.s32.totalorder %s201, %s217
    %p219 = scmp.eq.s32.totalorder %s20, 0
    %p220 = por %p218, %p219
    %p221 = scmp.le.s32.totalorder 1, %s14
    %p222 = scmp.lt.s32.totalorder %s14, 3
    %p223 = pnand %p221, %p222
    %p224 = pneg %p223
    // Predicated region
    $region9: #{shufflenet_forward.12} parent=5 // pred_check
      _
    $region10: #{shufflenet_forward.12} parent=5 // pred_check_branch
      %226 = sbr.rel (%p223) target = $region12
    $region11: #{shufflenet_forward.12} parent=5 // pred_region
      %s227 = ssub.s32 %s14, 1
      // Predicated region
      $region13: #{shufflenet_forward.12} parent=11 // pred_check
        %p228 = pneg %p61
      $region14: #{shufflenet_forward.12} parent=11 // pred_check_branch
        %230 = sbr.rel (%p228) target = $region16
      $region15: #{shufflenet_forward.12} parent=11 // pred_region
        _
      $region16: #{shufflenet_forward.12} parent=11 // pred_fallthru
        _
      // Predicated region
      $region17: #{shufflenet_forward.12} parent=11 // pred_check
        %p231 = pneg %p82
      $region18: #{shufflenet_forward.12} parent=11 // pred_check_branch
        %233 = sbr.rel (%p231) target = $region20
      $region19: #{shufflenet_forward.12} parent=11 // pred_region
        _
      $region20: #{shufflenet_forward.12} parent=11 // pred_fallthru
        _
      // Predicated region
      $region21: #{shufflenet_forward.12} parent=11 // pred_check
        %p234 = pneg %p103
      $region22: #{shufflenet_forward.12} parent=11 // pred_check_branch
        %236 = sbr.rel (%p234) target = $region24
      $region23: #{shufflenet_forward.12} parent=11 // pred_region
        _
      $region24: #{shufflenet_forward.12} parent=11 // pred_fallthru
        _
      // Predicated region
      $region25: #{shufflenet_forward.12} parent=11 // pred_check
        %p237 = pneg %p124
      $region26: #{shufflenet_forward.12} parent=11 // pred_check_branch
        %239 = sbr.rel (%p237) target = $region28
      $region27: #{shufflenet_forward.12} parent=11 // pred_region
        _
      $region28: #{shufflenet_forward.12} parent=11 // pred_fallthru
        _
      // Predicated region
      $region29: #{shufflenet_forward.12} parent=11 // pred_check
        %p240 = pneg %p145
      $region30: #{shufflenet_forward.12} parent=11 // pred_check_branch
        %242 = sbr.rel (%p240) target = $region32
      $region31: #{shufflenet_forward.12} parent=11 // pred_region
        _
      $region32: #{shufflenet_forward.12} parent=11 // pred_fallthru
        _
      // Predicated region
      $region33: #{shufflenet_forward.12} parent=11 // pred_check
        %p243 = pneg %p166
      $region34: #{shufflenet_forward.12} parent=11 // pred_check_branch
        %245 = sbr.rel (%p243) target = $region36
      $region35: #{shufflenet_forward.12} parent=11 // pred_region
        _
      $region36: #{shufflenet_forward.12} parent=11 // pred_fallthru
        _
      // Predicated region
      $region37: #{shufflenet_forward.12} parent=11 // pred_check
        %p246 = pneg %p187
      $region38: #{shufflenet_forward.12} parent=11 // pred_check_branch
        %248 = sbr.rel (%p246) target = $region40
      $region39: #{shufflenet_forward.12} parent=11 // pred_region
        _
      $region40: #{shufflenet_forward.12} parent=11 // pred_fallthru
        _
    $region12: #{shufflenet_forward.12} parent=5 // pred_fallthru
      _
    %p249 = scmp.lt.s32.totalorder %s14, 2
    // Predicated region
    $region41: #{shufflenet_forward.12} parent=5 // pred_check
      %p250 = pneg %p249
    $region42: #{shufflenet_forward.12} parent=5 // pred_check_branch
      %252 = sbr.rel (%p250) target = $region44
    $region43: #{shufflenet_forward.12} parent=5 // pred_region
      // Predicated region
      $region45: #{shufflenet_forward.12} parent=43 // pred_check
        %p253 = pneg %p34
      $region46: #{shufflenet_forward.12} parent=43 // pred_check_branch
        %255 = sbr.rel (%p253) target = $region48
      $region47: #{shufflenet_forward.12} parent=43 // pred_region
        %p256 = scmp.lt.s32.totalorder %s14, 1
        %s257 = scalar_select %p256, %s14, 1
        %s258 = smul.addr %s257, 2
        %s259 = scalar_lea.vmem %s0, %s258
      $region48: #{shufflenet_forward.12} parent=43 // pred_fallthru
        _
    $region44: #{shufflenet_forward.12} parent=5 // pred_fallthru
      _
    %p260 = scmp.le.s32.totalorder 1, %s14
    %p261 = scmp.lt.s32.totalorder %s14, 3
    %p262 = pnand %p260, %p261
    %p263 = pneg %p262
    // Predicated region
    $region49: #{shufflenet_forward.12} parent=5 // pred_check
      _
    $region50: #{shufflenet_forward.12} parent=5 // pred_check_branch
      %265 = sbr.rel (%p262) target = $region52
    $region51: #{shufflenet_forward.12} parent=5 // pred_region
      %s266 = ssub.s32 %s14, 1
      %p267 = scmp.lt.s32.totalorder %s19, 1
      %s268 = scalar_select %p267, %s19, 1
      %s269 = smul.addr %s268, 2
      %s270 = scalar_lea.vmem %s0, %s269
      %p271 = pneg %p40
      %p272 = pneg %p37
      %p273 = pneg %p61
      %p274 = pneg %p58
      %p275 = pneg %p82
      %p276 = pneg %p79
      %p277 = pneg %p103
      %p278 = pneg %p100
      %p279 = pneg %p124
      %p280 = pneg %p121
      %p281 = pneg %p145
      %p282 = pneg %p142
      %p283 = pneg %p166
      %p284 = pneg %p163
      %p285 = pneg %p187
      %p286 = pneg %p184
      %p287 = pneg %p213
      %p288 = pneg %p210
      %p289 = scmp.lt.s32.totalorder %s19, 1
      %s290 = scalar_select %p289, %s19, 1
      %s291 = smul.addr %s290, 2
      %s292 = scalar_lea.vmem %s8, %s291
      %p293 = scmp.lt.s32.totalorder %s19, 1
      %s294 = scalar_select %p293, %s19, 1
      %s295 = smul.addr %s294, 2
      %s296 = scalar_lea.vmem %s0, %s295
      %p297 = scmp.lt.s32.totalorder %s19, 1
      %s298 = scalar_select %p297, %s19, 1
      %s299 = smul.addr %s298, 2
      %s300 = scalar_lea.vmem %s8, %s299
      %v302 = vld [vmem:[%s296] sm:$0x3]
      %v303 = vld [vmem:[%s1] sm:$0xf]
      %v304 = vld [vmem:[%s1 + $0x4] sm:$0xf]
      %v305 = vld [vmem:[%s1 + $0x8] sm:$0xf]
      %v306 = vld [vmem:[%s1 + $0xc] sm:$0xf]
      %v307 = vld [vmem:[%s2] sm:$0x1]
      %v309 = vlaneseq
      %v310 = vshrl.u32 %v309, 7
      %v311 = vsub.s32 0, %v310
      %v312 = vrot.slane %v307, %v311
      %v318 = vunpack.c.l.b16 %v303
      %v319 = vunpack.c.l.b16 %v304
      %v320 = vunpack.c.l.b16 %v305
      %v321 = vunpack.c.l.b16 %v306
      %v322 = vpack.c.b16 %v319, %v318
      %v323 = vpack.c.b16 %v321, %v320
      %vm326 = vcmask 261120
      %v328 = vsel %vm326, %v302, 0
      %330 = vmatprep.subr.bf16.mxu0 0
      %331 = vmatpush1.bf16.msra.mxu0 %v322
      %332 = vmatprep.subr.bf16.mxu0 0
      %333 = vmatpush1.bf16.msra.mxu0 %v323
      %334 = vmatprep.subr.bf16.mxu0 0
      %335 = vmatpush1.bf16.msra.mxu0 0
      %336 = vmatprep.subr.bf16.mxu0 0
      %337 = vmatpush1.bf16.msra.mxu0 0
      %338 = vmatprep.subr.bf16.mxu0 0
      %339 = vmatpush1.bf16.msra.mxu0 0
      %340 = vmatprep.subr.bf16.mxu0 0
      %341 = vmatpush1.bf16.msra.mxu0 0
      %342 = vmatprep.subr.bf16.mxu0 0
      %343 = vmatpush1.bf16.msra.mxu0 0
      %344 = vmatprep.subr.bf16.mxu0 0
      %345 = vmatpush1.bf16.msra.mxu0 0
      %346 = vmatprep.subr.bf16.mxu0 0
      %347 = vmatpush1.bf16.msra.mxu0 0
      %348 = vmatprep.subr.bf16.mxu0 0
      %349 = vmatpush1.bf16.msra.mxu0 0
      %350 = vmatprep.subr.bf16.mxu0 0
      %351 = vmatpush1.bf16.msra.mxu0 0
      %352 = vmatprep.subr.bf16.mxu0 0
      %353 = vmatpush1.bf16.msra.mxu0 0
      %354 = vmatprep.subr.bf16.mxu0 0
      %355 = vmatpush1.bf16.msra.mxu0 0
      %356 = vmatprep.subr.bf16.mxu0 0
      %357 = vmatpush1.bf16.msra.mxu0 0
      %358 = vmatprep.subr.bf16.mxu0 0
      %359 = vmatpush1.bf16.msra.mxu0 0
      %360 = vmatprep.subr.bf16.mxu0 0
      %361 = vmatpush1.bf16.msra.mxu0 0
      %362 = vmatprep.mubr.bf16.mxu0 0
      %363 = vmatmul.mubr.bf16.gmra.mrb[0].mxu0 %v328
      %v364 = vpop.f32.mrb[0].mxu0
      %v365 = vadd.f32 %v312, %v364
      %v366 = vpop.f32.mrb[0].mxu0
      %v367 = vpop.f32.mrb[0].mxu0
      %v368 = vpop.f32.mrb[0].mxu0
      %369 = vdwg.mxu0
      %v370 = vmax.f32 %v365, 0.0
      %v371 = vpack.c.bf16 %v370, %v370
      %v372 = vld [vmem:[%s3] sm:$0x3]
      %vm373 = vcmask 31744
      %v375 = vsel %vm373, %v372, 0
      %vm377 = vcmask 1041408
      %v379 = vsel %vm377, %v371, 0
      %381 = vmatprep.subr.bf16.mxu0 0
      %382 = vmatpush1.bf16.msra.mxu0 %v379
      %383 = vmatprep.subr.bf16.mxu0 0
      %384 = vmatpush1.bf16.msra.mxu0 0
      %385 = vmatprep.subr.bf16.mxu0 0
      %386 = vmatpush1.bf16.msra.mxu0 0
      %387 = vmatprep.subr.bf16.mxu0 0
      %388 = vmatpush1.bf16.msra.mxu0 0
      %389 = vmatprep.subr.bf16.mxu0 0
      %390 = vmatpush1.bf16.msra.mxu0 0
      %391 = vmatprep.subr.bf16.mxu0 0
      %392 = vmatpush1.bf16.msra.mxu0 0
      %393 = vmatprep.subr.bf16.mxu0 0
      %394 = vmatpush1.bf16.msra.mxu0 0
      %395 = vmatprep.subr.bf16.mxu0 0
      %396 = vmatpush1.bf16.msra.mxu0 0
      %397 = vmatprep.subr.bf16.mxu0 0
      %398 = vmatpush1.bf16.msra.mxu0 0
      %399 = vmatprep.subr.bf16.mxu0 0
      %400 = vmatpush1.bf16.msra.mxu0 0
      %401 = vmatprep.subr.bf16.mxu0 0
      %402 = vmatpush1.bf16.msra.mxu0 0
      %403 = vmatprep.subr.bf16.mxu0 0
      %404 = vmatpush1.bf16.msra.mxu0 0
      %405 = vmatprep.subr.bf16.mxu0 0
      %406 = vmatpush1.bf16.msra.mxu0 0
      %407 = vmatprep.subr.bf16.mxu0 0
      %408 = vmatpush1.bf16.msra.mxu0 0
      %409 = vmatprep.subr.bf16.mxu0 0
      %410 = vmatpush1.bf16.msra.mxu0 0
      %411 = vmatprep.subr.bf16.mxu0 0
      %412 = vmatpush1.bf16.msra.mxu0 0
      %413 = vmatprep.mubr.bf16.mxu0 0
      %414 = vmatmul.mubr.bf16.gmra.mrb[0].mxu0 %v375
      %v415 = vpop.f32.mrb[0].mxu0
      %v416 = vadd.f32 0.0, %v415
      %v417 = vpop.f32.mrb[0].mxu0
      %v418 = vpop.f32.mrb[0].mxu0
      %v419 = vpop.f32.mrb[0].mxu0
      %420 = vdwg.mxu0
      %v421 = vld [vmem:[%s4] sm:$0x1]
      %v423 = vlaneseq
      %v424 = vshrl.u32 %v423, 7
      %v425 = vsub.s32 0, %v424
      %v426 = vrot.slane %v421, %v425
      %v428 = vmul.f32 %v416, %v426
      %s429 = scalar_lea.vmem %s3, 2
      %v430 = vld [vmem:[%s429] sm:$0x3]
      %v432 = vsel %vm373, %v430, 0
      %434 = vmatprep.subr.bf16.mxu0 0
      %435 = vmatpush1.bf16.msra.mxu0 %v379
      %436 = vmatprep.subr.bf16.mxu0 0
      %437 = vmatpush1.bf16.msra.mxu0 0
      %438 = vmatprep.subr.bf16.mxu0 0
      %439 = vmatpush1.bf16.msra.mxu0 0
      %440 = vmatprep.subr.bf16.mxu0 0
      %441 = vmatpush1.bf16.msra.mxu0 0
      %442 = vmatprep.subr.bf16.mxu0 0
      %443 = vmatpush1.bf16.msra.mxu0 0
      %444 = vmatprep.subr.bf16.mxu0 0
      %445 = vmatpush1.bf16.msra.mxu0 0
      %446 = vmatprep.subr.bf16.mxu0 0
      %447 = vmatpush1.bf16.msra.mxu0 0
      %448 = vmatprep.subr.bf16.mxu0 0
      %449 = vmatpush1.bf16.msra.mxu0 0
      %450 = vmatprep.subr.bf16.mxu0 0
      %451 = vmatpush1.bf16.msra.mxu0 0
      %452 = vmatprep.subr.bf16.mxu0 0
      %453 = vmatpush1.bf16.msra.mxu0 0
      %454 = vmatprep.subr.bf16.mxu0 0
      %455 = vmatpush1.bf16.msra.mxu0 0
      %456 = vmatprep.subr.bf16.mxu0 0
      %457 = vmatpush1.bf16.msra.mxu0 0
      %458 = vmatprep.subr.bf16.mxu0 0
      %459 = vmatpush1.bf16.msra.mxu0 0
      %460 = vmatprep.subr.bf16.mxu0 0
      %461 = vmatpush1.bf16.msra.mxu0 0
      %462 = vmatprep.subr.bf16.mxu0 0
      %463 = vmatpush1.bf16.msra.mxu0 0
      %464 = vmatprep.subr.bf16.mxu0 0
      %465 = vmatpush1.bf16.msra.mxu0 0
      %466 = vmatprep.mubr.bf16.mxu0 0
      %467 = vmatmul.mubr.bf16.gmra.mrb[0].mxu0 %v432
      %v468 = vpop.f32.mrb[0].mxu0
      %v469 = vadd.f32 0.0, %v468
      %v470 = vpop.f32.mrb[0].mxu0
      %v471 = vpop.f32.mrb[0].mxu0
      %v472 = vpop.f32.mrb[0].mxu0
      %473 = vdwg.mxu0
      %s474 = scalar_lea.vmem %s4, 1
      %v475 = vld [vmem:[%s474] sm:$0x1]
      %v477 = vlaneseq
      %v478 = vshrl.u32 %v477, 7
      %v479 = vsub.s32 0, %v478
      %v480 = vrot.slane %v475, %v479
      %v482 = vmul.f32 %v469, %v480
      %v483 = vadd.f32 %v428, %v482
      %s484 = scalar_lea.vmem %s3, 4
      %v485 = vld [vmem:[%s484] sm:$0x3]
      %v487 = vsel %vm373, %v485, 0
      %489 = vmatprep.subr.bf16.mxu0 0
      %490 = vmatpush1.bf16.msra.mxu0 %v379
      %491 = vmatprep.subr.bf16.mxu0 0
      %492 = vmatpush1.bf16.msra.mxu0 0
      %493 = vmatprep.subr.bf16.mxu0 0
      %494 = vmatpush1.bf16.msra.mxu0 0
      %495 = vmatprep.subr.bf16.mxu0 0
      %496 = vmatpush1.bf16.msra.mxu0 0
      %497 = vmatprep.subr.bf16.mxu0 0
      %498 = vmatpush1.bf16.msra.mxu0 0
      %499 = vmatprep.subr.bf16.mxu0 0
      %500 = vmatpush1.bf16.msra.mxu0 0
      %501 = vmatprep.subr.bf16.mxu0 0
      %502 = vmatpush1.bf16.msra.mxu0 0
      %503 = vmatprep.subr.bf16.mxu0 0
      %504 = vmatpush1.bf16.msra.mxu0 0
      %505 = vmatprep.subr.bf16.mxu0 0
      %506 = vmatpush1.bf16.msra.mxu0 0
      %507 = vmatprep.subr.bf16.mxu0 0
      %508 = vmatpush1.bf16.msra.mxu0 0
      %509 = vmatprep.subr.bf16.mxu0 0
      %510 = vmatpush1.bf16.msra.mxu0 0
      %511 = vmatprep.subr.bf16.mxu0 0
      %512 = vmatpush1.bf16.msra.mxu0 0
      %513 = vmatprep.subr.bf16.mxu0 0
      %514 = vmatpush1.bf16.msra.mxu0 0
      %515 = vmatprep.subr.bf16.mxu0 0
      %516 = vmatpush1.bf16.msra.mxu0 0
      %517 = vmatprep.subr.bf16.mxu0 0
      %518 = vmatpush1.bf16.msra.mxu0 0
      %519 = vmatprep.subr.bf16.mxu0 0
      %520 = vmatpush1.bf16.msra.mxu0 0
      %521 = vmatprep.mubr.bf16.mxu0 0
      %522 = vmatmul.mubr.bf16.gmra.mrb[0].mxu0 %v487
      %v523 = vpop.f32.mrb[0].mxu0
      %v524 = vadd.f32 0.0, %v523
      %v525 = vpop.f32.mrb[0].mxu0
      %v526 = vpop.f32.mrb[0].mxu0
      %v527 = vpop.f32.mrb[0].mxu0
      %528 = vdwg.mxu0
      %s529 = scalar_lea.vmem %s4, 2
      %v530 = vld [vmem:[%s529] sm:$0x1]
      %v532 = vlaneseq
      %v533 = vshrl.u32 %v532, 7
      %v534 = vsub.s32 0, %v533
      %v535 = vrot.slane %v530, %v534
      %v537 = vmul.f32 %v524, %v535
      %v538 = vadd.f32 %v483, %v537
      %s539 = scalar_lea.vmem %s3, 6
      %v540 = vld [vmem:[%s539] sm:$0x3]
      %v542 = vsel %vm373, %v540, 0
      %544 = vmatprep.subr.bf16.mxu0 0
      %545 = vmatpush1.bf16.msra.mxu0 %v379
      %546 = vmatprep.subr.bf16.mxu0 0
      %547 = vmatpush1.bf16.msra.mxu0 0
      %548 = vmatprep.subr.bf16.mxu0 0
      %549 = vmatpush1.bf16.msra.mxu0 0
      %550 = vmatprep.subr.bf16.mxu0 0
      %551 = vmatpush1.bf16.msra.mxu0 0
      %552 = vmatprep.subr.bf16.mxu0 0
      %553 = vmatpush1.bf16.msra.mxu0 0
      %554 = vmatprep.subr.bf16.mxu0 0
      %555 = vmatpush1.bf16.msra.mxu0 0
      %556 = vmatprep.subr.bf16.mxu0 0
      %557 = vmatpush1.bf16.msra.mxu0 0
      %558 = vmatprep.subr.bf16.mxu0 0
      %559 = vmatpush1.bf16.msra.mxu0 0
      %560 = vmatprep.subr.bf16.mxu0 0
      %561 = vmatpush1.bf16.msra.mxu0 0
      %562 = vmatprep.subr.bf16.mxu0 0
      %563 = vmatpush1.bf16.msra.mxu0 0
      %564 = vmatprep.subr.bf16.mxu0 0
      %565 = vmatpush1.bf16.msra.mxu0 0
      %566 = vmatprep.subr.bf16.mxu0 0
      %567 = vmatpush1.bf16.msra.mxu0 0
      %568 = vmatprep.subr.bf16.mxu0 0
      %569 = vmatpush1.bf16.msra.mxu0 0
      %570 = vmatprep.subr.bf16.mxu0 0
      %571 = vmatpush1.bf16.msra.mxu0 0
      %572 = vmatprep.subr.bf16.mxu0 0
      %573 = vmatpush1.bf16.msra.mxu0 0
      %574 = vmatprep.subr.bf16.mxu0 0
      %575 = vmatpush1.bf16.msra.mxu0 0
      %576 = vmatprep.mubr.bf16.mxu0 0
      %577 = vmatmul.mubr.bf16.gmra.mrb[0].mxu0 %v542
      %v578 = vpop.f32.mrb[0].mxu0
      %v579 = vadd.f32 0.0, %v578
      %v580 = vpop.f32.mrb[0].mxu0
      %v581 = vpop.f32.mrb[0].mxu0
      %v582 = vpop.f32.mrb[0].mxu0
      %583 = vdwg.mxu0
      %s584 = scalar_lea.vmem %s4, 3
      %v585 = vld [vmem:[%s584] sm:$0x1]
      %v587 = vlaneseq
      %v588 = vshrl.u32 %v587, 7
      %v589 = vsub.s32 0, %v588
      %v590 = vrot.slane %v585, %v589
      %v592 = vmul.f32 %v579, %v590
      %v593 = vadd.f32 %v538, %v592
      %s594 = scalar_lea.vmem %s3, 8
      %v595 = vld [vmem:[%s594] sm:$0x3]
      %v597 = vsel %vm373, %v595, 0
      %599 = vmatprep.subr.bf16.mxu0 0
      %600 = vmatpush1.bf16.msra.mxu0 %v379
      %601 = vmatprep.subr.bf16.mxu0 0
      %602 = vmatpush1.bf16.msra.mxu0 0
      %603 = vmatprep.subr.bf16.mxu0 0
      %604 = vmatpush1.bf16.msra.mxu0 0
      %605 = vmatprep.subr.bf16.mxu0 0
      %606 = vmatpush1.bf16.msra.mxu0 0
      %607 = vmatprep.subr.bf16.mxu0 0
      %608 = vmatpush1.bf16.msra.mxu0 0
      %609 = vmatprep.subr.bf16.mxu0 0
      %610 = vmatpush1.bf16.msra.mxu0 0
      %611 = vmatprep.subr.bf16.mxu0 0
      %612 = vmatpush1.bf16.msra.mxu0 0
      %613 = vmatprep.subr.bf16.mxu0 0
      %614 = vmatpush1.bf16.msra.mxu0 0
      %615 = vmatprep.subr.bf16.mxu0 0
      %616 = vmatpush1.bf16.msra.mxu0 0
      %617 = vmatprep.subr.bf16.mxu0 0
      %618 = vmatpush1.bf16.msra.mxu0 0
      %619 = vmatprep.subr.bf16.mxu0 0
      %620 = vmatpush1.bf16.msra.mxu0 0
      %621 = vmatprep.subr.bf16.mxu0 0
      %622 = vmatpush1.bf16.msra.mxu0 0
      %623 = vmatprep.subr.bf16.mxu0 0
      %624 = vmatpush1.bf16.msra.mxu0 0
      %625 = vmatprep.subr.bf16.mxu0 0
      %626 = vmatpush1.bf16.msra.mxu0 0
      %627 = vmatprep.subr.bf16.mxu0 0
      %628 = vmatpush1.bf16.msra.mxu0 0
      %629 = vmatprep.subr.bf16.mxu0 0
      %630 = vmatpush1.bf16.msra.mxu0 0
      %631 = vmatprep.mubr.bf16.mxu0 0
      %632 = vmatmul.mubr.bf16.gmra.mrb[0].mxu0 %v597
      %v633 = vpop.f32.mrb[0].mxu0
      %v634 = vadd.f32 0.0, %v633
      %v635 = vpop.f32.mrb[0].mxu0
      %v636 = vpop.f32.mrb[0].mxu0
      %v637 = vpop.f32.mrb[0].mxu0
      %638 = vdwg.mxu0
      %s639 = scalar_lea.vmem %s4, 4
      %v640 = vld [vmem:[%s639] sm:$0x1]
      %v642 = vlaneseq
      %v643 = vshrl.u32 %v642, 7
      %v644 = vsub.s32 0, %v643
      %v645 = vrot.slane %v640, %v644
      %v647 = vmul.f32 %v634, %v645
      %v648 = vadd.f32 %v593, %v647
      %s649 = scalar_lea.vmem %s3, 10
      %v650 = vld [vmem:[%s649] sm:$0x3]
      %v652 = vsel %vm373, %v650, 0
      %654 = vmatprep.subr.bf16.mxu0 0
      %655 = vmatpush1.bf16.msra.mxu0 %v379
      %656 = vmatprep.subr.bf16.mxu0 0
      %657 = vmatpush1.bf16.msra.mxu0 0
      %658 = vmatprep.subr.bf16.mxu0 0
      %659 = vmatpush1.bf16.msra.mxu0 0
      %660 = vmatprep.subr.bf16.mxu0 0
      %661 = vmatpush1.bf16.msra.mxu0 0
      %662 = vmatprep.subr.bf16.mxu0 0
      %663 = vmatpush1.bf16.msra.mxu0 0
      %664 = vmatprep.subr.bf16.mxu0 0
      %665 = vmatpush1.bf16.msra.mxu0 0
      %666 = vmatprep.subr.bf16.mxu0 0
      %667 = vmatpush1.bf16.msra.mxu0 0
      %668 = vmatprep.subr.bf16.mxu0 0
      %669 = vmatpush1.bf16.msra.mxu0 0
      %670 = vmatprep.subr.bf16.mxu0 0
      %671 = vmatpush1.bf16.msra.mxu0 0
      %672 = vmatprep.subr.bf16.mxu0 0
      %673 = vmatpush1.bf16.msra.mxu0 0
      %674 = vmatprep.subr.bf16.mxu0 0
      %675 = vmatpush1.bf16.msra.mxu0 0
      %676 = vmatprep.subr.bf16.mxu0 0
      %677 = vmatpush1.bf16.msra.mxu0 0
      %678 = vmatprep.subr.bf16.mxu0 0
      %679 = vmatpush1.bf16.msra.mxu0 0
      %680 = vmatprep.subr.bf16.mxu0 0
      %681 = vmatpush1.bf16.msra.mxu0 0
      %682 = vmatprep.subr.bf16.mxu0 0
      %683 = vmatpush1.bf16.msra.mxu0 0
      %684 = vmatprep.subr.bf16.mxu0 0
      %685 = vmatpush1.bf16.msra.mxu0 0
      %686 = vmatprep.mubr.bf16.mxu0 0
      %687 = vmatmul.mubr.bf16.gmra.mrb[0].mxu0 %v652
      %v688 = vpop.f32.mrb[0].mxu0
      %v689 = vadd.f32 0.0, %v688
      %v690 = vpop.f32.mrb[0].mxu0
      %v691 = vpop.f32.mrb[0].mxu0
      %v692 = vpop.f32.mrb[0].mxu0
      %693 = vdwg.mxu0
      %s694 = scalar_lea.vmem %s4, 5
      %v695 = vld [vmem:[%s694] sm:$0x1]
      %v697 = vlaneseq
      %v698 = vshrl.u32 %v697, 7
      %v699 = vsub.s32 0, %v698
      %v700 = vrot.slane %v695, %v699
      %v702 = vmul.f32 %v689, %v700
      %v703 = vadd.f32 %v648, %v702
      %s704 = scalar_lea.vmem %s3, 12
      %v705 = vld [vmem:[%s704] sm:$0x3]
      %v707 = vsel %vm373, %v705, 0
      %709 = vmatprep.subr.bf16.mxu0 0
      %710 = vmatpush1.bf16.msra.mxu0 %v379
      %711 = vmatprep.subr.bf16.mxu0 0
      %712 = vmatpush1.bf16.msra.mxu0 0
      %713 = vmatprep.subr.bf16.mxu0 0
      %714 = vmatpush1.bf16.msra.mxu0 0
      %715 = vmatprep.subr.bf16.mxu0 0
      %716 = vmatpush1.bf16.msra.mxu0 0
      %717 = vmatprep.subr.bf16.mxu0 0
      %718 = vmatpush1.bf16.msra.mxu0 0
      %719 = vmatprep.subr.bf16.mxu0 0
      %720 = vmatpush1.bf16.msra.mxu0 0
      %721 = vmatprep.subr.bf16.mxu0 0
      %722 = vmatpush1.bf16.msra.mxu0 0
      %723 = vmatprep.subr.bf16.mxu0 0
      %724 = vmatpush1.bf16.msra.mxu0 0
      %725 = vmatprep.subr.bf16.mxu0 0
      %726 = vmatpush1.bf16.msra.mxu0 0
      %727 = vmatprep.subr.bf16.mxu0 0
      %728 = vmatpush1.bf16.msra.mxu0 0
      %729 = vmatprep.subr.bf16.mxu0 0
      %730 = vmatpush1.bf16.msra.mxu0 0
      %731 = vmatprep.subr.bf16.mxu0 0
      %732 = vmatpush1.bf16.msra.mxu0 0
      %733 = vmatprep.subr.bf16.mxu0 0
      %734 = vmatpush1.bf16.msra.mxu0 0
      %735 = vmatprep.subr.bf16.mxu0 0
      %736 = vmatpush1.bf16.msra.mxu0 0
      %737 = vmatprep.subr.bf16.mxu0 0
      %738 = vmatpush1.bf16.msra.mxu0 0
      %739 = vmatprep.subr.bf16.mxu0 0
      %740 = vmatpush1.bf16.msra.mxu0 0
      %741 = vmatprep.mubr.bf16.mxu0 0
      %742 = vmatmul.mubr.bf16.gmra.mrb[0].mxu0 %v707
      %v743 = vpop.f32.mrb[0].mxu0
      %v744 = vadd.f32 0.0, %v743
      %v745 = vpop.f32.mrb[0].mxu0
      %v746 = vpop.f32.mrb[0].mxu0
      %v747 = vpop.f32.mrb[0].mxu0
      %748 = vdwg.mxu0
      %s749 = scalar_lea.vmem %s4, 6
      %v750 = vld [vmem:[%s749] sm:$0x1]
      %v752 = vlaneseq
      %v753 = vshrl.u32 %v752, 7
      %v754 = vsub.s32 0, %v753
      %v755 = vrot.slane %v750, %v754
      %v757 = vmul.f32 %v744, %v755
      %v758 = vadd.f32 %v703, %v757
      %s759 = scalar_lea.vmem %s3, 14
      %v760 = vld [vmem:[%s759] sm:$0x3]
      %v762 = vsel %vm373, %v760, 0
      %764 = vmatprep.subr.bf16.mxu0 0
      %765 = vmatpush1.bf16.msra.mxu0 %v379
      %766 = vmatprep.subr.bf16.mxu0 0
      %767 = vmatpush1.bf16.msra.mxu0 0
      %768 = vmatprep.subr.bf16.mxu0 0
      %769 = vmatpush1.bf16.msra.mxu0 0
      %770 = vmatprep.subr.bf16.mxu0 0
      %771 = vmatpush1.bf16.msra.mxu0 0
      %772 = vmatprep.subr.bf16.mxu0 0
      %773 = vmatpush1.bf16.msra.mxu0 0
      %774 = vmatprep.subr.bf16.mxu0 0
      %775 = vmatpush1.bf16.msra.mxu0 0
      %776 = vmatprep.subr.bf16.mxu0 0
      %777 = vmatpush1.bf16.msra.mxu0 0
      %778 = vmatprep.subr.bf16.mxu0 0
      %779 = vmatpush1.bf16.msra.mxu0 0
      %780 = vmatprep.subr.bf16.mxu0 0
      %781 = vmatpush1.bf16.msra.mxu0 0
      %782 = vmatprep.subr.bf16.mxu0 0
      %783 = vmatpush1.bf16.msra.mxu0 0
      %784 = vmatprep.subr.bf16.mxu0 0
      %785 = vmatpush1.bf16.msra.mxu0 0
      %786 = vmatprep.subr.bf16.mxu0 0
      %787 = vmatpush1.bf16.msra.mxu0 0
      %788 = vmatprep.subr.bf16.mxu0 0
      %789 = vmatpush1.bf16.msra.mxu0 0
      %790 = vmatprep.subr.bf16.mxu0 0
      %791 = vmatpush1.bf16.msra.mxu0 0
      %792 = vmatprep.subr.bf16.mxu0 0
      %793 = vmatpush1.bf16.msra.mxu0 0
      %794 = vmatprep.subr.bf16.mxu0 0
      %795 = vmatpush1.bf16.msra.mxu0 0
      %796 = vmatprep.mubr.bf16.mxu0 0
      %797 = vmatmul.mubr.bf16.gmra.mrb[0].mxu0 %v762
      %v798 = vpop.f32.mrb[0].mxu0
      %v799 = vadd.f32 0.0, %v798
      %v800 = vpop.f32.mrb[0].mxu0
      %v801 = vpop.f32.mrb[0].mxu0
      %v802 = vpop.f32.mrb[0].mxu0
      %803 = vdwg.mxu0
      %s804 = scalar_lea.vmem %s4, 7
      %v805 = vld [vmem:[%s804] sm:$0x1]
      %v807 = vlaneseq
      %v808 = vshrl.u32 %v807, 7
      %v809 = vsub.s32 0, %v808
      %v810 = vrot.slane %v805, %v809
      %v812 = vmul.f32 %v799, %v810
      %v813 = vadd.f32 %v758, %v812
      %s814 = scalar_lea.vmem %s3, 16
      %v815 = vld [vmem:[%s814] sm:$0x3]
      %v817 = vsel %vm373, %v815, 0
      %819 = vmatprep.subr.bf16.mxu0 0
      %820 = vmatpush1.bf16.msra.mxu0 %v379
      %821 = vmatprep.subr.bf16.mxu0 0
      %822 = vmatpush1.bf16.msra.mxu0 0
      %823 = vmatprep.subr.bf16.mxu0 0
      %824 = vmatpush1.bf16.msra.mxu0 0
      %825 = vmatprep.subr.bf16.mxu0 0
      %826 = vmatpush1.bf16.msra.mxu0 0
      %827 = vmatprep.subr.bf16.mxu0 0
      %828 = vmatpush1.bf16.msra.mxu0 0
      %829 = vmatprep.subr.bf16.mxu0 0
      %830 = vmatpush1.bf16.msra.mxu0 0
      %831 = vmatprep.subr.bf16.mxu0 0
      %832 = vmatpush1.bf16.msra.mxu0 0
      %833 = vmatprep.subr.bf16.mxu0 0
      %834 = vmatpush1.bf16.msra.mxu0 0
      %835 = vmatprep.subr.bf16.mxu0 0
      %836 = vmatpush1.bf16.msra.mxu0 0
      %837 = vmatprep.subr.bf16.mxu0 0
      %838 = vmatpush1.bf16.msra.mxu0 0
      %839 = vmatprep.subr.bf16.mxu0 0
      %840 = vmatpush1.bf16.msra.mxu0 0
      %841 = vmatprep.subr.bf16.mxu0 0
      %842 = vmatpush1.bf16.msra.mxu0 0
      %843 = vmatprep.subr.bf16.mxu0 0
      %844 = vmatpush1.bf16.msra.mxu0 0
      %845 = vmatprep.subr.bf16.mxu0 0
      %846 = vmatpush1.bf16.msra.mxu0 0
      %847 = vmatprep.subr.bf16.mxu0 0
      %848 = vmatpush1.bf16.msra.mxu0 0
      %849 = vmatprep.subr.bf16.mxu0 0
      %850 = vmatpush1.bf16.msra.mxu0 0
      %851 = vmatprep.mubr.bf16.mxu0 0
      %852 = vmatmul.mubr.bf16.gmra.mrb[0].mxu0 %v817
      %v853 = vpop.f32.mrb[0].mxu0
      %v854 = vadd.f32 0.0, %v853
      %v855 = vpop.f32.mrb[0].mxu0
      %v856 = vpop.f32.mrb[0].mxu0
      %v857 = vpop.f32.mrb[0].mxu0
      %858 = vdwg.mxu0
      %s859 = scalar_lea.vmem %s4, 8
      %v860 = vld [vmem:[%s859] sm:$0x1]
      %v862 = vlaneseq
      %v863 = vshrl.u32 %v862, 7
      %v864 = vsub.s32 0, %v863
      %v865 = vrot.slane %v860, %v864
      %v867 = vmul.f32 %v854, %v865
      %v868 = vadd.f32 %v813, %v867
      %v869 = vld [vmem:[%s5] sm:$0x1]
      %v871 = vlaneseq
      %v872 = vshrl.u32 %v871, 7
      %v873 = vsub.s32 0, %v872
      %v874 = vrot.slane %v869, %v873
      %v876 = vadd.f32 %v868, %v874
      %v877 = vpack.c.bf16 %v876, %v876
      %v878 = vld [vmem:[%s6] sm:$0xf]
      %v879 = vld [vmem:[%s7] sm:$0x1]
      %v881 = vlaneseq
      %v882 = vshrl.u32 %v881, 7
      %v883 = vsub.s32 0, %v882
      %v884 = vrot.slane %v879, %v883
      %vm886 = vcmask 64512
      %v888 = vsel %vm886, %v877, 0
      %vm890 = vcmask 1043456
      %v892 = vsel %vm890, %v878, 0
      %894 = vmatprep.subr.bf16.mxu0 0
      %895 = vmatpush1.bf16.msra.mxu0 %v892
      %896 = vmatprep.subr.bf16.mxu0 0
      %897 = vmatpush1.bf16.msra.mxu0 0
      %898 = vmatprep.subr.bf16.mxu0 0
      %899 = vmatpush1.bf16.msra.mxu0 0
      %900 = vmatprep.subr.bf16.mxu0 0
      %901 = vmatpush1.bf16.msra.mxu0 0
      %902 = vmatprep.subr.bf16.mxu0 0
      %903 = vmatpush1.bf16.msra.mxu0 0
      %904 = vmatprep.subr.bf16.mxu0 0
      %905 = vmatpush1.bf16.msra.mxu0 0
      %906 = vmatprep.subr.bf16.mxu0 0
      %907 = vmatpush1.bf16.msra.mxu0 0
      %908 = vmatprep.subr.bf16.mxu0 0
      %909 = vmatpush1.bf16.msra.mxu0 0
      %910 = vmatprep.subr.bf16.mxu0 0
      %911 = vmatpush1.bf16.msra.mxu0 0
      %912 = vmatprep.subr.bf16.mxu0 0
      %913 = vmatpush1.bf16.msra.mxu0 0
      %914 = vmatprep.subr.bf16.mxu0 0
      %915 = vmatpush1.bf16.msra.mxu0 0
      %916 = vmatprep.subr.bf16.mxu0 0
      %917 = vmatpush1.bf16.msra.mxu0 0
      %918 = vmatprep.subr.bf16.mxu0 0
      %919 = vmatpush1.bf16.msra.mxu0 0
      %920 = vmatprep.subr.bf16.mxu0 0
      %921 = vmatpush1.bf16.msra.mxu0 0
      %922 = vmatprep.subr.bf16.mxu0 0
      %923 = vmatpush1.bf16.msra.mxu0 0
      %924 = vmatprep.subr.bf16.mxu0 0
      %925 = vmatpush1.bf16.msra.mxu0 0
      %926 = vmatprep.mubr.bf16.mxu0 0
      %927 = vmatmul.mubr.bf16.gmra.mrb[0].mxu0 %v888
      %v928 = vpop.f32.mrb[0].mxu0
      %v929 = vadd.f32 %v884, %v928
      %v930 = vpop.f32.mrb[0].mxu0
      %v931 = vpop.f32.mrb[0].mxu0
      %v932 = vpop.f32.mrb[0].mxu0
      %933 = vdwg.mxu0
      %v934 = vunpack.c.l.bf16 %v302
      %v935 = vadd.f32 %v929, %v934
      %v936 = vmax.f32 %v935, 0.0
      %v937 = vpack.c.bf16 %v936, %v936
      %vm938 = vcmask 254976
      %939 = vst.msk [vmem:[%s300] sm:$0x3] %vm938, %v937
      %p940 = scmp.lt.s32.totalorder %s19, 1
      %s941 = scalar_select %p940, %s19, 1
      %s942 = smul.addr %s941, 2
      %s943 = scalar_lea.vmem %s8, %s942
      // Predicated region
      $region53: #{shufflenet_forward.12} parent=51 // pred_check
        %p944 = pneg %p210
      $region54: #{shufflenet_forward.12} parent=51 // pred_check_branch
        %946 = sbr.rel (%p944) target = $region56
      $region55: #{shufflenet_forward.12} parent=51 // pred_region
        _
      $region56: #{shufflenet_forward.12} parent=51 // pred_fallthru
        _
    $region52: #{shufflenet_forward.12} parent=5 // pred_fallthru
      _
    %p947 = scmp.le.s32.totalorder 2, %s14
    // Predicated region
    $region57: #{shufflenet_forward.12} parent=5 // pred_check
      %p948 = pneg %p947
    $region58: #{shufflenet_forward.12} parent=5 // pred_check_branch
      %950 = sbr.rel (%p948) target = $region60
    $region59: #{shufflenet_forward.12} parent=5 // pred_region
      %s951 = ssub.s32 %s14, 2
      // Predicated region
      $region61: #{shufflenet_forward.12} parent=59 // pred_check
        %p952 = pneg %p216
      $region62: #{shufflenet_forward.12} parent=59 // pred_check_branch
        %954 = sbr.rel (%p952) target = $region64
      $region63: #{shufflenet_forward.12} parent=59 // pred_region
        %p955 = scmp.lt.s32.totalorder %s20, 1
        %s956 = scalar_select %p955, %s20, 1
        %s957 = smul.addr %s956, 2
        %s958 = scalar_lea.vmem %s8, %s957
      $region64: #{shufflenet_forward.12} parent=59 // pred_fallthru
        _
    $region60: #{shufflenet_forward.12} parent=5 // pred_fallthru
      _
  $region6: #{shufflenet_forward.12} parent=0 // loop_footer
    %s18 = sadd.s32 1, %s14
  $region7: #{shufflenet_forward.12} parent=0 // loop_footer_branch
    %13 = sbr.rel target = $region3
  $region8: #{shufflenet_forward.12} parent=0 // loop_exit
    _

// kernel: shufflenet_forward.11
$region0: #{shufflenet_forward.11}
  #allocation0 [shape = 'u32[]', space=smem, size = 0x4, offset = 0x4, fixed_abs, tag = 'smem constant byte address 0x4 - core index']
  #allocation1 [shape = 'u32[144,128]{1,0:T(1,128)}', space=vmem, size = 0x12000, scoped, tag = 'internal scratch']
  %s0 = inlined_call_operand.vmem [shape: bf16[2,16,16], index: 0, kind: input, shape index: {}]
  %s1 = inlined_call_operand.vmem [shape: bf16[16,8], index: 1, kind: input, shape index: {}]
  %s2 = inlined_call_operand.vmem [shape: f32[1,8], index: 2, kind: input, shape index: {}]
  %s3 = inlined_call_operand.vmem [shape: bf16[9,4,16], index: 3, kind: input, shape index: {}]
  %s4 = inlined_call_operand.vmem [shape: f32[9,1,8], index: 4, kind: input, shape index: {}]
  %s5 = inlined_call_operand.vmem [shape: f32[1,8], index: 5, kind: input, shape index: {}]
  %s6 = inlined_call_operand.vmem [shape: bf16[8,32], index: 6, kind: input, shape index: {}]
  %s7 = inlined_call_operand.vmem [shape: f32[1,32], index: 7, kind: input, shape index: {}]
  %s8 = inlined_call_operand.vmem [shape: bf16[4,16], index: 8, kind: input, shape index: {}]
  %s9 = inlined_call_operand.vmem [shape: bf16[16,32], index: 9, kind: input, shape index: {}]
  %s10 = inlined_call_operand.vmem [shape: bf16[2,4,32], index: 10, kind: output, shape index: {}]
  %s11 = sld [smem:[#allocation0]]
  $region73: #{shufflenet_forward.11} parent=0
    _
  %s13 = ssub.s32 1, %s11
  %s14 = scalar_select 0, %s13, %s11
  loop: start=0, step=1, limit=4
  $region2: #{shufflenet_forward.11} parent=0 // loop_pre_header
    _
  $region3: #{shufflenet_forward.11} parent=0 // loop_header
    %s16 = sphi 0, %s20
    %p17 = scmp.ge.s32.totalorder %s16, 4
    %s26 = sphi 0, %s28
    %s29 = sphi 0, %s26
    %s30 = sphi 0, %s29
    %s46 = sphi 0, %s30
    %s50 = sphi 0, %s50
    %s52 = sphi 0, %s50
    %s53 = sphi 0, %s52
    %s67 = sphi 0, %s53
    %s71 = sphi 0, %s71
    %s73 = sphi 0, %s71
    %s74 = sphi 0, %s73
    %s88 = sphi 0, %s74
    %s92 = sphi 0, %s92
    %s94 = sphi 0, %s92
    %s95 = sphi 0, %s94
    %s109 = sphi 0, %s95
    %s113 = sphi 0, %s113
    %s115 = sphi 0, %s113
    %s116 = sphi 0, %s115
    %s130 = sphi 0, %s116
    %s134 = sphi 0, %s134
    %s136 = sphi 0, %s134
    %s137 = sphi 0, %s136
    %s151 = sphi 0, %s137
    %s155 = sphi 0, %s155
    %s157 = sphi 0, %s155
    %s158 = sphi 0, %s157
    %s172 = sphi 0, %s158
    %s176 = sphi 0, %s176
    %s178 = sphi 0, %s176
    %s179 = sphi 0, %s178
    %s193 = sphi 0, %s179
    %s197 = sphi 0, %s197
    %s199 = sphi 0, %s197
    %s200 = sphi 0, %s199
    %s214 = sphi 0, %s200
    %s218 = sphi 0, %s218
    %s220 = sphi 0, %s218
    %s221 = sphi 0, %s220
    %s235 = sphi 0, %s221
    %s241 = sphi 0, %s243
    %s244 = sphi 0, %s241
    %s245 = sphi 0, %s244
    %s261 = sphi 0, %s245
  $region4: #{shufflenet_forward.11} parent=0 // loop_header_branch
    %19 = sbr.rel (%p17) target = $region8
  $region5: #{shufflenet_forward.11} parent=0 // loop_body
    %s21 = ssub.s32 %s16, 1
    %s22 = ssub.s32 %s16, 2
    %s23 = sadd.s32 %s16, 1
    %s24 = ssub.s32 %s16, %s23
    %p25 = scmp.eq.s32.totalorder %s24, 0
    %s27 = sadd.s32 %s26, 1
    %s28 = scalar_select %p25, %s26, %s27
    %p31 = pneg %p25
    %p32 = scmp.eq.s32.totalorder %s16, 1
    %p33 = por %p31, %p32
    %p34 = scmp.ne.s32.totalorder %s26, %s29
    %p35 = scmp.eq.s32.totalorder %s16, 0
    %p36 = por %p34, %p35
    %p37 = scmp.ne.s32.totalorder %s26, %s29
    %p38 = scmp.eq.s32.totalorder %s21, 1
    %p39 = por %p37, %p38
    %p40 = scmp.ne.s32.totalorder %s29, %s30
    %p41 = scmp.eq.s32.totalorder %s21, 0
    %p42 = por %p40, %p41
    %p43 = scmp.ne.s32.totalorder %s29, %s30
    %p44 = scmp.eq.s32.totalorder %s22, 1
    %p45 = por %p43, %p44
    %p47 = scmp.ne.s32.totalorder %s30, %s46
    %p48 = scmp.eq.s32.totalorder %s22, 0
    %p49 = por %p47, %p48
    %s51 = sadd.s32 %s50, 1
    %p54 = scmp.eq.s32.totalorder %s16, 1
    %p55 = scmp.ne.s32.totalorder %s50, %s52
    %p56 = scmp.eq.s32.totalorder %s16, 0
    %p57 = por %p55, %p56
    %p58 = scmp.ne.s32.totalorder %s50, %s52
    %p59 = scmp.eq.s32.totalorder %s21, 1
    %p60 = por %p58, %p59
    %p61 = scmp.ne.s32.totalorder %s52, %s53
    %p62 = scmp.eq.s32.totalorder %s21, 0
    %p63 = por %p61, %p62
    %p64 = scmp.ne.s32.totalorder %s52, %s53
    %p65 = scmp.eq.s32.totalorder %s22, 1
    %p66 = por %p64, %p65
    %p68 = scmp.ne.s32.totalorder %s53, %s67
    %p69 = scmp.eq.s32.totalorder %s22, 0
    %p70 = por %p68, %p69
    %s72 = sadd.s32 %s71, 1
    %p75 = scmp.eq.s32.totalorder %s16, 1
    %p76 = scmp.ne.s32.totalorder %s71, %s73
    %p77 = scmp.eq.s32.totalorder %s16, 0
    %p78 = por %p76, %p77
    %p79 = scmp.ne.s32.totalorder %s71, %s73
    %p80 = scmp.eq.s32.totalorder %s21, 1
    %p81 = por %p79, %p80
    %p82 = scmp.ne.s32.totalorder %s73, %s74
    %p83 = scmp.eq.s32.totalorder %s21, 0
    %p84 = por %p82, %p83
    %p85 = scmp.ne.s32.totalorder %s73, %s74
    %p86 = scmp.eq.s32.totalorder %s22, 1
    %p87 = por %p85, %p86
    %p89 = scmp.ne.s32.totalorder %s74, %s88
    %p90 = scmp.eq.s32.totalorder %s22, 0
    %p91 = por %p89, %p90
    %s93 = sadd.s32 %s92, 1
    %p96 = scmp.eq.s32.totalorder %s16, 1
    %p97 = scmp.ne.s32.totalorder %s92, %s94
    %p98 = scmp.eq.s32.totalorder %s16, 0
    %p99 = por %p97, %p98
    %p100 = scmp.ne.s32.totalorder %s92, %s94
    %p101 = scmp.eq.s32.totalorder %s21, 1
    %p102 = por %p100, %p101
    %p103 = scmp.ne.s32.totalorder %s94, %s95
    %p104 = scmp.eq.s32.totalorder %s21, 0
    %p105 = por %p103, %p104
    %p106 = scmp.ne.s32.totalorder %s94, %s95
    %p107 = scmp.eq.s32.totalorder %s22, 1
    %p108 = por %p106, %p107
    %p110 = scmp.ne.s32.totalorder %s95, %s109
    %p111 = scmp.eq.s32.totalorder %s22, 0
    %p112 = por %p110, %p111
    %s114 = sadd.s32 %s113, 1
    %p117 = scmp.eq.s32.totalorder %s16, 1
    %p118 = scmp.ne.s32.totalorder %s113, %s115
    %p119 = scmp.eq.s32.totalorder %s16, 0
    %p120 = por %p118, %p119
    %p121 = scmp.ne.s32.totalorder %s113, %s115
    %p122 = scmp.eq.s32.totalorder %s21, 1
    %p123 = por %p121, %p122
    %p124 = scmp.ne.s32.totalorder %s115, %s116
    %p125 = scmp.eq.s32.totalorder %s21, 0
    %p126 = por %p124, %p125
    %p127 = scmp.ne.s32.totalorder %s115, %s116
    %p128 = scmp.eq.s32.totalorder %s22, 1
    %p129 = por %p127, %p128
    %p131 = scmp.ne.s32.totalorder %s116, %s130
    %p132 = scmp.eq.s32.totalorder %s22, 0
    %p133 = por %p131, %p132
    %s135 = sadd.s32 %s134, 1
    %p138 = scmp.eq.s32.totalorder %s16, 1
    %p139 = scmp.ne.s32.totalorder %s134, %s136
    %p140 = scmp.eq.s32.totalorder %s16, 0
    %p141 = por %p139, %p140
    %p142 = scmp.ne.s32.totalorder %s134, %s136
    %p143 = scmp.eq.s32.totalorder %s21, 1
    %p144 = por %p142, %p143
    %p145 = scmp.ne.s32.totalorder %s136, %s137
    %p146 = scmp.eq.s32.totalorder %s21, 0
    %p147 = por %p145, %p146
    %p148 = scmp.ne.s32.totalorder %s136, %s137
    %p149 = scmp.eq.s32.totalorder %s22, 1
    %p150 = por %p148, %p149
    %p152 = scmp.ne.s32.totalorder %s137, %s151
    %p153 = scmp.eq.s32.totalorder %s22, 0
    %p154 = por %p152, %p153
    %s156 = sadd.s32 %s155, 1
    %p159 = scmp.eq.s32.totalorder %s16, 1
    %p160 = scmp.ne.s32.totalorder %s155, %s157
    %p161 = scmp.eq.s32.totalorder %s16, 0
    %p162 = por %p160, %p161
    %p163 = scmp.ne.s32.totalorder %s155, %s157
    %p164 = scmp.eq.s32.totalorder %s21, 1
    %p165 = por %p163, %p164
    %p166 = scmp.ne.s32.totalorder %s157, %s158
    %p167 = scmp.eq.s32.totalorder %s21, 0
    %p168 = por %p166, %p167
    %p169 = scmp.ne.s32.totalorder %s157, %s158
    %p170 = scmp.eq.s32.totalorder %s22, 1
    %p171 = por %p169, %p170
    %p173 = scmp.ne.s32.totalorder %s158, %s172
    %p174 = scmp.eq.s32.totalorder %s22, 0
    %p175 = por %p173, %p174
    %s177 = sadd.s32 %s176, 1
    %p180 = scmp.eq.s32.totalorder %s16, 1
    %p181 = scmp.ne.s32.totalorder %s176, %s178
    %p182 = scmp.eq.s32.totalorder %s16, 0
    %p183 = por %p181, %p182
    %p184 = scmp.ne.s32.totalorder %s176, %s178
    %p185 = scmp.eq.s32.totalorder %s21, 1
    %p186 = por %p184, %p185
    %p187 = scmp.ne.s32.totalorder %s178, %s179
    %p188 = scmp.eq.s32.totalorder %s21, 0
    %p189 = por %p187, %p188
    %p190 = scmp.ne.s32.totalorder %s178, %s179
    %p191 = scmp.eq.s32.totalorder %s22, 1
    %p192 = por %p190, %p191
    %p194 = scmp.ne.s32.totalorder %s179, %s193
    %p195 = scmp.eq.s32.totalorder %s22, 0
    %p196 = por %p194, %p195
    %s198 = sadd.s32 %s197, 1
    %p201 = scmp.eq.s32.totalorder %s16, 1
    %p202 = scmp.ne.s32.totalorder %s197, %s199
    %p203 = scmp.eq.s32.totalorder %s16, 0
    %p204 = por %p202, %p203
    %p205 = scmp.ne.s32.totalorder %s197, %s199
    %p206 = scmp.eq.s32.totalorder %s21, 1
    %p207 = por %p205, %p206
    %p208 = scmp.ne.s32.totalorder %s199, %s200
    %p209 = scmp.eq.s32.totalorder %s21, 0
    %p210 = por %p208, %p209
    %p211 = scmp.ne.s32.totalorder %s199, %s200
    %p212 = scmp.eq.s32.totalorder %s22, 1
    %p213 = por %p211, %p212
    %p215 = scmp.ne.s32.totalorder %s200, %s214
    %p216 = scmp.eq.s32.totalorder %s22, 0
    %p217 = por %p215, %p216
    %s219 = sadd.s32 %s218, 1
    %p222 = scmp.eq.s32.totalorder %s16, 1
    %p223 = scmp.ne.s32.totalorder %s218, %s220
    %p224 = scmp.eq.s32.totalorder %s16, 0
    %p225 = por %p223, %p224
    %p226 = scmp.ne.s32.totalorder %s218, %s220
    %p227 = scmp.eq.s32.totalorder %s21, 1
    %p228 = por %p226, %p227
    %p229 = scmp.ne.s32.totalorder %s220, %s221
    %p230 = scmp.eq.s32.totalorder %s21, 0
    %p231 = por %p229, %p230
    %p232 = scmp.ne.s32.totalorder %s220, %s221
    %p233 = scmp.eq.s32.totalorder %s22, 1
    %p234 = por %p232, %p233
    %p236 = scmp.ne.s32.totalorder %s221, %s235
    %p237 = scmp.eq.s32.totalorder %s22, 0
    %p238 = por %p236, %p237
    %s239 = ssub.s32 %s16, %s23
    %p240 = scmp.eq.s32.totalorder %s239, 0
    %s242 = sadd.s32 %s241, 1
    %s243 = scalar_select %p240, %s241, %s242
    %p246 = pneg %p240
    %p247 = scmp.eq.s32.totalorder %s16, 1
    %p248 = por %p246, %p247
    %p249 = scmp.ne.s32.totalorder %s241, %s244
    %p250 = scmp.eq.s32.totalorder %s16, 0
    %p251 = por %p249, %p250
    %p252 = scmp.ne.s32.totalorder %s241, %s244
    %p253 = scmp.eq.s32.totalorder %s21, 1
    %p254 = por %p252, %p253
    %p255 = scmp.ne.s32.totalorder %s244, %s245
    %p256 = scmp.eq.s32.totalorder %s21, 0
    %p257 = por %p255, %p256
    %p258 = scmp.ne.s32.totalorder %s244, %s245
    %p259 = scmp.eq.s32.totalorder %s22, 1
    %p260 = por %p258, %p259
    %p262 = scmp.ne.s32.totalorder %s245, %s261
    %p263 = scmp.eq.s32.totalorder %s22, 0
    %p264 = por %p262, %p263
    %p265 = scmp.le.s32.totalorder 1, %s16
    %p266 = scmp.lt.s32.totalorder %s16, 3
    %p267 = pnand %p265, %p266
    %p268 = pneg %p267
    // Predicated region
    $region9: #{shufflenet_forward.11} parent=5 // pred_check
      _
    $region10: #{shufflenet_forward.11} parent=5 // pred_check_branch
      %270 = sbr.rel (%p267) target = $region12
    $region11: #{shufflenet_forward.11} parent=5 // pred_region
      %s271 = ssub.s32 %s16, 1
      // Predicated region
      $region13: #{shufflenet_forward.11} parent=11 // pred_check
        %p272 = pneg %p63
      $region14: #{shufflenet_forward.11} parent=11 // pred_check_branch
        %274 = sbr.rel (%p272) target = $region16
      $region15: #{shufflenet_forward.11} parent=11 // pred_region
        _
      $region16: #{shufflenet_forward.11} parent=11 // pred_fallthru
        _
      // Predicated region
      $region17: #{shufflenet_forward.11} parent=11 // pred_check
        %p275 = pneg %p84
      $region18: #{shufflenet_forward.11} parent=11 // pred_check_branch
        %277 = sbr.rel (%p275) target = $region20
      $region19: #{shufflenet_forward.11} parent=11 // pred_region
        _
      $region20: #{shufflenet_forward.11} parent=11 // pred_fallthru
        _
      // Predicated region
      $region21: #{shufflenet_forward.11} parent=11 // pred_check
        %p278 = pneg %p105
      $region22: #{shufflenet_forward.11} parent=11 // pred_check_branch
        %280 = sbr.rel (%p278) target = $region24
      $region23: #{shufflenet_forward.11} parent=11 // pred_region
        _
      $region24: #{shufflenet_forward.11} parent=11 // pred_fallthru
        _
      // Predicated region
      $region25: #{shufflenet_forward.11} parent=11 // pred_check
        %p281 = pneg %p126
      $region26: #{shufflenet_forward.11} parent=11 // pred_check_branch
        %283 = sbr.rel (%p281) target = $region28
      $region27: #{shufflenet_forward.11} parent=11 // pred_region
        _
      $region28: #{shufflenet_forward.11} parent=11 // pred_fallthru
        _
      // Predicated region
      $region29: #{shufflenet_forward.11} parent=11 // pred_check
        %p284 = pneg %p147
      $region30: #{shufflenet_forward.11} parent=11 // pred_check_branch
        %286 = sbr.rel (%p284) target = $region32
      $region31: #{shufflenet_forward.11} parent=11 // pred_region
        _
      $region32: #{shufflenet_forward.11} parent=11 // pred_fallthru
        _
      // Predicated region
      $region33: #{shufflenet_forward.11} parent=11 // pred_check
        %p287 = pneg %p168
      $region34: #{shufflenet_forward.11} parent=11 // pred_check_branch
        %289 = sbr.rel (%p287) target = $region36
      $region35: #{shufflenet_forward.11} parent=11 // pred_region
        _
      $region36: #{shufflenet_forward.11} parent=11 // pred_fallthru
        _
      // Predicated region
      $region37: #{shufflenet_forward.11} parent=11 // pred_check
        %p290 = pneg %p189
      $region38: #{shufflenet_forward.11} parent=11 // pred_check_branch
        %292 = sbr.rel (%p290) target = $region40
      $region39: #{shufflenet_forward.11} parent=11 // pred_region
        _
      $region40: #{shufflenet_forward.11} parent=11 // pred_fallthru
        _
      // Predicated region
      $region41: #{shufflenet_forward.11} parent=11 // pred_check
        %p293 = pneg %p210
      $region42: #{shufflenet_forward.11} parent=11 // pred_check_branch
        %295 = sbr.rel (%p293) target = $region44
      $region43: #{shufflenet_forward.11} parent=11 // pred_region
        _
      $region44: #{shufflenet_forward.11} parent=11 // pred_fallthru
        _
      // Predicated region
      $region45: #{shufflenet_forward.11} parent=11 // pred_check
        %p296 = pneg %p231
      $region46: #{shufflenet_forward.11} parent=11 // pred_check_branch
        %298 = sbr.rel (%p296) target = $region48
      $region47: #{shufflenet_forward.11} parent=11 // pred_region
        _
      $region48: #{shufflenet_forward.11} parent=11 // pred_fallthru
        _
    $region12: #{shufflenet_forward.11} parent=5 // pred_fallthru
      _
    %p299 = scmp.lt.s32.totalorder %s16, 2
    // Predicated region
    $region49: #{shufflenet_forward.11} parent=5 // pred_check
      %p300 = pneg %p299
    $region50: #{shufflenet_forward.11} parent=5 // pred_check_branch
      %302 = sbr.rel (%p300) target = $region52
    $region51: #{shufflenet_forward.11} parent=5 // pred_region
      // Predicated region
      $region53: #{shufflenet_forward.11} parent=51 // pred_check
        %p303 = pneg %p36
      $region54: #{shufflenet_forward.11} parent=51 // pred_check_branch
        %305 = sbr.rel (%p303) target = $region56
      $region55: #{shufflenet_forward.11} parent=51 // pred_region
        %p306 = scmp.lt.s32.totalorder %s16, 1
        %s307 = scalar_select %p306, %s16, 1
        %s308 = smul.addr %s307, 2
        %s309 = smul.addr %s308, 4
        %s310 = scalar_lea.vmem %s0, %s309
      $region56: #{shufflenet_forward.11} parent=51 // pred_fallthru
        _
    $region52: #{shufflenet_forward.11} parent=5 // pred_fallthru
      _
    %p311 = scmp.le.s32.totalorder 1, %s16
    %p312 = scmp.lt.s32.totalorder %s16, 3
    %p313 = pnand %p311, %p312
    %p314 = pneg %p313
    // Predicated region
    $region57: #{shufflenet_forward.11} parent=5 // pred_check
      _
    $region58: #{shufflenet_forward.11} parent=5 // pred_check_branch
      %316 = sbr.rel (%p313) target = $region60
    $region59: #{shufflenet_forward.11} parent=5 // pred_region
      %s317 = ssub.s32 %s16, 1
      %p318 = scmp.lt.s32.totalorder %s21, 1
      %s319 = scalar_select %p318, %s21, 1
      %s320 = smul.addr %s319, 2
      %s321 = smul.addr %s320, 4
      %s322 = scalar_lea.vmem %s0, %s321
      %p323 = pneg %p42
      %p324 = pneg %p39
      %p325 = pneg %p63
      %p326 = pneg %p60
      %p327 = pneg %p84
      %p328 = pneg %p81
      %p329 = pneg %p105
      %p330 = pneg %p102
      %p331 = pneg %p126
      %p332 = pneg %p123
      %p333 = pneg %p147
      %p334 = pneg %p144
      %p335 = pneg %p168
      %p336 = pneg %p165
      %p337 = pneg %p189
      %p338 = pneg %p186
      %p339 = pneg %p210
      %p340 = pneg %p207
      %p341 = pneg %p231
      %p342 = pneg %p228
      %p343 = pneg %p257
      %p344 = pneg %p254
      %p345 = scmp.lt.s32.totalorder %s21, 1
      %s346 = scalar_select %p345, %s21, 1
      %s347 = smul.addr %s346, 2
      %s348 = scalar_lea.vmem %s10, %s347
      %p349 = scmp.lt.s32.totalorder %s21, 1
      %s350 = scalar_select %p349, %s21, 1
      %s351 = smul.addr %s350, 2
      %s352 = smul.addr %s351, 4
      %s353 = scalar_lea.vmem %s0, %s352
      %p354 = scmp.lt.s32.totalorder %s21, 1
      %s355 = scalar_select %p354, %s21, 1
      %s356 = smul.addr %s355, 2
      %s357 = scalar_lea.vmem %s10, %s356
      %v359 = vld [vmem:[%s353] sm:$0xf]
      %v360 = vld [vmem:[%s353 + $0x4] sm:$0xf]
      %v361 = vld [vmem:[%s1] sm:$0xf]
      %v362 = vld [vmem:[%s1 + $0x4] sm:$0xf]
      %v363 = vld [vmem:[%s2] sm:$0x1]
      %v365 = vlaneseq
      %v366 = vshrl.u32 %v365, 7
      %v367 = vsub.s32 0, %v366
      %v368 = vrot.slane %v363, %v367
      %v372 = vunpack.c.l.b16 %v359
      %v373 = vunpack.c.l.b16 %v360
      %v374 = vpack.c.b16 %v373, %v372
      %v377 = vunpack.c.l.b16 %v361
      %v378 = vunpack.c.l.b16 %v362
      %v379 = vpack.c.b16 %v378, %v377
      %vm381 = vcmask 130048
      %v383 = vsel %vm381, %v374, 0
      %385 = vmatprep.subr.bf16.mxu0 0
      %386 = vmatpush1.bf16.msra.mxu0 %v379
      %387 = vmatprep.subr.bf16.mxu0 0
      %388 = vmatpush1.bf16.msra.mxu0 0
      %389 = vmatprep.subr.bf16.mxu0 0
      %390 = vmatpush1.bf16.msra.mxu0 0
      %391 = vmatprep.subr.bf16.mxu0 0
      %392 = vmatpush1.bf16.msra.mxu0 0
      %393 = vmatprep.subr.bf16.mxu0 0
      %394 = vmatpush1.bf16.msra.mxu0 0
      %395 = vmatprep.subr.bf16.mxu0 0
      %396 = vmatpush1.bf16.msra.mxu0 0
      %397 = vmatprep.subr.bf16.mxu0 0
      %398 = vmatpush1.bf16.msra.mxu0 0
      %399 = vmatprep.subr.bf16.mxu0 0
      %400 = vmatpush1.bf16.msra.mxu0 0
      %401 = vmatprep.subr.bf16.mxu0 0
      %402 = vmatpush1.bf16.msra.mxu0 0
      %403 = vmatprep.subr.bf16.mxu0 0
      %404 = vmatpush1.bf16.msra.mxu0 0
      %405 = vmatprep.subr.bf16.mxu0 0
      %406 = vmatpush1.bf16.msra.mxu0 0
      %407 = vmatprep.subr.bf16.mxu0 0
      %408 = vmatpush1.bf16.msra.mxu0 0
      %409 = vmatprep.subr.bf16.mxu0 0
      %410 = vmatpush1.bf16.msra.mxu0 0
      %411 = vmatprep.subr.bf16.mxu0 0
      %412 = vmatpush1.bf16.msra.mxu0 0
      %413 = vmatprep.subr.bf16.mxu0 0
      %414 = vmatpush1.bf16.msra.mxu0 0
      %415 = vmatprep.subr.bf16.mxu0 0
      %416 = vmatpush1.bf16.msra.mxu0 0
      %417 = vmatprep.mubr.bf16.mxu0 0
      %418 = vmatmul.mubr.bf16.gmra.mrb[0].mxu0 %v383
      %v419 = vpop.f32.mrb[0].mxu0
      %v420 = vadd.f32 %v368, %v419
      %v421 = vpop.f32.mrb[0].mxu0
      %v422 = vpop.f32.mrb[0].mxu0
      %v423 = vadd.f32 %v368, %v422
      %v424 = vpop.f32.mrb[0].mxu0
      %425 = vdwg.mxu0
      %v426 = vmax.f32 %v420, 0.0
      %v427 = vmax.f32 %v423, 0.0
      %v428 = vpack.c.bf16 %v427, %v426
      %v429 = vld [vmem:[%s3] sm:$0x3]
      %v431 = vsel %vm381, %v429, 0
      %433 = vmatprep.subr.bf16.mxu0 0
      %434 = vmatpush1.bf16.msra.mxu0 %v428
      %435 = vmatprep.subr.bf16.mxu0 0
      %436 = vmatpush1.bf16.msra.mxu0 0
      %437 = vmatprep.subr.bf16.mxu0 0
      %438 = vmatpush1.bf16.msra.mxu0 0
      %439 = vmatprep.subr.bf16.mxu0 0
      %440 = vmatpush1.bf16.msra.mxu0 0
      %441 = vmatprep.subr.bf16.mxu0 0
      %442 = vmatpush1.bf16.msra.mxu0 0
      %443 = vmatprep.subr.bf16.mxu0 0
      %444 = vmatpush1.bf16.msra.mxu0 0
      %445 = vmatprep.subr.bf16.mxu0 0
      %446 = vmatpush1.bf16.msra.mxu0 0
      %447 = vmatprep.subr.bf16.mxu0 0
      %448 = vmatpush1.bf16.msra.mxu0 0
      %449 = vmatprep.subr.bf16.mxu0 0
      %450 = vmatpush1.bf16.msra.mxu0 0
      %451 = vmatprep.subr.bf16.mxu0 0
      %452 = vmatpush1.bf16.msra.mxu0 0
      %453 = vmatprep.subr.bf16.mxu0 0
      %454 = vmatpush1.bf16.msra.mxu0 0
      %455 = vmatprep.subr.bf16.mxu0 0
      %456 = vmatpush1.bf16.msra.mxu0 0
      %457 = vmatprep.subr.bf16.mxu0 0
      %458 = vmatpush1.bf16.msra.mxu0 0
      %459 = vmatprep.subr.bf16.mxu0 0
      %460 = vmatpush1.bf16.msra.mxu0 0
      %461 = vmatprep.subr.bf16.mxu0 0
      %462 = vmatpush1.bf16.msra.mxu0 0
      %463 = vmatprep.subr.bf16.mxu0 0
      %464 = vmatpush1.bf16.msra.mxu0 0
      %465 = vmatprep.mubr.bf16.mxu0 0
      %466 = vmatmul.mubr.bf16.gmra.mrb[0].mxu0 %v431
      %v467 = vpop.f32.mrb[0].mxu0
      %v468 = vadd.f32 0.0, %v467
      %v469 = vpop.f32.mrb[0].mxu0
      %v470 = vpop.f32.mrb[0].mxu0
      %v471 = vpop.f32.mrb[0].mxu0
      %472 = vdwg.mxu0
      %v473 = vld [vmem:[%s4] sm:$0x1]
      %v475 = vlaneseq
      %v476 = vshrl.u32 %v475, 7
      %v477 = vsub.s32 0, %v476
      %v478 = vrot.slane %v473, %v477
      %v480 = vmul.f32 %v468, %v478
      %s481 = scalar_lea.vmem %s3, 2
      %v482 = vld [vmem:[%s481] sm:$0x3]
      %v484 = vsel %vm381, %v482, 0
      %486 = vmatprep.subr.bf16.mxu0 0
      %487 = vmatpush1.bf16.msra.mxu0 %v428
      %488 = vmatprep.subr.bf16.mxu0 0
      %489 = vmatpush1.bf16.msra.mxu0 0
      %490 = vmatprep.subr.bf16.mxu0 0
      %491 = vmatpush1.bf16.msra.mxu0 0
      %492 = vmatprep.subr.bf16.mxu0 0
      %493 = vmatpush1.bf16.msra.mxu0 0
      %494 = vmatprep.subr.bf16.mxu0 0
      %495 = vmatpush1.bf16.msra.mxu0 0
      %496 = vmatprep.subr.bf16.mxu0 0
      %497 = vmatpush1.bf16.msra.mxu0 0
      %498 = vmatprep.subr.bf16.mxu0 0
      %499 = vmatpush1.bf16.msra.mxu0 0
      %500 = vmatprep.subr.bf16.mxu0 0
      %501 = vmatpush1.bf16.msra.mxu0 0
      %502 = vmatprep.subr.bf16.mxu0 0
      %503 = vmatpush1.bf16.msra.mxu0 0
      %504 = vmatprep.subr.bf16.mxu0 0
      %505 = vmatpush1.bf16.msra.mxu0 0
      %506 = vmatprep.subr.bf16.mxu0 0
      %507 = vmatpush1.bf16.msra.mxu0 0
      %508 = vmatprep.subr.bf16.mxu0 0
      %509 = vmatpush1.bf16.msra.mxu0 0
      %510 = vmatprep.subr.bf16.mxu0 0
      %511 = vmatpush1.bf16.msra.mxu0 0
      %512 = vmatprep.subr.bf16.mxu0 0
      %513 = vmatpush1.bf16.msra.mxu0 0
      %514 = vmatprep.subr.bf16.mxu0 0
      %515 = vmatpush1.bf16.msra.mxu0 0
      %516 = vmatprep.subr.bf16.mxu0 0
      %517 = vmatpush1.bf16.msra.mxu0 0
      %518 = vmatprep.mubr.bf16.mxu0 0
      %519 = vmatmul.mubr.bf16.gmra.mrb[0].mxu0 %v484
      %v520 = vpop.f32.mrb[0].mxu0
      %v521 = vadd.f32 0.0, %v520
      %v522 = vpop.f32.mrb[0].mxu0
      %v523 = vpop.f32.mrb[0].mxu0
      %v524 = vpop.f32.mrb[0].mxu0
      %525 = vdwg.mxu0
      %s526 = scalar_lea.vmem %s4, 1
      %v527 = vld [vmem:[%s526] sm:$0x1]
      %v529 = vlaneseq
      %v530 = vshrl.u32 %v529, 7
      %v531 = vsub.s32 0, %v530
      %v532 = vrot.slane %v527, %v531
      %v534 = vmul.f32 %v521, %v532
      %v535 = vadd.f32 %v480, %v534
      %s536 = scalar_lea.vmem %s3, 4
      %v537 = vld [vmem:[%s536] sm:$0x3]
      %v539 = vsel %vm381, %v537, 0
      %541 = vmatprep.subr.bf16.mxu0 0
      %542 = vmatpush1.bf16.msra.mxu0 %v428
      %543 = vmatprep.subr.bf16.mxu0 0
      %544 = vmatpush1.bf16.msra.mxu0 0
      %545 = vmatprep.subr.bf16.mxu0 0
      %546 = vmatpush1.bf16.msra.mxu0 0
      %547 = vmatprep.subr.bf16.mxu0 0
      %548 = vmatpush1.bf16.msra.mxu0 0
      %549 = vmatprep.subr.bf16.mxu0 0
      %550 = vmatpush1.bf16.msra.mxu0 0
      %551 = vmatprep.subr.bf16.mxu0 0
      %552 = vmatpush1.bf16.msra.mxu0 0
      %553 = vmatprep.subr.bf16.mxu0 0
      %554 = vmatpush1.bf16.msra.mxu0 0
      %555 = vmatprep.subr.bf16.mxu0 0
      %556 = vmatpush1.bf16.msra.mxu0 0
      %557 = vmatprep.subr.bf16.mxu0 0
      %558 = vmatpush1.bf16.msra.mxu0 0
      %559 = vmatprep.subr.bf16.mxu0 0
      %560 = vmatpush1.bf16.msra.mxu0 0
      %561 = vmatprep.subr.bf16.mxu0 0
      %562 = vmatpush1.bf16.msra.mxu0 0
      %563 = vmatprep.subr.bf16.mxu0 0
      %564 = vmatpush1.bf16.msra.mxu0 0
      %565 = vmatprep.subr.bf16.mxu0 0
      %566 = vmatpush1.bf16.msra.mxu0 0
      %567 = vmatprep.subr.bf16.mxu0 0
      %568 = vmatpush1.bf16.msra.mxu0 0
      %569 = vmatprep.subr.bf16.mxu0 0
      %570 = vmatpush1.bf16.msra.mxu0 0
      %571 = vmatprep.subr.bf16.mxu0 0
      %572 = vmatpush1.bf16.msra.mxu0 0
      %573 = vmatprep.mubr.bf16.mxu0 0
      %574 = vmatmul.mubr.bf16.gmra.mrb[0].mxu0 %v539
      %v575 = vpop.f32.mrb[0].mxu0
      %v576 = vadd.f32 0.0, %v575
      %v577 = vpop.f32.mrb[0].mxu0
      %v578 = vpop.f32.mrb[0].mxu0
      %v579 = vpop.f32.mrb[0].mxu0
      %580 = vdwg.mxu0
      %s581 = scalar_lea.vmem %s4, 2
      %v582 = vld [vmem:[%s581] sm:$0x1]
      %v584 = vlaneseq
      %v585 = vshrl.u32 %v584, 7
      %v586 = vsub.s32 0, %v585
      %v587 = vrot.slane %v582, %v586
      %v589 = vmul.f32 %v576, %v587
      %v590 = vadd.f32 %v535, %v589
      %s591 = scalar_lea.vmem %s3, 6
      %v592 = vld [vmem:[%s591] sm:$0x3]
      %v594 = vsel %vm381, %v592, 0
      %596 = vmatprep.subr.bf16.mxu0 0
      %597 = vmatpush1.bf16.msra.mxu0 %v428
      %598 = vmatprep.subr.bf16.mxu0 0
      %599 = vmatpush1.bf16.msra.mxu0 0
      %600 = vmatprep.subr.bf16.mxu0 0
      %601 = vmatpush1.bf16.msra.mxu0 0
      %602 = vmatprep.subr.bf16.mxu0 0
      %603 = vmatpush1.bf16.msra.mxu0 0
      %604 = vmatprep.subr.bf16.mxu0 0
      %605 = vmatpush1.bf16.msra.mxu0 0
      %606 = vmatprep.subr.bf16.mxu0 0
      %607 = vmatpush1.bf16.msra.mxu0 0
      %608 = vmatprep.subr.bf16.mxu0 0
      %609 = vmatpush1.bf16.msra.mxu0 0
      %610 = vmatprep.subr.bf16.mxu0 0
      %611 = vmatpush1.bf16.msra.mxu0 0
      %612 = vmatprep.subr.bf16.mxu0 0
      %613 = vmatpush1.bf16.msra.mxu0 0
      %614 = vmatprep.subr.bf16.mxu0 0
      %615 = vmatpush1.bf16.msra.mxu0 0
      %616 = vmatprep.subr.bf16.mxu0 0
      %617 = vmatpush1.bf16.msra.mxu0 0
      %618 = vmatprep.subr.bf16.mxu0 0
      %619 = vmatpush1.bf16.msra.mxu0 0
      %620 = vmatprep.subr.bf16.mxu0 0
      %621 = vmatpush1.bf16.msra.mxu0 0
      %622 = vmatprep.subr.bf16.mxu0 0
      %623 = vmatpush1.bf16.msra.mxu0 0
      %624 = vmatprep.subr.bf16.mxu0 0
      %625 = vmatpush1.bf16.msra.mxu0 0
      %626 = vmatprep.subr.bf16.mxu0 0
      %627 = vmatpush1.bf16.msra.mxu0 0
      %628 = vmatprep.mubr.bf16.mxu0 0
      %629 = vmatmul.mubr.bf16.gmra.mrb[0].mxu0 %v594
      %v630 = vpop.f32.mrb[0].mxu0
      %v631 = vadd.f32 0.0, %v630
      %v632 = vpop.f32.mrb[0].mxu0
      %v633 = vpop.f32.mrb[0].mxu0
      %v634 = vpop.f32.mrb[0].mxu0
      %635 = vdwg.mxu0
      %s636 = scalar_lea.vmem %s4, 3
      %v637 = vld [vmem:[%s636] sm:$0x1]
      %v639 = vlaneseq
      %v640 = vshrl.u32 %v639, 7
      %v641 = vsub.s32 0, %v640
      %v642 = vrot.slane %v637, %v641
      %v644 = vmul.f32 %v631, %v642
      %v645 = vadd.f32 %v590, %v644
      %s646 = scalar_lea.vmem %s3, 8
      %v647 = vld [vmem:[%s646] sm:$0x3]
      %v649 = vsel %vm381, %v647, 0
      %651 = vmatprep.subr.bf16.mxu0 0
      %652 = vmatpush1.bf16.msra.mxu0 %v428
      %653 = vmatprep.subr.bf16.mxu0 0
      %654 = vmatpush1.bf16.msra.mxu0 0
      %655 = vmatprep.subr.bf16.mxu0 0
      %656 = vmatpush1.bf16.msra.mxu0 0
      %657 = vmatprep.subr.bf16.mxu0 0
      %658 = vmatpush1.bf16.msra.mxu0 0
      %659 = vmatprep.subr.bf16.mxu0 0
      %660 = vmatpush1.bf16.msra.mxu0 0
      %661 = vmatprep.subr.bf16.mxu0 0
      %662 = vmatpush1.bf16.msra.mxu0 0
      %663 = vmatprep.subr.bf16.mxu0 0
      %664 = vmatpush1.bf16.msra.mxu0 0
      %665 = vmatprep.subr.bf16.mxu0 0
      %666 = vmatpush1.bf16.msra.mxu0 0
      %667 = vmatprep.subr.bf16.mxu0 0
      %668 = vmatpush1.bf16.msra.mxu0 0
      %669 = vmatprep.subr.bf16.mxu0 0
      %670 = vmatpush1.bf16.msra.mxu0 0
      %671 = vmatprep.subr.bf16.mxu0 0
      %672 = vmatpush1.bf16.msra.mxu0 0
      %673 = vmatprep.subr.bf16.mxu0 0
      %674 = vmatpush1.bf16.msra.mxu0 0
      %675 = vmatprep.subr.bf16.mxu0 0
      %676 = vmatpush1.bf16.msra.mxu0 0
      %677 = vmatprep.subr.bf16.mxu0 0
      %678 = vmatpush1.bf16.msra.mxu0 0
      %679 = vmatprep.subr.bf16.mxu0 0
      %680 = vmatpush1.bf16.msra.mxu0 0
      %681 = vmatprep.subr.bf16.mxu0 0
      %682 = vmatpush1.bf16.msra.mxu0 0
      %683 = vmatprep.mubr.bf16.mxu0 0
      %684 = vmatmul.mubr.bf16.gmra.mrb[0].mxu0 %v649
      %v685 = vpop.f32.mrb[0].mxu0
      %v686 = vadd.f32 0.0, %v685
      %v687 = vpop.f32.mrb[0].mxu0
      %v688 = vpop.f32.mrb[0].mxu0
      %v689 = vpop.f32.mrb[0].mxu0
      %690 = vdwg.mxu0
      %s691 = scalar_lea.vmem %s4, 4
      %v692 = vld [vmem:[%s691] sm:$0x1]
      %v694 = vlaneseq
      %v695 = vshrl.u32 %v694, 7
      %v696 = vsub.s32 0, %v695
      %v697 = vrot.slane %v692, %v696
      %v699 = vmul.f32 %v686, %v697
      %v700 = vadd.f32 %v645, %v699
      %s701 = scalar_lea.vmem %s3, 10
      %v702 = vld [vmem:[%s701] sm:$0x3]
      %v704 = vsel %vm381, %v702, 0
      %706 = vmatprep.subr.bf16.mxu0 0
      %707 = vmatpush1.bf16.msra.mxu0 %v428
      %708 = vmatprep.subr.bf16.mxu0 0
      %709 = vmatpush1.bf16.msra.mxu0 0
      %710 = vmatprep.subr.bf16.mxu0 0
      %711 = vmatpush1.bf16.msra.mxu0 0
      %712 = vmatprep.subr.bf16.mxu0 0
      %713 = vmatpush1.bf16.msra.mxu0 0
      %714 = vmatprep.subr.bf16.mxu0 0
      %715 = vmatpush1.bf16.msra.mxu0 0
      %716 = vmatprep.subr.bf16.mxu0 0
      %717 = vmatpush1.bf16.msra.mxu0 0
      %718 = vmatprep.subr.bf16.mxu0 0
      %719 = vmatpush1.bf16.msra.mxu0 0
      %720 = vmatprep.subr.bf16.mxu0 0
      %721 = vmatpush1.bf16.msra.mxu0 0
      %722 = vmatprep.subr.bf16.mxu0 0
      %723 = vmatpush1.bf16.msra.mxu0 0
      %724 = vmatprep.subr.bf16.mxu0 0
      %725 = vmatpush1.bf16.msra.mxu0 0
      %726 = vmatprep.subr.bf16.mxu0 0
      %727 = vmatpush1.bf16.msra.mxu0 0
      %728 = vmatprep.subr.bf16.mxu0 0
      %729 = vmatpush1.bf16.msra.mxu0 0
      %730 = vmatprep.subr.bf16.mxu0 0
      %731 = vmatpush1.bf16.msra.mxu0 0
      %732 = vmatprep.subr.bf16.mxu0 0
      %733 = vmatpush1.bf16.msra.mxu0 0
      %734 = vmatprep.subr.bf16.mxu0 0
      %735 = vmatpush1.bf16.msra.mxu0 0
      %736 = vmatprep.subr.bf16.mxu0 0
      %737 = vmatpush1.bf16.msra.mxu0 0
      %738 = vmatprep.mubr.bf16.mxu0 0
      %739 = vmatmul.mubr.bf16.gmra.mrb[0].mxu0 %v704
      %v740 = vpop.f32.mrb[0].mxu0
      %v741 = vadd.f32 0.0, %v740
      %v742 = vpop.f32.mrb[0].mxu0
      %v743 = vpop.f32.mrb[0].mxu0
      %v744 = vpop.f32.mrb[0].mxu0
      %745 = vdwg.mxu0
      %s746 = scalar_lea.vmem %s4, 5
      %v747 = vld [vmem:[%s746] sm:$0x1]
      %v749 = vlaneseq
      %v750 = vshrl.u32 %v749, 7
      %v751 = vsub.s32 0, %v750
      %v752 = vrot.slane %v747, %v751
      %v754 = vmul.f32 %v741, %v752
      %v755 = vadd.f32 %v700, %v754
      %s756 = scalar_lea.vmem %s3, 12
      %v757 = vld [vmem:[%s756] sm:$0x3]
      %v759 = vsel %vm381, %v757, 0
      %761 = vmatprep.subr.bf16.mxu0 0
      %762 = vmatpush1.bf16.msra.mxu0 %v428
      %763 = vmatprep.subr.bf16.mxu0 0
      %764 = vmatpush1.bf16.msra.mxu0 0
      %765 = vmatprep.subr.bf16.mxu0 0
      %766 = vmatpush1.bf16.msra.mxu0 0
      %767 = vmatprep.subr.bf16.mxu0 0
      %768 = vmatpush1.bf16.msra.mxu0 0
      %769 = vmatprep.subr.bf16.mxu0 0
      %770 = vmatpush1.bf16.msra.mxu0 0
      %771 = vmatprep.subr.bf16.mxu0 0
      %772 = vmatpush1.bf16.msra.mxu0 0
      %773 = vmatprep.subr.bf16.mxu0 0
      %774 = vmatpush1.bf16.msra.mxu0 0
      %775 = vmatprep.subr.bf16.mxu0 0
      %776 = vmatpush1.bf16.msra.mxu0 0
      %777 = vmatprep.subr.bf16.mxu0 0
      %778 = vmatpush1.bf16.msra.mxu0 0
      %779 = vmatprep.subr.bf16.mxu0 0
      %780 = vmatpush1.bf16.msra.mxu0 0
      %781 = vmatprep.subr.bf16.mxu0 0
      %782 = vmatpush1.bf16.msra.mxu0 0
      %783 = vmatprep.subr.bf16.mxu0 0
      %784 = vmatpush1.bf16.msra.mxu0 0
      %785 = vmatprep.subr.bf16.mxu0 0
      %786 = vmatpush1.bf16.msra.mxu0 0
      %787 = vmatprep.subr.bf16.mxu0 0
      %788 = vmatpush1.bf16.msra.mxu0 0
      %789 = vmatprep.subr.bf16.mxu0 0
      %790 = vmatpush1.bf16.msra.mxu0 0
      %791 = vmatprep.subr.bf16.mxu0 0
      %792 = vmatpush1.bf16.msra.mxu0 0
      %793 = vmatprep.mubr.bf16.mxu0 0
      %794 = vmatmul.mubr.bf16.gmra.mrb[0].mxu0 %v759
      %v795 = vpop.f32.mrb[0].mxu0
      %v796 = vadd.f32 0.0, %v795
      %v797 = vpop.f32.mrb[0].mxu0
      %v798 = vpop.f32.mrb[0].mxu0
      %v799 = vpop.f32.mrb[0].mxu0
      %800 = vdwg.mxu0
      %s801 = scalar_lea.vmem %s4, 6
      %v802 = vld [vmem:[%s801] sm:$0x1]
      %v804 = vlaneseq
      %v805 = vshrl.u32 %v804, 7
      %v806 = vsub.s32 0, %v805
      %v807 = vrot.slane %v802, %v806
      %v809 = vmul.f32 %v796, %v807
      %v810 = vadd.f32 %v755, %v809
      %s811 = scalar_lea.vmem %s3, 14
      %v812 = vld [vmem:[%s811] sm:$0x3]
      %v814 = vsel %vm381, %v812, 0
      %816 = vmatprep.subr.bf16.mxu0 0
      %817 = vmatpush1.bf16.msra.mxu0 %v428
      %818 = vmatprep.subr.bf16.mxu0 0
      %819 = vmatpush1.bf16.msra.mxu0 0
      %820 = vmatprep.subr.bf16.mxu0 0
      %821 = vmatpush1.bf16.msra.mxu0 0
      %822 = vmatprep.subr.bf16.mxu0 0
      %823 = vmatpush1.bf16.msra.mxu0 0
      %824 = vmatprep.subr.bf16.mxu0 0
      %825 = vmatpush1.bf16.msra.mxu0 0
      %826 = vmatprep.subr.bf16.mxu0 0
      %827 = vmatpush1.bf16.msra.mxu0 0
      %828 = vmatprep.subr.bf16.mxu0 0
      %829 = vmatpush1.bf16.msra.mxu0 0
      %830 = vmatprep.subr.bf16.mxu0 0
      %831 = vmatpush1.bf16.msra.mxu0 0
      %832 = vmatprep.subr.bf16.mxu0 0
      %833 = vmatpush1.bf16.msra.mxu0 0
      %834 = vmatprep.subr.bf16.mxu0 0
      %835 = vmatpush1.bf16.msra.mxu0 0
      %836 = vmatprep.subr.bf16.mxu0 0
      %837 = vmatpush1.bf16.msra.mxu0 0
      %838 = vmatprep.subr.bf16.mxu0 0
      %839 = vmatpush1.bf16.msra.mxu0 0
      %840 = vmatprep.subr.bf16.mxu0 0
      %841 = vmatpush1.bf16.msra.mxu0 0
      %842 = vmatprep.subr.bf16.mxu0 0
      %843 = vmatpush1.bf16.msra.mxu0 0
      %844 = vmatprep.subr.bf16.mxu0 0
      %845 = vmatpush1.bf16.msra.mxu0 0
      %846 = vmatprep.subr.bf16.mxu0 0
      %847 = vmatpush1.bf16.msra.mxu0 0
      %848 = vmatprep.mubr.bf16.mxu0 0
      %849 = vmatmul.mubr.bf16.gmra.mrb[0].mxu0 %v814
      %v850 = vpop.f32.mrb[0].mxu0
      %v851 = vadd.f32 0.0, %v850
      %v852 = vpop.f32.mrb[0].mxu0
      %v853 = vpop.f32.mrb[0].mxu0
      %v854 = vpop.f32.mrb[0].mxu0
      %855 = vdwg.mxu0
      %s856 = scalar_lea.vmem %s4, 7
      %v857 = vld [vmem:[%s856] sm:$0x1]
      %v859 = vlaneseq
      %v860 = vshrl.u32 %v859, 7
      %v861 = vsub.s32 0, %v860
      %v862 = vrot.slane %v857, %v861
      %v864 = vmul.f32 %v851, %v862
      %v865 = vadd.f32 %v810, %v864
      %s866 = scalar_lea.vmem %s3, 16
      %v867 = vld [vmem:[%s866] sm:$0x3]
      %v869 = vsel %vm381, %v867, 0
      %871 = vmatprep.subr.bf16.mxu0 0
      %872 = vmatpush1.bf16.msra.mxu0 %v428
      %873 = vmatprep.subr.bf16.mxu0 0
      %874 = vmatpush1.bf16.msra.mxu0 0
      %875 = vmatprep.subr.bf16.mxu0 0
      %876 = vmatpush1.bf16.msra.mxu0 0
      %877 = vmatprep.subr.bf16.mxu0 0
      %878 = vmatpush1.bf16.msra.mxu0 0
      %879 = vmatprep.subr.bf16.mxu0 0
      %880 = vmatpush1.bf16.msra.mxu0 0
      %881 = vmatprep.subr.bf16.mxu0 0
      %882 = vmatpush1.bf16.msra.mxu0 0
      %883 = vmatprep.subr.bf16.mxu0 0
      %884 = vmatpush1.bf16.msra.mxu0 0
      %885 = vmatprep.subr.bf16.mxu0 0
      %886 = vmatpush1.bf16.msra.mxu0 0
      %887 = vmatprep.subr.bf16.mxu0 0
      %888 = vmatpush1.bf16.msra.mxu0 0
      %889 = vmatprep.subr.bf16.mxu0 0
      %890 = vmatpush1.bf16.msra.mxu0 0
      %891 = vmatprep.subr.bf16.mxu0 0
      %892 = vmatpush1.bf16.msra.mxu0 0
      %893 = vmatprep.subr.bf16.mxu0 0
      %894 = vmatpush1.bf16.msra.mxu0 0
      %895 = vmatprep.subr.bf16.mxu0 0
      %896 = vmatpush1.bf16.msra.mxu0 0
      %897 = vmatprep.subr.bf16.mxu0 0
      %898 = vmatpush1.bf16.msra.mxu0 0
      %899 = vmatprep.subr.bf16.mxu0 0
      %900 = vmatpush1.bf16.msra.mxu0 0
      %901 = vmatprep.subr.bf16.mxu0 0
      %902 = vmatpush1.bf16.msra.mxu0 0
      %903 = vmatprep.mubr.bf16.mxu0 0
      %904 = vmatmul.mubr.bf16.gmra.mrb[0].mxu0 %v869
      %v905 = vpop.f32.mrb[0].mxu0
      %v906 = vadd.f32 0.0, %v905
      %v907 = vpop.f32.mrb[0].mxu0
      %v908 = vpop.f32.mrb[0].mxu0
      %v909 = vpop.f32.mrb[0].mxu0
      %910 = vdwg.mxu0
      %s911 = scalar_lea.vmem %s4, 8
      %v912 = vld [vmem:[%s911] sm:$0x1]
      %v914 = vlaneseq
      %v915 = vshrl.u32 %v914, 7
      %v916 = vsub.s32 0, %v915
      %v917 = vrot.slane %v912, %v916
      %v919 = vmul.f32 %v906, %v917
      %v920 = vadd.f32 %v865, %v919
      %v921 = vld [vmem:[%s5] sm:$0x1]
      %v923 = vlaneseq
      %v924 = vshrl.u32 %v923, 7
      %v925 = vsub.s32 0, %v924
      %v926 = vrot.slane %v921, %v925
      %v928 = vadd.f32 %v920, %v926
      %v929 = vpack.c.bf16 %v928, %v928
      %v930 = vld [vmem:[%s6] sm:$0xf]
      %v931 = vld [vmem:[%s7] sm:$0x1]
      %v933 = vlaneseq
      %v934 = vshrl.u32 %v933, 7
      %v935 = vsub.s32 0, %v934
      %v936 = vrot.slane %v931, %v935
      %vm938 = vcmask 64512
      %v940 = vsel %vm938, %v929, 0
      %vm942 = vcmask 1043456
      %v944 = vsel %vm942, %v930, 0
      %946 = vmatprep.subr.bf16.mxu0 0
      %947 = vmatpush1.bf16.msra.mxu0 %v944
      %948 = vmatprep.subr.bf16.mxu0 0
      %949 = vmatpush1.bf16.msra.mxu0 0
      %950 = vmatprep.subr.bf16.mxu0 0
      %951 = vmatpush1.bf16.msra.mxu0 0
      %952 = vmatprep.subr.bf16.mxu0 0
      %953 = vmatpush1.bf16.msra.mxu0 0
      %954 = vmatprep.subr.bf16.mxu0 0
      %955 = vmatpush1.bf16.msra.mxu0 0
      %956 = vmatprep.subr.bf16.mxu0 0
      %957 = vmatpush1.bf16.msra.mxu0 0
      %958 = vmatprep.subr.bf16.mxu0 0
      %959 = vmatpush1.bf16.msra.mxu0 0
      %960 = vmatprep.subr.bf16.mxu0 0
      %961 = vmatpush1.bf16.msra.mxu0 0
      %962 = vmatprep.subr.bf16.mxu0 0
      %963 = vmatpush1.bf16.msra.mxu0 0
      %964 = vmatprep.subr.bf16.mxu0 0
      %965 = vmatpush1.bf16.msra.mxu0 0
      %966 = vmatprep.subr.bf16.mxu0 0
      %967 = vmatpush1.bf16.msra.mxu0 0
      %968 = vmatprep.subr.bf16.mxu0 0
      %969 = vmatpush1.bf16.msra.mxu0 0
      %970 = vmatprep.subr.bf16.mxu0 0
      %971 = vmatpush1.bf16.msra.mxu0 0
      %972 = vmatprep.subr.bf16.mxu0 0
      %973 = vmatpush1.bf16.msra.mxu0 0
      %974 = vmatprep.subr.bf16.mxu0 0
      %975 = vmatpush1.bf16.msra.mxu0 0
      %976 = vmatprep.subr.bf16.mxu0 0
      %977 = vmatpush1.bf16.msra.mxu0 0
      %978 = vmatprep.mubr.bf16.mxu0 0
      %979 = vmatmul.mubr.bf16.gmra.mrb[0].mxu0 %v940
      %v980 = vpop.f32.mrb[0].mxu0
      %v981 = vadd.f32 %v936, %v980
      %v982 = vpop.f32.mrb[0].mxu0
      %v983 = vpop.f32.mrb[0].mxu0
      %v984 = vpop.f32.mrb[0].mxu0
      %985 = vdwg.mxu0
      %v986 = vld [vmem:[%s8] sm:$0x3]
      %v989 = vsel %vm381, %v986, 0
      %991 = vmatprep.subr.bf16.mxu0 0
      %992 = vmatpush1.bf16.msra.mxu0 %v374
      %993 = vmatprep.subr.bf16.mxu0 0
      %994 = vmatpush1.bf16.msra.mxu0 0
      %995 = vmatprep.subr.bf16.mxu0 0
      %996 = vmatpush1.bf16.msra.mxu0 0
      %997 = vmatprep.subr.bf16.mxu0 0
      %998 = vmatpush1.bf16.msra.mxu0 0
      %999 = vmatprep.subr.bf16.mxu0 0
      %1000 = vmatpush1.bf16.msra.mxu0 0
      %1001 = vmatprep.subr.bf16.mxu0 0
      %1002 = vmatpush1.bf16.msra.mxu0 0
      %1003 = vmatprep.subr.bf16.mxu0 0
      %1004 = vmatpush1.bf16.msra.mxu0 0
      %1005 = vmatprep.subr.bf16.mxu0 0
      %1006 = vmatpush1.bf16.msra.mxu0 0
      %1007 = vmatprep.subr.bf16.mxu0 0
      %1008 = vmatpush1.bf16.msra.mxu0 0
      %1009 = vmatprep.subr.bf16.mxu0 0
      %1010 = vmatpush1.bf16.msra.mxu0 0
      %1011 = vmatprep.subr.bf16.mxu0 0
      %1012 = vmatpush1.bf16.msra.mxu0 0
      %1013 = vmatprep.subr.bf16.mxu0 0
      %1014 = vmatpush1.bf16.msra.mxu0 0
      %1015 = vmatprep.subr.bf16.mxu0 0
      %1016 = vmatpush1.bf16.msra.mxu0 0
      %1017 = vmatprep.subr.bf16.mxu0 0
      %1018 = vmatpush1.bf16.msra.mxu0 0
      %1019 = vmatprep.subr.bf16.mxu0 0
      %1020 = vmatpush1.bf16.msra.mxu0 0
      %1021 = vmatprep.subr.bf16.mxu0 0
      %1022 = vmatpush1.bf16.msra.mxu0 0
      %1023 = vmatprep.mubr.bf16.mxu0 0
      %1024 = vmatmul.mubr.bf16.gmra.mrb[0].mxu0 %v989
      %v1025 = vpop.f32.mrb[0].mxu0
      %v1026 = vadd.f32 0.0, %v1025
      %v1027 = vpop.f32.mrb[0].mxu0
      %v1028 = vpop.f32.mrb[0].mxu0
      %v1029 = vpop.f32.mrb[0].mxu0
      %1030 = vdwg.mxu0
      %v1031 = vmul.f32 %v1026, 0.11111111
      %v1032 = vpack.c.bf16 %v1031, %v1031
      %v1033 = vld [vmem:[%s9] sm:$0xf]
      %v1034 = vld [vmem:[%s9 + $0x4] sm:$0xf]
      %v1037 = vunpack.c.l.b16 %v1033
      %v1038 = vunpack.c.l.b16 %v1034
      %v1039 = vpack.c.b16 %v1038, %v1037
      %v1042 = vsel %vm381, %v1032, 0
      %1044 = vmatprep.subr.bf16.mxu0 0
      %1045 = vmatpush1.bf16.msra.mxu0 %v1039
      %1046 = vmatprep.subr.bf16.mxu0 0
      %1047 = vmatpush1.bf16.msra.mxu0 0
      %1048 = vmatprep.subr.bf16.mxu0 0
      %1049 = vmatpush1.bf16.msra.mxu0 0
      %1050 = vmatprep.subr.bf16.mxu0 0
      %1051 = vmatpush1.bf16.msra.mxu0 0
      %1052 = vmatprep.subr.bf16.mxu0 0
      %1053 = vmatpush1.bf16.msra.mxu0 0
      %1054 = vmatprep.subr.bf16.mxu0 0
      %1055 = vmatpush1.bf16.msra.mxu0 0
      %1056 = vmatprep.subr.bf16.mxu0 0
      %1057 = vmatpush1.bf16.msra.mxu0 0
      %1058 = vmatprep.subr.bf16.mxu0 0
      %1059 = vmatpush1.bf16.msra.mxu0 0
      %1060 = vmatprep.subr.bf16.mxu0 0
      %1061 = vmatpush1.bf16.msra.mxu0 0
      %1062 = vmatprep.subr.bf16.mxu0 0
      %1063 = vmatpush1.bf16.msra.mxu0 0
      %1064 = vmatprep.subr.bf16.mxu0 0
      %1065 = vmatpush1.bf16.msra.mxu0 0
      %1066 = vmatprep.subr.bf16.mxu0 0
      %1067 = vmatpush1.bf16.msra.mxu0 0
      %1068 = vmatprep.subr.bf16.mxu0 0
      %1069 = vmatpush1.bf16.msra.mxu0 0
      %1070 = vmatprep.subr.bf16.mxu0 0
      %1071 = vmatpush1.bf16.msra.mxu0 0
      %1072 = vmatprep.subr.bf16.mxu0 0
      %1073 = vmatpush1.bf16.msra.mxu0 0
      %1074 = vmatprep.subr.bf16.mxu0 0
      %1075 = vmatpush1.bf16.msra.mxu0 0
      %1076 = vmatprep.mubr.bf16.mxu0 0
      %1077 = vmatmul.mubr.bf16.gmra.mrb[0].mxu0 %v1042
      %v1078 = vpop.f32.mrb[0].mxu0
      %v1079 = vadd.f32 0.0, %v1078
      %v1080 = vpop.f32.mrb[0].mxu0
      %v1081 = vpop.f32.mrb[0].mxu0
      %v1082 = vpop.f32.mrb[0].mxu0
      %1083 = vdwg.mxu0
      %v1084 = vadd.f32 %v981, %v1079
      %v1085 = vmax.f32 %v1084, 0.0
      %v1086 = vpack.c.bf16 %v1085, %v1085
      %vm1087 = vcmask 254976
      %1088 = vst.msk [vmem:[%s357] sm:$0x3] %vm1087, %v1086
      %p1089 = scmp.lt.s32.totalorder %s21, 1
      %s1090 = scalar_select %p1089, %s21, 1
      %s1091 = smul.addr %s1090, 2
      %s1092 = scalar_lea.vmem %s10, %s1091
      // Predicated region
      $region61: #{shufflenet_forward.11} parent=59 // pred_check
        %p1093 = pneg %p254
      $region62: #{shufflenet_forward.11} parent=59 // pred_check_branch
        %1095 = sbr.rel (%p1093) target = $region64
      $region63: #{shufflenet_forward.11} parent=59 // pred_region
        _
      $region64: #{shufflenet_forward.11} parent=59 // pred_fallthru
        _
    $region60: #{shufflenet_forward.11} parent=5 // pred_fallthru
      _
    %p1096 = scmp.le.s32.totalorder 2, %s16
    // Predicated region
    $region65: #{shufflenet_forward.11} parent=5 // pred_check
      %p1097 = pneg %p1096
    $region66: #{shufflenet_forward.11} parent=5 // pred_check_branch
      %1099 = sbr.rel (%p1097) target = $region68
    $region67: #{shufflenet_forward.11} parent=5 // pred_region
      %s1100 = ssub.s32 %s16, 2
      // Predicated region
      $region69: #{shufflenet_forward.11} parent=67 // pred_check
        %p1101 = pneg %p260
      $region70: #{shufflenet_forward.11} parent=67 // pred_check_branch
        %1103 = sbr.rel (%p1101) target = $region72
      $region71: #{shufflenet_forward.11} parent=67 // pred_region
        %p1104 = scmp.lt.s32.totalorder %s22, 1
        %s1105 = scalar_select %p1104, %s22, 1
        %s1106 = smul.addr %s1105, 2
        %s1107 = scalar_lea.vmem %s10, %s1106
      $region72: #{shufflenet_forward.11} parent=67 // pred_fallthru
        _
    $region68: #{shufflenet_forward.11} parent=5 // pred_fallthru
      _
  $region6: #{shufflenet_forward.11} parent=0 // loop_footer
    %s20 = sadd.s32 1, %s16
  $region7: #{shufflenet_forward.11} parent=0 // loop_footer_branch
    %15 = sbr.rel target = $region3
  $region8: #{shufflenet_forward.11} parent=0 // loop_exit
    _

// kernel: shufflenet_forward.14
$region0: #{shufflenet_forward.14}
  #allocation0 [shape = 'u32[]', space=smem, size = 0x4, offset = 0x4, fixed_abs, tag = 'smem constant byte address 0x4 - core index']
  #allocation1 [shape = 'u32[144,128]{1,0:T(1,128)}', space=vmem, size = 0x12000, scoped, tag = 'internal scratch']
  %s0 = inlined_call_operand.vmem [shape: bf16[2,1,64], index: 0, kind: input, shape index: {}]
  %s1 = inlined_call_operand.vmem [shape: bf16[64,16], index: 1, kind: input, shape index: {}]
  %s2 = inlined_call_operand.vmem [shape: f32[1,16], index: 2, kind: input, shape index: {}]
  %s3 = inlined_call_operand.vmem [shape: bf16[9,1,1], index: 3, kind: input, shape index: {}]
  %s4 = inlined_call_operand.vmem [shape: f32[9,1,16], index: 4, kind: input, shape index: {}]
  %s5 = inlined_call_operand.vmem [shape: f32[1,16], index: 5, kind: input, shape index: {}]
  %s6 = inlined_call_operand.vmem [shape: bf16[16,64], index: 6, kind: input, shape index: {}]
  %s7 = inlined_call_operand.vmem [shape: f32[1,64], index: 7, kind: input, shape index: {}]
  %s8 = inlined_call_operand.vmem [shape: bf16[2,1,64], index: 8, kind: output, shape index: {}]
  %s9 = sld [smem:[#allocation0]]
  $region65: #{shufflenet_forward.14} parent=0
    _
  %s11 = ssub.s32 1, %s9
  %s12 = scalar_select 0, %s11, %s9
  loop: start=0, step=1, limit=4
  $region2: #{shufflenet_forward.14} parent=0 // loop_pre_header
    _
  $region3: #{shufflenet_forward.14} parent=0 // loop_header
    %s14 = sphi 0, %s18
    %p15 = scmp.ge.s32.totalorder %s14, 4
    %s24 = sphi 0, %s26
    %s27 = sphi 0, %s24
    %s28 = sphi 0, %s27
    %s44 = sphi 0, %s28
    %s48 = sphi 0, %s48
    %s50 = sphi 0, %s48
    %s51 = sphi 0, %s50
    %s65 = sphi 0, %s51
    %s69 = sphi 0, %s69
    %s71 = sphi 0, %s69
    %s72 = sphi 0, %s71
    %s86 = sphi 0, %s72
    %s90 = sphi 0, %s90
    %s92 = sphi 0, %s90
    %s93 = sphi 0, %s92
    %s107 = sphi 0, %s93
    %s111 = sphi 0, %s111
    %s113 = sphi 0, %s111
    %s114 = sphi 0, %s113
    %s128 = sphi 0, %s114
    %s132 = sphi 0, %s132
    %s134 = sphi 0, %s132
    %s135 = sphi 0, %s134
    %s149 = sphi 0, %s135
    %s153 = sphi 0, %s153
    %s155 = sphi 0, %s153
    %s156 = sphi 0, %s155
    %s170 = sphi 0, %s156
    %s174 = sphi 0, %s174
    %s176 = sphi 0, %s174
    %s177 = sphi 0, %s176
    %s191 = sphi 0, %s177
    %s197 = sphi 0, %s199
    %s200 = sphi 0, %s197
    %s201 = sphi 0, %s200
    %s217 = sphi 0, %s201
  $region4: #{shufflenet_forward.14} parent=0 // loop_header_branch
    %17 = sbr.rel (%p15) target = $region8
  $region5: #{shufflenet_forward.14} parent=0 // loop_body
    %s19 = ssub.s32 %s14, 1
    %s20 = ssub.s32 %s14, 2
    %s21 = sadd.s32 %s14, 1
    %s22 = ssub.s32 %s14, %s21
    %p23 = scmp.eq.s32.totalorder %s22, 0
    %s25 = sadd.s32 %s24, 1
    %s26 = scalar_select %p23, %s24, %s25
    %p29 = pneg %p23
    %p30 = scmp.eq.s32.totalorder %s14, 1
    %p31 = por %p29, %p30
    %p32 = scmp.ne.s32.totalorder %s24, %s27
    %p33 = scmp.eq.s32.totalorder %s14, 0
    %p34 = por %p32, %p33
    %p35 = scmp.ne.s32.totalorder %s24, %s27
    %p36 = scmp.eq.s32.totalorder %s19, 1
    %p37 = por %p35, %p36
    %p38 = scmp.ne.s32.totalorder %s27, %s28
    %p39 = scmp.eq.s32.totalorder %s19, 0
    %p40 = por %p38, %p39
    %p41 = scmp.ne.s32.totalorder %s27, %s28
    %p42 = scmp.eq.s32.totalorder %s20, 1
    %p43 = por %p41, %p42
    %p45 = scmp.ne.s32.totalorder %s28, %s44
    %p46 = scmp.eq.s32.totalorder %s20, 0
    %p47 = por %p45, %p46
    %s49 = sadd.s32 %s48, 1
    %p52 = scmp.eq.s32.totalorder %s14, 1
    %p53 = scmp.ne.s32.totalorder %s48, %s50
    %p54 = scmp.eq.s32.totalorder %s14, 0
    %p55 = por %p53, %p54
    %p56 = scmp.ne.s32.totalorder %s48, %s50
    %p57 = scmp.eq.s32.totalorder %s19, 1
    %p58 = por %p56, %p57
    %p59 = scmp.ne.s32.totalorder %s50, %s51
    %p60 = scmp.eq.s32.totalorder %s19, 0
    %p61 = por %p59, %p60
    %p62 = scmp.ne.s32.totalorder %s50, %s51
    %p63 = scmp.eq.s32.totalorder %s20, 1
    %p64 = por %p62, %p63
    %p66 = scmp.ne.s32.totalorder %s51, %s65
    %p67 = scmp.eq.s32.totalorder %s20, 0
    %p68 = por %p66, %p67
    %s70 = sadd.s32 %s69, 1
    %p73 = scmp.eq.s32.totalorder %s14, 1
    %p74 = scmp.ne.s32.totalorder %s69, %s71
    %p75 = scmp.eq.s32.totalorder %s14, 0
    %p76 = por %p74, %p75
    %p77 = scmp.ne.s32.totalorder %s69, %s71
    %p78 = scmp.eq.s32.totalorder %s19, 1
    %p79 = por %p77, %p78
    %p80 = scmp.ne.s32.totalorder %s71, %s72
    %p81 = scmp.eq.s32.totalorder %s19, 0
    %p82 = por %p80, %p81
    %p83 = scmp.ne.s32.totalorder %s71, %s72
    %p84 = scmp.eq.s32.totalorder %s20, 1
    %p85 = por %p83, %p84
    %p87 = scmp.ne.s32.totalorder %s72, %s86
    %p88 = scmp.eq.s32.totalorder %s20, 0
    %p89 = por %p87, %p88
    %s91 = sadd.s32 %s90, 1
    %p94 = scmp.eq.s32.totalorder %s14, 1
    %p95 = scmp.ne.s32.totalorder %s90, %s92
    %p96 = scmp.eq.s32.totalorder %s14, 0
    %p97 = por %p95, %p96
    %p98 = scmp.ne.s32.totalorder %s90, %s92
    %p99 = scmp.eq.s32.totalorder %s19, 1
    %p100 = por %p98, %p99
    %p101 = scmp.ne.s32.totalorder %s92, %s93
    %p102 = scmp.eq.s32.totalorder %s19, 0
    %p103 = por %p101, %p102
    %p104 = scmp.ne.s32.totalorder %s92, %s93
    %p105 = scmp.eq.s32.totalorder %s20, 1
    %p106 = por %p104, %p105
    %p108 = scmp.ne.s32.totalorder %s93, %s107
    %p109 = scmp.eq.s32.totalorder %s20, 0
    %p110 = por %p108, %p109
    %s112 = sadd.s32 %s111, 1
    %p115 = scmp.eq.s32.totalorder %s14, 1
    %p116 = scmp.ne.s32.totalorder %s111, %s113
    %p117 = scmp.eq.s32.totalorder %s14, 0
    %p118 = por %p116, %p117
    %p119 = scmp.ne.s32.totalorder %s111, %s113
    %p120 = scmp.eq.s32.totalorder %s19, 1
    %p121 = por %p119, %p120
    %p122 = scmp.ne.s32.totalorder %s113, %s114
    %p123 = scmp.eq.s32.totalorder %s19, 0
    %p124 = por %p122, %p123
    %p125 = scmp.ne.s32.totalorder %s113, %s114
    %p126 = scmp.eq.s32.totalorder %s20, 1
    %p127 = por %p125, %p126
    %p129 = scmp.ne.s32.totalorder %s114, %s128
    %p130 = scmp.eq.s32.totalorder %s20, 0
    %p131 = por %p129, %p130
    %s133 = sadd.s32 %s132, 1
    %p136 = scmp.eq.s32.totalorder %s14, 1
    %p137 = scmp.ne.s32.totalorder %s132, %s134
    %p138 = scmp.eq.s32.totalorder %s14, 0
    %p139 = por %p137, %p138
    %p140 = scmp.ne.s32.totalorder %s132, %s134
    %p141 = scmp.eq.s32.totalorder %s19, 1
    %p142 = por %p140, %p141
    %p143 = scmp.ne.s32.totalorder %s134, %s135
    %p144 = scmp.eq.s32.totalorder %s19, 0
    %p145 = por %p143, %p144
    %p146 = scmp.ne.s32.totalorder %s134, %s135
    %p147 = scmp.eq.s32.totalorder %s20, 1
    %p148 = por %p146, %p147
    %p150 = scmp.ne.s32.totalorder %s135, %s149
    %p151 = scmp.eq.s32.totalorder %s20, 0
    %p152 = por %p150, %p151
    %s154 = sadd.s32 %s153, 1
    %p157 = scmp.eq.s32.totalorder %s14, 1
    %p158 = scmp.ne.s32.totalorder %s153, %s155
    %p159 = scmp.eq.s32.totalorder %s14, 0
    %p160 = por %p158, %p159
    %p161 = scmp.ne.s32.totalorder %s153, %s155
    %p162 = scmp.eq.s32.totalorder %s19, 1
    %p163 = por %p161, %p162
    %p164 = scmp.ne.s32.totalorder %s155, %s156
    %p165 = scmp.eq.s32.totalorder %s19, 0
    %p166 = por %p164, %p165
    %p167 = scmp.ne.s32.totalorder %s155, %s156
    %p168 = scmp.eq.s32.totalorder %s20, 1
    %p169 = por %p167, %p168
    %p171 = scmp.ne.s32.totalorder %s156, %s170
    %p172 = scmp.eq.s32.totalorder %s20, 0
    %p173 = por %p171, %p172
    %s175 = sadd.s32 %s174, 1
    %p178 = scmp.eq.s32.totalorder %s14, 1
    %p179 = scmp.ne.s32.totalorder %s174, %s176
    %p180 = scmp.eq.s32.totalorder %s14, 0
    %p181 = por %p179, %p180
    %p182 = scmp.ne.s32.totalorder %s174, %s176
    %p183 = scmp.eq.s32.totalorder %s19, 1
    %p184 = por %p182, %p183
    %p185 = scmp.ne.s32.totalorder %s176, %s177
    %p186 = scmp.eq.s32.totalorder %s19, 0
    %p187 = por %p185, %p186
    %p188 = scmp.ne.s32.totalorder %s176, %s177
    %p189 = scmp.eq.s32.totalorder %s20, 1
    %p190 = por %p188, %p189
    %p192 = scmp.ne.s32.totalorder %s177, %s191
    %p193 = scmp.eq.s32.totalorder %s20, 0
    %p194 = por %p192, %p193
    %s195 = ssub.s32 %s14, %s21
    %p196 = scmp.eq.s32.totalorder %s195, 0
    %s198 = sadd.s32 %s197, 1
    %s199 = scalar_select %p196, %s197, %s198
    %p202 = pneg %p196
    %p203 = scmp.eq.s32.totalorder %s14, 1
    %p204 = por %p202, %p203
    %p205 = scmp.ne.s32.totalorder %s197, %s200
    %p206 = scmp.eq.s32.totalorder %s14, 0
    %p207 = por %p205, %p206
    %p208 = scmp.ne.s32.totalorder %s197, %s200
    %p209 = scmp.eq.s32.totalorder %s19, 1
    %p210 = por %p208, %p209
    %p211 = scmp.ne.s32.totalorder %s200, %s201
    %p212 = scmp.eq.s32.totalorder %s19, 0
    %p213 = por %p211, %p212
    %p214 = scmp.ne.s32.totalorder %s200, %s201
    %p215 = scmp.eq.s32.totalorder %s20, 1
    %p216 = por %p214, %p215
    %p218 = scmp.ne.s32.totalorder %s201, %s217
    %p219 = scmp.eq.s32.totalorder %s20, 0
    %p220 = por %p218, %p219
    %p221 = scmp.le.s32.totalorder 1, %s14
    %p222 = scmp.lt.s32.totalorder %s14, 3
    %p223 = pnand %p221, %p222
    %p224 = pneg %p223
    // Predicated region
    $region9: #{shufflenet_forward.14} parent=5 // pred_check
      _
    $region10: #{shufflenet_forward.14} parent=5 // pred_check_branch
      %226 = sbr.rel (%p223) target = $region12
    $region11: #{shufflenet_forward.14} parent=5 // pred_region
      %s227 = ssub.s32 %s14, 1
      // Predicated region
      $region13: #{shufflenet_forward.14} parent=11 // pred_check
        %p228 = pneg %p61
      $region14: #{shufflenet_forward.14} parent=11 // pred_check_branch
        %230 = sbr.rel (%p228) target = $region16
      $region15: #{shufflenet_forward.14} parent=11 // pred_region
        _
      $region16: #{shufflenet_forward.14} parent=11 // pred_fallthru
        _
      // Predicated region
      $region17: #{shufflenet_forward.14} parent=11 // pred_check
        %p231 = pneg %p82
      $region18: #{shufflenet_forward.14} parent=11 // pred_check_branch
        %233 = sbr.rel (%p231) target = $region20
      $region19: #{shufflenet_forward.14} parent=11 // pred_region
        _
      $region20: #{shufflenet_forward.14} parent=11 // pred_fallthru
        _
      // Predicated region
      $region21: #{shufflenet_forward.14} parent=11 // pred_check
        %p234 = pneg %p103
      $region22: #{shufflenet_forward.14} parent=11 // pred_check_branch
        %236 = sbr.rel (%p234) target = $region24
      $region23: #{shufflenet_forward.14} parent=11 // pred_region
        _
      $region24: #{shufflenet_forward.14} parent=11 // pred_fallthru
        _
      // Predicated region
      $region25: #{shufflenet_forward.14} parent=11 // pred_check
        %p237 = pneg %p124
      $region26: #{shufflenet_forward.14} parent=11 // pred_check_branch
        %239 = sbr.rel (%p237) target = $region28
      $region27: #{shufflenet_forward.14} parent=11 // pred_region
        _
      $region28: #{shufflenet_forward.14} parent=11 // pred_fallthru
        _
      // Predicated region
      $region29: #{shufflenet_forward.14} parent=11 // pred_check
        %p240 = pneg %p145
      $region30: #{shufflenet_forward.14} parent=11 // pred_check_branch
        %242 = sbr.rel (%p240) target = $region32
      $region31: #{shufflenet_forward.14} parent=11 // pred_region
        _
      $region32: #{shufflenet_forward.14} parent=11 // pred_fallthru
        _
      // Predicated region
      $region33: #{shufflenet_forward.14} parent=11 // pred_check
        %p243 = pneg %p166
      $region34: #{shufflenet_forward.14} parent=11 // pred_check_branch
        %245 = sbr.rel (%p243) target = $region36
      $region35: #{shufflenet_forward.14} parent=11 // pred_region
        _
      $region36: #{shufflenet_forward.14} parent=11 // pred_fallthru
        _
      // Predicated region
      $region37: #{shufflenet_forward.14} parent=11 // pred_check
        %p246 = pneg %p187
      $region38: #{shufflenet_forward.14} parent=11 // pred_check_branch
        %248 = sbr.rel (%p246) target = $region40
      $region39: #{shufflenet_forward.14} parent=11 // pred_region
        _
      $region40: #{shufflenet_forward.14} parent=11 // pred_fallthru
        _
    $region12: #{shufflenet_forward.14} parent=5 // pred_fallthru
      _
    %p249 = scmp.lt.s32.totalorder %s14, 2
    // Predicated region
    $region41: #{shufflenet_forward.14} parent=5 // pred_check
      %p250 = pneg %p249
    $region42: #{shufflenet_forward.14} parent=5 // pred_check_branch
      %252 = sbr.rel (%p250) target = $region44
    $region43: #{shufflenet_forward.14} parent=5 // pred_region
      // Predicated region
      $region45: #{shufflenet_forward.14} parent=43 // pred_check
        %p253 = pneg %p34
      $region46: #{shufflenet_forward.14} parent=43 // pred_check_branch
        %255 = sbr.rel (%p253) target = $region48
      $region47: #{shufflenet_forward.14} parent=43 // pred_region
        %p256 = scmp.lt.s32.totalorder %s14, 1
        %s257 = scalar_select %p256, %s14, 1
        %s258 = scalar_lea.vmem %s0, %s257
      $region48: #{shufflenet_forward.14} parent=43 // pred_fallthru
        _
    $region44: #{shufflenet_forward.14} parent=5 // pred_fallthru
      _
    %p259 = scmp.le.s32.totalorder 1, %s14
    %p260 = scmp.lt.s32.totalorder %s14, 3
    %p261 = pnand %p259, %p260
    %p262 = pneg %p261
    // Predicated region
    $region49: #{shufflenet_forward.14} parent=5 // pred_check
      _
    $region50: #{shufflenet_forward.14} parent=5 // pred_check_branch
      %264 = sbr.rel (%p261) target = $region52
    $region51: #{shufflenet_forward.14} parent=5 // pred_region
      %s265 = ssub.s32 %s14, 1
      %p266 = scmp.lt.s32.totalorder %s19, 1
      %s267 = scalar_select %p266, %s19, 1
      %s268 = scalar_lea.vmem %s0, %s267
      %p269 = pneg %p40
      %p270 = pneg %p37
      %p271 = pneg %p61
      %p272 = pneg %p58
      %p273 = pneg %p82
      %p274 = pneg %p79
      %p275 = pneg %p103
      %p276 = pneg %p100
      %p277 = pneg %p124
      %p278 = pneg %p121
      %p279 = pneg %p145
      %p280 = pneg %p142
      %p281 = pneg %p166
      %p282 = pneg %p163
      %p283 = pneg %p187
      %p284 = pneg %p184
      %p285 = pneg %p213
      %p286 = pneg %p210
      %p287 = scmp.lt.s32.totalorder %s19, 1
      %s288 = scalar_select %p287, %s19, 1
      %s289 = scalar_lea.vmem %s8, %s288
      %p290 = scmp.lt.s32.totalorder %s19, 1
      %s291 = scalar_select %p290, %s19, 1
      %s292 = scalar_lea.vmem %s0, %s291
      %p293 = scmp.lt.s32.totalorder %s19, 1
      %s294 = scalar_select %p293, %s19, 1
      %s295 = scalar_lea.vmem %s8, %s294
      %v297 = vld [vmem:[%s292] sm:$0x1]
      %v298 = vld [vmem:[%s1] sm:$0xf]
      %v299 = vld [vmem:[%s1 + $0x4] sm:$0xf]
      %v300 = vld [vmem:[%s1 + $0x8] sm:$0xf]
      %v301 = vld [vmem:[%s1 + $0xc] sm:$0xf]
      %v302 = vld [vmem:[%s1 + $0x10] sm:$0xf]
      %v303 = vld [vmem:[%s1 + $0x14] sm:$0xf]
      %v304 = vld [vmem:[%s1 + $0x18] sm:$0xf]
      %v305 = vld [vmem:[%s1 + $0x1c] sm:$0xf]
      %v306 = vld [vmem:[%s2] sm:$0x1]
      %v315 = vunpack.c.l.b16 %v298
      %v316 = vunpack.c.l.b16 %v299
      %v317 = vunpack.c.l.b16 %v300
      %v318 = vunpack.c.l.b16 %v301
      %v319 = vunpack.c.l.b16 %v302
      %v320 = vunpack.c.l.b16 %v303
      %v321 = vunpack.c.l.b16 %v304
      %v322 = vunpack.c.l.b16 %v305
      %v323 = vpack.c.b16 %v316, %v315
      %v324 = vpack.c.b16 %v318, %v317
      %v325 = vpack.c.b16 %v320, %v319
      %v326 = vpack.c.b16 %v322, %v321
      %vm331 = vcmask 523264
      %v333 = vsel %vm331, %v297, 0
      %335 = vmatprep.subr.bf16.mxu0 0
      %336 = vmatpush1.bf16.msra.mxu0 %v323
      %337 = vmatprep.subr.bf16.mxu0 0
      %338 = vmatpush1.bf16.msra.mxu0 %v324
      %339 = vmatprep.subr.bf16.mxu0 0
      %340 = vmatpush1.bf16.msra.mxu0 %v325
      %341 = vmatprep.subr.bf16.mxu0 0
      %342 = vmatpush1.bf16.msra.mxu0 %v326
      %343 = vmatprep.subr.bf16.mxu0 0
      %344 = vmatpush1.bf16.msra.mxu0 0
      %345 = vmatprep.subr.bf16.mxu0 0
      %346 = vmatpush1.bf16.msra.mxu0 0
      %347 = vmatprep.subr.bf16.mxu0 0
      %348 = vmatpush1.bf16.msra.mxu0 0
      %349 = vmatprep.subr.bf16.mxu0 0
      %350 = vmatpush1.bf16.msra.mxu0 0
      %351 = vmatprep.subr.bf16.mxu0 0
      %352 = vmatpush1.bf16.msra.mxu0 0
      %353 = vmatprep.subr.bf16.mxu0 0
      %354 = vmatpush1.bf16.msra.mxu0 0
      %355 = vmatprep.subr.bf16.mxu0 0
      %356 = vmatpush1.bf16.msra.mxu0 0
      %357 = vmatprep.subr.bf16.mxu0 0
      %358 = vmatpush1.bf16.msra.mxu0 0
      %359 = vmatprep.subr.bf16.mxu0 0
      %360 = vmatpush1.bf16.msra.mxu0 0
      %361 = vmatprep.subr.bf16.mxu0 0
      %362 = vmatpush1.bf16.msra.mxu0 0
      %363 = vmatprep.subr.bf16.mxu0 0
      %364 = vmatpush1.bf16.msra.mxu0 0
      %365 = vmatprep.subr.bf16.mxu0 0
      %366 = vmatpush1.bf16.msra.mxu0 0
      %367 = vmatprep.mubr.bf16.mxu0 0
      %368 = vmatmul.mubr.bf16.gmra.mrb[0].mxu0 %v333
      %v369 = vpop.f32.mrb[0].mxu0
      %v370 = vadd.f32 %v306, %v369
      %v371 = vpop.f32.mrb[0].mxu0
      %v372 = vpop.f32.mrb[0].mxu0
      %v373 = vpop.f32.mrb[0].mxu0
      %374 = vdwg.mxu0
      %v375 = vmax.f32 %v370, 0.0
      %v376 = vpack.c.bf16 %v375, %v375
      %v377 = vld [vmem:[%s3] sm:$0x1]
      %vm378 = vcmask 7168
      %v380 = vsel %vm378, %v377, 0
      %vm382 = vcmask 1040384
      %v383 = vsel 0, 4294967295, 65535
      %v384 = vsel %vm382, %v383, 0
      %v386 = vand.u32 %v376, %v384
      %388 = vmatprep.subr.bf16.mxu0 0
      %389 = vmatpush1.bf16.msra.mxu0 %v386
      %390 = vmatprep.subr.bf16.mxu0 0
      %391 = vmatpush1.bf16.msra.mxu0 0
      %392 = vmatprep.subr.bf16.mxu0 0
      %393 = vmatpush1.bf16.msra.mxu0 0
      %394 = vmatprep.subr.bf16.mxu0 0
      %395 = vmatpush1.bf16.msra.mxu0 0
      %396 = vmatprep.subr.bf16.mxu0 0
      %397 = vmatpush1.bf16.msra.mxu0 0
      %398 = vmatprep.subr.bf16.mxu0 0
      %399 = vmatpush1.bf16.msra.mxu0 0
      %400 = vmatprep.subr.bf16.mxu0 0
      %401 = vmatpush1.bf16.msra.mxu0 0
      %402 = vmatprep.subr.bf16.mxu0 0
      %403 = vmatpush1.bf16.msra.mxu0 0
      %404 = vmatprep.subr.bf16.mxu0 0
      %405 = vmatpush1.bf16.msra.mxu0 0
      %406 = vmatprep.subr.bf16.mxu0 0
      %407 = vmatpush1.bf16.msra.mxu0 0
      %408 = vmatprep.subr.bf16.mxu0 0
      %409 = vmatpush1.bf16.msra.mxu0 0
      %410 = vmatprep.subr.bf16.mxu0 0
      %411 = vmatpush1.bf16.msra.mxu0 0
      %412 = vmatprep.subr.bf16.mxu0 0
      %413 = vmatpush1.bf16.msra.mxu0 0
      %414 = vmatprep.subr.bf16.mxu0 0
      %415 = vmatpush1.bf16.msra.mxu0 0
      %416 = vmatprep.subr.bf16.mxu0 0
      %417 = vmatpush1.bf16.msra.mxu0 0
      %418 = vmatprep.subr.bf16.mxu0 0
      %419 = vmatpush1.bf16.msra.mxu0 0
      %420 = vmatprep.mubr.bf16.mxu0 0
      %421 = vmatmul.mubr.bf16.gmra.mrb[0].mxu0 %v380
      %v422 = vpop.f32.mrb[0].mxu0
      %v423 = vadd.f32 0.0, %v422
      %v424 = vpop.f32.mrb[0].mxu0
      %v425 = vpop.f32.mrb[0].mxu0
      %v426 = vpop.f32.mrb[0].mxu0
      %427 = vdwg.mxu0
      %v428 = vld [vmem:[%s4] sm:$0x1]
      %v429 = vmul.f32 %v423, %v428
      %s430 = scalar_lea.vmem %s3, 1
      %v431 = vld [vmem:[%s430] sm:$0x1]
      %v433 = vsel %vm378, %v431, 0
      %435 = vmatprep.subr.bf16.mxu0 0
      %436 = vmatpush1.bf16.msra.mxu0 %v386
      %437 = vmatprep.subr.bf16.mxu0 0
      %438 = vmatpush1.bf16.msra.mxu0 0
      %439 = vmatprep.subr.bf16.mxu0 0
      %440 = vmatpush1.bf16.msra.mxu0 0
      %441 = vmatprep.subr.bf16.mxu0 0
      %442 = vmatpush1.bf16.msra.mxu0 0
      %443 = vmatprep.subr.bf16.mxu0 0
      %444 = vmatpush1.bf16.msra.mxu0 0
      %445 = vmatprep.subr.bf16.mxu0 0
      %446 = vmatpush1.bf16.msra.mxu0 0
      %447 = vmatprep.subr.bf16.mxu0 0
      %448 = vmatpush1.bf16.msra.mxu0 0
      %449 = vmatprep.subr.bf16.mxu0 0
      %450 = vmatpush1.bf16.msra.mxu0 0
      %451 = vmatprep.subr.bf16.mxu0 0
      %452 = vmatpush1.bf16.msra.mxu0 0
      %453 = vmatprep.subr.bf16.mxu0 0
      %454 = vmatpush1.bf16.msra.mxu0 0
      %455 = vmatprep.subr.bf16.mxu0 0
      %456 = vmatpush1.bf16.msra.mxu0 0
      %457 = vmatprep.subr.bf16.mxu0 0
      %458 = vmatpush1.bf16.msra.mxu0 0
      %459 = vmatprep.subr.bf16.mxu0 0
      %460 = vmatpush1.bf16.msra.mxu0 0
      %461 = vmatprep.subr.bf16.mxu0 0
      %462 = vmatpush1.bf16.msra.mxu0 0
      %463 = vmatprep.subr.bf16.mxu0 0
      %464 = vmatpush1.bf16.msra.mxu0 0
      %465 = vmatprep.subr.bf16.mxu0 0
      %466 = vmatpush1.bf16.msra.mxu0 0
      %467 = vmatprep.mubr.bf16.mxu0 0
      %468 = vmatmul.mubr.bf16.gmra.mrb[0].mxu0 %v433
      %v469 = vpop.f32.mrb[0].mxu0
      %v470 = vadd.f32 0.0, %v469
      %v471 = vpop.f32.mrb[0].mxu0
      %v472 = vpop.f32.mrb[0].mxu0
      %v473 = vpop.f32.mrb[0].mxu0
      %474 = vdwg.mxu0
      %s475 = scalar_lea.vmem %s4, 1
      %v476 = vld [vmem:[%s475] sm:$0x1]
      %v477 = vmul.f32 %v470, %v476
      %v478 = vadd.f32 %v429, %v477
      %s479 = scalar_lea.vmem %s3, 2
      %v480 = vld [vmem:[%s479] sm:$0x1]
      %v482 = vsel %vm378, %v480, 0
      %484 = vmatprep.subr.bf16.mxu0 0
      %485 = vmatpush1.bf16.msra.mxu0 %v386
      %486 = vmatprep.subr.bf16.mxu0 0
      %487 = vmatpush1.bf16.msra.mxu0 0
      %488 = vmatprep.subr.bf16.mxu0 0
      %489 = vmatpush1.bf16.msra.mxu0 0
      %490 = vmatprep.subr.bf16.mxu0 0
      %491 = vmatpush1.bf16.msra.mxu0 0
      %492 = vmatprep.subr.bf16.mxu0 0
      %493 = vmatpush1.bf16.msra.mxu0 0
      %494 = vmatprep.subr.bf16.mxu0 0
      %495 = vmatpush1.bf16.msra.mxu0 0
      %496 = vmatprep.subr.bf16.mxu0 0
      %497 = vmatpush1.bf16.msra.mxu0 0
      %498 = vmatprep.subr.bf16.mxu0 0
      %499 = vmatpush1.bf16.msra.mxu0 0
      %500 = vmatprep.subr.bf16.mxu0 0
      %501 = vmatpush1.bf16.msra.mxu0 0
      %502 = vmatprep.subr.bf16.mxu0 0
      %503 = vmatpush1.bf16.msra.mxu0 0
      %504 = vmatprep.subr.bf16.mxu0 0
      %505 = vmatpush1.bf16.msra.mxu0 0
      %506 = vmatprep.subr.bf16.mxu0 0
      %507 = vmatpush1.bf16.msra.mxu0 0
      %508 = vmatprep.subr.bf16.mxu0 0
      %509 = vmatpush1.bf16.msra.mxu0 0
      %510 = vmatprep.subr.bf16.mxu0 0
      %511 = vmatpush1.bf16.msra.mxu0 0
      %512 = vmatprep.subr.bf16.mxu0 0
      %513 = vmatpush1.bf16.msra.mxu0 0
      %514 = vmatprep.subr.bf16.mxu0 0
      %515 = vmatpush1.bf16.msra.mxu0 0
      %516 = vmatprep.mubr.bf16.mxu0 0
      %517 = vmatmul.mubr.bf16.gmra.mrb[0].mxu0 %v482
      %v518 = vpop.f32.mrb[0].mxu0
      %v519 = vadd.f32 0.0, %v518
      %v520 = vpop.f32.mrb[0].mxu0
      %v521 = vpop.f32.mrb[0].mxu0
      %v522 = vpop.f32.mrb[0].mxu0
      %523 = vdwg.mxu0
      %s524 = scalar_lea.vmem %s4, 2
      %v525 = vld [vmem:[%s524] sm:$0x1]
      %v526 = vmul.f32 %v519, %v525
      %v527 = vadd.f32 %v478, %v526
      %s528 = scalar_lea.vmem %s3, 3
      %v529 = vld [vmem:[%s528] sm:$0x1]
      %v531 = vsel %vm378, %v529, 0
      %533 = vmatprep.subr.bf16.mxu0 0
      %534 = vmatpush1.bf16.msra.mxu0 %v386
      %535 = vmatprep.subr.bf16.mxu0 0
      %536 = vmatpush1.bf16.msra.mxu0 0
      %537 = vmatprep.subr.bf16.mxu0 0
      %538 = vmatpush1.bf16.msra.mxu0 0
      %539 = vmatprep.subr.bf16.mxu0 0
      %540 = vmatpush1.bf16.msra.mxu0 0
      %541 = vmatprep.subr.bf16.mxu0 0
      %542 = vmatpush1.bf16.msra.mxu0 0
      %543 = vmatprep.subr.bf16.mxu0 0
      %544 = vmatpush1.bf16.msra.mxu0 0
      %545 = vmatprep.subr.bf16.mxu0 0
      %546 = vmatpush1.bf16.msra.mxu0 0
      %547 = vmatprep.subr.bf16.mxu0 0
      %548 = vmatpush1.bf16.msra.mxu0 0
      %549 = vmatprep.subr.bf16.mxu0 0
      %550 = vmatpush1.bf16.msra.mxu0 0
      %551 = vmatprep.subr.bf16.mxu0 0
      %552 = vmatpush1.bf16.msra.mxu0 0
      %553 = vmatprep.subr.bf16.mxu0 0
      %554 = vmatpush1.bf16.msra.mxu0 0
      %555 = vmatprep.subr.bf16.mxu0 0
      %556 = vmatpush1.bf16.msra.mxu0 0
      %557 = vmatprep.subr.bf16.mxu0 0
      %558 = vmatpush1.bf16.msra.mxu0 0
      %559 = vmatprep.subr.bf16.mxu0 0
      %560 = vmatpush1.bf16.msra.mxu0 0
      %561 = vmatprep.subr.bf16.mxu0 0
      %562 = vmatpush1.bf16.msra.mxu0 0
      %563 = vmatprep.subr.bf16.mxu0 0
      %564 = vmatpush1.bf16.msra.mxu0 0
      %565 = vmatprep.mubr.bf16.mxu0 0
      %566 = vmatmul.mubr.bf16.gmra.mrb[0].mxu0 %v531
      %v567 = vpop.f32.mrb[0].mxu0
      %v568 = vadd.f32 0.0, %v567
      %v569 = vpop.f32.mrb[0].mxu0
      %v570 = vpop.f32.mrb[0].mxu0
      %v571 = vpop.f32.mrb[0].mxu0
      %572 = vdwg.mxu0
      %s573 = scalar_lea.vmem %s4, 3
      %v574 = vld [vmem:[%s573] sm:$0x1]
      %v575 = vmul.f32 %v568, %v574
      %v576 = vadd.f32 %v527, %v575
      %s577 = scalar_lea.vmem %s3, 4
      %v578 = vld [vmem:[%s577] sm:$0x1]
      %v580 = vsel %vm378, %v578, 0
      %582 = vmatprep.subr.bf16.mxu0 0
      %583 = vmatpush1.bf16.msra.mxu0 %v386
      %584 = vmatprep.subr.bf16.mxu0 0
      %585 = vmatpush1.bf16.msra.mxu0 0
      %586 = vmatprep.subr.bf16.mxu0 0
      %587 = vmatpush1.bf16.msra.mxu0 0
      %588 = vmatprep.subr.bf16.mxu0 0
      %589 = vmatpush1.bf16.msra.mxu0 0
      %590 = vmatprep.subr.bf16.mxu0 0
      %591 = vmatpush1.bf16.msra.mxu0 0
      %592 = vmatprep.subr.bf16.mxu0 0
      %593 = vmatpush1.bf16.msra.mxu0 0
      %594 = vmatprep.subr.bf16.mxu0 0
      %595 = vmatpush1.bf16.msra.mxu0 0
      %596 = vmatprep.subr.bf16.mxu0 0
      %597 = vmatpush1.bf16.msra.mxu0 0
      %598 = vmatprep.subr.bf16.mxu0 0
      %599 = vmatpush1.bf16.msra.mxu0 0
      %600 = vmatprep.subr.bf16.mxu0 0
      %601 = vmatpush1.bf16.msra.mxu0 0
      %602 = vmatprep.subr.bf16.mxu0 0
      %603 = vmatpush1.bf16.msra.mxu0 0
      %604 = vmatprep.subr.bf16.mxu0 0
      %605 = vmatpush1.bf16.msra.mxu0 0
      %606 = vmatprep.subr.bf16.mxu0 0
      %607 = vmatpush1.bf16.msra.mxu0 0
      %608 = vmatprep.subr.bf16.mxu0 0
      %609 = vmatpush1.bf16.msra.mxu0 0
      %610 = vmatprep.subr.bf16.mxu0 0
      %611 = vmatpush1.bf16.msra.mxu0 0
      %612 = vmatprep.subr.bf16.mxu0 0
      %613 = vmatpush1.bf16.msra.mxu0 0
      %614 = vmatprep.mubr.bf16.mxu0 0
      %615 = vmatmul.mubr.bf16.gmra.mrb[0].mxu0 %v580
      %v616 = vpop.f32.mrb[0].mxu0
      %v617 = vadd.f32 0.0, %v616
      %v618 = vpop.f32.mrb[0].mxu0
      %v619 = vpop.f32.mrb[0].mxu0
      %v620 = vpop.f32.mrb[0].mxu0
      %621 = vdwg.mxu0
      %s622 = scalar_lea.vmem %s4, 4
      %v623 = vld [vmem:[%s622] sm:$0x1]
      %v624 = vmul.f32 %v617, %v623
      %v625 = vadd.f32 %v576, %v624
      %s626 = scalar_lea.vmem %s3, 5
      %v627 = vld [vmem:[%s626] sm:$0x1]
      %v629 = vsel %vm378, %v627, 0
      %631 = vmatprep.subr.bf16.mxu0 0
      %632 = vmatpush1.bf16.msra.mxu0 %v386
      %633 = vmatprep.subr.bf16.mxu0 0
      %634 = vmatpush1.bf16.msra.mxu0 0
      %635 = vmatprep.subr.bf16.mxu0 0
      %636 = vmatpush1.bf16.msra.mxu0 0
      %637 = vmatprep.subr.bf16.mxu0 0
      %638 = vmatpush1.bf16.msra.mxu0 0
      %639 = vmatprep.subr.bf16.mxu0 0
      %640 = vmatpush1.bf16.msra.mxu0 0
      %641 = vmatprep.subr.bf16.mxu0 0
      %642 = vmatpush1.bf16.msra.mxu0 0
      %643 = vmatprep.subr.bf16.mxu0 0
      %644 = vmatpush1.bf16.msra.mxu0 0
      %645 = vmatprep.subr.bf16.mxu0 0
      %646 = vmatpush1.bf16.msra.mxu0 0
      %647 = vmatprep.subr.bf16.mxu0 0
      %648 = vmatpush1.bf16.msra.mxu0 0
      %649 = vmatprep.subr.bf16.mxu0 0
      %650 = vmatpush1.bf16.msra.mxu0 0
      %651 = vmatprep.subr.bf16.mxu0 0
      %652 = vmatpush1.bf16.msra.mxu0 0
      %653 = vmatprep.subr.bf16.mxu0 0
      %654 = vmatpush1.bf16.msra.mxu0 0
      %655 = vmatprep.subr.bf16.mxu0 0
      %656 = vmatpush1.bf16.msra.mxu0 0
      %657 = vmatprep.subr.bf16.mxu0 0
      %658 = vmatpush1.bf16.msra.mxu0 0
      %659 = vmatprep.subr.bf16.mxu0 0
      %660 = vmatpush1.bf16.msra.mxu0 0
      %661 = vmatprep.subr.bf16.mxu0 0
      %662 = vmatpush1.bf16.msra.mxu0 0
      %663 = vmatprep.mubr.bf16.mxu0 0
      %664 = vmatmul.mubr.bf16.gmra.mrb[0].mxu0 %v629
      %v665 = vpop.f32.mrb[0].mxu0
      %v666 = vadd.f32 0.0, %v665
      %v667 = vpop.f32.mrb[0].mxu0
      %v668 = vpop.f32.mrb[0].mxu0
      %v669 = vpop.f32.mrb[0].mxu0
      %670 = vdwg.mxu0
      %s671 = scalar_lea.vmem %s4, 5
      %v672 = vld [vmem:[%s671] sm:$0x1]
      %v673 = vmul.f32 %v666, %v672
      %v674 = vadd.f32 %v625, %v673
      %s675 = scalar_lea.vmem %s3, 6
      %v676 = vld [vmem:[%s675] sm:$0x1]
      %v678 = vsel %vm378, %v676, 0
      %680 = vmatprep.subr.bf16.mxu0 0
      %681 = vmatpush1.bf16.msra.mxu0 %v386
      %682 = vmatprep.subr.bf16.mxu0 0
      %683 = vmatpush1.bf16.msra.mxu0 0
      %684 = vmatprep.subr.bf16.mxu0 0
      %685 = vmatpush1.bf16.msra.mxu0 0
      %686 = vmatprep.subr.bf16.mxu0 0
      %687 = vmatpush1.bf16.msra.mxu0 0
      %688 = vmatprep.subr.bf16.mxu0 0
      %689 = vmatpush1.bf16.msra.mxu0 0
      %690 = vmatprep.subr.bf16.mxu0 0
      %691 = vmatpush1.bf16.msra.mxu0 0
      %692 = vmatprep.subr.bf16.mxu0 0
      %693 = vmatpush1.bf16.msra.mxu0 0
      %694 = vmatprep.subr.bf16.mxu0 0
      %695 = vmatpush1.bf16.msra.mxu0 0
      %696 = vmatprep.subr.bf16.mxu0 0
      %697 = vmatpush1.bf16.msra.mxu0 0
      %698 = vmatprep.subr.bf16.mxu0 0
      %699 = vmatpush1.bf16.msra.mxu0 0
      %700 = vmatprep.subr.bf16.mxu0 0
      %701 = vmatpush1.bf16.msra.mxu0 0
      %702 = vmatprep.subr.bf16.mxu0 0
      %703 = vmatpush1.bf16.msra.mxu0 0
      %704 = vmatprep.subr.bf16.mxu0 0
      %705 = vmatpush1.bf16.msra.mxu0 0
      %706 = vmatprep.subr.bf16.mxu0 0
      %707 = vmatpush1.bf16.msra.mxu0 0
      %708 = vmatprep.subr.bf16.mxu0 0
      %709 = vmatpush1.bf16.msra.mxu0 0
      %710 = vmatprep.subr.bf16.mxu0 0
      %711 = vmatpush1.bf16.msra.mxu0 0
      %712 = vmatprep.mubr.bf16.mxu0 0
      %713 = vmatmul.mubr.bf16.gmra.mrb[0].mxu0 %v678
      %v714 = vpop.f32.mrb[0].mxu0
      %v715 = vadd.f32 0.0, %v714
      %v716 = vpop.f32.mrb[0].mxu0
      %v717 = vpop.f32.mrb[0].mxu0
      %v718 = vpop.f32.mrb[0].mxu0
      %719 = vdwg.mxu0
      %s720 = scalar_lea.vmem %s4, 6
      %v721 = vld [vmem:[%s720] sm:$0x1]
      %v722 = vmul.f32 %v715, %v721
      %v723 = vadd.f32 %v674, %v722
      %s724 = scalar_lea.vmem %s3, 7
      %v725 = vld [vmem:[%s724] sm:$0x1]
      %v727 = vsel %vm378, %v725, 0
      %729 = vmatprep.subr.bf16.mxu0 0
      %730 = vmatpush1.bf16.msra.mxu0 %v386
      %731 = vmatprep.subr.bf16.mxu0 0
      %732 = vmatpush1.bf16.msra.mxu0 0
      %733 = vmatprep.subr.bf16.mxu0 0
      %734 = vmatpush1.bf16.msra.mxu0 0
      %735 = vmatprep.subr.bf16.mxu0 0
      %736 = vmatpush1.bf16.msra.mxu0 0
      %737 = vmatprep.subr.bf16.mxu0 0
      %738 = vmatpush1.bf16.msra.mxu0 0
      %739 = vmatprep.subr.bf16.mxu0 0
      %740 = vmatpush1.bf16.msra.mxu0 0
      %741 = vmatprep.subr.bf16.mxu0 0
      %742 = vmatpush1.bf16.msra.mxu0 0
      %743 = vmatprep.subr.bf16.mxu0 0
      %744 = vmatpush1.bf16.msra.mxu0 0
      %745 = vmatprep.subr.bf16.mxu0 0
      %746 = vmatpush1.bf16.msra.mxu0 0
      %747 = vmatprep.subr.bf16.mxu0 0
      %748 = vmatpush1.bf16.msra.mxu0 0
      %749 = vmatprep.subr.bf16.mxu0 0
      %750 = vmatpush1.bf16.msra.mxu0 0
      %751 = vmatprep.subr.bf16.mxu0 0
      %752 = vmatpush1.bf16.msra.mxu0 0
      %753 = vmatprep.subr.bf16.mxu0 0
      %754 = vmatpush1.bf16.msra.mxu0 0
      %755 = vmatprep.subr.bf16.mxu0 0
      %756 = vmatpush1.bf16.msra.mxu0 0
      %757 = vmatprep.subr.bf16.mxu0 0
      %758 = vmatpush1.bf16.msra.mxu0 0
      %759 = vmatprep.subr.bf16.mxu0 0
      %760 = vmatpush1.bf16.msra.mxu0 0
      %761 = vmatprep.mubr.bf16.mxu0 0
      %762 = vmatmul.mubr.bf16.gmra.mrb[0].mxu0 %v727
      %v763 = vpop.f32.mrb[0].mxu0
      %v764 = vadd.f32 0.0, %v763
      %v765 = vpop.f32.mrb[0].mxu0
      %v766 = vpop.f32.mrb[0].mxu0
      %v767 = vpop.f32.mrb[0].mxu0
      %768 = vdwg.mxu0
      %s769 = scalar_lea.vmem %s4, 7
      %v770 = vld [vmem:[%s769] sm:$0x1]
      %v771 = vmul.f32 %v764, %v770
      %v772 = vadd.f32 %v723, %v771
      %s773 = scalar_lea.vmem %s3, 8
      %v774 = vld [vmem:[%s773] sm:$0x1]
      %v776 = vsel %vm378, %v774, 0
      %778 = vmatprep.subr.bf16.mxu0 0
      %779 = vmatpush1.bf16.msra.mxu0 %v386
      %780 = vmatprep.subr.bf16.mxu0 0
      %781 = vmatpush1.bf16.msra.mxu0 0
      %782 = vmatprep.subr.bf16.mxu0 0
      %783 = vmatpush1.bf16.msra.mxu0 0
      %784 = vmatprep.subr.bf16.mxu0 0
      %785 = vmatpush1.bf16.msra.mxu0 0
      %786 = vmatprep.subr.bf16.mxu0 0
      %787 = vmatpush1.bf16.msra.mxu0 0
      %788 = vmatprep.subr.bf16.mxu0 0
      %789 = vmatpush1.bf16.msra.mxu0 0
      %790 = vmatprep.subr.bf16.mxu0 0
      %791 = vmatpush1.bf16.msra.mxu0 0
      %792 = vmatprep.subr.bf16.mxu0 0
      %793 = vmatpush1.bf16.msra.mxu0 0
      %794 = vmatprep.subr.bf16.mxu0 0
      %795 = vmatpush1.bf16.msra.mxu0 0
      %796 = vmatprep.subr.bf16.mxu0 0
      %797 = vmatpush1.bf16.msra.mxu0 0
      %798 = vmatprep.subr.bf16.mxu0 0
      %799 = vmatpush1.bf16.msra.mxu0 0
      %800 = vmatprep.subr.bf16.mxu0 0
      %801 = vmatpush1.bf16.msra.mxu0 0
      %802 = vmatprep.subr.bf16.mxu0 0
      %803 = vmatpush1.bf16.msra.mxu0 0
      %804 = vmatprep.subr.bf16.mxu0 0
      %805 = vmatpush1.bf16.msra.mxu0 0
      %806 = vmatprep.subr.bf16.mxu0 0
      %807 = vmatpush1.bf16.msra.mxu0 0
      %808 = vmatprep.subr.bf16.mxu0 0
      %809 = vmatpush1.bf16.msra.mxu0 0
      %810 = vmatprep.mubr.bf16.mxu0 0
      %811 = vmatmul.mubr.bf16.gmra.mrb[0].mxu0 %v776
      %v812 = vpop.f32.mrb[0].mxu0
      %v813 = vadd.f32 0.0, %v812
      %v814 = vpop.f32.mrb[0].mxu0
      %v815 = vpop.f32.mrb[0].mxu0
      %v816 = vpop.f32.mrb[0].mxu0
      %817 = vdwg.mxu0
      %s818 = scalar_lea.vmem %s4, 8
      %v819 = vld [vmem:[%s818] sm:$0x1]
      %v820 = vmul.f32 %v813, %v819
      %v821 = vadd.f32 %v772, %v820
      %v822 = vld [vmem:[%s5] sm:$0x1]
      %v823 = vadd.f32 %v821, %v822
      %v824 = vpack.c.bf16 %v823, %v823
      %v825 = vld [vmem:[%s6] sm:$0xf]
      %v826 = vld [vmem:[%s6 + $0x4] sm:$0xf]
      %v827 = vld [vmem:[%s7] sm:$0x1]
      %v830 = vunpack.c.l.b16 %v825
      %v831 = vunpack.c.l.b16 %v826
      %v832 = vpack.c.b16 %v831, %v830
      %vm834 = vcmask 130048
      %v836 = vsel %vm834, %v824, 0
      %838 = vmatprep.subr.bf16.mxu0 0
      %839 = vmatpush1.bf16.msra.mxu0 %v832
      %840 = vmatprep.subr.bf16.mxu0 0
      %841 = vmatpush1.bf16.msra.mxu0 0
      %842 = vmatprep.subr.bf16.mxu0 0
      %843 = vmatpush1.bf16.msra.mxu0 0
      %844 = vmatprep.subr.bf16.mxu0 0
      %845 = vmatpush1.bf16.msra.mxu0 0
      %846 = vmatprep.subr.bf16.mxu0 0
      %847 = vmatpush1.bf16.msra.mxu0 0
      %848 = vmatprep.subr.bf16.mxu0 0
      %849 = vmatpush1.bf16.msra.mxu0 0
      %850 = vmatprep.subr.bf16.mxu0 0
      %851 = vmatpush1.bf16.msra.mxu0 0
      %852 = vmatprep.subr.bf16.mxu0 0
      %853 = vmatpush1.bf16.msra.mxu0 0
      %854 = vmatprep.subr.bf16.mxu0 0
      %855 = vmatpush1.bf16.msra.mxu0 0
      %856 = vmatprep.subr.bf16.mxu0 0
      %857 = vmatpush1.bf16.msra.mxu0 0
      %858 = vmatprep.subr.bf16.mxu0 0
      %859 = vmatpush1.bf16.msra.mxu0 0
      %860 = vmatprep.subr.bf16.mxu0 0
      %861 = vmatpush1.bf16.msra.mxu0 0
      %862 = vmatprep.subr.bf16.mxu0 0
      %863 = vmatpush1.bf16.msra.mxu0 0
      %864 = vmatprep.subr.bf16.mxu0 0
      %865 = vmatpush1.bf16.msra.mxu0 0
      %866 = vmatprep.subr.bf16.mxu0 0
      %867 = vmatpush1.bf16.msra.mxu0 0
      %868 = vmatprep.subr.bf16.mxu0 0
      %869 = vmatpush1.bf16.msra.mxu0 0
      %870 = vmatprep.mubr.bf16.mxu0 0
      %871 = vmatmul.mubr.bf16.gmra.mrb[0].mxu0 %v836
      %v872 = vpop.f32.mrb[0].mxu0
      %v873 = vadd.f32 %v827, %v872
      %v874 = vpop.f32.mrb[0].mxu0
      %v875 = vpop.f32.mrb[0].mxu0
      %v876 = vpop.f32.mrb[0].mxu0
      %877 = vdwg.mxu0
      %v878 = vunpack.c.l.bf16 %v297
      %v879 = vadd.f32 %v873, %v878
      %v880 = vmax.f32 %v879, 0.0
      %v881 = vpack.c.bf16 %v880, %v880
      %vm882 = vcmask 516096
      %vm883 = vsmask.f32 256
      %vm884 = vmand %vm882, %vm883
      %v885 = vld [vmem:[%s295] sm:$0x1]
      %v886 = vsel %vm884, %v881, %v885
      %887 = vst [vmem:[%s295] sm:$0x1] %v886
      %p888 = scmp.lt.s32.totalorder %s19, 1
      %s889 = scalar_select %p888, %s19, 1
      %s890 = scalar_lea.vmem %s8, %s889
      // Predicated region
      $region53: #{shufflenet_forward.14} parent=51 // pred_check
        %p891 = pneg %p210
      $region54: #{shufflenet_forward.14} parent=51 // pred_check_branch
        %893 = sbr.rel (%p891) target = $region56
      $region55: #{shufflenet_forward.14} parent=51 // pred_region
        _
      $region56: #{shufflenet_forward.14} parent=51 // pred_fallthru
        _
    $region52: #{shufflenet_forward.14} parent=5 // pred_fallthru
      _
    %p894 = scmp.le.s32.totalorder 2, %s14
    // Predicated region
    $region57: #{shufflenet_forward.14} parent=5 // pred_check
      %p895 = pneg %p894
    $region58: #{shufflenet_forward.14} parent=5 // pred_check_branch
      %897 = sbr.rel (%p895) target = $region60
    $region59: #{shufflenet_forward.14} parent=5 // pred_region
      %s898 = ssub.s32 %s14, 2
      // Predicated region
      $region61: #{shufflenet_forward.14} parent=59 // pred_check
        %p899 = pneg %p216
      $region62: #{shufflenet_forward.14} parent=59 // pred_check_branch
        %901 = sbr.rel (%p899) target = $region64
      $region63: #{shufflenet_forward.14} parent=59 // pred_region
        %p902 = scmp.lt.s32.totalorder %s20, 1
        %s903 = scalar_select %p902, %s20, 1
        %s904 = scalar_lea.vmem %s8, %s903
      $region64: #{shufflenet_forward.14} parent=59 // pred_fallthru
        _
    $region60: #{shufflenet_forward.14} parent=5 // pred_fallthru
      _
  $region6: #{shufflenet_forward.14} parent=0 // loop_footer
    %s18 = sadd.s32 1, %s14
  $region7: #{shufflenet_forward.14} parent=0 // loop_footer_branch
    %13 = sbr.rel target = $region3
  $region8: #{shufflenet_forward.14} parent=0 // loop_exit
    _

// kernel: shufflenet_forward.13
$region0: #{shufflenet_forward.13}
  #allocation0 [shape = 'u32[]', space=smem, size = 0x4, offset = 0x4, fixed_abs, tag = 'smem constant byte address 0x4 - core index']
  #allocation1 [shape = 'u32[144,128]{1,0:T(1,128)}', space=vmem, size = 0x12000, scoped, tag = 'internal scratch']
  %s0 = inlined_call_operand.vmem [shape: bf16[2,4,32], index: 0, kind: input, shape index: {}]
  %s1 = inlined_call_operand.vmem [shape: bf16[32,16], index: 1, kind: input, shape index: {}]
  %s2 = inlined_call_operand.vmem [shape: f32[1,16], index: 2, kind: input, shape index: {}]
  %s3 = inlined_call_operand.vmem [shape: bf16[9,1,4], index: 3, kind: input, shape index: {}]
  %s4 = inlined_call_operand.vmem [shape: f32[9,1,16], index: 4, kind: input, shape index: {}]
  %s5 = inlined_call_operand.vmem [shape: f32[1,16], index: 5, kind: input, shape index: {}]
  %s6 = inlined_call_operand.vmem [shape: bf16[16,64], index: 6, kind: input, shape index: {}]
  %s7 = inlined_call_operand.vmem [shape: f32[1,64], index: 7, kind: input, shape index: {}]
  %s8 = inlined_call_operand.vmem [shape: bf16[1,4], index: 8, kind: input, shape index: {}]
  %s9 = inlined_call_operand.vmem [shape: bf16[32,64], index: 9, kind: input, shape index: {}]
  %s10 = inlined_call_operand.vmem [shape: bf16[2,1,64], index: 10, kind: output, shape index: {}]
  %s11 = sld [smem:[#allocation0]]
  $region73: #{shufflenet_forward.13} parent=0
    _
  %s13 = ssub.s32 1, %s11
  %s14 = scalar_select 0, %s13, %s11
  loop: start=0, step=1, limit=4
  $region2: #{shufflenet_forward.13} parent=0 // loop_pre_header
    _
  $region3: #{shufflenet_forward.13} parent=0 // loop_header
    %s16 = sphi 0, %s20
    %p17 = scmp.ge.s32.totalorder %s16, 4
    %s26 = sphi 0, %s28
    %s29 = sphi 0, %s26
    %s30 = sphi 0, %s29
    %s46 = sphi 0, %s30
    %s50 = sphi 0, %s50
    %s52 = sphi 0, %s50
    %s53 = sphi 0, %s52
    %s67 = sphi 0, %s53
    %s71 = sphi 0, %s71
    %s73 = sphi 0, %s71
    %s74 = sphi 0, %s73
    %s88 = sphi 0, %s74
    %s92 = sphi 0, %s92
    %s94 = sphi 0, %s92
    %s95 = sphi 0, %s94
    %s109 = sphi 0, %s95
    %s113 = sphi 0, %s113
    %s115 = sphi 0, %s113
    %s116 = sphi 0, %s115
    %s130 = sphi 0, %s116
    %s134 = sphi 0, %s134
    %s136 = sphi 0, %s134
    %s137 = sphi 0, %s136
    %s151 = sphi 0, %s137
    %s155 = sphi 0, %s155
    %s157 = sphi 0, %s155
    %s158 = sphi 0, %s157
    %s172 = sphi 0, %s158
    %s176 = sphi 0, %s176
    %s178 = sphi 0, %s176
    %s179 = sphi 0, %s178
    %s193 = sphi 0, %s179
    %s197 = sphi 0, %s197
    %s199 = sphi 0, %s197
    %s200 = sphi 0, %s199
    %s214 = sphi 0, %s200
    %s218 = sphi 0, %s218
    %s220 = sphi 0, %s218
    %s221 = sphi 0, %s220
    %s235 = sphi 0, %s221
    %s241 = sphi 0, %s243
    %s244 = sphi 0, %s241
    %s245 = sphi 0, %s244
    %s261 = sphi 0, %s245
  $region4: #{shufflenet_forward.13} parent=0 // loop_header_branch
    %19 = sbr.rel (%p17) target = $region8
  $region5: #{shufflenet_forward.13} parent=0 // loop_body
    %s21 = ssub.s32 %s16, 1
    %s22 = ssub.s32 %s16, 2
    %s23 = sadd.s32 %s16, 1
    %s24 = ssub.s32 %s16, %s23
    %p25 = scmp.eq.s32.totalorder %s24, 0
    %s27 = sadd.s32 %s26, 1
    %s28 = scalar_select %p25, %s26, %s27
    %p31 = pneg %p25
    %p32 = scmp.eq.s32.totalorder %s16, 1
    %p33 = por %p31, %p32
    %p34 = scmp.ne.s32.totalorder %s26, %s29
    %p35 = scmp.eq.s32.totalorder %s16, 0
    %p36 = por %p34, %p35
    %p37 = scmp.ne.s32.totalorder %s26, %s29
    %p38 = scmp.eq.s32.totalorder %s21, 1
    %p39 = por %p37, %p38
    %p40 = scmp.ne.s32.totalorder %s29, %s30
    %p41 = scmp.eq.s32.totalorder %s21, 0
    %p42 = por %p40, %p41
    %p43 = scmp.ne.s32.totalorder %s29, %s30
    %p44 = scmp.eq.s32.totalorder %s22, 1
    %p45 = por %p43, %p44
    %p47 = scmp.ne.s32.totalorder %s30, %s46
    %p48 = scmp.eq.s32.totalorder %s22, 0
    %p49 = por %p47, %p48
    %s51 = sadd.s32 %s50, 1
    %p54 = scmp.eq.s32.totalorder %s16, 1
    %p55 = scmp.ne.s32.totalorder %s50, %s52
    %p56 = scmp.eq.s32.totalorder %s16, 0
    %p57 = por %p55, %p56
    %p58 = scmp.ne.s32.totalorder %s50, %s52
    %p59 = scmp.eq.s32.totalorder %s21, 1
    %p60 = por %p58, %p59
    %p61 = scmp.ne.s32.totalorder %s52, %s53
    %p62 = scmp.eq.s32.totalorder %s21, 0
    %p63 = por %p61, %p62
    %p64 = scmp.ne.s32.totalorder %s52, %s53
    %p65 = scmp.eq.s32.totalorder %s22, 1
    %p66 = por %p64, %p65
    %p68 = scmp.ne.s32.totalorder %s53, %s67
    %p69 = scmp.eq.s32.totalorder %s22, 0
    %p70 = por %p68, %p69
    %s72 = sadd.s32 %s71, 1
    %p75 = scmp.eq.s32.totalorder %s16, 1
    %p76 = scmp.ne.s32.totalorder %s71, %s73
    %p77 = scmp.eq.s32.totalorder %s16, 0
    %p78 = por %p76, %p77
    %p79 = scmp.ne.s32.totalorder %s71, %s73
    %p80 = scmp.eq.s32.totalorder %s21, 1
    %p81 = por %p79, %p80
    %p82 = scmp.ne.s32.totalorder %s73, %s74
    %p83 = scmp.eq.s32.totalorder %s21, 0
    %p84 = por %p82, %p83
    %p85 = scmp.ne.s32.totalorder %s73, %s74
    %p86 = scmp.eq.s32.totalorder %s22, 1
    %p87 = por %p85, %p86
    %p89 = scmp.ne.s32.totalorder %s74, %s88
    %p90 = scmp.eq.s32.totalorder %s22, 0
    %p91 = por %p89, %p90
    %s93 = sadd.s32 %s92, 1
    %p96 = scmp.eq.s32.totalorder %s16, 1
    %p97 = scmp.ne.s32.totalorder %s92, %s94
    %p98 = scmp.eq.s32.totalorder %s16, 0
    %p99 = por %p97, %p98
    %p100 = scmp.ne.s32.totalorder %s92, %s94
    %p101 = scmp.eq.s32.totalorder %s21, 1
    %p102 = por %p100, %p101
    %p103 = scmp.ne.s32.totalorder %s94, %s95
    %p104 = scmp.eq.s32.totalorder %s21, 0
    %p105 = por %p103, %p104
    %p106 = scmp.ne.s32.totalorder %s94, %s95
    %p107 = scmp.eq.s32.totalorder %s22, 1
    %p108 = por %p106, %p107
    %p110 = scmp.ne.s32.totalorder %s95, %s109
    %p111 = scmp.eq.s32.totalorder %s22, 0
    %p112 = por %p110, %p111
    %s114 = sadd.s32 %s113, 1
    %p117 = scmp.eq.s32.totalorder %s16, 1
    %p118 = scmp.ne.s32.totalorder %s113, %s115
    %p119 = scmp.eq.s32.totalorder %s16, 0
    %p120 = por %p118, %p119
    %p121 = scmp.ne.s32.totalorder %s113, %s115
    %p122 = scmp.eq.s32.totalorder %s21, 1
    %p123 = por %p121, %p122
    %p124 = scmp.ne.s32.totalorder %s115, %s116
    %p125 = scmp.eq.s32.totalorder %s21, 0
    %p126 = por %p124, %p125
    %p127 = scmp.ne.s32.totalorder %s115, %s116
    %p128 = scmp.eq.s32.totalorder %s22, 1
    %p129 = por %p127, %p128
    %p131 = scmp.ne.s32.totalorder %s116, %s130
    %p132 = scmp.eq.s32.totalorder %s22, 0
    %p133 = por %p131, %p132
    %s135 = sadd.s32 %s134, 1
    %p138 = scmp.eq.s32.totalorder %s16, 1
    %p139 = scmp.ne.s32.totalorder %s134, %s136
    %p140 = scmp.eq.s32.totalorder %s16, 0
    %p141 = por %p139, %p140
    %p142 = scmp.ne.s32.totalorder %s134, %s136
    %p143 = scmp.eq.s32.totalorder %s21, 1
    %p144 = por %p142, %p143
    %p145 = scmp.ne.s32.totalorder %s136, %s137
    %p146 = scmp.eq.s32.totalorder %s21, 0
    %p147 = por %p145, %p146
    %p148 = scmp.ne.s32.totalorder %s136, %s137
    %p149 = scmp.eq.s32.totalorder %s22, 1
    %p150 = por %p148, %p149
    %p152 = scmp.ne.s32.totalorder %s137, %s151
    %p153 = scmp.eq.s32.totalorder %s22, 0
    %p154 = por %p152, %p153
    %s156 = sadd.s32 %s155, 1
    %p159 = scmp.eq.s32.totalorder %s16, 1
    %p160 = scmp.ne.s32.totalorder %s155, %s157
    %p161 = scmp.eq.s32.totalorder %s16, 0
    %p162 = por %p160, %p161
    %p163 = scmp.ne.s32.totalorder %s155, %s157
    %p164 = scmp.eq.s32.totalorder %s21, 1
    %p165 = por %p163, %p164
    %p166 = scmp.ne.s32.totalorder %s157, %s158
    %p167 = scmp.eq.s32.totalorder %s21, 0
    %p168 = por %p166, %p167
    %p169 = scmp.ne.s32.totalorder %s157, %s158
    %p170 = scmp.eq.s32.totalorder %s22, 1
    %p171 = por %p169, %p170
    %p173 = scmp.ne.s32.totalorder %s158, %s172
    %p174 = scmp.eq.s32.totalorder %s22, 0
    %p175 = por %p173, %p174
    %s177 = sadd.s32 %s176, 1
    %p180 = scmp.eq.s32.totalorder %s16, 1
    %p181 = scmp.ne.s32.totalorder %s176, %s178
    %p182 = scmp.eq.s32.totalorder %s16, 0
    %p183 = por %p181, %p182
    %p184 = scmp.ne.s32.totalorder %s176, %s178
    %p185 = scmp.eq.s32.totalorder %s21, 1
    %p186 = por %p184, %p185
    %p187 = scmp.ne.s32.totalorder %s178, %s179
    %p188 = scmp.eq.s32.totalorder %s21, 0
    %p189 = por %p187, %p188
    %p190 = scmp.ne.s32.totalorder %s178, %s179
    %p191 = scmp.eq.s32.totalorder %s22, 1
    %p192 = por %p190, %p191
    %p194 = scmp.ne.s32.totalorder %s179, %s193
    %p195 = scmp.eq.s32.totalorder %s22, 0
    %p196 = por %p194, %p195
    %s198 = sadd.s32 %s197, 1
    %p201 = scmp.eq.s32.totalorder %s16, 1
    %p202 = scmp.ne.s32.totalorder %s197, %s199
    %p203 = scmp.eq.s32.totalorder %s16, 0
    %p204 = por %p202, %p203
    %p205 = scmp.ne.s32.totalorder %s197, %s199
    %p206 = scmp.eq.s32.totalorder %s21, 1
    %p207 = por %p205, %p206
    %p208 = scmp.ne.s32.totalorder %s199, %s200
    %p209 = scmp.eq.s32.totalorder %s21, 0
    %p210 = por %p208, %p209
    %p211 = scmp.ne.s32.totalorder %s199, %s200
    %p212 = scmp.eq.s32.totalorder %s22, 1
    %p213 = por %p211, %p212
    %p215 = scmp.ne.s32.totalorder %s200, %s214
    %p216 = scmp.eq.s32.totalorder %s22, 0
    %p217 = por %p215, %p216
    %s219 = sadd.s32 %s218, 1
    %p222 = scmp.eq.s32.totalorder %s16, 1
    %p223 = scmp.ne.s32.totalorder %s218, %s220
    %p224 = scmp.eq.s32.totalorder %s16, 0
    %p225 = por %p223, %p224
    %p226 = scmp.ne.s32.totalorder %s218, %s220
    %p227 = scmp.eq.s32.totalorder %s21, 1
    %p228 = por %p226, %p227
    %p229 = scmp.ne.s32.totalorder %s220, %s221
    %p230 = scmp.eq.s32.totalorder %s21, 0
    %p231 = por %p229, %p230
    %p232 = scmp.ne.s32.totalorder %s220, %s221
    %p233 = scmp.eq.s32.totalorder %s22, 1
    %p234 = por %p232, %p233
    %p236 = scmp.ne.s32.totalorder %s221, %s235
    %p237 = scmp.eq.s32.totalorder %s22, 0
    %p238 = por %p236, %p237
    %s239 = ssub.s32 %s16, %s23
    %p240 = scmp.eq.s32.totalorder %s239, 0
    %s242 = sadd.s32 %s241, 1
    %s243 = scalar_select %p240, %s241, %s242
    %p246 = pneg %p240
    %p247 = scmp.eq.s32.totalorder %s16, 1
    %p248 = por %p246, %p247
    %p249 = scmp.ne.s32.totalorder %s241, %s244
    %p250 = scmp.eq.s32.totalorder %s16, 0
    %p251 = por %p249, %p250
    %p252 = scmp.ne.s32.totalorder %s241, %s244
    %p253 = scmp.eq.s32.totalorder %s21, 1
    %p254 = por %p252, %p253
    %p255 = scmp.ne.s32.totalorder %s244, %s245
    %p256 = scmp.eq.s32.totalorder %s21, 0
    %p257 = por %p255, %p256
    %p258 = scmp.ne.s32.totalorder %s244, %s245
    %p259 = scmp.eq.s32.totalorder %s22, 1
    %p260 = por %p258, %p259
    %p262 = scmp.ne.s32.totalorder %s245, %s261
    %p263 = scmp.eq.s32.totalorder %s22, 0
    %p264 = por %p262, %p263
    %p265 = scmp.le.s32.totalorder 1, %s16
    %p266 = scmp.lt.s32.totalorder %s16, 3
    %p267 = pnand %p265, %p266
    %p268 = pneg %p267
    // Predicated region
    $region9: #{shufflenet_forward.13} parent=5 // pred_check
      _
    $region10: #{shufflenet_forward.13} parent=5 // pred_check_branch
      %270 = sbr.rel (%p267) target = $region12
    $region11: #{shufflenet_forward.13} parent=5 // pred_region
      %s271 = ssub.s32 %s16, 1
      // Predicated region
      $region13: #{shufflenet_forward.13} parent=11 // pred_check
        %p272 = pneg %p63
      $region14: #{shufflenet_forward.13} parent=11 // pred_check_branch
        %274 = sbr.rel (%p272) target = $region16
      $region15: #{shufflenet_forward.13} parent=11 // pred_region
        _
      $region16: #{shufflenet_forward.13} parent=11 // pred_fallthru
        _
      // Predicated region
      $region17: #{shufflenet_forward.13} parent=11 // pred_check
        %p275 = pneg %p84
      $region18: #{shufflenet_forward.13} parent=11 // pred_check_branch
        %277 = sbr.rel (%p275) target = $region20
      $region19: #{shufflenet_forward.13} parent=11 // pred_region
        _
      $region20: #{shufflenet_forward.13} parent=11 // pred_fallthru
        _
      // Predicated region
      $region21: #{shufflenet_forward.13} parent=11 // pred_check
        %p278 = pneg %p105
      $region22: #{shufflenet_forward.13} parent=11 // pred_check_branch
        %280 = sbr.rel (%p278) target = $region24
      $region23: #{shufflenet_forward.13} parent=11 // pred_region
        _
      $region24: #{shufflenet_forward.13} parent=11 // pred_fallthru
        _
      // Predicated region
      $region25: #{shufflenet_forward.13} parent=11 // pred_check
        %p281 = pneg %p126
      $region26: #{shufflenet_forward.13} parent=11 // pred_check_branch
        %283 = sbr.rel (%p281) target = $region28
      $region27: #{shufflenet_forward.13} parent=11 // pred_region
        _
      $region28: #{shufflenet_forward.13} parent=11 // pred_fallthru
        _
      // Predicated region
      $region29: #{shufflenet_forward.13} parent=11 // pred_check
        %p284 = pneg %p147
      $region30: #{shufflenet_forward.13} parent=11 // pred_check_branch
        %286 = sbr.rel (%p284) target = $region32
      $region31: #{shufflenet_forward.13} parent=11 // pred_region
        _
      $region32: #{shufflenet_forward.13} parent=11 // pred_fallthru
        _
      // Predicated region
      $region33: #{shufflenet_forward.13} parent=11 // pred_check
        %p287 = pneg %p168
      $region34: #{shufflenet_forward.13} parent=11 // pred_check_branch
        %289 = sbr.rel (%p287) target = $region36
      $region35: #{shufflenet_forward.13} parent=11 // pred_region
        _
      $region36: #{shufflenet_forward.13} parent=11 // pred_fallthru
        _
      // Predicated region
      $region37: #{shufflenet_forward.13} parent=11 // pred_check
        %p290 = pneg %p189
      $region38: #{shufflenet_forward.13} parent=11 // pred_check_branch
        %292 = sbr.rel (%p290) target = $region40
      $region39: #{shufflenet_forward.13} parent=11 // pred_region
        _
      $region40: #{shufflenet_forward.13} parent=11 // pred_fallthru
        _
      // Predicated region
      $region41: #{shufflenet_forward.13} parent=11 // pred_check
        %p293 = pneg %p210
      $region42: #{shufflenet_forward.13} parent=11 // pred_check_branch
        %295 = sbr.rel (%p293) target = $region44
      $region43: #{shufflenet_forward.13} parent=11 // pred_region
        _
      $region44: #{shufflenet_forward.13} parent=11 // pred_fallthru
        _
      // Predicated region
      $region45: #{shufflenet_forward.13} parent=11 // pred_check
        %p296 = pneg %p231
      $region46: #{shufflenet_forward.13} parent=11 // pred_check_branch
        %298 = sbr.rel (%p296) target = $region48
      $region47: #{shufflenet_forward.13} parent=11 // pred_region
        _
      $region48: #{shufflenet_forward.13} parent=11 // pred_fallthru
        _
    $region12: #{shufflenet_forward.13} parent=5 // pred_fallthru
      _
    %p299 = scmp.lt.s32.totalorder %s16, 2
    // Predicated region
    $region49: #{shufflenet_forward.13} parent=5 // pred_check
      %p300 = pneg %p299
    $region50: #{shufflenet_forward.13} parent=5 // pred_check_branch
      %302 = sbr.rel (%p300) target = $region52
    $region51: #{shufflenet_forward.13} parent=5 // pred_region
      // Predicated region
      $region53: #{shufflenet_forward.13} parent=51 // pred_check
        %p303 = pneg %p36
      $region54: #{shufflenet_forward.13} parent=51 // pred_check_branch
        %305 = sbr.rel (%p303) target = $region56
      $region55: #{shufflenet_forward.13} parent=51 // pred_region
        %p306 = scmp.lt.s32.totalorder %s16, 1
        %s307 = scalar_select %p306, %s16, 1
        %s308 = smul.addr %s307, 2
        %s309 = scalar_lea.vmem %s0, %s308
      $region56: #{shufflenet_forward.13} parent=51 // pred_fallthru
        _
    $region52: #{shufflenet_forward.13} parent=5 // pred_fallthru
      _
    %p310 = scmp.le.s32.totalorder 1, %s16
    %p311 = scmp.lt.s32.totalorder %s16, 3
    %p312 = pnand %p310, %p311
    %p313 = pneg %p312
    // Predicated region
    $region57: #{shufflenet_forward.13} parent=5 // pred_check
      _
    $region58: #{shufflenet_forward.13} parent=5 // pred_check_branch
      %315 = sbr.rel (%p312) target = $region60
    $region59: #{shufflenet_forward.13} parent=5 // pred_region
      %s316 = ssub.s32 %s16, 1
      %p317 = scmp.lt.s32.totalorder %s21, 1
      %s318 = scalar_select %p317, %s21, 1
      %s319 = smul.addr %s318, 2
      %s320 = scalar_lea.vmem %s0, %s319
      %p321 = pneg %p42
      %p322 = pneg %p39
      %p323 = pneg %p63
      %p324 = pneg %p60
      %p325 = pneg %p84
      %p326 = pneg %p81
      %p327 = pneg %p105
      %p328 = pneg %p102
      %p329 = pneg %p126
      %p330 = pneg %p123
      %p331 = pneg %p147
      %p332 = pneg %p144
      %p333 = pneg %p168
      %p334 = pneg %p165
      %p335 = pneg %p189
      %p336 = pneg %p186
      %p337 = pneg %p210
      %p338 = pneg %p207
      %p339 = pneg %p231
      %p340 = pneg %p228
      %p341 = pneg %p257
      %p342 = pneg %p254
      %p343 = scmp.lt.s32.totalorder %s21, 1
      %s344 = scalar_select %p343, %s21, 1
      %s345 = scalar_lea.vmem %s10, %s344
      %p346 = scmp.lt.s32.totalorder %s21, 1
      %s347 = scalar_select %p346, %s21, 1
      %s348 = smul.addr %s347, 2
      %s349 = scalar_lea.vmem %s0, %s348
      %p350 = scmp.lt.s32.totalorder %s21, 1
      %s351 = scalar_select %p350, %s21, 1
      %s352 = scalar_lea.vmem %s10, %s351
      %v354 = vld [vmem:[%s349] sm:$0x3]
      %v355 = vld [vmem:[%s1] sm:$0xf]
      %v356 = vld [vmem:[%s1 + $0x4] sm:$0xf]
      %v357 = vld [vmem:[%s1 + $0x8] sm:$0xf]
      %v358 = vld [vmem:[%s1 + $0xc] sm:$0xf]
      %v359 = vld [vmem:[%s2] sm:$0x1]
      %v361 = vlaneseq
      %v362 = vshrl.u32 %v361, 7
      %v363 = vsub.s32 0, %v362
      %v364 = vrot.slane %v359, %v363
      %v370 = vunpack.c.l.b16 %v355
      %v371 = vunpack.c.l.b16 %v356
      %v372 = vunpack.c.l.b16 %v357
      %v373 = vunpack.c.l.b16 %v358
      %v374 = vpack.c.b16 %v371, %v370
      %v375 = vpack.c.b16 %v373, %v372
      %vm378 = vcmask 261120
      %v380 = vsel %vm378, %v354, 0
      %382 = vmatprep.subr.bf16.mxu0 0
      %383 = vmatpush1.bf16.msra.mxu0 %v374
      %384 = vmatprep.subr.bf16.mxu0 0
      %385 = vmatpush1.bf16.msra.mxu0 %v375
      %386 = vmatprep.subr.bf16.mxu0 0
      %387 = vmatpush1.bf16.msra.mxu0 0
      %388 = vmatprep.subr.bf16.mxu0 0
      %389 = vmatpush1.bf16.msra.mxu0 0
      %390 = vmatprep.subr.bf16.mxu0 0
      %391 = vmatpush1.bf16.msra.mxu0 0
      %392 = vmatprep.subr.bf16.mxu0 0
      %393 = vmatpush1.bf16.msra.mxu0 0
      %394 = vmatprep.subr.bf16.mxu0 0
      %395 = vmatpush1.bf16.msra.mxu0 0
      %396 = vmatprep.subr.bf16.mxu0 0
      %397 = vmatpush1.bf16.msra.mxu0 0
      %398 = vmatprep.subr.bf16.mxu0 0
      %399 = vmatpush1.bf16.msra.mxu0 0
      %400 = vmatprep.subr.bf16.mxu0 0
      %401 = vmatpush1.bf16.msra.mxu0 0
      %402 = vmatprep.subr.bf16.mxu0 0
      %403 = vmatpush1.bf16.msra.mxu0 0
      %404 = vmatprep.subr.bf16.mxu0 0
      %405 = vmatpush1.bf16.msra.mxu0 0
      %406 = vmatprep.subr.bf16.mxu0 0
      %407 = vmatpush1.bf16.msra.mxu0 0
      %408 = vmatprep.subr.bf16.mxu0 0
      %409 = vmatpush1.bf16.msra.mxu0 0
      %410 = vmatprep.subr.bf16.mxu0 0
      %411 = vmatpush1.bf16.msra.mxu0 0
      %412 = vmatprep.subr.bf16.mxu0 0
      %413 = vmatpush1.bf16.msra.mxu0 0
      %414 = vmatprep.mubr.bf16.mxu0 0
      %415 = vmatmul.mubr.bf16.gmra.mrb[0].mxu0 %v380
      %v416 = vpop.f32.mrb[0].mxu0
      %v417 = vadd.f32 %v364, %v416
      %v418 = vpop.f32.mrb[0].mxu0
      %v419 = vpop.f32.mrb[0].mxu0
      %v420 = vpop.f32.mrb[0].mxu0
      %421 = vdwg.mxu0
      %v422 = vmax.f32 %v417, 0.0
      %v423 = vpack.c.bf16 %v422, %v422
      %v424 = vld [vmem:[%s3] sm:$0x1]
      %vm425 = vcmask 31744
      %v427 = vsel %vm425, %v424, 0
      %vm429 = vcmask 1041408
      %v431 = vsel %vm429, %v423, 0
      %433 = vmatprep.subr.bf16.mxu0 0
      %434 = vmatpush1.bf16.msra.mxu0 %v431
      %435 = vmatprep.subr.bf16.mxu0 0
      %436 = vmatpush1.bf16.msra.mxu0 0
      %437 = vmatprep.subr.bf16.mxu0 0
      %438 = vmatpush1.bf16.msra.mxu0 0
      %439 = vmatprep.subr.bf16.mxu0 0
      %440 = vmatpush1.bf16.msra.mxu0 0
      %441 = vmatprep.subr.bf16.mxu0 0
      %442 = vmatpush1.bf16.msra.mxu0 0
      %443 = vmatprep.subr.bf16.mxu0 0
      %444 = vmatpush1.bf16.msra.mxu0 0
      %445 = vmatprep.subr.bf16.mxu0 0
      %446 = vmatpush1.bf16.msra.mxu0 0
      %447 = vmatprep.subr.bf16.mxu0 0
      %448 = vmatpush1.bf16.msra.mxu0 0
      %449 = vmatprep.subr.bf16.mxu0 0
      %450 = vmatpush1.bf16.msra.mxu0 0
      %451 = vmatprep.subr.bf16.mxu0 0
      %452 = vmatpush1.bf16.msra.mxu0 0
      %453 = vmatprep.subr.bf16.mxu0 0
      %454 = vmatpush1.bf16.msra.mxu0 0
      %455 = vmatprep.subr.bf16.mxu0 0
      %456 = vmatpush1.bf16.msra.mxu0 0
      %457 = vmatprep.subr.bf16.mxu0 0
      %458 = vmatpush1.bf16.msra.mxu0 0
      %459 = vmatprep.subr.bf16.mxu0 0
      %460 = vmatpush1.bf16.msra.mxu0 0
      %461 = vmatprep.subr.bf16.mxu0 0
      %462 = vmatpush1.bf16.msra.mxu0 0
      %463 = vmatprep.subr.bf16.mxu0 0
      %464 = vmatpush1.bf16.msra.mxu0 0
      %465 = vmatprep.mubr.bf16.mxu0 0
      %466 = vmatmul.mubr.bf16.gmra.mrb[0].mxu0 %v427
      %v467 = vpop.f32.mrb[0].mxu0
      %v468 = vadd.f32 0.0, %v467
      %v469 = vpop.f32.mrb[0].mxu0
      %v470 = vpop.f32.mrb[0].mxu0
      %v471 = vpop.f32.mrb[0].mxu0
      %472 = vdwg.mxu0
      %v473 = vld [vmem:[%s4] sm:$0x1]
      %v474 = vmul.f32 %v468, %v473
      %s475 = scalar_lea.vmem %s3, 1
      %v476 = vld [vmem:[%s475] sm:$0x1]
      %v478 = vsel %vm425, %v476, 0
      %480 = vmatprep.subr.bf16.mxu0 0
      %481 = vmatpush1.bf16.msra.mxu0 %v431
      %482 = vmatprep.subr.bf16.mxu0 0
      %483 = vmatpush1.bf16.msra.mxu0 0
      %484 = vmatprep.subr.bf16.mxu0 0
      %485 = vmatpush1.bf16.msra.mxu0 0
      %486 = vmatprep.subr.bf16.mxu0 0
      %487 = vmatpush1.bf16.msra.mxu0 0
      %488 = vmatprep.subr.bf16.mxu0 0
      %489 = vmatpush1.bf16.msra.mxu0 0
      %490 = vmatprep.subr.bf16.mxu0 0
      %491 = vmatpush1.bf16.msra.mxu0 0
      %492 = vmatprep.subr.bf16.mxu0 0
      %493 = vmatpush1.bf16.msra.mxu0 0
      %494 = vmatprep.subr.bf16.mxu0 0
      %495 = vmatpush1.bf16.msra.mxu0 0
      %496 = vmatprep.subr.bf16.mxu0 0
      %497 = vmatpush1.bf16.msra.mxu0 0
      %498 = vmatprep.subr.bf16.mxu0 0
      %499 = vmatpush1.bf16.msra.mxu0 0
      %500 = vmatprep.subr.bf16.mxu0 0
      %501 = vmatpush1.bf16.msra.mxu0 0
      %502 = vmatprep.subr.bf16.mxu0 0
      %503 = vmatpush1.bf16.msra.mxu0 0
      %504 = vmatprep.subr.bf16.mxu0 0
      %505 = vmatpush1.bf16.msra.mxu0 0
      %506 = vmatprep.subr.bf16.mxu0 0
      %507 = vmatpush1.bf16.msra.mxu0 0
      %508 = vmatprep.subr.bf16.mxu0 0
      %509 = vmatpush1.bf16.msra.mxu0 0
      %510 = vmatprep.subr.bf16.mxu0 0
      %511 = vmatpush1.bf16.msra.mxu0 0
      %512 = vmatprep.mubr.bf16.mxu0 0
      %513 = vmatmul.mubr.bf16.gmra.mrb[0].mxu0 %v478
      %v514 = vpop.f32.mrb[0].mxu0
      %v515 = vadd.f32 0.0, %v514
      %v516 = vpop.f32.mrb[0].mxu0
      %v517 = vpop.f32.mrb[0].mxu0
      %v518 = vpop.f32.mrb[0].mxu0
      %519 = vdwg.mxu0
      %s520 = scalar_lea.vmem %s4, 1
      %v521 = vld [vmem:[%s520] sm:$0x1]
      %v522 = vmul.f32 %v515, %v521
      %v523 = vadd.f32 %v474, %v522
      %s524 = scalar_lea.vmem %s3, 2
      %v525 = vld [vmem:[%s524] sm:$0x1]
      %v527 = vsel %vm425, %v525, 0
      %529 = vmatprep.subr.bf16.mxu0 0
      %530 = vmatpush1.bf16.msra.mxu0 %v431
      %531 = vmatprep.subr.bf16.mxu0 0
      %532 = vmatpush1.bf16.msra.mxu0 0
      %533 = vmatprep.subr.bf16.mxu0 0
      %534 = vmatpush1.bf16.msra.mxu0 0
      %535 = vmatprep.subr.bf16.mxu0 0
      %536 = vmatpush1.bf16.msra.mxu0 0
      %537 = vmatprep.subr.bf16.mxu0 0
      %538 = vmatpush1.bf16.msra.mxu0 0
      %539 = vmatprep.subr.bf16.mxu0 0
      %540 = vmatpush1.bf16.msra.mxu0 0
      %541 = vmatprep.subr.bf16.mxu0 0
      %542 = vmatpush1.bf16.msra.mxu0 0
      %543 = vmatprep.subr.bf16.mxu0 0
      %544 = vmatpush1.bf16.msra.mxu0 0
      %545 = vmatprep.subr.bf16.mxu0 0
      %546 = vmatpush1.bf16.msra.mxu0 0
      %547 = vmatprep.subr.bf16.mxu0 0
      %548 = vmatpush1.bf16.msra.mxu0 0
      %549 = vmatprep.subr.bf16.mxu0 0
      %550 = vmatpush1.bf16.msra.mxu0 0
      %551 = vmatprep.subr.bf16.mxu0 0
      %552 = vmatpush1.bf16.msra.mxu0 0
      %553 = vmatprep.subr.bf16.mxu0 0
      %554 = vmatpush1.bf16.msra.mxu0 0
      %555 = vmatprep.subr.bf16.mxu0 0
      %556 = vmatpush1.bf16.msra.mxu0 0
      %557 = vmatprep.subr.bf16.mxu0 0
      %558 = vmatpush1.bf16.msra.mxu0 0
      %559 = vmatprep.subr.bf16.mxu0 0
      %560 = vmatpush1.bf16.msra.mxu0 0
      %561 = vmatprep.mubr.bf16.mxu0 0
      %562 = vmatmul.mubr.bf16.gmra.mrb[0].mxu0 %v527
      %v563 = vpop.f32.mrb[0].mxu0
      %v564 = vadd.f32 0.0, %v563
      %v565 = vpop.f32.mrb[0].mxu0
      %v566 = vpop.f32.mrb[0].mxu0
      %v567 = vpop.f32.mrb[0].mxu0
      %568 = vdwg.mxu0
      %s569 = scalar_lea.vmem %s4, 2
      %v570 = vld [vmem:[%s569] sm:$0x1]
      %v571 = vmul.f32 %v564, %v570
      %v572 = vadd.f32 %v523, %v571
      %s573 = scalar_lea.vmem %s3, 3
      %v574 = vld [vmem:[%s573] sm:$0x1]
      %v576 = vsel %vm425, %v574, 0
      %578 = vmatprep.subr.bf16.mxu0 0
      %579 = vmatpush1.bf16.msra.mxu0 %v431
      %580 = vmatprep.subr.bf16.mxu0 0
      %581 = vmatpush1.bf16.msra.mxu0 0
      %582 = vmatprep.subr.bf16.mxu0 0
      %583 = vmatpush1.bf16.msra.mxu0 0
      %584 = vmatprep.subr.bf16.mxu0 0
      %585 = vmatpush1.bf16.msra.mxu0 0
      %586 = vmatprep.subr.bf16.mxu0 0
      %587 = vmatpush1.bf16.msra.mxu0 0
      %588 = vmatprep.subr.bf16.mxu0 0
      %589 = vmatpush1.bf16.msra.mxu0 0
      %590 = vmatprep.subr.bf16.mxu0 0
      %591 = vmatpush1.bf16.msra.mxu0 0
      %592 = vmatprep.subr.bf16.mxu0 0
      %593 = vmatpush1.bf16.msra.mxu0 0
      %594 = vmatprep.subr.bf16.mxu0 0
      %595 = vmatpush1.bf16.msra.mxu0 0
      %596 = vmatprep.subr.bf16.mxu0 0
      %597 = vmatpush1.bf16.msra.mxu0 0
      %598 = vmatprep.subr.bf16.mxu0 0
      %599 = vmatpush1.bf16.msra.mxu0 0
      %600 = vmatprep.subr.bf16.mxu0 0
      %601 = vmatpush1.bf16.msra.mxu0 0
      %602 = vmatprep.subr.bf16.mxu0 0
      %603 = vmatpush1.bf16.msra.mxu0 0
      %604 = vmatprep.subr.bf16.mxu0 0
      %605 = vmatpush1.bf16.msra.mxu0 0
      %606 = vmatprep.subr.bf16.mxu0 0
      %607 = vmatpush1.bf16.msra.mxu0 0
      %608 = vmatprep.subr.bf16.mxu0 0
      %609 = vmatpush1.bf16.msra.mxu0 0
      %610 = vmatprep.mubr.bf16.mxu0 0
      %611 = vmatmul.mubr.bf16.gmra.mrb[0].mxu0 %v576
      %v612 = vpop.f32.mrb[0].mxu0
      %v613 = vadd.f32 0.0, %v612
      %v614 = vpop.f32.mrb[0].mxu0
      %v615 = vpop.f32.mrb[0].mxu0
      %v616 = vpop.f32.mrb[0].mxu0
      %617 = vdwg.mxu0
      %s618 = scalar_lea.vmem %s4, 3
      %v619 = vld [vmem:[%s618] sm:$0x1]
      %v620 = vmul.f32 %v613, %v619
      %v621 = vadd.f32 %v572, %v620
      %s622 = scalar_lea.vmem %s3, 4
      %v623 = vld [vmem:[%s622] sm:$0x1]
      %v625 = vsel %vm425, %v623, 0
      %627 = vmatprep.subr.bf16.mxu0 0
      %628 = vmatpush1.bf16.msra.mxu0 %v431
      %629 = vmatprep.subr.bf16.mxu0 0
      %630 = vmatpush1.bf16.msra.mxu0 0
      %631 = vmatprep.subr.bf16.mxu0 0
      %632 = vmatpush1.bf16.msra.mxu0 0
      %633 = vmatprep.subr.bf16.mxu0 0
      %634 = vmatpush1.bf16.msra.mxu0 0
      %635 = vmatprep.subr.bf16.mxu0 0
      %636 = vmatpush1.bf16.msra.mxu0 0
      %637 = vmatprep.subr.bf16.mxu0 0
      %638 = vmatpush1.bf16.msra.mxu0 0
      %639 = vmatprep.subr.bf16.mxu0 0
      %640 = vmatpush1.bf16.msra.mxu0 0
      %641 = vmatprep.subr.bf16.mxu0 0
      %642 = vmatpush1.bf16.msra.mxu0 0
      %643 = vmatprep.subr.bf16.mxu0 0
      %644 = vmatpush1.bf16.msra.mxu0 0
      %645 = vmatprep.subr.bf16.mxu0 0
      %646 = vmatpush1.bf16.msra.mxu0 0
      %647 = vmatprep.subr.bf16.mxu0 0
      %648 = vmatpush1.bf16.msra.mxu0 0
      %649 = vmatprep.subr.bf16.mxu0 0
      %650 = vmatpush1.bf16.msra.mxu0 0
      %651 = vmatprep.subr.bf16.mxu0 0
      %652 = vmatpush1.bf16.msra.mxu0 0
      %653 = vmatprep.subr.bf16.mxu0 0
      %654 = vmatpush1.bf16.msra.mxu0 0
      %655 = vmatprep.subr.bf16.mxu0 0
      %656 = vmatpush1.bf16.msra.mxu0 0
      %657 = vmatprep.subr.bf16.mxu0 0
      %658 = vmatpush1.bf16.msra.mxu0 0
      %659 = vmatprep.mubr.bf16.mxu0 0
      %660 = vmatmul.mubr.bf16.gmra.mrb[0].mxu0 %v625
      %v661 = vpop.f32.mrb[0].mxu0
      %v662 = vadd.f32 0.0, %v661
      %v663 = vpop.f32.mrb[0].mxu0
      %v664 = vpop.f32.mrb[0].mxu0
      %v665 = vpop.f32.mrb[0].mxu0
      %666 = vdwg.mxu0
      %s667 = scalar_lea.vmem %s4, 4
      %v668 = vld [vmem:[%s667] sm:$0x1]
      %v669 = vmul.f32 %v662, %v668
      %v670 = vadd.f32 %v621, %v669
      %s671 = scalar_lea.vmem %s3, 5
      %v672 = vld [vmem:[%s671] sm:$0x1]
      %v674 = vsel %vm425, %v672, 0
      %676 = vmatprep.subr.bf16.mxu0 0
      %677 = vmatpush1.bf16.msra.mxu0 %v431
      %678 = vmatprep.subr.bf16.mxu0 0
      %679 = vmatpush1.bf16.msra.mxu0 0
      %680 = vmatprep.subr.bf16.mxu0 0
      %681 = vmatpush1.bf16.msra.mxu0 0
      %682 = vmatprep.subr.bf16.mxu0 0
      %683 = vmatpush1.bf16.msra.mxu0 0
      %684 = vmatprep.subr.bf16.mxu0 0
      %685 = vmatpush1.bf16.msra.mxu0 0
      %686 = vmatprep.subr.bf16.mxu0 0
      %687 = vmatpush1.bf16.msra.mxu0 0
      %688 = vmatprep.subr.bf16.mxu0 0
      %689 = vmatpush1.bf16.msra.mxu0 0
      %690 = vmatprep.subr.bf16.mxu0 0
      %691 = vmatpush1.bf16.msra.mxu0 0
      %692 = vmatprep.subr.bf16.mxu0 0
      %693 = vmatpush1.bf16.msra.mxu0 0
      %694 = vmatprep.subr.bf16.mxu0 0
      %695 = vmatpush1.bf16.msra.mxu0 0
      %696 = vmatprep.subr.bf16.mxu0 0
      %697 = vmatpush1.bf16.msra.mxu0 0
      %698 = vmatprep.subr.bf16.mxu0 0
      %699 = vmatpush1.bf16.msra.mxu0 0
      %700 = vmatprep.subr.bf16.mxu0 0
      %701 = vmatpush1.bf16.msra.mxu0 0
      %702 = vmatprep.subr.bf16.mxu0 0
      %703 = vmatpush1.bf16.msra.mxu0 0
      %704 = vmatprep.subr.bf16.mxu0 0
      %705 = vmatpush1.bf16.msra.mxu0 0
      %706 = vmatprep.subr.bf16.mxu0 0
      %707 = vmatpush1.bf16.msra.mxu0 0
      %708 = vmatprep.mubr.bf16.mxu0 0
      %709 = vmatmul.mubr.bf16.gmra.mrb[0].mxu0 %v674
      %v710 = vpop.f32.mrb[0].mxu0
      %v711 = vadd.f32 0.0, %v710
      %v712 = vpop.f32.mrb[0].mxu0
      %v713 = vpop.f32.mrb[0].mxu0
      %v714 = vpop.f32.mrb[0].mxu0
      %715 = vdwg.mxu0
      %s716 = scalar_lea.vmem %s4, 5
      %v717 = vld [vmem:[%s716] sm:$0x1]
      %v718 = vmul.f32 %v711, %v717
      %v719 = vadd.f32 %v670, %v718
      %s720 = scalar_lea.vmem %s3, 6
      %v721 = vld [vmem:[%s720] sm:$0x1]
      %v723 = vsel %vm425, %v721, 0
      %725 = vmatprep.subr.bf16.mxu0 0
      %726 = vmatpush1.bf16.msra.mxu0 %v431
      %727 = vmatprep.subr.bf16.mxu0 0
      %728 = vmatpush1.bf16.msra.mxu0 0
      %729 = vmatprep.subr.bf16.mxu0 0
      %730 = vmatpush1.bf16.msra.mxu0 0
      %731 = vmatprep.subr.bf16.mxu0 0
      %732 = vmatpush1.bf16.msra.mxu0 0
      %733 = vmatprep.subr.bf16.mxu0 0
      %734 = vmatpush1.bf16.msra.mxu0 0
      %735 = vmatprep.subr.bf16.mxu0 0
      %736 = vmatpush1.bf16.msra.mxu0 0
      %737 = vmatprep.subr.bf16.mxu0 0
      %738 = vmatpush1.bf16.msra.mxu0 0
      %739 = vmatprep.subr.bf16.mxu0 0
      %740 = vmatpush1.bf16.msra.mxu0 0
      %741 = vmatprep.subr.bf16.mxu0 0
      %742 = vmatpush1.bf16.msra.mxu0 0
      %743 = vmatprep.subr.bf16.mxu0 0
      %744 = vmatpush1.bf16.msra.mxu0 0
      %745 = vmatprep.subr.bf16.mxu0 0
      %746 = vmatpush1.bf16.msra.mxu0 0
      %747 = vmatprep.subr.bf16.mxu0 0
      %748 = vmatpush1.bf16.msra.mxu0 0
      %749 = vmatprep.subr.bf16.mxu0 0
      %750 = vmatpush1.bf16.msra.mxu0 0
      %751 = vmatprep.subr.bf16.mxu0 0
      %752 = vmatpush1.bf16.msra.mxu0 0
      %753 = vmatprep.subr.bf16.mxu0 0
      %754 = vmatpush1.bf16.msra.mxu0 0
      %755 = vmatprep.subr.bf16.mxu0 0
      %756 = vmatpush1.bf16.msra.mxu0 0
      %757 = vmatprep.mubr.bf16.mxu0 0
      %758 = vmatmul.mubr.bf16.gmra.mrb[0].mxu0 %v723
      %v759 = vpop.f32.mrb[0].mxu0
      %v760 = vadd.f32 0.0, %v759
      %v761 = vpop.f32.mrb[0].mxu0
      %v762 = vpop.f32.mrb[0].mxu0
      %v763 = vpop.f32.mrb[0].mxu0
      %764 = vdwg.mxu0
      %s765 = scalar_lea.vmem %s4, 6
      %v766 = vld [vmem:[%s765] sm:$0x1]
      %v767 = vmul.f32 %v760, %v766
      %v768 = vadd.f32 %v719, %v767
      %s769 = scalar_lea.vmem %s3, 7
      %v770 = vld [vmem:[%s769] sm:$0x1]
      %v772 = vsel %vm425, %v770, 0
      %774 = vmatprep.subr.bf16.mxu0 0
      %775 = vmatpush1.bf16.msra.mxu0 %v431
      %776 = vmatprep.subr.bf16.mxu0 0
      %777 = vmatpush1.bf16.msra.mxu0 0
      %778 = vmatprep.subr.bf16.mxu0 0
      %779 = vmatpush1.bf16.msra.mxu0 0
      %780 = vmatprep.subr.bf16.mxu0 0
      %781 = vmatpush1.bf16.msra.mxu0 0
      %782 = vmatprep.subr.bf16.mxu0 0
      %783 = vmatpush1.bf16.msra.mxu0 0
      %784 = vmatprep.subr.bf16.mxu0 0
      %785 = vmatpush1.bf16.msra.mxu0 0
      %786 = vmatprep.subr.bf16.mxu0 0
      %787 = vmatpush1.bf16.msra.mxu0 0
      %788 = vmatprep.subr.bf16.mxu0 0
      %789 = vmatpush1.bf16.msra.mxu0 0
      %790 = vmatprep.subr.bf16.mxu0 0
      %791 = vmatpush1.bf16.msra.mxu0 0
      %792 = vmatprep.subr.bf16.mxu0 0
      %793 = vmatpush1.bf16.msra.mxu0 0
      %794 = vmatprep.subr.bf16.mxu0 0
      %795 = vmatpush1.bf16.msra.mxu0 0
      %796 = vmatprep.subr.bf16.mxu0 0
      %797 = vmatpush1.bf16.msra.mxu0 0
      %798 = vmatprep.subr.bf16.mxu0 0
      %799 = vmatpush1.bf16.msra.mxu0 0
      %800 = vmatprep.subr.bf16.mxu0 0
      %801 = vmatpush1.bf16.msra.mxu0 0
      %802 = vmatprep.subr.bf16.mxu0 0
      %803 = vmatpush1.bf16.msra.mxu0 0
      %804 = vmatprep.subr.bf16.mxu0 0
      %805 = vmatpush1.bf16.msra.mxu0 0
      %806 = vmatprep.mubr.bf16.mxu0 0
      %807 = vmatmul.mubr.bf16.gmra.mrb[0].mxu0 %v772
      %v808 = vpop.f32.mrb[0].mxu0
      %v809 = vadd.f32 0.0, %v808
      %v810 = vpop.f32.mrb[0].mxu0
      %v811 = vpop.f32.mrb[0].mxu0
      %v812 = vpop.f32.mrb[0].mxu0
      %813 = vdwg.mxu0
      %s814 = scalar_lea.vmem %s4, 7
      %v815 = vld [vmem:[%s814] sm:$0x1]
      %v816 = vmul.f32 %v809, %v815
      %v817 = vadd.f32 %v768, %v816
      %s818 = scalar_lea.vmem %s3, 8
      %v819 = vld [vmem:[%s818] sm:$0x1]
      %v821 = vsel %vm425, %v819, 0
      %823 = vmatprep.subr.bf16.mxu0 0
      %824 = vmatpush1.bf16.msra.mxu0 %v431
      %825 = vmatprep.subr.bf16.mxu0 0
      %826 = vmatpush1.bf16.msra.mxu0 0
      %827 = vmatprep.subr.bf16.mxu0 0
      %828 = vmatpush1.bf16.msra.mxu0 0
      %829 = vmatprep.subr.bf16.mxu0 0
      %830 = vmatpush1.bf16.msra.mxu0 0
      %831 = vmatprep.subr.bf16.mxu0 0
      %832 = vmatpush1.bf16.msra.mxu0 0
      %833 = vmatprep.subr.bf16.mxu0 0
      %834 = vmatpush1.bf16.msra.mxu0 0
      %835 = vmatprep.subr.bf16.mxu0 0
      %836 = vmatpush1.bf16.msra.mxu0 0
      %837 = vmatprep.subr.bf16.mxu0 0
      %838 = vmatpush1.bf16.msra.mxu0 0
      %839 = vmatprep.subr.bf16.mxu0 0
      %840 = vmatpush1.bf16.msra.mxu0 0
      %841 = vmatprep.subr.bf16.mxu0 0
      %842 = vmatpush1.bf16.msra.mxu0 0
      %843 = vmatprep.subr.bf16.mxu0 0
      %844 = vmatpush1.bf16.msra.mxu0 0
      %845 = vmatprep.subr.bf16.mxu0 0
      %846 = vmatpush1.bf16.msra.mxu0 0
      %847 = vmatprep.subr.bf16.mxu0 0
      %848 = vmatpush1.bf16.msra.mxu0 0
      %849 = vmatprep.subr.bf16.mxu0 0
      %850 = vmatpush1.bf16.msra.mxu0 0
      %851 = vmatprep.subr.bf16.mxu0 0
      %852 = vmatpush1.bf16.msra.mxu0 0
      %853 = vmatprep.subr.bf16.mxu0 0
      %854 = vmatpush1.bf16.msra.mxu0 0
      %855 = vmatprep.mubr.bf16.mxu0 0
      %856 = vmatmul.mubr.bf16.gmra.mrb[0].mxu0 %v821
      %v857 = vpop.f32.mrb[0].mxu0
      %v858 = vadd.f32 0.0, %v857
      %v859 = vpop.f32.mrb[0].mxu0
      %v860 = vpop.f32.mrb[0].mxu0
      %v861 = vpop.f32.mrb[0].mxu0
      %862 = vdwg.mxu0
      %s863 = scalar_lea.vmem %s4, 8
      %v864 = vld [vmem:[%s863] sm:$0x1]
      %v865 = vmul.f32 %v858, %v864
      %v866 = vadd.f32 %v817, %v865
      %v867 = vld [vmem:[%s5] sm:$0x1]
      %v868 = vadd.f32 %v866, %v867
      %v869 = vpack.c.bf16 %v868, %v868
      %v870 = vld [vmem:[%s6] sm:$0xf]
      %v871 = vld [vmem:[%s6 + $0x4] sm:$0xf]
      %v872 = vld [vmem:[%s7] sm:$0x1]
      %v875 = vunpack.c.l.b16 %v870
      %v876 = vunpack.c.l.b16 %v871
      %v877 = vpack.c.b16 %v876, %v875
      %vm879 = vcmask 130048
      %v881 = vsel %vm879, %v869, 0
      %883 = vmatprep.subr.bf16.mxu0 0
      %884 = vmatpush1.bf16.msra.mxu0 %v877
      %885 = vmatprep.subr.bf16.mxu0 0
      %886 = vmatpush1.bf16.msra.mxu0 0
      %887 = vmatprep.subr.bf16.mxu0 0
      %888 = vmatpush1.bf16.msra.mxu0 0
      %889 = vmatprep.subr.bf16.mxu0 0
      %890 = vmatpush1.bf16.msra.mxu0 0
      %891 = vmatprep.subr.bf16.mxu0 0
      %892 = vmatpush1.bf16.msra.mxu0 0
      %893 = vmatprep.subr.bf16.mxu0 0
      %894 = vmatpush1.bf16.msra.mxu0 0
      %895 = vmatprep.subr.bf16.mxu0 0
      %896 = vmatpush1.bf16.msra.mxu0 0
      %897 = vmatprep.subr.bf16.mxu0 0
      %898 = vmatpush1.bf16.msra.mxu0 0
      %899 = vmatprep.subr.bf16.mxu0 0
      %900 = vmatpush1.bf16.msra.mxu0 0
      %901 = vmatprep.subr.bf16.mxu0 0
      %902 = vmatpush1.bf16.msra.mxu0 0
      %903 = vmatprep.subr.bf16.mxu0 0
      %904 = vmatpush1.bf16.msra.mxu0 0
      %905 = vmatprep.subr.bf16.mxu0 0
      %906 = vmatpush1.bf16.msra.mxu0 0
      %907 = vmatprep.subr.bf16.mxu0 0
      %908 = vmatpush1.bf16.msra.mxu0 0
      %909 = vmatprep.subr.bf16.mxu0 0
      %910 = vmatpush1.bf16.msra.mxu0 0
      %911 = vmatprep.subr.bf16.mxu0 0
      %912 = vmatpush1.bf16.msra.mxu0 0
      %913 = vmatprep.subr.bf16.mxu0 0
      %914 = vmatpush1.bf16.msra.mxu0 0
      %915 = vmatprep.mubr.bf16.mxu0 0
      %916 = vmatmul.mubr.bf16.gmra.mrb[0].mxu0 %v881
      %v917 = vpop.f32.mrb[0].mxu0
      %v918 = vadd.f32 %v872, %v917
      %v919 = vpop.f32.mrb[0].mxu0
      %v920 = vpop.f32.mrb[0].mxu0
      %v921 = vpop.f32.mrb[0].mxu0
      %922 = vdwg.mxu0
      %v923 = vld [vmem:[%s8] sm:$0x1]
      %v925 = vsel %vm425, %v923, 0
      %v927 = vsel %vm429, %v354, 0
      %929 = vmatprep.subr.bf16.mxu0 0
      %930 = vmatpush1.bf16.msra.mxu0 %v927
      %931 = vmatprep.subr.bf16.mxu0 0
      %932 = vmatpush1.bf16.msra.mxu0 0
      %933 = vmatprep.subr.bf16.mxu0 0
      %934 = vmatpush1.bf16.msra.mxu0 0
      %935 = vmatprep.subr.bf16.mxu0 0
      %936 = vmatpush1.bf16.msra.mxu0 0
      %937 = vmatprep.subr.bf16.mxu0 0
      %938 = vmatpush1.bf16.msra.mxu0 0
      %939 = vmatprep.subr.bf16.mxu0 0
      %940 = vmatpush1.bf16.msra.mxu0 0
      %941 = vmatprep.subr.bf16.mxu0 0
      %942 = vmatpush1.bf16.msra.mxu0 0
      %943 = vmatprep.subr.bf16.mxu0 0
      %944 = vmatpush1.bf16.msra.mxu0 0
      %945 = vmatprep.subr.bf16.mxu0 0
      %946 = vmatpush1.bf16.msra.mxu0 0
      %947 = vmatprep.subr.bf16.mxu0 0
      %948 = vmatpush1.bf16.msra.mxu0 0
      %949 = vmatprep.subr.bf16.mxu0 0
      %950 = vmatpush1.bf16.msra.mxu0 0
      %951 = vmatprep.subr.bf16.mxu0 0
      %952 = vmatpush1.bf16.msra.mxu0 0
      %953 = vmatprep.subr.bf16.mxu0 0
      %954 = vmatpush1.bf16.msra.mxu0 0
      %955 = vmatprep.subr.bf16.mxu0 0
      %956 = vmatpush1.bf16.msra.mxu0 0
      %957 = vmatprep.subr.bf16.mxu0 0
      %958 = vmatpush1.bf16.msra.mxu0 0
      %959 = vmatprep.subr.bf16.mxu0 0
      %960 = vmatpush1.bf16.msra.mxu0 0
      %961 = vmatprep.mubr.bf16.mxu0 0
      %962 = vmatmul.mubr.bf16.gmra.mrb[0].mxu0 %v925
      %v963 = vpop.f32.mrb[0].mxu0
      %v964 = vadd.f32 0.0, %v963
      %v965 = vpop.f32.mrb[0].mxu0
      %v966 = vpop.f32.mrb[0].mxu0
      %v967 = vpop.f32.mrb[0].mxu0
      %968 = vdwg.mxu0
      %v969 = vmul.f32 %v964, 0.11111111
      %v970 = vpack.c.bf16 %v969, %v969
      %v971 = vld [vmem:[%s9] sm:$0xf]
      %v972 = vld [vmem:[%s9 + $0x4] sm:$0xf]
      %v973 = vld [vmem:[%s9 + $0x8] sm:$0xf]
      %v974 = vld [vmem:[%s9 + $0xc] sm:$0xf]
      %v979 = vunpack.c.l.b16 %v971
      %v980 = vunpack.c.l.b16 %v972
      %v981 = vunpack.c.l.b16 %v973
      %v982 = vunpack.c.l.b16 %v974
      %v983 = vpack.c.b16 %v980, %v979
      %v984 = vpack.c.b16 %v982, %v981
      %v988 = vsel %vm378, %v970, 0
      %990 = vmatprep.subr.bf16.mxu0 0
      %991 = vmatpush1.bf16.msra.mxu0 %v983
      %992 = vmatprep.subr.bf16.mxu0 0
      %993 = vmatpush1.bf16.msra.mxu0 %v984
      %994 = vmatprep.subr.bf16.mxu0 0
      %995 = vmatpush1.bf16.msra.mxu0 0
      %996 = vmatprep.subr.bf16.mxu0 0
      %997 = vmatpush1.bf16.msra.mxu0 0
      %998 = vmatprep.subr.bf16.mxu0 0
      %999 = vmatpush1.bf16.msra.mxu0 0
      %1000 = vmatprep.subr.bf16.mxu0 0
      %1001 = vmatpush1.bf16.msra.mxu0 0
      %1002 = vmatprep.subr.bf16.mxu0 0
      %1003 = vmatpush1.bf16.msra.mxu0 0
      %1004 = vmatprep.subr.bf16.mxu0 0
      %1005 = vmatpush1.bf16.msra.mxu0 0
      %1006 = vmatprep.subr.bf16.mxu0 0
      %1007 = vmatpush1.bf16.msra.mxu0 0
      %1008 = vmatprep.subr.bf16.mxu0 0
      %1009 = vmatpush1.bf16.msra.mxu0 0
      %1010 = vmatprep.subr.bf16.mxu0 0
      %1011 = vmatpush1.bf16.msra.mxu0 0
      %1012 = vmatprep.subr.bf16.mxu0 0
      %1013 = vmatpush1.bf16.msra.mxu0 0
      %1014 = vmatprep.subr.bf16.mxu0 0
      %1015 = vmatpush1.bf16.msra.mxu0 0
      %1016 = vmatprep.subr.bf16.mxu0 0
      %1017 = vmatpush1.bf16.msra.mxu0 0
      %1018 = vmatprep.subr.bf16.mxu0 0
      %1019 = vmatpush1.bf16.msra.mxu0 0
      %1020 = vmatprep.subr.bf16.mxu0 0
      %1021 = vmatpush1.bf16.msra.mxu0 0
      %1022 = vmatprep.mubr.bf16.mxu0 0
      %1023 = vmatmul.mubr.bf16.gmra.mrb[0].mxu0 %v988
      %v1024 = vpop.f32.mrb[0].mxu0
      %v1025 = vadd.f32 0.0, %v1024
      %v1026 = vpop.f32.mrb[0].mxu0
      %v1027 = vpop.f32.mrb[0].mxu0
      %v1028 = vpop.f32.mrb[0].mxu0
      %1029 = vdwg.mxu0
      %v1030 = vadd.f32 %v918, %v1025
      %v1031 = vmax.f32 %v1030, 0.0
      %v1032 = vpack.c.bf16 %v1031, %v1031
      %vm1033 = vcmask 516096
      %vm1034 = vsmask.f32 256
      %vm1035 = vmand %vm1033, %vm1034
      %v1036 = vld [vmem:[%s352] sm:$0x1]
      %v1037 = vsel %vm1035, %v1032, %v1036
      %1038 = vst [vmem:[%s352] sm:$0x1] %v1037
      %p1039 = scmp.lt.s32.totalorder %s21, 1
      %s1040 = scalar_select %p1039, %s21, 1
      %s1041 = scalar_lea.vmem %s10, %s1040
      // Predicated region
      $region61: #{shufflenet_forward.13} parent=59 // pred_check
        %p1042 = pneg %p254
      $region62: #{shufflenet_forward.13} parent=59 // pred_check_branch
        %1044 = sbr.rel (%p1042) target = $region64
      $region63: #{shufflenet_forward.13} parent=59 // pred_region
        _
      $region64: #{shufflenet_forward.13} parent=59 // pred_fallthru
        _
    $region60: #{shufflenet_forward.13} parent=5 // pred_fallthru
      _
    %p1045 = scmp.le.s32.totalorder 2, %s16
    // Predicated region
    $region65: #{shufflenet_forward.13} parent=5 // pred_check
      %p1046 = pneg %p1045
    $region66: #{shufflenet_forward.13} parent=5 // pred_check_branch
      %1048 = sbr.rel (%p1046) target = $region68
    $region67: #{shufflenet_forward.13} parent=5 // pred_region
      %s1049 = ssub.s32 %s16, 2
      // Predicated region
      $region69: #{shufflenet_forward.13} parent=67 // pred_check
        %p1050 = pneg %p260
      $region70: #{shufflenet_forward.13} parent=67 // pred_check_branch
        %1052 = sbr.rel (%p1050) target = $region72
      $region71: #{shufflenet_forward.13} parent=67 // pred_region
        %p1053 = scmp.lt.s32.totalorder %s22, 1
        %s1054 = scalar_select %p1053, %s22, 1
        %s1055 = scalar_lea.vmem %s10, %s1054
      $region72: #{shufflenet_forward.13} parent=67 // pred_fallthru
        _
    $region68: #{shufflenet_forward.13} parent=5 // pred_fallthru
      _
  $region6: #{shufflenet_forward.13} parent=0 // loop_footer
    %s20 = sadd.s32 1, %s16
  $region7: #{shufflenet_forward.13} parent=0 // loop_footer_branch
    %15 = sbr.rel target = $region3
  $region8: #{shufflenet_forward.13} parent=0 // loop_exit
    _

// kernel: shufflenet_forward.15
$region0: #{shufflenet_forward.15}
  #allocation0 [shape = 'u32[]', space=smem, size = 0x4, offset = 0x4, fixed_abs, tag = 'smem constant byte address 0x4 - core index']
  #allocation1 [shape = 'u32[144,128]{1,0:T(1,128)}', space=vmem, size = 0x12000, scoped, tag = 'internal scratch']
  %s0 = inlined_call_operand.vmem [shape: bf16[2,64], index: 0, kind: input, shape index: {}]
  %s1 = inlined_call_operand.vmem [shape: bf16[64,10], index: 1, kind: input, shape index: {}]
  %s2 = inlined_call_operand.vmem [shape: bf16[64,1000], index: 2, kind: input, shape index: {}]
  %s3 = inlined_call_operand.hbm [shape: f32[2,10], index: 3, kind: output, shape index: {0}]
  %s4 = inlined_call_operand.hbm [shape: f32[2,1000], index: 4, kind: output, shape index: {1}]
  %5 = xla_tuple %s3, %s4
  %s6 = sld [smem:[#allocation0]]
  $region30: #{shufflenet_forward.15} parent=0
    _
  %s8 = ssub.s32 1, %s6
  %s9 = scalar_select 0, %s8, %s6
  $region1: #{shufflenet_forward.15} parent=0
    #allocation2 [shape = 'u8[1024]{0}', space=vmem, size = 0x400, scoped, tag = 'output window, operand 0, single buffered']
    #allocation3 [shape = 's32[1]{0}', space=sflag, size = 0x4, scoped, tag = 'scoped memory for shufflenet_forward.15']
    #allocation4 [shape = 'u8[8192]{0}', space=vmem, size = 0x2000, scoped, tag = 'output window, operand 1, single buffered']
    #allocation5 [shape = 's32[1]{0}', space=sflag, size = 0x4, scoped, tag = 'scoped memory for shufflenet_forward.15']
    %10 = vsyncpa [#allocation3], 0
    %11 = vsyncpa [#allocation5], 0
    // Predicated region
    $region2: #{shufflenet_forward.15} parent=1 // pred_check
      _
    $region3: #{shufflenet_forward.15} parent=1 // pred_check_branch
      %13 = sbr.rel (0) target = $region5
    $region4: #{shufflenet_forward.15} parent=1 // pred_region
      _
    $region5: #{shufflenet_forward.15} parent=1 // pred_fallthru
      _
    // Predicated region
    $region6: #{shufflenet_forward.15} parent=1 // pred_check
      _
    $region7: #{shufflenet_forward.15} parent=1 // pred_check_branch
      %15 = sbr.rel (0) target = $region9
    $region8: #{shufflenet_forward.15} parent=1 // pred_region
      _
    $region9: #{shufflenet_forward.15} parent=1 // pred_fallthru
      _
    // Predicated region
    $region10: #{shufflenet_forward.15} parent=1 // pred_check
      _
    $region11: #{shufflenet_forward.15} parent=1 // pred_check_branch
      %17 = sbr.rel (0) target = $region13
    $region12: #{shufflenet_forward.15} parent=1 // pred_region
      _
    $region13: #{shufflenet_forward.15} parent=1 // pred_fallthru
      _
    %v19 = vld [vmem:[%s0] sm:$0x1]
    %v20 = vld [vmem:[%s1] sm:$0xf]
    %v21 = vld [vmem:[%s1 + $0x4] sm:$0xf]
    %v22 = vld [vmem:[%s1 + $0x8] sm:$0xf]
    %v23 = vld [vmem:[%s1 + $0xc] sm:$0xf]
    %v24 = vld [vmem:[%s1 + $0x10] sm:$0xf]
    %v25 = vld [vmem:[%s1 + $0x14] sm:$0xf]
    %v26 = vld [vmem:[%s1 + $0x18] sm:$0xf]
    %v27 = vld [vmem:[%s1 + $0x1c] sm:$0xf]
    %v36 = vunpack.c.l.b16 %v20
    %v37 = vunpack.c.l.b16 %v21
    %v38 = vunpack.c.l.b16 %v22
    %v39 = vunpack.c.l.b16 %v23
    %v40 = vunpack.c.l.b16 %v24
    %v41 = vunpack.c.l.b16 %v25
    %v42 = vunpack.c.l.b16 %v26
    %v43 = vunpack.c.l.b16 %v27
    %v44 = vpack.c.b16 %v37, %v36
    %v45 = vpack.c.b16 %v39, %v38
    %v46 = vpack.c.b16 %v41, %v40
    %v47 = vpack.c.b16 %v43, %v42
    %vm52 = vcmask 523264
    %v54 = vsel %vm52, %v19, 0
    %56 = vmatprep.subr.bf16.mxu0 0
    %57 = vmatpush1.bf16.msra.mxu0 %v44
    %58 = vmatprep.subr.bf16.mxu0 0
    %59 = vmatpush1.bf16.msra.mxu0 %v45
    %60 = vmatprep.subr.bf16.mxu0 0
    %61 = vmatpush1.bf16.msra.mxu0 %v46
    %62 = vmatprep.subr.bf16.mxu0 0
    %63 = vmatpush1.bf16.msra.mxu0 %v47
    %64 = vmatprep.subr.bf16.mxu0 0
    %65 = vmatpush1.bf16.msra.mxu0 0
    %66 = vmatprep.subr.bf16.mxu0 0
    %67 = vmatpush1.bf16.msra.mxu0 0
    %68 = vmatprep.subr.bf16.mxu0 0
    %69 = vmatpush1.bf16.msra.mxu0 0
    %70 = vmatprep.subr.bf16.mxu0 0
    %71 = vmatpush1.bf16.msra.mxu0 0
    %72 = vmatprep.subr.bf16.mxu0 0
    %73 = vmatpush1.bf16.msra.mxu0 0
    %74 = vmatprep.subr.bf16.mxu0 0
    %75 = vmatpush1.bf16.msra.mxu0 0
    %76 = vmatprep.subr.bf16.mxu0 0
    %77 = vmatpush1.bf16.msra.mxu0 0
    %78 = vmatprep.subr.bf16.mxu0 0
    %79 = vmatpush1.bf16.msra.mxu0 0
    %80 = vmatprep.subr.bf16.mxu0 0
    %81 = vmatpush1.bf16.msra.mxu0 0
    %82 = vmatprep.subr.bf16.mxu0 0
    %83 = vmatpush1.bf16.msra.mxu0 0
    %84 = vmatprep.subr.bf16.mxu0 0
    %85 = vmatpush1.bf16.msra.mxu0 0
    %86 = vmatprep.subr.bf16.mxu0 0
    %87 = vmatpush1.bf16.msra.mxu0 0
    %88 = vmatprep.mubr.bf16.mxu0 0
    %89 = vmatmul.mubr.bf16.gmra.mrb[0].mxu0 %v54
    %v90 = vpop.f32.mrb[0].mxu0
    %v91 = vadd.f32 0.0, %v90
    %v92 = vpop.f32.mrb[0].mxu0
    %v93 = vpop.f32.mrb[0].mxu0
    %v94 = vpop.f32.mrb[0].mxu0
    %95 = vdwg.mxu0
    %vm96 = vcmask 74752
    %97 = vst.msk [vmem:[#allocation2] sm:$0x3] %vm96, %v91
    %v98 = vld [vmem:[%s2] sm:$0xff]
    %v99 = vld [vmem:[%s2 + $0x8] sm:$0xff]
    %v100 = vld [vmem:[%s2 + $0x10] sm:$0xff]
    %v101 = vld [vmem:[%s2 + $0x18] sm:$0xff]
    %v102 = vld [vmem:[%s2 + $0x20] sm:$0xff]
    %v103 = vld [vmem:[%s2 + $0x28] sm:$0xff]
    %v104 = vld [vmem:[%s2 + $0x30] sm:$0xff]
    %v105 = vld [vmem:[%s2 + $0x38] sm:$0xff]
    %v106 = vld [vmem:[%s2 + $0x40] sm:$0xff]
    %v107 = vld [vmem:[%s2 + $0x48] sm:$0xff]
    %v108 = vld [vmem:[%s2 + $0x50] sm:$0xff]
    %v109 = vld [vmem:[%s2 + $0x58] sm:$0xff]
    %v110 = vld [vmem:[%s2 + $0x60] sm:$0xff]
    %v111 = vld [vmem:[%s2 + $0x68] sm:$0xff]
    %v112 = vld [vmem:[%s2 + $0x70] sm:$0xff]
    %v113 = vld [vmem:[%s2 + $0x78] sm:$0xff]
    %v114 = vld [vmem:[%s2 + $0x80] sm:$0xff]
    %v115 = vld [vmem:[%s2 + $0x88] sm:$0xff]
    %v116 = vld [vmem:[%s2 + $0x90] sm:$0xff]
    %v117 = vld [vmem:[%s2 + $0x98] sm:$0xff]
    %v118 = vld [vmem:[%s2 + $0xa0] sm:$0xff]
    %v119 = vld [vmem:[%s2 + $0xa8] sm:$0xff]
    %v120 = vld [vmem:[%s2 + $0xb0] sm:$0xff]
    %v121 = vld [vmem:[%s2 + $0xb8] sm:$0xff]
    %v122 = vld [vmem:[%s2 + $0xc0] sm:$0xff]
    %v123 = vld [vmem:[%s2 + $0xc8] sm:$0xff]
    %v124 = vld [vmem:[%s2 + $0xd0] sm:$0xff]
    %v125 = vld [vmem:[%s2 + $0xd8] sm:$0xff]
    %v126 = vld [vmem:[%s2 + $0xe0] sm:$0xff]
    %v127 = vld [vmem:[%s2 + $0xe8] sm:$0xff]
    %v128 = vld [vmem:[%s2 + $0xf0] sm:$0xff]
    %v129 = vld [vmem:[%s2 + $0xf8] sm:$0xff]
    %v162 = vunpack.c.l.b16 %v98
    %v163 = vunpack.c.h.b16 %v98
    %v164 = vunpack.c.l.b16 %v99
    %v165 = vunpack.c.h.b16 %v99
    %v166 = vunpack.c.l.b16 %v100
    %v167 = vunpack.c.h.b16 %v100
    %v168 = vunpack.c.l.b16 %v101
    %v169 = vunpack.c.h.b16 %v101
    %v170 = vunpack.c.l.b16 %v102
    %v171 = vunpack.c.h.b16 %v102
    %v172 = vunpack.c.l.b16 %v103
    %v173 = vunpack.c.h.b16 %v103
    %v174 = vunpack.c.l.b16 %v104
    %v175 = vunpack.c.h.b16 %v104
    %v176 = vunpack.c.l.b16 %v105
    %v177 = vunpack.c.h.b16 %v105
    %v178 = vunpack.c.l.b16 %v106
    %v179 = vunpack.c.h.b16 %v106
    %v180 = vunpack.c.l.b16 %v107
    %v181 = vunpack.c.h.b16 %v107
    %v182 = vunpack.c.l.b16 %v108
    %v183 = vunpack.c.h.b16 %v108
    %v184 = vunpack.c.l.b16 %v109
    %v185 = vunpack.c.h.b16 %v109
    %v186 = vunpack.c.l.b16 %v110
    %v187 = vunpack.c.h.b16 %v110
    %v188 = vunpack.c.l.b16 %v111
    %v189 = vunpack.c.h.b16 %v111
    %v190 = vunpack.c.l.b16 %v112
    %v191 = vunpack.c.h.b16 %v112
    %v192 = vunpack.c.l.b16 %v113
    %v193 = vunpack.c.h.b16 %v113
    %v194 = vunpack.c.l.b16 %v114
    %v195 = vunpack.c.h.b16 %v114
    %v196 = vunpack.c.l.b16 %v115
    %v197 = vunpack.c.h.b16 %v115
    %v198 = vunpack.c.l.b16 %v116
    %v199 = vunpack.c.h.b16 %v116
    %v200 = vunpack.c.l.b16 %v117
    %v201 = vunpack.c.h.b16 %v117
    %v202 = vunpack.c.l.b16 %v118
    %v203 = vunpack.c.h.b16 %v118
    %v204 = vunpack.c.l.b16 %v119
    %v205 = vunpack.c.h.b16 %v119
    %v206 = vunpack.c.l.b16 %v120
    %v207 = vunpack.c.h.b16 %v120
    %v208 = vunpack.c.l.b16 %v121
    %v209 = vunpack.c.h.b16 %v121
    %v210 = vunpack.c.l.b16 %v122
    %v211 = vunpack.c.h.b16 %v122
    %v212 = vunpack.c.l.b16 %v123
    %v213 = vunpack.c.h.b16 %v123
    %v214 = vunpack.c.l.b16 %v124
    %v215 = vunpack.c.h.b16 %v124
    %v216 = vunpack.c.l.b16 %v125
    %v217 = vunpack.c.h.b16 %v125
    %v218 = vunpack.c.l.b16 %v126
    %v219 = vunpack.c.h.b16 %v126
    %v220 = vunpack.c.l.b16 %v127
    %v221 = vunpack.c.h.b16 %v127
    %v222 = vunpack.c.l.b16 %v128
    %v223 = vunpack.c.h.b16 %v128
    %v224 = vunpack.c.l.b16 %v129
    %v225 = vunpack.c.h.b16 %v129
    %v226 = vpack.c.b16 %v170, %v162
    %v227 = vpack.c.b16 %v171, %v163
    %v228 = vpack.c.b16 %v172, %v164
    %v229 = vpack.c.b16 %v173, %v165
    %v230 = vpack.c.b16 %v174, %v166
    %v231 = vpack.c.b16 %v175, %v167
    %v232 = vpack.c.b16 %v176, %v168
    %v233 = vpack.c.b16 %v177, %v169
    %v234 = vpack.c.b16 %v186, %v178
    %v235 = vpack.c.b16 %v187, %v179
    %v236 = vpack.c.b16 %v188, %v180
    %v237 = vpack.c.b16 %v189, %v181
    %v238 = vpack.c.b16 %v190, %v182
    %v239 = vpack.c.b16 %v191, %v183
    %v240 = vpack.c.b16 %v192, %v184
    %v241 = vpack.c.b16 %v193, %v185
    %v242 = vpack.c.b16 %v202, %v194
    %v243 = vpack.c.b16 %v203, %v195
    %v244 = vpack.c.b16 %v204, %v196
    %v245 = vpack.c.b16 %v205, %v197
    %v246 = vpack.c.b16 %v206, %v198
    %v247 = vpack.c.b16 %v207, %v199
    %v248 = vpack.c.b16 %v208, %v200
    %v249 = vpack.c.b16 %v209, %v201
    %v250 = vpack.c.b16 %v218, %v210
    %v251 = vpack.c.b16 %v219, %v211
    %v252 = vpack.c.b16 %v220, %v212
    %v253 = vpack.c.b16 %v221, %v213
    %v254 = vpack.c.b16 %v222, %v214
    %v255 = vpack.c.b16 %v223, %v215
    %v256 = vpack.c.b16 %v224, %v216
    %v257 = vpack.c.b16 %v225, %v217
    %290 = vmatprep.subr.bf16.mxu0 %v227
    %291 = vmatpush1.bf16.msra.mxu0 %v226
    %292 = vmatprep.subr.bf16.mxu0 %v235
    %293 = vmatpush1.bf16.msra.mxu0 %v234
    %294 = vmatprep.subr.bf16.mxu0 %v243
    %295 = vmatpush1.bf16.msra.mxu0 %v242
    %296 = vmatprep.subr.bf16.mxu0 %v251
    %297 = vmatpush1.bf16.msra.mxu0 %v250
    %298 = vmatprep.subr.bf16.mxu0 0
    %299 = vmatpush1.bf16.msra.mxu0 0
    %300 = vmatprep.subr.bf16.mxu0 0
    %301 = vmatpush1.bf16.msra.mxu0 0
    %302 = vmatprep.subr.bf16.mxu0 0
    %303 = vmatpush1.bf16.msra.mxu0 0
    %304 = vmatprep.subr.bf16.mxu0 0
    %305 = vmatpush1.bf16.msra.mxu0 0
    %306 = vmatprep.subr.bf16.mxu0 0
    %307 = vmatpush1.bf16.msra.mxu0 0
    %308 = vmatprep.subr.bf16.mxu0 0
    %309 = vmatpush1.bf16.msra.mxu0 0
    %310 = vmatprep.subr.bf16.mxu0 0
    %311 = vmatpush1.bf16.msra.mxu0 0
    %312 = vmatprep.subr.bf16.mxu0 0
    %313 = vmatpush1.bf16.msra.mxu0 0
    %314 = vmatprep.subr.bf16.mxu0 0
    %315 = vmatpush1.bf16.msra.mxu0 0
    %316 = vmatprep.subr.bf16.mxu0 0
    %317 = vmatpush1.bf16.msra.mxu0 0
    %318 = vmatprep.subr.bf16.mxu0 0
    %319 = vmatpush1.bf16.msra.mxu0 0
    %320 = vmatprep.subr.bf16.mxu0 0
    %321 = vmatpush1.bf16.msra.mxu0 0
    %322 = vmatprep.mubr.bf16.mxu0 0
    %323 = vmatmul.mubr.bf16.gmra.mrb[0].mxu0 %v54
    %v324 = vpop.f32.mrb[0].mxu0
    %v325 = vadd.f32 0.0, %v324
    %v326 = vpop.f32.mrb[0].mxu0
    %v327 = vadd.f32 0.0, %v326
    %v328 = vpop.f32.mrb[0].mxu0
    %v329 = vpop.f32.mrb[0].mxu0
    %330 = vdwg.mxu0
    %331 = vmatprep.subr.bf16.mxu0 %v229
    %332 = vmatpush1.bf16.msra.mxu0 %v228
    %333 = vmatprep.subr.bf16.mxu0 %v237
    %334 = vmatpush1.bf16.msra.mxu0 %v236
    %335 = vmatprep.subr.bf16.mxu0 %v245
    %336 = vmatpush1.bf16.msra.mxu0 %v244
    %337 = vmatprep.subr.bf16.mxu0 %v253
    %338 = vmatpush1.bf16.msra.mxu0 %v252
    %339 = vmatprep.subr.bf16.mxu0 0
    %340 = vmatpush1.bf16.msra.mxu0 0
    %341 = vmatprep.subr.bf16.mxu0 0
    %342 = vmatpush1.bf16.msra.mxu0 0
    %343 = vmatprep.subr.bf16.mxu0 0
    %344 = vmatpush1.bf16.msra.mxu0 0
    %345 = vmatprep.subr.bf16.mxu0 0
    %346 = vmatpush1.bf16.msra.mxu0 0
    %347 = vmatprep.subr.bf16.mxu0 0
    %348 = vmatpush1.bf16.msra.mxu0 0
    %349 = vmatprep.subr.bf16.mxu0 0
    %350 = vmatpush1.bf16.msra.mxu0 0
    %351 = vmatprep.subr.bf16.mxu0 0
    %352 = vmatpush1.bf16.msra.mxu0 0
    %353 = vmatprep.subr.bf16.mxu0 0
    %354 = vmatpush1.bf16.msra.mxu0 0
    %355 = vmatprep.subr.bf16.mxu0 0
    %356 = vmatpush1.bf16.msra.mxu0 0
    %357 = vmatprep.subr.bf16.mxu0 0
    %358 = vmatpush1.bf16.msra.mxu0 0
    %359 = vmatprep.subr.bf16.mxu0 0
    %360 = vmatpush1.bf16.msra.mxu0 0
    %361 = vmatprep.subr.bf16.mxu0 0
    %362 = vmatpush1.bf16.msra.mxu0 0
    %363 = vmatprep.mubr.bf16.mxu0 0
    %364 = vmatmul.mubr.bf16.gmra.mrb[0].mxu0 %v54
    %v365 = vpop.f32.mrb[0].mxu0
    %v366 = vadd.f32 0.0, %v365
    %v367 = vpop.f32.mrb[0].mxu0
    %v368 = vadd.f32 0.0, %v367
    %v369 = vpop.f32.mrb[0].mxu0
    %v370 = vpop.f32.mrb[0].mxu0
    %371 = vdwg.mxu0
    %372 = vmatprep.subr.bf16.mxu0 %v231
    %373 = vmatpush1.bf16.msra.mxu0 %v230
    %374 = vmatprep.subr.bf16.mxu0 %v239
    %375 = vmatpush1.bf16.msra.mxu0 %v238
    %376 = vmatprep.subr.bf16.mxu0 %v247
    %377 = vmatpush1.bf16.msra.mxu0 %v246
    %378 = vmatprep.subr.bf16.mxu0 %v255
    %379 = vmatpush1.bf16.msra.mxu0 %v254
    %380 = vmatprep.subr.bf16.mxu0 0
    %381 = vmatpush1.bf16.msra.mxu0 0
    %382 = vmatprep.subr.bf16.mxu0 0
    %383 = vmatpush1.bf16.msra.mxu0 0
    %384 = vmatprep.subr.bf16.mxu0 0
    %385 = vmatpush1.bf16.msra.mxu0 0
    %386 = vmatprep.subr.bf16.mxu0 0
    %387 = vmatpush1.bf16.msra.mxu0 0
    %388 = vmatprep.subr.bf16.mxu0 0
    %389 = vmatpush1.bf16.msra.mxu0 0
    %390 = vmatprep.subr.bf16.mxu0 0
    %391 = vmatpush1.bf16.msra.mxu0 0
    %392 = vmatprep.subr.bf16.mxu0 0
    %393 = vmatpush1.bf16.msra.mxu0 0
    %394 = vmatprep.subr.bf16.mxu0 0
    %395 = vmatpush1.bf16.msra.mxu0 0
    %396 = vmatprep.subr.bf16.mxu0 0
    %397 = vmatpush1.bf16.msra.mxu0 0
    %398 = vmatprep.subr.bf16.mxu0 0
    %399 = vmatpush1.bf16.msra.mxu0 0
    %400 = vmatprep.subr.bf16.mxu0 0
    %401 = vmatpush1.bf16.msra.mxu0 0
    %402 = vmatprep.subr.bf16.mxu0 0
    %403 = vmatpush1.bf16.msra.mxu0 0
    %404 = vmatprep.mubr.bf16.mxu0 0
    %405 = vmatmul.mubr.bf16.gmra.mrb[0].mxu0 %v54
    %v406 = vpop.f32.mrb[0].mxu0
    %v407 = vadd.f32 0.0, %v406
    %v408 = vpop.f32.mrb[0].mxu0
    %v409 = vadd.f32 0.0, %v408
    %v410 = vpop.f32.mrb[0].mxu0
    %v411 = vpop.f32.mrb[0].mxu0
    %412 = vdwg.mxu0
    %413 = vmatprep.subr.bf16.mxu0 %v233
    %414 = vmatpush1.bf16.msra.mxu0 %v232
    %415 = vmatprep.subr.bf16.mxu0 %v241
    %416 = vmatpush1.bf16.msra.mxu0 %v240
    %417 = vmatprep.subr.bf16.mxu0 %v249
    %418 = vmatpush1.bf16.msra.mxu0 %v248
    %419 = vmatprep.subr.bf16.mxu0 %v257
    %420 = vmatpush1.bf16.msra.mxu0 %v256
    %421 = vmatprep.subr.bf16.mxu0 0
    %422 = vmatpush1.bf16.msra.mxu0 0
    %423 = vmatprep.subr.bf16.mxu0 0
    %424 = vmatpush1.bf16.msra.mxu0 0
    %425 = vmatprep.subr.bf16.mxu0 0
    %426 = vmatpush1.bf16.msra.mxu0 0
    %427 = vmatprep.subr.bf16.mxu0 0
    %428 = vmatpush1.bf16.msra.mxu0 0
    %429 = vmatprep.subr.bf16.mxu0 0
    %430 = vmatpush1.bf16.msra.mxu0 0
    %431 = vmatprep.subr.bf16.mxu0 0
    %432 = vmatpush1.bf16.msra.mxu0 0
    %433 = vmatprep.subr.bf16.mxu0 0
    %434 = vmatpush1.bf16.msra.mxu0 0
    %435 = vmatprep.subr.bf16.mxu0 0
    %436 = vmatpush1.bf16.msra.mxu0 0
    %437 = vmatprep.subr.bf16.mxu0 0
    %438 = vmatpush1.bf16.msra.mxu0 0
    %439 = vmatprep.subr.bf16.mxu0 0
    %440 = vmatpush1.bf16.msra.mxu0 0
    %441 = vmatprep.subr.bf16.mxu0 0
    %442 = vmatpush1.bf16.msra.mxu0 0
    %443 = vmatprep.subr.bf16.mxu0 0
    %444 = vmatpush1.bf16.msra.mxu0 0
    %445 = vmatprep.mubr.bf16.mxu0 0
    %446 = vmatmul.mubr.bf16.gmra.mrb[0].mxu0 %v54
    %v447 = vpop.f32.mrb[0].mxu0
    %v448 = vadd.f32 0.0, %v447
    %v449 = vpop.f32.mrb[0].mxu0
    %v450 = vadd.f32 0.0, %v449
    %v451 = vpop.f32.mrb[0].mxu0
    %v452 = vpop.f32.mrb[0].mxu0
    %453 = vdwg.mxu0
    %v454 = vmax.f32 %v325, 0.0
    %v455 = vmax.f32 %v327, 0.0
    %v456 = vmax.f32 %v366, 0.0
    %v457 = vmax.f32 %v368, 0.0
    %v458 = vmax.f32 %v407, 0.0
    %v459 = vmax.f32 %v409, 0.0
    %v460 = vmax.f32 %v448, 0.0
    %v461 = vmax.f32 %v450, 0.0
    %v470 = vcombine.low %v454, %v455
    %v471 = vcombine.low %v456, %v457
    %v473 = vunpack.c.l.s4 1983009808
    %v474 = vunpack.c.0.s8 %v473
    %v475 = vlaneseq
    %v476 = vshrl.u32 %v475, 7
    %v477 = vsub.s32 %v474, %v476
    %v478 = vrot.slane %v470, %v477
    %v480 = vunpack.c.l.s4 1983009808
    %v481 = vunpack.c.0.s8 %v480
    %v482 = vlaneseq
    %v483 = vshrl.u32 %v482, 7
    %v484 = vsub.s32 %v481, %v483
    %v485 = vrot.slane %v471, %v484
    %v486 = vcombine.low %v478, %v485
    %v487 = vcombine.low %v458, %v459
    %v488 = vcombine.low %v460, %v461
    %v490 = vunpack.c.l.s4 1983009808
    %v491 = vunpack.c.0.s8 %v490
    %v492 = vlaneseq
    %v493 = vshrl.u32 %v492, 7
    %v494 = vsub.s32 %v491, %v493
    %v495 = vrot.slane %v487, %v494
    %v497 = vunpack.c.l.s4 1983009808
    %v498 = vunpack.c.0.s8 %v497
    %v499 = vlaneseq
    %v500 = vshrl.u32 %v499, 7
    %v501 = vsub.s32 %v498, %v500
    %v502 = vrot.slane %v488, %v501
    %v503 = vcombine.low %v495, %v502
    %506 = vst [vmem:[#allocation4] sm:$0xff] %v486
    %vm507 = vcmask 1041408
    %vm508 = vcmask 1043458
    %vm509 = vmor %vm508, %vm507
    %vm510 = vcmask 1045508
    %vm511 = vmor %vm510, %vm509
    %vm512 = vcmask 850950
    %vm513 = vmor %vm512, %vm511
    %514 = vst.msk [vmem:[#allocation4 + $0x8] sm:$0xff] %vm513, %v503
    // Predicated region
    $region14: #{shufflenet_forward.15} parent=1 // pred_check
      _
    $region15: #{shufflenet_forward.15} parent=1 // pred_check_branch
      %516 = sbr.rel (0) target = $region17
    $region16: #{shufflenet_forward.15} parent=1 // pred_region
      %s518 = ssub.s32 32, 32
      %519 = vsyncadd [#allocation3], %s518
      %s521 = sshll.u32 [#allocation2], 4
      %s522 = int_to_ptr.vmem [resolvable:$true] %s521
      %524 = dma.vmem_to_hbm [thread:$0]  %s522, 32, %s3, [#allocation3]
    $region17: #{shufflenet_forward.15} parent=1 // pred_fallthru
      _
    // Predicated region
    $region18: #{shufflenet_forward.15} parent=1 // pred_check
      _
    $region19: #{shufflenet_forward.15} parent=1 // pred_check_branch
      %526 = sbr.rel (0) target = $region21
    $region20: #{shufflenet_forward.15} parent=1 // pred_region
      %s528 = ssub.s32 256, 256
      %529 = vsyncadd [#allocation5], %s528
      %s531 = sshll.u32 [#allocation4], 4
      %s532 = int_to_ptr.vmem [resolvable:$true] %s531
      %534 = dma.vmem_to_hbm [thread:$0]  %s532, 256, %s4, [#allocation5]
    $region21: #{shufflenet_forward.15} parent=1 // pred_fallthru
      _
    // Predicated region
    $region22: #{shufflenet_forward.15} parent=1 // pred_check
      _
    $region23: #{shufflenet_forward.15} parent=1 // pred_check_branch
      %536 = sbr.rel (0) target = $region25
    $region24: #{shufflenet_forward.15} parent=1 // pred_region
      %537 = dma.done [#allocation3], 32
    $region25: #{shufflenet_forward.15} parent=1 // pred_fallthru
      _
    // Predicated region
    $region26: #{shufflenet_forward.15} parent=1 // pred_check
      _
    $region27: #{shufflenet_forward.15} parent=1 // pred_check_branch
      %539 = sbr.rel (0) target = $region29
    $region28: #{shufflenet_forward.15} parent=1 // pred_region
      %540 = dma.done [#allocation5], 256
    $region29: #{shufflenet_forward.15} parent=1 // pred_fallthru
      _
    %541 = vsyncpa [#allocation3], 1
    %542 = vsyncpa [#allocation5], 1

</llo_original>
